<compile_context>
chip_gen: v7x
topology: tpu7x:2x2x1
jax: 0.10.0
libtpu: 0.0.40
codegen_flags: <defaults>
</compile_context>

<pallas_src>
import functools

import jax
import jax.numpy as jnp
from jax.experimental import pallas as pl
from jax.experimental.pallas import tpu as pltpu

LANE = 128
ALIGN_M = 16            # sublane alignment safe for bf16 blocks
TILE_M = 1024           # max rows of output per grid step
TILE_K_MAX = 1024       # max K per grid step (multiple of 128)


def _round_up(x, m):
    return ((x + m - 1) // m) * m


def _vmem_limit_bytes():
    """~75% of physical VMEM: ≈96 MiB on v5e/v6e (128 MiB), ≈48 MiB on v7x."""
    try:
        cap = int(pltpu.get_tpu_info().vmem_capacity_bytes)
    except Exception:
        cap = 64 * 1024 * 1024
    return min(cap * 3 // 4, 100 * 1024 * 1024)


_VMEM_LIMIT = _vmem_limit_bytes()


def _m_tiling(M, tile_m_max=TILE_M):
    """(tile_m, Mp) with tile_m % 16 == 0, Mp % tile_m == 0 and — whenever the
    problem is big enough — at least 2 M tiles so v7x's 2 TCs both get work."""
    m_al = _round_up(max(M, 1), ALIGN_M)
    if m_al <= ALIGN_M:
        return ALIGN_M, ALIGN_M
    tile_m = min(tile_m_max, _round_up((m_al + 1) // 2, ALIGN_M))
    Mp = _round_up(m_al, tile_m)
    return tile_m, Mp


def _k_tiling(K, tile_k_max=TILE_K_MAX):
    """(tile_k, Kp) so that Kp % tile_k == 0 and tile_k % 128 == 0."""
    kp = _round_up(K, LANE)
    if kp <= tile_k_max:
        return kp, kp
    return tile_k_max, _round_up(kp, tile_k_max)


# ----------------------------------------------------------------------------
# Kernel 1: gridded fused  out = act(x @ w + bias)
#   grid = (M tiles [parallel], K tiles [arbitrary])
#   bf16 operands on the MXU, f32 accumulator scratch, f32 epilogue,
#   bf16 (or f32) output.
# ----------------------------------------------------------------------------
def _matmul_bias_act_kernel(x_ref, w_ref, b_ref, o_ref, acc_ref, *, relu):
    @pl.when(pl.program_id(1) == 0)
    def _init():
        acc_ref[...] = jnp.zeros_like(acc_ref)

    acc_ref[...] += jnp.dot(x_ref[...], w_ref[...],
                            preferred_element_type=jnp.float32)

    @pl.when(pl.program_id(1) == pl.num_programs(1) - 1)
    def _finalize():
        out = acc_ref[...] + b_ref[...]            # (tile_m, Np) + (1, Np), f32
        if relu:
            out = jnp.maximum(out, 0.0)
        o_ref[...] = out.astype(o_ref.dtype)


def pallas_matmul_bias_act(x_bf16, w_p, b_p, *, relu, out_dtype=jnp.bfloat16,
                           tile_m_max=TILE_M):
    """act(x @ w + b).  x_bf16: (M, K) bf16 unpadded; w_p: (Kp, Np) bf16
    pre-padded; b_p: (1, Np) f32 pre-padded.  Returns (M, Np) `out_dtype`;
    padded output columns are exactly act(0 + 0) = 0, callers slice them."""
    M, K = x_bf16.shape
    Kp, Np = w_p.shape
    tile_k, kp_check = _k_tiling(K)
    assert kp_check == Kp, (K, kp_check, Kp)
    tile_m, Mp = _m_tiling(M, tile_m_max)

    # Zero K-padding must be exact for the accumulation; M padding is sliced off.
    x_p = x_bf16 if (Mp, Kp) == (M, K) else jnp.pad(
        x_bf16, ((0, Mp - M), (0, Kp - K)))

    grid = (Mp // tile_m, Kp // tile_k)
    out = pl.pallas_call(
        functools.partial(_matmul_bias_act_kernel, relu=relu),
        out_shape=jax.ShapeDtypeStruct((Mp, Np), out_dtype),
        grid_spec=pltpu.PrefetchScalarGridSpec(
            num_scalar_prefetch=0,
            grid=grid,
            in_specs=[
                pl.BlockSpec((tile_m, tile_k), lambda i, k: (i, k)),
                pl.BlockSpec((tile_k, Np), lambda i, k: (k, 0)),
                pl.BlockSpec((1, Np), lambda i, k: (0, 0)),
            ],
            out_specs=pl.BlockSpec((tile_m, Np), lambda i, k: (i, 0)),
            scratch_shapes=[pltpu.VMEM((tile_m, Np), jnp.float32)],
        ),
        compiler_params=pltpu.CompilerParams(
            dimension_semantics=("parallel", "arbitrary"),
            vmem_limit_bytes=_VMEM_LIMIT,
        ),
    )(x_p, w_p, b_p)
    return out[:M]


# ----------------------------------------------------------------------------
# Kernel 2: fused MLP head  q = (relu(x @ w1 + b1)) @ w2 + b2
#   grid = (M tiles [parallel]); the 512-wide intermediate stays in VMEM.
# ----------------------------------------------------------------------------
def _fused_mlp_kernel(x_ref, w1_ref, b1_ref, w2_ref, b2_ref, o_ref):
    h = jnp.dot(x_ref[...], w1_ref[...], preferred_element_type=jnp.float32)
    h = jnp.maximum(h + b1_ref[...], 0.0)
    q = jnp.dot(h.astype(jnp.bfloat16), w2_ref[...],
                preferred_element_type=jnp.float32)
    o_ref[...] = (q + b2_ref[...]).astype(o_ref.dtype)


def pallas_fused_mlp(x_bf16, w1, b1, w2, b2, *, tile_m_max=TILE_M):
    """x_bf16: (B, K1) bf16 -> (B, Np2) f32 (padded action columns kept)."""
    M, K1 = x_bf16.shape
    assert w1.shape[0] == K1, (w1.shape, K1)
    H, Np2 = w1.shape[1], w2.shape[1]

    tile_m, Mp = _m_tiling(M, tile_m_max)
    x_p = x_bf16 if Mp == M else jnp.pad(x_bf16, ((0, Mp - M), (0, 0)))

    out = pl.pallas_call(
        _fused_mlp_kernel,
        out_shape=jax.ShapeDtypeStruct((Mp, Np2), jnp.float32),
        grid_spec=pltpu.PrefetchScalarGridSpec(
            num_scalar_prefetch=0,
            grid=(Mp // tile_m,),
            in_specs=[
                pl.BlockSpec((tile_m, K1), lambda i: (i, 0)),
                pl.BlockSpec((K1, H), lambda i: (0, 0)),
                pl.BlockSpec((1, H), lambda i: (0, 0)),
                pl.BlockSpec((H, Np2), lambda i: (0, 0)),
                pl.BlockSpec((1, Np2), lambda i: (0, 0)),
            ],
            out_specs=pl.BlockSpec((tile_m, Np2), lambda i: (i, 0)),
        ),
        compiler_params=pltpu.CompilerParams(
            dimension_semantics=("parallel",),
            vmem_limit_bytes=_VMEM_LIMIT,
        ),
    )(x_p, w1, b1, w2, b2)
    return out[:M]


# ----------------------------------------------------------------------------
# XLA glue: space-to-depth + im2col in NHWC (patch feature order (kh,kw,Cin)).
# Weights are permuted at prep time to match, so there are no activation
# transposes between layers.  k / stride / block are static Python ints.
# ----------------------------------------------------------------------------
def _space_to_depth(x, block):
    """(B,H,W,C) -> (B,H/b,W/b,b*b*C), folded channel order (bi, bj, c)."""
    B, H, W, C = x.shape
    Hb, Wb = H // block, W // block
    x = x.reshape(B, Hb, block, Wb, block, C)
    x = jnp.transpose(x, (0, 1, 3, 2, 4, 5))
    return x.reshape(B, Hb, Wb, block * block * C)


def _im2col_nhwc(x, k, s):
    B, H, W, C = x.shape
    Ho = (H - k) // s + 1
    Wo = (W - k) // s + 1
    cols = [x[:, i:i + s * Ho:s, j:j + s * Wo:s, :]
            for i in range(k) for j in range(k)]          # each (B,Ho,Wo,C)
    patches = jnp.stack(cols, axis=3).reshape(B * Ho * Wo, k * k * C)
    return patches, Ho, Wo


def conv2d_relu_nhwc(x, w_p, b_p, *, k, stride, cout):
    """x: (B,H,W,Cin) bf16 NHWC -> (B,Ho,Wo,cout) bf16 NHWC, fused bias+ReLU."""
    B = x.shape[0]
    patches, Ho, Wo = _im2col_nhwc(x, k, stride)
    out = pallas_matmul_bias_act(patches, w_p, b_p, relu=True,
                                 out_dtype=jnp.bfloat16)
    return out[:, :cout].reshape(B, Ho, Wo, cout)


# ----------------------------------------------------------------------------
# Parameters: PyTorch-layout init + ONE-TIME prep (permute / pad / bf16 cast).
# ----------------------------------------------------------------------------
def init_cnn_dqn_params(key, num_channels, num_actions):
    ks = jax.random.split(key, 10)

    def u(k, shape, fan_in):
        bound = 1.0 / jnp.sqrt(fan_in)
        return jax.random.uniform(k, shape, jnp.float32, -bound, bound)

    return {
        "conv1_w": u(ks[0], (32, num_channels, 8, 8), num_channels * 64),
        "conv1_b": u(ks[1], (32,), num_channels * 64),
        "conv2_w": u(ks[2], (64, 32, 4, 4), 32 * 16),
        "conv2_b": u(ks[3], (64,), 32 * 16),
        "conv3_w": u(ks[4], (64, 64, 3, 3), 64 * 9),
        "conv3_b": u(ks[5], (64,), 64 * 9),
        "fc1_w": u(ks[6], (512, 64 * 6 * 6), 64 * 36),   # PyTorch (out, in)
        "fc1_b": u(ks[7], (512,), 64 * 36),
        "fc2_w": u(ks[8], (num_actions, 512), 512),
        "fc2_b": u(ks[9], (num_actions,), 512),
    }


def _pad_kn_bf16(w2d, Kp, Np):
    K, N = w2d.shape
    return jnp.zeros((Kp, Np), jnp.bfloat16).at[:K, :N].set(
        w2d.astype(jnp.bfloat16))


def _pad_bias_f32(b, Np):
    return jnp.zeros((1, Np), jnp.float32).at[0, :b.shape[0]].set(
        b.astype(jnp.float32))


def prepare_params(params):
    """One-time weight prep: permute to NHWC / space-to-depth layouts, zero-pad
    to TPU tile multiples, cast MXU operands to bf16 (biases stay f32).
    Returns a pytree of ARRAYS ONLY (jit-friendly)."""
    cin = params["conv1_w"].shape[1]

    def prep_2d(w2d, b):
        K, Co = w2d.shape
        _, Kp = _k_tiling(K)
        Np = _round_up(Co, LANE)
        return _pad_kn_bf16(w2d, Kp, Np), _pad_bias_f32(b, Np)

    def conv_to_2d(w):                       # (Co,Ci,kh,kw) -> (kh*kw*Ci, Co)
        Co, Ci, kh, kw = w.shape
        return jnp.transpose(w, (2, 3, 1, 0)).reshape(kh * kw * Ci, Co)

    # conv1 weight for the space-to-depth(4) folded input: feature order
    # (kh', kw', bi, bj, cin) with original kh = 4*kh'+bi, kw = 4*kw'+bj.
    w1 = params["conv1_w"].reshape(32, cin, 2, 4, 2, 4)   # (Co,Ci,kh',bi,kw',bj)
    w1 = jnp.transpose(w1, (2, 4, 3, 5, 1, 0))            # (kh',kw',bi,bj,Ci,Co)
    w1 = w1.reshape(2 * 2 * 16 * cin, 32)

    c1w, c1b = prep_2d(w1, params["conv1_b"])
    c2w, c2b = prep_2d(conv_to_2d(params["conv2_w"]), params["conv2_b"])
    c3w, c3b = prep_2d(conv_to_2d(params["conv3_w"]), params["conv3_b"])

    # fc1: PyTorch flatten is (c, h, w); our NHWC flatten is (h, w, c).
    fc1 = params["fc1_w"].reshape(512, 64, 6, 6)          # (out, c, h, w)
    fc1 = jnp.transpose(fc1, (0, 2, 3, 1)).reshape(512, 6 * 6 * 64).T  # (2304,512)
    fc1_w = fc1.astype(jnp.bfloat16)
    fc1_b = params["fc1_b"].reshape(1, 512).astype(jnp.float32)

    A = params["fc2_w"].shape[0]
    Np2 = _round_up(A, LANE)
    fc2_w = jnp.zeros((512, Np2), jnp.bfloat16).at[:, :A].set(
        params["fc2_w"].T.astype(jnp.bfloat16))
    fc2_b = _pad_bias_f32(params["fc2_b"], Np2)

    return {
        "conv1_w": c1w, "conv1_b": c1b,
        "conv2_w": c2w, "conv2_b": c2b,
        "conv3_w": c3w, "conv3_b": c3b,
        "fc1_w": fc1_w, "fc1_b": fc1_b,
        "fc2_w": fc2_w, "fc2_b": fc2_b,
    }


# ----------------------------------------------------------------------------
# Forward pass (NCHW input, exactly like the PyTorch module).
# All architecture constants are static Python ints -> no tracer int errors.
# ----------------------------------------------------------------------------
def make_forward(num_actions):
    @jax.jit
    def forward(prep, x_nchw):
        """x: (B, num_channels, 76, 76) f32 -> (B, num_actions) f32."""
        # one NCHW -> NHWC transpose + bf16 cast at the input
        x = jnp.transpose(x_nchw, (0, 2, 3, 1)).astype(jnp.bfloat16)
        # space-to-depth(4): 8x8/s4 conv1 == 2x2/s1 conv on the folded input
        x = _space_to_depth(x, 4)                               # (B,19,19,16*C)
        h = conv2d_relu_nhwc(x, prep["conv1_w"], prep["conv1_b"],
                             k=2, stride=1, cout=32)            # (B,18,18,32)
        h = conv2d_relu_nhwc(h, prep["conv2_w"], prep["conv2_b"],
                             k=4, stride=2, cout=64)            # (B, 8, 8,64)
        h = conv2d_relu_nhwc(h, prep["conv3_w"], prep["conv3_b"],
                             k=3, stride=1, cout=64)            # (B, 6, 6,64)
        flat = h.reshape(h.shape[0], -1)                        # (B,2304) (h,w,c)
        q = pallas_fused_mlp(flat, prep["fc1_w"], prep["fc1_b"],
                             prep["fc2_w"], prep["fc2_b"])      # (B, 128) f32
        return q[:, :num_actions]
    return forward


# ----------------------------------------------------------------------------
# Pure-JAX f32 reference (mirrors the PyTorch module) for a tolerance check.
# ----------------------------------------------------------------------------
def reference_forward(params, x):
    dn = ("NCHW", "OIHW", "NCHW")
    h = jax.lax.conv_general_dilated(x, params["conv1_w"], (4, 4), "VALID",
                                     dimension_numbers=dn)
    h = jnp.maximum(h + params["conv1_b"][None, :, None, None], 0.0)
    h = jax.lax.conv_general_dilated(h, params["conv2_w"], (2, 2), "VALID",
                                     dimension_numbers=dn)
    h = jnp.maximum(h + params["conv2_b"][None, :, None, None], 0.0)
    h = jax.lax.conv_general_dilated(h, params["conv3_w"], (1, 1), "VALID",
                                     dimension_numbers=dn)
    h = jnp.maximum(h + params["conv3_b"][None, :, None, None], 0.0)
    flat = h.reshape(h.shape[0], -1)                       # (c, h, w) order
    h = jnp.maximum(flat @ params["fc1_w"].T + params["fc1_b"], 0.0)
    return h @ params["fc2_w"].T + params["fc2_b"]


if __name__ == "__main__":
    key = jax.random.PRNGKey(0)
    k_param, k_x = jax.random.split(key)

    batch = 2
    num_channels = 4
    num_actions = 6
    # Spatial size 76 is what the module's Linear(64*6*6, 512) implies.
    x = jax.random.normal(k_x, (batch, num_channels, 76, 76), jnp.float32)

    params = init_cnn_dqn_params(k_param, num_channels, num_actions)
    prep = prepare_params(params)               # one-time weight prep
    forward = make_forward(num_actions)

    q = forward(prep, x)
    q = jax.block_until_ready(q)
    assert q.shape == (batch, num_actions), q.shape
    assert bool(jnp.all(jnp.isfinite(q)))

    # correctness vs. f32 reference (bf16 MXU operands -> loose tolerance)
    q_ref = reference_forward(params, x)
    err = float(jnp.max(jnp.abs(q - q_ref)))
    tol = 3e-2 + 3e-2 * float(jnp.max(jnp.abs(q_ref)))
    assert err < tol, (err, tol)

    # equivalent of CnnDQN.act with epsilon = 0.0 (greedy action of first row)
    action = int(jnp.argmax(q, axis=1)[0])
    assert 0 <= action < num_actions

    print("KERNEL_OK")
</pallas_src>

<mosaic_0001>
module attributes {stable_mosaic.version = 11 : i64} {
  func.func @_matmul_bias_act_kernel(%arg0: i32, %arg1: i32, %arg2: memref<336x256xbf16, #tpu.memory_space<vmem>>, %arg3: memref<256x128xbf16, #tpu.memory_space<vmem>>, %arg4: memref<1x128xf32, #tpu.memory_space<vmem>>, %arg5: memref<336x128xbf16, #tpu.memory_space<vmem>>, %arg6: memref<336x128xf32, #tpu.memory_space<vmem>>) attributes {dimension_semantics = [#tpu.dimension_semantics<parallel>, #tpu.dimension_semantics<arbitrary>], iteration_bounds = array<i64: 2, 1>, scalar_prefetch = 0 : i64, scratch_operands = 1 : i64, tpu.core_type = #tpu.core_type<tc>, window_params = [{transform_indices = @transform_0, window_bounds = array<i64: 336, 256>}, {transform_indices = @transform_1, window_bounds = array<i64: 256, 128>}, {pipeline_mode = #tpu.pipeline_mode<synchronous>, transform_indices = @transform_2, window_bounds = array<i64: 1, 128>}, {transform_indices = @transform_3, window_bounds = array<i64: 336, 128>}]} {
    %c0_i32 = arith.constant 0 : i32
    %0 = arith.cmpi eq, %arg1, %c0_i32 : i32
    %1 = arith.extui %0 : i1 to i32
    %c0_i32_0 = arith.constant 0 : i32
    %2 = arith.cmpi ne, %1, %c0_i32_0 : i32
    scf.if %2 {
      %cst_10 = arith.constant 0.000000e+00 : f32
      %12 = vector.broadcast %cst_10 : f32 to vector<336x128xf32>
      %c0_11 = arith.constant 0 : index
      %c0_12 = arith.constant 0 : index
      %13 = vector.load %arg6[%c0_11, %c0_12] : memref<336x128xf32, #tpu.memory_space<vmem>>, vector<336x128xf32>
      tpu.vector_store %arg6[%c0_11, %c0_12], %12 {strides = array<i32>} : memref<336x128xf32, #tpu.memory_space<vmem>>, vector<336x128xf32>,
    } else {
    }
    %c0 = arith.constant 0 : index
    %c0_1 = arith.constant 0 : index
    %3 = vector.load %arg6[%c0, %c0_1] : memref<336x128xf32, #tpu.memory_space<vmem>>, vector<336x128xf32>
    %c0_2 = arith.constant 0 : index
    %c0_3 = arith.constant 0 : index
    %4 = vector.load %arg2[%c0_2, %c0_3] : memref<336x256xbf16, #tpu.memory_space<vmem>>, vector<336x256xbf16>
    %c0_4 = arith.constant 0 : index
    %c0_5 = arith.constant 0 : index
    %5 = vector.load %arg3[%c0_4, %c0_5] : memref<256x128xbf16, #tpu.memory_space<vmem>>, vector<256x128xbf16>
    %cst = arith.constant dense<0.000000e+00> : vector<336x128xf32>
    %6 = tpu.matmul %4, %5, %cst {dimension_numbers = #tpu.dot_dimension_numbers<[1], [0], [0], [1], [0, 0, 1, 1], [], []>} : vector<336x256xbf16>, vector<256x128xbf16>, vector<336x128xf32> -> vector<336x128xf32>
    %7 = arith.addf %3, %6 : vector<336x128xf32>
    %c0_6 = arith.constant 0 : index
    %c0_7 = arith.constant 0 : index
    %8 = vector.load %arg6[%c0_6, %c0_7] : memref<336x128xf32, #tpu.memory_space<vmem>>, vector<336x128xf32>
    tpu.vector_store %arg6[%c0_6, %c0_7], %7 {strides = array<i32>} : memref<336x128xf32, #tpu.memory_space<vmem>>, vector<336x128xf32>,
    %c0_i32_8 = arith.constant 0 : i32
    %9 = arith.cmpi eq, %arg1, %c0_i32_8 : i32
    %10 = arith.extui %9 : i1 to i32
    %c0_i32_9 = arith.constant 0 : i32
    %11 = arith.cmpi ne, %10, %c0_i32_9 : i32
    scf.if %11 {
      %c0_10 = arith.constant 0 : index
      %c0_11 = arith.constant 0 : index
      %12 = vector.load %arg6[%c0_10, %c0_11] : memref<336x128xf32, #tpu.memory_space<vmem>>, vector<336x128xf32>
      %c0_12 = arith.constant 0 : index
      %c0_13 = arith.constant 0 : index
      %13 = vector.load %arg4[%c0_12, %c0_13] : memref<1x128xf32, #tpu.memory_space<vmem>>, vector<1x128xf32>
      %14 = vector.broadcast %13 : vector<1x128xf32> to vector<336x128xf32>
      %15 = arith.addf %12, %14 : vector<336x128xf32>
      %cst_14 = arith.constant 0.000000e+00 : f32
      %16 = vector.broadcast %cst_14 : f32 to vector<336x128xf32>
      %17 = arith.maximumf %15, %16 : vector<336x128xf32>
      %18 = arith.truncf %17 : vector<336x128xf32> to vector<336x128xbf16>
      %c0_15 = arith.constant 0 : index
      %c0_16 = arith.constant 0 : index
      %19 = vector.load %arg5[%c0_15, %c0_16] : memref<336x128xbf16, #tpu.memory_space<vmem>>, vector<336x128xbf16>
      tpu.vector_store %arg5[%c0_15, %c0_16], %18 {strides = array<i32>} : memref<336x128xbf16, #tpu.memory_space<vmem>>, vector<336x128xbf16>,
    } else {
    }
    return
  }
  func.func @transform_0(%arg0: i32, %arg1: i32) -> (i32, i32) {
    %c0_i32 = arith.constant 0 : i32
    return %arg0, %arg1 : i32, i32
  }
  func.func @transform_1(%arg0: i32, %arg1: i32) -> (i32, i32) {
    %c0_i32 = arith.constant 0 : i32
    %c0_i32_0 = arith.constant 0 : i32
    return %arg1, %c0_i32 : i32, i32
  }
  func.func @transform_2(%arg0: i32, %arg1: i32) -> (i32, i32) {
    %c0_i32 = arith.constant 0 : i32
    %c0_i32_0 = arith.constant 0 : i32
    %c0_i32_1 = arith.constant 0 : i32
    return %c0_i32, %c0_i32_0 : i32, i32
  }
  func.func @transform_3(%arg0: i32, %arg1: i32) -> (i32, i32) {
    %c0_i32 = arith.constant 0 : i32
    %c0_i32_0 = arith.constant 0 : i32
    return %arg0, %c0_i32 : i32, i32
  }
}

module attributes {stable_mosaic.version = 11 : i64} {
  func.func @_matmul_bias_act_kernel(%arg0: i32, %arg1: i32, %arg2: memref<64x512xbf16, #tpu.memory_space<vmem>>, %arg3: memref<512x128xbf16, #tpu.memory_space<vmem>>, %arg4: memref<1x128xf32, #tpu.memory_space<vmem>>, %arg5: memref<64x128xbf16, #tpu.memory_space<vmem>>, %arg6: memref<64x128xf32, #tpu.memory_space<vmem>>) attributes {dimension_semantics = [#tpu.dimension_semantics<parallel>, #tpu.dimension_semantics<arbitrary>], iteration_bounds = array<i64: 2, 1>, scalar_prefetch = 0 : i64, scratch_operands = 1 : i64, tpu.core_type = #tpu.core_type<tc>, window_params = [{transform_indices = @transform_0, window_bounds = array<i64: 64, 512>}, {transform_indices = @transform_1, window_bounds = array<i64: 512, 128>}, {pipeline_mode = #tpu.pipeline_mode<synchronous>, transform_indices = @transform_2, window_bounds = array<i64: 1, 128>}, {transform_indices = @transform_3, window_bounds = array<i64: 64, 128>}]} {
    %c0_i32 = arith.constant 0 : i32
    %0 = arith.cmpi eq, %arg1, %c0_i32 : i32
    %1 = arith.extui %0 : i1 to i32
    %c0_i32_0 = arith.constant 0 : i32
    %2 = arith.cmpi ne, %1, %c0_i32_0 : i32
    scf.if %2 {
      %cst_10 = arith.constant 0.000000e+00 : f32
      %12 = vector.broadcast %cst_10 : f32 to vector<64x128xf32>
      %c0_11 = arith.constant 0 : index
      %c0_12 = arith.constant 0 : index
      %13 = vector.load %arg6[%c0_11, %c0_12] : memref<64x128xf32, #tpu.memory_space<vmem>>, vector<64x128xf32>
      tpu.vector_store %arg6[%c0_11, %c0_12], %12 {strides = array<i32>} : memref<64x128xf32, #tpu.memory_space<vmem>>, vector<64x128xf32>,
    } else {
    }
    %c0 = arith.constant 0 : index
    %c0_1 = arith.constant 0 : index
    %3 = vector.load %arg6[%c0, %c0_1] : memref<64x128xf32, #tpu.memory_space<vmem>>, vector<64x128xf32>
    %c0_2 = arith.constant 0 : index
    %c0_3 = arith.constant 0 : index
    %4 = vector.load %arg2[%c0_2, %c0_3] : memref<64x512xbf16, #tpu.memory_space<vmem>>, vector<64x512xbf16>
    %c0_4 = arith.constant 0 : index
    %c0_5 = arith.constant 0 : index
    %5 = vector.load %arg3[%c0_4, %c0_5] : memref<512x128xbf16, #tpu.memory_space<vmem>>, vector<512x128xbf16>
    %cst = arith.constant dense<0.000000e+00> : vector<64x128xf32>
    %6 = tpu.matmul %4, %5, %cst {dimension_numbers = #tpu.dot_dimension_numbers<[1], [0], [0], [1], [0, 0, 1, 1], [], []>} : vector<64x512xbf16>, vector<512x128xbf16>, vector<64x128xf32> -> vector<64x128xf32>
    %7 = arith.addf %3, %6 : vector<64x128xf32>
    %c0_6 = arith.constant 0 : index
    %c0_7 = arith.constant 0 : index
    %8 = vector.load %arg6[%c0_6, %c0_7] : memref<64x128xf32, #tpu.memory_space<vmem>>, vector<64x128xf32>
    tpu.vector_store %arg6[%c0_6, %c0_7], %7 {strides = array<i32>} : memref<64x128xf32, #tpu.memory_space<vmem>>, vector<64x128xf32>,
    %c0_i32_8 = arith.constant 0 : i32
    %9 = arith.cmpi eq, %arg1, %c0_i32_8 : i32
    %10 = arith.extui %9 : i1 to i32
    %c0_i32_9 = arith.constant 0 : i32
    %11 = arith.cmpi ne, %10, %c0_i32_9 : i32
    scf.if %11 {
      %c0_10 = arith.constant 0 : index
      %c0_11 = arith.constant 0 : index
      %12 = vector.load %arg6[%c0_10, %c0_11] : memref<64x128xf32, #tpu.memory_space<vmem>>, vector<64x128xf32>
      %c0_12 = arith.constant 0 : index
      %c0_13 = arith.constant 0 : index
      %13 = vector.load %arg4[%c0_12, %c0_13] : memref<1x128xf32, #tpu.memory_space<vmem>>, vector<1x128xf32>
      %14 = vector.broadcast %13 : vector<1x128xf32> to vector<64x128xf32>
      %15 = arith.addf %12, %14 : vector<64x128xf32>
      %cst_14 = arith.constant 0.000000e+00 : f32
      %16 = vector.broadcast %cst_14 : f32 to vector<64x128xf32>
      %17 = arith.maximumf %15, %16 : vector<64x128xf32>
      %18 = arith.truncf %17 : vector<64x128xf32> to vector<64x128xbf16>
      %c0_15 = arith.constant 0 : index
      %c0_16 = arith.constant 0 : index
      %19 = vector.load %arg5[%c0_15, %c0_16] : memref<64x128xbf16, #tpu.memory_space<vmem>>, vector<64x128xbf16>
      tpu.vector_store %arg5[%c0_15, %c0_16], %18 {strides = array<i32>} : memref<64x128xbf16, #tpu.memory_space<vmem>>, vector<64x128xbf16>,
    } else {
    }
    return
  }
  func.func @transform_0(%arg0: i32, %arg1: i32) -> (i32, i32) {
    %c0_i32 = arith.constant 0 : i32
    return %arg0, %arg1 : i32, i32
  }
  func.func @transform_1(%arg0: i32, %arg1: i32) -> (i32, i32) {
    %c0_i32 = arith.constant 0 : i32
    %c0_i32_0 = arith.constant 0 : i32
    return %arg1, %c0_i32 : i32, i32
  }
  func.func @transform_2(%arg0: i32, %arg1: i32) -> (i32, i32) {
    %c0_i32 = arith.constant 0 : i32
    %c0_i32_0 = arith.constant 0 : i32
    %c0_i32_1 = arith.constant 0 : i32
    return %c0_i32, %c0_i32_0 : i32, i32
  }
  func.func @transform_3(%arg0: i32, %arg1: i32) -> (i32, i32) {
    %c0_i32 = arith.constant 0 : i32
    %c0_i32_0 = arith.constant 0 : i32
    return %arg0, %c0_i32 : i32, i32
  }
}

module attributes {stable_mosaic.version = 11 : i64} {
  func.func @_matmul_bias_act_kernel(%arg0: i32, %arg1: i32, %arg2: memref<48x640xbf16, #tpu.memory_space<vmem>>, %arg3: memref<640x128xbf16, #tpu.memory_space<vmem>>, %arg4: memref<1x128xf32, #tpu.memory_space<vmem>>, %arg5: memref<48x128xbf16, #tpu.memory_space<vmem>>, %arg6: memref<48x128xf32, #tpu.memory_space<vmem>>) attributes {dimension_semantics = [#tpu.dimension_semantics<parallel>, #tpu.dimension_semantics<arbitrary>], iteration_bounds = array<i64: 2, 1>, scalar_prefetch = 0 : i64, scratch_operands = 1 : i64, tpu.core_type = #tpu.core_type<tc>, window_params = [{transform_indices = @transform_0, window_bounds = array<i64: 48, 640>}, {transform_indices = @transform_1, window_bounds = array<i64: 640, 128>}, {pipeline_mode = #tpu.pipeline_mode<synchronous>, transform_indices = @transform_2, window_bounds = array<i64: 1, 128>}, {transform_indices = @transform_3, window_bounds = array<i64: 48, 128>}]} {
    %c0_i32 = arith.constant 0 : i32
    %0 = arith.cmpi eq, %arg1, %c0_i32 : i32
    %1 = arith.extui %0 : i1 to i32
    %c0_i32_0 = arith.constant 0 : i32
    %2 = arith.cmpi ne, %1, %c0_i32_0 : i32
    scf.if %2 {
      %cst_10 = arith.constant 0.000000e+00 : f32
      %12 = vector.broadcast %cst_10 : f32 to vector<48x128xf32>
      %c0_11 = arith.constant 0 : index
      %c0_12 = arith.constant 0 : index
      %13 = vector.load %arg6[%c0_11, %c0_12] : memref<48x128xf32, #tpu.memory_space<vmem>>, vector<48x128xf32>
      tpu.vector_store %arg6[%c0_11, %c0_12], %12 {strides = array<i32>} : memref<48x128xf32, #tpu.memory_space<vmem>>, vector<48x128xf32>,
    } else {
    }
    %c0 = arith.constant 0 : index
    %c0_1 = arith.constant 0 : index
    %3 = vector.load %arg6[%c0, %c0_1] : memref<48x128xf32, #tpu.memory_space<vmem>>, vector<48x128xf32>
    %c0_2 = arith.constant 0 : index
    %c0_3 = arith.constant 0 : index
    %4 = vector.load %arg2[%c0_2, %c0_3] : memref<48x640xbf16, #tpu.memory_space<vmem>>, vector<48x640xbf16>
    %c0_4 = arith.constant 0 : index
    %c0_5 = arith.constant 0 : index
    %5 = vector.load %arg3[%c0_4, %c0_5] : memref<640x128xbf16, #tpu.memory_space<vmem>>, vector<640x128xbf16>
    %cst = arith.constant dense<0.000000e+00> : vector<48x128xf32>
    %6 = tpu.matmul %4, %5, %cst {dimension_numbers = #tpu.dot_dimension_numbers<[1], [0], [0], [1], [0, 0, 1, 1], [], []>} : vector<48x640xbf16>, vector<640x128xbf16>, vector<48x128xf32> -> vector<48x128xf32>
    %7 = arith.addf %3, %6 : vector<48x128xf32>
    %c0_6 = arith.constant 0 : index
    %c0_7 = arith.constant 0 : index
    %8 = vector.load %arg6[%c0_6, %c0_7] : memref<48x128xf32, #tpu.memory_space<vmem>>, vector<48x128xf32>
    tpu.vector_store %arg6[%c0_6, %c0_7], %7 {strides = array<i32>} : memref<48x128xf32, #tpu.memory_space<vmem>>, vector<48x128xf32>,
    %c0_i32_8 = arith.constant 0 : i32
    %9 = arith.cmpi eq, %arg1, %c0_i32_8 : i32
    %10 = arith.extui %9 : i1 to i32
    %c0_i32_9 = arith.constant 0 : i32
    %11 = arith.cmpi ne, %10, %c0_i32_9 : i32
    scf.if %11 {
      %c0_10 = arith.constant 0 : index
      %c0_11 = arith.constant 0 : index
      %12 = vector.load %arg6[%c0_10, %c0_11] : memref<48x128xf32, #tpu.memory_space<vmem>>, vector<48x128xf32>
      %c0_12 = arith.constant 0 : index
      %c0_13 = arith.constant 0 : index
      %13 = vector.load %arg4[%c0_12, %c0_13] : memref<1x128xf32, #tpu.memory_space<vmem>>, vector<1x128xf32>
      %14 = vector.broadcast %13 : vector<1x128xf32> to vector<48x128xf32>
      %15 = arith.addf %12, %14 : vector<48x128xf32>
      %cst_14 = arith.constant 0.000000e+00 : f32
      %16 = vector.broadcast %cst_14 : f32 to vector<48x128xf32>
      %17 = arith.maximumf %15, %16 : vector<48x128xf32>
      %18 = arith.truncf %17 : vector<48x128xf32> to vector<48x128xbf16>
      %c0_15 = arith.constant 0 : index
      %c0_16 = arith.constant 0 : index
      %19 = vector.load %arg5[%c0_15, %c0_16] : memref<48x128xbf16, #tpu.memory_space<vmem>>, vector<48x128xbf16>
      tpu.vector_store %arg5[%c0_15, %c0_16], %18 {strides = array<i32>} : memref<48x128xbf16, #tpu.memory_space<vmem>>, vector<48x128xbf16>,
    } else {
    }
    return
  }
  func.func @transform_0(%arg0: i32, %arg1: i32) -> (i32, i32) {
    %c0_i32 = arith.constant 0 : i32
    return %arg0, %arg1 : i32, i32
  }
  func.func @transform_1(%arg0: i32, %arg1: i32) -> (i32, i32) {
    %c0_i32 = arith.constant 0 : i32
    %c0_i32_0 = arith.constant 0 : i32
    return %arg1, %c0_i32 : i32, i32
  }
  func.func @transform_2(%arg0: i32, %arg1: i32) -> (i32, i32) {
    %c0_i32 = arith.constant 0 : i32
    %c0_i32_0 = arith.constant 0 : i32
    %c0_i32_1 = arith.constant 0 : i32
    return %c0_i32, %c0_i32_0 : i32, i32
  }
  func.func @transform_3(%arg0: i32, %arg1: i32) -> (i32, i32) {
    %c0_i32 = arith.constant 0 : i32
    %c0_i32_0 = arith.constant 0 : i32
    return %arg0, %c0_i32 : i32, i32
  }
}

module attributes {stable_mosaic.version = 11 : i64} {
  func.func @_fused_mlp_kernel(%arg0: i32, %arg1: memref<16x2304xbf16, #tpu.memory_space<vmem>>, %arg2: memref<2304x512xbf16, #tpu.memory_space<vmem>>, %arg3: memref<1x512xf32, #tpu.memory_space<vmem>>, %arg4: memref<512x128xbf16, #tpu.memory_space<vmem>>, %arg5: memref<1x128xf32, #tpu.memory_space<vmem>>, %arg6: memref<16x128xf32, #tpu.memory_space<vmem>>) attributes {dimension_semantics = [#tpu.dimension_semantics<parallel>], iteration_bounds = array<i64: 1>, scalar_prefetch = 0 : i64, scratch_operands = 0 : i64, tpu.core_type = #tpu.core_type<tc>, window_params = [{transform_indices = @transform_0, window_bounds = array<i64: 16, 2304>}, {pipeline_mode = #tpu.pipeline_mode<synchronous>, transform_indices = @transform_1, window_bounds = array<i64: 2304, 512>}, {pipeline_mode = #tpu.pipeline_mode<synchronous>, transform_indices = @transform_2, window_bounds = array<i64: 1, 512>}, {pipeline_mode = #tpu.pipeline_mode<synchronous>, transform_indices = @transform_3, window_bounds = array<i64: 512, 128>}, {pipeline_mode = #tpu.pipeline_mode<synchronous>, transform_indices = @transform_4, window_bounds = array<i64: 1, 128>}, {transform_indices = @transform_5, window_bounds = array<i64: 16, 128>}]} {
    %c0 = arith.constant 0 : index
    %c0_0 = arith.constant 0 : index
    %0 = vector.load %arg1[%c0, %c0_0] : memref<16x2304xbf16, #tpu.memory_space<vmem>>, vector<16x2304xbf16>
    %c0_1 = arith.constant 0 : index
    %c0_2 = arith.constant 0 : index
    %1 = vector.load %arg2[%c0_1, %c0_2] : memref<2304x512xbf16, #tpu.memory_space<vmem>>, vector<2304x512xbf16>
    %cst = arith.constant dense<0.000000e+00> : vector<16x512xf32>
    %2 = tpu.matmul %0, %1, %cst {dimension_numbers = #tpu.dot_dimension_numbers<[1], [0], [0], [1], [0, 0, 1, 1], [], []>} : vector<16x2304xbf16>, vector<2304x512xbf16>, vector<16x512xf32> -> vector<16x512xf32>
    %c0_3 = arith.constant 0 : index
    %c0_4 = arith.constant 0 : index
    %3 = vector.load %arg3[%c0_3, %c0_4] : memref<1x512xf32, #tpu.memory_space<vmem>>, vector<1x512xf32>
    %4 = vector.broadcast %3 : vector<1x512xf32> to vector<16x512xf32>
    %5 = arith.addf %2, %4 : vector<16x512xf32>
    %cst_5 = arith.constant 0.000000e+00 : f32
    %6 = vector.broadcast %cst_5 : f32 to vector<16x512xf32>
    %7 = arith.maximumf %5, %6 : vector<16x512xf32>
    %8 = arith.truncf %7 : vector<16x512xf32> to vector<16x512xbf16>
    %c0_6 = arith.constant 0 : index
    %c0_7 = arith.constant 0 : index
    %9 = vector.load %arg4[%c0_6, %c0_7] : memref<512x128xbf16, #tpu.memory_space<vmem>>, vector<512x128xbf16>
    %cst_8 = arith.constant dense<0.000000e+00> : vector<16x128xf32>
    %10 = tpu.matmul %8, %9, %cst_8 {dimension_numbers = #tpu.dot_dimension_numbers<[1], [0], [0], [1], [0, 0, 1, 1], [], []>} : vector<16x512xbf16>, vector<512x128xbf16>, vector<16x128xf32> -> vector<16x128xf32>
    %c0_9 = arith.constant 0 : index
    %c0_10 = arith.constant 0 : index
    %11 = vector.load %arg5[%c0_9, %c0_10] : memref<1x128xf32, #tpu.memory_space<vmem>>, vector<1x128xf32>
    %12 = vector.broadcast %11 : vector<1x128xf32> to vector<16x128xf32>
    %13 = arith.addf %10, %12 : vector<16x128xf32>
    %c0_11 = arith.constant 0 : index
    %c0_12 = arith.constant 0 : index
    %14 = vector.load %arg6[%c0_11, %c0_12] : memref<16x128xf32, #tpu.memory_space<vmem>>, vector<16x128xf32>
    tpu.vector_store %arg6[%c0_11, %c0_12], %13 {strides = array<i32>} : memref<16x128xf32, #tpu.memory_space<vmem>>, vector<16x128xf32>,
    return
  }
  func.func @transform_0(%arg0: i32) -> (i32, i32) {
    %c0_i32 = arith.constant 0 : i32
    %c0_i32_0 = arith.constant 0 : i32
    return %arg0, %c0_i32 : i32, i32
  }
  func.func @transform_1(%arg0: i32) -> (i32, i32) {
    %c0_i32 = arith.constant 0 : i32
    %c0_i32_0 = arith.constant 0 : i32
    %c0_i32_1 = arith.constant 0 : i32
    return %c0_i32, %c0_i32_0 : i32, i32
  }
  func.func @transform_2(%arg0: i32) -> (i32, i32) {
    %c0_i32 = arith.constant 0 : i32
    %c0_i32_0 = arith.constant 0 : i32
    %c0_i32_1 = arith.constant 0 : i32
    return %c0_i32, %c0_i32_0 : i32, i32
  }
  func.func @transform_3(%arg0: i32) -> (i32, i32) {
    %c0_i32 = arith.constant 0 : i32
    %c0_i32_0 = arith.constant 0 : i32
    %c0_i32_1 = arith.constant 0 : i32
    return %c0_i32, %c0_i32_0 : i32, i32
  }
  func.func @transform_4(%arg0: i32) -> (i32, i32) {
    %c0_i32 = arith.constant 0 : i32
    %c0_i32_0 = arith.constant 0 : i32
    %c0_i32_1 = arith.constant 0 : i32
    return %c0_i32, %c0_i32_0 : i32, i32
  }
  func.func @transform_5(%arg0: i32) -> (i32, i32) {
    %c0_i32 = arith.constant 0 : i32
    %c0_i32_0 = arith.constant 0 : i32
    return %arg0, %c0_i32 : i32, i32
  }
}

</mosaic_0001>

<llo_original>
// kernel: forward.4
$region0: #{forward.4}
  #allocation0 [shape = 'u32[]', space=smem, size = 0x4, offset = 0x4, fixed_abs, tag = 'smem constant byte address 0x4 - core index']
  #allocation1 [shape = 'u32[144,128]{1,0:T(1,128)}', space=vmem, size = 0x12000, scoped, tag = 'internal scratch']
  #allocation2 [shape = 'f32[336,128]{1,0:T(8,128)}', space=vmem, size = 0x2a000, scoped, tag = 'scratch operand']
  %s0 = inlined_call_operand.vmem [shape: bf16[672,256], index: 0, kind: input, shape index: {}]
  %s1 = inlined_call_operand.vmem [shape: bf16[256,128], index: 1, kind: input, shape index: {}]
  %s2 = inlined_call_operand.vmem [shape: f32[1,128], index: 2, kind: input, shape index: {}]
  %s3 = inlined_call_operand.vmem [shape: bf16[672,128], index: 3, kind: output, shape index: {}]
  %s4 = sld [smem:[#allocation0]]
  $region53: #{forward.4} parent=0
    _
  %s6 = ssub.s32 1, %s4
  %s7 = scalar_select 0, %s6, %s4
  loop: start=0, step=1, limit=4
  $region2: #{forward.4} parent=0 // loop_pre_header
    _
  $region3: #{forward.4} parent=0 // loop_header
    %s9 = sphi 0, %s13
    %p10 = scmp.ge.s32.totalorder %s9, 4
    %s16 = sphi 0, %s28
    %s17 = sphi 0, %s24
    %s18 = sphi 0, %s16
    %s19 = sphi 0, %s17
    %s20 = sphi 0, %s18
    %s21 = sphi 0, %s19
    %s33 = sphi 0, %s35
    %s36 = sphi 0, %s33
    %s37 = sphi 0, %s36
    %s53 = sphi 0, %s37
    %s59 = sphi 0, %s61
    %s62 = sphi 0, %s59
    %s63 = sphi 0, %s62
    %s79 = sphi 0, %s63
    %s83 = sphi 0, %s83
    %s85 = sphi 0, %s83
    %s86 = sphi 0, %s85
    %s100 = sphi 0, %s86
    %s106 = sphi 0, %s108
    %s109 = sphi 0, %s106
    %s110 = sphi 0, %s109
    %s126 = sphi 0, %s110
  $region4: #{forward.4} parent=0 // loop_header_branch
    %12 = sbr.rel (%p10) target = $region8
  $region5: #{forward.4} parent=0 // loop_body
    %s14 = ssub.s32 %s9, 1
    %s15 = ssub.s32 %s9, 2
    %s22 = sadd.s32 1, %s17
    %p23 = scmp.ge.s32.totalorder %s22, 1
    %s24 = scalar_select %p23, 0, %s22
    %s25 = sadd.s32 1, %s16
    %s26 = scalar_select %p23, %s25, %s16
    %p27 = scmp.ge.s32.totalorder %s26, 2
    %s28 = scalar_select %p27, 0, %s26
    %s29 = ssub.s32 %s16, %s28
    %s30 = ssub.s32 %s17, %s24
    %s31 = sor.u32 %s29, %s30
    %p32 = scmp.eq.s32.totalorder %s31, 0
    %s34 = sadd.s32 %s33, 1
    %s35 = scalar_select %p32, %s33, %s34
    %p38 = pneg %p32
    %p39 = scmp.eq.s32.totalorder %s9, 1
    %p40 = por %p38, %p39
    %p41 = scmp.ne.s32.totalorder %s33, %s36
    %p42 = scmp.eq.s32.totalorder %s9, 0
    %p43 = por %p41, %p42
    %p44 = scmp.ne.s32.totalorder %s33, %s36
    %p45 = scmp.eq.s32.totalorder %s14, 1
    %p46 = por %p44, %p45
    %p47 = scmp.ne.s32.totalorder %s36, %s37
    %p48 = scmp.eq.s32.totalorder %s14, 0
    %p49 = por %p47, %p48
    %p50 = scmp.ne.s32.totalorder %s36, %s37
    %p51 = scmp.eq.s32.totalorder %s15, 1
    %p52 = por %p50, %p51
    %p54 = scmp.ne.s32.totalorder %s37, %s53
    %p55 = scmp.eq.s32.totalorder %s15, 0
    %p56 = por %p54, %p55
    %s57 = ssub.s32 %s17, %s24
    %p58 = scmp.eq.s32.totalorder %s57, 0
    %s60 = sadd.s32 %s59, 1
    %s61 = scalar_select %p58, %s59, %s60
    %p64 = pneg %p58
    %p65 = scmp.eq.s32.totalorder %s9, 1
    %p66 = por %p64, %p65
    %p67 = scmp.ne.s32.totalorder %s59, %s62
    %p68 = scmp.eq.s32.totalorder %s9, 0
    %p69 = por %p67, %p68
    %p70 = scmp.ne.s32.totalorder %s59, %s62
    %p71 = scmp.eq.s32.totalorder %s14, 1
    %p72 = por %p70, %p71
    %p73 = scmp.ne.s32.totalorder %s62, %s63
    %p74 = scmp.eq.s32.totalorder %s14, 0
    %p75 = por %p73, %p74
    %p76 = scmp.ne.s32.totalorder %s62, %s63
    %p77 = scmp.eq.s32.totalorder %s15, 1
    %p78 = por %p76, %p77
    %p80 = scmp.ne.s32.totalorder %s63, %s79
    %p81 = scmp.eq.s32.totalorder %s15, 0
    %p82 = por %p80, %p81
    %s84 = sadd.s32 %s83, 1
    %p87 = scmp.eq.s32.totalorder %s9, 1
    %p88 = scmp.ne.s32.totalorder %s83, %s85
    %p89 = scmp.eq.s32.totalorder %s9, 0
    %p90 = por %p88, %p89
    %p91 = scmp.ne.s32.totalorder %s83, %s85
    %p92 = scmp.eq.s32.totalorder %s14, 1
    %p93 = por %p91, %p92
    %p94 = scmp.ne.s32.totalorder %s85, %s86
    %p95 = scmp.eq.s32.totalorder %s14, 0
    %p96 = por %p94, %p95
    %p97 = scmp.ne.s32.totalorder %s85, %s86
    %p98 = scmp.eq.s32.totalorder %s15, 1
    %p99 = por %p97, %p98
    %p101 = scmp.ne.s32.totalorder %s86, %s100
    %p102 = scmp.eq.s32.totalorder %s15, 0
    %p103 = por %p101, %p102
    %s104 = ssub.s32 %s16, %s28
    %p105 = scmp.eq.s32.totalorder %s104, 0
    %s107 = sadd.s32 %s106, 1
    %s108 = scalar_select %p105, %s106, %s107
    %p111 = pneg %p105
    %p112 = scmp.eq.s32.totalorder %s9, 1
    %p113 = por %p111, %p112
    %p114 = scmp.ne.s32.totalorder %s106, %s109
    %p115 = scmp.eq.s32.totalorder %s9, 0
    %p116 = por %p114, %p115
    %p117 = scmp.ne.s32.totalorder %s106, %s109
    %p118 = scmp.eq.s32.totalorder %s14, 1
    %p119 = por %p117, %p118
    %p120 = scmp.ne.s32.totalorder %s109, %s110
    %p121 = scmp.eq.s32.totalorder %s14, 0
    %p122 = por %p120, %p121
    %p123 = scmp.ne.s32.totalorder %s109, %s110
    %p124 = scmp.eq.s32.totalorder %s15, 1
    %p125 = por %p123, %p124
    %p127 = scmp.ne.s32.totalorder %s110, %s126
    %p128 = scmp.eq.s32.totalorder %s15, 0
    %p129 = por %p127, %p128
    %p130 = scmp.le.s32.totalorder 1, %s9
    %p131 = scmp.lt.s32.totalorder %s9, 3
    %p132 = pnand %p130, %p131
    %p133 = pneg %p132
    // Predicated region
    $region9: #{forward.4} parent=5 // pred_check
      _
    $region10: #{forward.4} parent=5 // pred_check_branch
      %135 = sbr.rel (%p132) target = $region12
    $region11: #{forward.4} parent=5 // pred_region
      %s136 = ssub.s32 %s9, 1
      // Predicated region
      $region13: #{forward.4} parent=11 // pred_check
        %p137 = pneg %p75
      $region14: #{forward.4} parent=11 // pred_check_branch
        %139 = sbr.rel (%p137) target = $region16
      $region15: #{forward.4} parent=11 // pred_region
        %s140 = smul.u32 32, %s19
        %p141 = scmp.lt.s32.totalorder %s140, 31
        %s142 = scalar_select %p141, %s140, 31
        %s143 = smul.addr %s142, 4
        %s144 = scalar_lea.vmem %s1, %s143
        %s145 = smul.u32 32, %s19
      $region16: #{forward.4} parent=11 // pred_fallthru
        _
      // Predicated region
      $region17: #{forward.4} parent=11 // pred_check
        %p146 = pneg %p96
      $region18: #{forward.4} parent=11 // pred_check_branch
        %148 = sbr.rel (%p146) target = $region20
      $region19: #{forward.4} parent=11 // pred_region
        _
      $region20: #{forward.4} parent=11 // pred_fallthru
        _
    $region12: #{forward.4} parent=5 // pred_fallthru
      _
    %p149 = scmp.lt.s32.totalorder %s9, 2
    // Predicated region
    $region21: #{forward.4} parent=5 // pred_check
      %p150 = pneg %p149
    $region22: #{forward.4} parent=5 // pred_check_branch
      %152 = sbr.rel (%p150) target = $region24
    $region23: #{forward.4} parent=5 // pred_region
      // Predicated region
      $region25: #{forward.4} parent=23 // pred_check
        %p153 = pneg %p43
      $region26: #{forward.4} parent=23 // pred_check_branch
        %155 = sbr.rel (%p153) target = $region28
      $region27: #{forward.4} parent=23 // pred_region
        %s156 = smul.u32 42, %s16
        %s157 = smul.u32 2, %s17
        %p158 = scmp.lt.s32.totalorder %s156, 83
        %s159 = scalar_select %p158, %s156, 83
        %p160 = scmp.lt.s32.totalorder %s157, 1
        %s161 = scalar_select %p160, %s157, 1
        %s162 = smul.addr %s159, 2
        %s163 = sadd.s32 %s161, %s162
        %s164 = smul.addr %s163, 4
        %s165 = scalar_lea.vmem %s0, %s164
        %s166 = smul.u32 42, %s16
        %s167 = smul.u32 2, %s17
      $region28: #{forward.4} parent=23 // pred_fallthru
        _
    $region24: #{forward.4} parent=5 // pred_fallthru
      _
    %p168 = scmp.le.s32.totalorder 1, %s9
    %p169 = scmp.lt.s32.totalorder %s9, 3
    %p170 = pnand %p168, %p169
    %p171 = pneg %p170
    // Predicated region
    $region29: #{forward.4} parent=5 // pred_check
      _
    $region30: #{forward.4} parent=5 // pred_check_branch
      %173 = sbr.rel (%p170) target = $region32
    $region31: #{forward.4} parent=5 // pred_region
      %s174 = ssub.s32 %s9, 1
      %s175 = smul.u32 42, %s18
      %s176 = smul.u32 2, %s19
      %p177 = scmp.lt.s32.totalorder %s175, 83
      %s178 = scalar_select %p177, %s175, 83
      %p179 = scmp.lt.s32.totalorder %s176, 1
      %s180 = scalar_select %p179, %s176, 1
      %s181 = smul.addr %s178, 2
      %s182 = sadd.s32 %s180, %s181
      %s183 = smul.addr %s182, 4
      %s184 = scalar_lea.vmem %s0, %s183
      %p185 = pneg %p49
      %p186 = pneg %p46
      %s187 = smul.u32 32, %s19
      %p188 = scmp.lt.s32.totalorder %s187, 31
      %s189 = scalar_select %p188, %s187, 31
      %s190 = smul.addr %s189, 4
      %s191 = scalar_lea.vmem %s1, %s190
      %p192 = pneg %p75
      %p193 = pneg %p72
      %p194 = pneg %p96
      %p195 = pneg %p93
      %p196 = pneg %p122
      %p197 = pneg %p119
      %s198 = smul.u32 42, %s18
      %p199 = scmp.lt.s32.totalorder %s198, 83
      %s200 = scalar_select %p199, %s198, 83
      %s201 = smul.addr %s200, 4
      %s202 = scalar_lea.vmem %s3, %s201
      %s203 = smul.u32 42, %s18
      %s204 = smul.u32 2, %s19
      %p205 = scmp.lt.s32.totalorder %s203, 83
      %s206 = scalar_select %p205, %s203, 83
      %p207 = scmp.lt.s32.totalorder %s204, 1
      %s208 = scalar_select %p207, %s204, 1
      %s209 = smul.addr %s206, 2
      %s210 = sadd.s32 %s208, %s209
      %s211 = smul.addr %s210, 4
      %s212 = scalar_lea.vmem %s0, %s211
      %s213 = smul.u32 42, %s18
      %s214 = smul.u32 2, %s19
      %s215 = smul.u32 32, %s19
      %p216 = scmp.lt.s32.totalorder %s215, 31
      %s217 = scalar_select %p216, %s215, 31
      %s218 = smul.addr %s217, 4
      %s219 = scalar_lea.vmem %s1, %s218
      %s220 = smul.u32 32, %s19
      %s221 = smul.u32 42, %s18
      %p222 = scmp.lt.s32.totalorder %s221, 83
      %s223 = scalar_select %p222, %s221, 83
      %s224 = smul.addr %s223, 4
      %s225 = scalar_lea.vmem %s3, %s224
      %s226 = smul.u32 42, %s18
      %p228 = scmp.eq.s32.totalorder %s19, 0
      // Predicated region
      $region33: #{forward.4} parent=31 // pred_check
        %p229 = pneg %p228
      $region34: #{forward.4} parent=31 // pred_check_branch
        %231 = sbr.rel (%p229) target = $region36
      $region35: #{forward.4} parent=31 // pred_region
        %232 = vst [vmem:[#allocation2] sm:$0xff] 0.0
        %233 = vst [vmem:[#allocation2 + $0x8] sm:$0xff] 0.0
        %234 = vst [vmem:[#allocation2 + $0x10] sm:$0xff] 0.0
        %235 = vst [vmem:[#allocation2 + $0x18] sm:$0xff] 0.0
        %236 = vst [vmem:[#allocation2 + $0x20] sm:$0xff] 0.0
        %237 = vst [vmem:[#allocation2 + $0x28] sm:$0xff] 0.0
        %238 = vst [vmem:[#allocation2 + $0x30] sm:$0xff] 0.0
        %239 = vst [vmem:[#allocation2 + $0x38] sm:$0xff] 0.0
        %240 = vst [vmem:[#allocation2 + $0x40] sm:$0xff] 0.0
        %241 = vst [vmem:[#allocation2 + $0x48] sm:$0xff] 0.0
        %242 = vst [vmem:[#allocation2 + $0x50] sm:$0xff] 0.0
        %243 = vst [vmem:[#allocation2 + $0x58] sm:$0xff] 0.0
        %244 = vst [vmem:[#allocation2 + $0x60] sm:$0xff] 0.0
        %245 = vst [vmem:[#allocation2 + $0x68] sm:$0xff] 0.0
        %246 = vst [vmem:[#allocation2 + $0x70] sm:$0xff] 0.0
        %247 = vst [vmem:[#allocation2 + $0x78] sm:$0xff] 0.0
        %248 = vst [vmem:[#allocation2 + $0x80] sm:$0xff] 0.0
        %249 = vst [vmem:[#allocation2 + $0x88] sm:$0xff] 0.0
        %250 = vst [vmem:[#allocation2 + $0x90] sm:$0xff] 0.0
        %251 = vst [vmem:[#allocation2 + $0x98] sm:$0xff] 0.0
        %252 = vst [vmem:[#allocation2 + $0xa0] sm:$0xff] 0.0
        %253 = vst [vmem:[#allocation2 + $0xa8] sm:$0xff] 0.0
        %254 = vst [vmem:[#allocation2 + $0xb0] sm:$0xff] 0.0
        %255 = vst [vmem:[#allocation2 + $0xb8] sm:$0xff] 0.0
        %256 = vst [vmem:[#allocation2 + $0xc0] sm:$0xff] 0.0
        %257 = vst [vmem:[#allocation2 + $0xc8] sm:$0xff] 0.0
        %258 = vst [vmem:[#allocation2 + $0xd0] sm:$0xff] 0.0
        %259 = vst [vmem:[#allocation2 + $0xd8] sm:$0xff] 0.0
        %260 = vst [vmem:[#allocation2 + $0xe0] sm:$0xff] 0.0
        %261 = vst [vmem:[#allocation2 + $0xe8] sm:$0xff] 0.0
        %262 = vst [vmem:[#allocation2 + $0xf0] sm:$0xff] 0.0
        %263 = vst [vmem:[#allocation2 + $0xf8] sm:$0xff] 0.0
        %264 = vst [vmem:[#allocation2 + $0x100] sm:$0xff] 0.0
        %265 = vst [vmem:[#allocation2 + $0x108] sm:$0xff] 0.0
        %266 = vst [vmem:[#allocation2 + $0x110] sm:$0xff] 0.0
        %267 = vst [vmem:[#allocation2 + $0x118] sm:$0xff] 0.0
        %268 = vst [vmem:[#allocation2 + $0x120] sm:$0xff] 0.0
        %269 = vst [vmem:[#allocation2 + $0x128] sm:$0xff] 0.0
        %270 = vst [vmem:[#allocation2 + $0x130] sm:$0xff] 0.0
        %271 = vst [vmem:[#allocation2 + $0x138] sm:$0xff] 0.0
        %272 = vst [vmem:[#allocation2 + $0x140] sm:$0xff] 0.0
        %273 = vst [vmem:[#allocation2 + $0x148] sm:$0xff] 0.0
      $region36: #{forward.4} parent=31 // pred_fallthru
        _
      %v274 = vld [vmem:[#allocation2] sm:$0xff]
      %v275 = vld [vmem:[#allocation2 + $0x8] sm:$0xff]
      %v276 = vld [vmem:[#allocation2 + $0x10] sm:$0xff]
      %v277 = vld [vmem:[#allocation2 + $0x18] sm:$0xff]
      %v278 = vld [vmem:[#allocation2 + $0x20] sm:$0xff]
      %v279 = vld [vmem:[#allocation2 + $0x28] sm:$0xff]
      %v280 = vld [vmem:[#allocation2 + $0x30] sm:$0xff]
      %v281 = vld [vmem:[#allocation2 + $0x38] sm:$0xff]
      %v282 = vld [vmem:[#allocation2 + $0x40] sm:$0xff]
      %v283 = vld [vmem:[#allocation2 + $0x48] sm:$0xff]
      %v284 = vld [vmem:[#allocation2 + $0x50] sm:$0xff]
      %v285 = vld [vmem:[#allocation2 + $0x58] sm:$0xff]
      %v286 = vld [vmem:[#allocation2 + $0x60] sm:$0xff]
      %v287 = vld [vmem:[#allocation2 + $0x68] sm:$0xff]
      %v288 = vld [vmem:[#allocation2 + $0x70] sm:$0xff]
      %v289 = vld [vmem:[#allocation2 + $0x78] sm:$0xff]
      %v290 = vld [vmem:[#allocation2 + $0x80] sm:$0xff]
      %v291 = vld [vmem:[#allocation2 + $0x88] sm:$0xff]
      %v292 = vld [vmem:[#allocation2 + $0x90] sm:$0xff]
      %v293 = vld [vmem:[#allocation2 + $0x98] sm:$0xff]
      %v294 = vld [vmem:[#allocation2 + $0xa0] sm:$0xff]
      %v295 = vld [vmem:[#allocation2 + $0xa8] sm:$0xff]
      %v296 = vld [vmem:[#allocation2 + $0xb0] sm:$0xff]
      %v297 = vld [vmem:[#allocation2 + $0xb8] sm:$0xff]
      %v298 = vld [vmem:[#allocation2 + $0xc0] sm:$0xff]
      %v299 = vld [vmem:[#allocation2 + $0xc8] sm:$0xff]
      %v300 = vld [vmem:[#allocation2 + $0xd0] sm:$0xff]
      %v301 = vld [vmem:[#allocation2 + $0xd8] sm:$0xff]
      %v302 = vld [vmem:[#allocation2 + $0xe0] sm:$0xff]
      %v303 = vld [vmem:[#allocation2 + $0xe8] sm:$0xff]
      %v304 = vld [vmem:[#allocation2 + $0xf0] sm:$0xff]
      %v305 = vld [vmem:[#allocation2 + $0xf8] sm:$0xff]
      %v306 = vld [vmem:[#allocation2 + $0x100] sm:$0xff]
      %v307 = vld [vmem:[#allocation2 + $0x108] sm:$0xff]
      %v308 = vld [vmem:[#allocation2 + $0x110] sm:$0xff]
      %v309 = vld [vmem:[#allocation2 + $0x118] sm:$0xff]
      %v310 = vld [vmem:[#allocation2 + $0x120] sm:$0xff]
      %v311 = vld [vmem:[#allocation2 + $0x128] sm:$0xff]
      %v312 = vld [vmem:[#allocation2 + $0x130] sm:$0xff]
      %v313 = vld [vmem:[#allocation2 + $0x138] sm:$0xff]
      %v314 = vld [vmem:[#allocation2 + $0x140] sm:$0xff]
      %v315 = vld [vmem:[#allocation2 + $0x148] sm:$0xff]
      %v316 = vld [vmem:[%s212] sm:$0xff]
      %v317 = vld [vmem:[%s212 + $0x8] sm:$0xff]
      %v318 = vld [vmem:[%s212 + $0x10] sm:$0xff]
      %v319 = vld [vmem:[%s212 + $0x18] sm:$0xff]
      %v320 = vld [vmem:[%s212 + $0x20] sm:$0xff]
      %v321 = vld [vmem:[%s212 + $0x28] sm:$0xff]
      %v322 = vld [vmem:[%s212 + $0x30] sm:$0xff]
      %v323 = vld [vmem:[%s212 + $0x38] sm:$0xff]
      %v324 = vld [vmem:[%s212 + $0x40] sm:$0xff]
      %v325 = vld [vmem:[%s212 + $0x48] sm:$0xff]
      %v326 = vld [vmem:[%s212 + $0x50] sm:$0xff]
      %v327 = vld [vmem:[%s212 + $0x58] sm:$0xff]
      %v328 = vld [vmem:[%s212 + $0x60] sm:$0xff]
      %v329 = vld [vmem:[%s212 + $0x68] sm:$0xff]
      %v330 = vld [vmem:[%s212 + $0x70] sm:$0xff]
      %v331 = vld [vmem:[%s212 + $0x78] sm:$0xff]
      %v332 = vld [vmem:[%s212 + $0x80] sm:$0xff]
      %v333 = vld [vmem:[%s212 + $0x88] sm:$0xff]
      %v334 = vld [vmem:[%s212 + $0x90] sm:$0xff]
      %v335 = vld [vmem:[%s212 + $0x98] sm:$0xff]
      %v336 = vld [vmem:[%s212 + $0xa0] sm:$0xff]
      %v337 = vld [vmem:[%s212 + $0xa8] sm:$0xff]
      %v338 = vld [vmem:[%s212 + $0xb0] sm:$0xff]
      %v339 = vld [vmem:[%s212 + $0xb8] sm:$0xff]
      %v340 = vld [vmem:[%s212 + $0xc0] sm:$0xff]
      %v341 = vld [vmem:[%s212 + $0xc8] sm:$0xff]
      %v342 = vld [vmem:[%s212 + $0xd0] sm:$0xff]
      %v343 = vld [vmem:[%s212 + $0xd8] sm:$0xff]
      %v344 = vld [vmem:[%s212 + $0xe0] sm:$0xff]
      %v345 = vld [vmem:[%s212 + $0xe8] sm:$0xff]
      %v346 = vld [vmem:[%s212 + $0xf0] sm:$0xff]
      %v347 = vld [vmem:[%s212 + $0xf8] sm:$0xff]
      %v348 = vld [vmem:[%s212 + $0x100] sm:$0xff]
      %v349 = vld [vmem:[%s212 + $0x108] sm:$0xff]
      %v350 = vld [vmem:[%s212 + $0x110] sm:$0xff]
      %v351 = vld [vmem:[%s212 + $0x118] sm:$0xff]
      %v352 = vld [vmem:[%s212 + $0x120] sm:$0xff]
      %v353 = vld [vmem:[%s212 + $0x128] sm:$0xff]
      %v354 = vld [vmem:[%s212 + $0x130] sm:$0xff]
      %v355 = vld [vmem:[%s212 + $0x138] sm:$0xff]
      %v356 = vld [vmem:[%s212 + $0x140] sm:$0xff]
      %v357 = vld [vmem:[%s212 + $0x148] sm:$0xff]
      %v358 = vld [vmem:[%s219] sm:$0xf]
      %v359 = vld [vmem:[%s219 + $0x4] sm:$0xf]
      %v360 = vld [vmem:[%s219 + $0x8] sm:$0xf]
      %v361 = vld [vmem:[%s219 + $0xc] sm:$0xf]
      %v362 = vld [vmem:[%s219 + $0x10] sm:$0xf]
      %v363 = vld [vmem:[%s219 + $0x14] sm:$0xf]
      %v364 = vld [vmem:[%s219 + $0x18] sm:$0xf]
      %v365 = vld [vmem:[%s219 + $0x1c] sm:$0xf]
      %v366 = vld [vmem:[%s219 + $0x20] sm:$0xf]
      %v367 = vld [vmem:[%s219 + $0x24] sm:$0xf]
      %v368 = vld [vmem:[%s219 + $0x28] sm:$0xf]
      %v369 = vld [vmem:[%s219 + $0x2c] sm:$0xf]
      %v370 = vld [vmem:[%s219 + $0x30] sm:$0xf]
      %v371 = vld [vmem:[%s219 + $0x34] sm:$0xf]
      %v372 = vld [vmem:[%s219 + $0x38] sm:$0xf]
      %v373 = vld [vmem:[%s219 + $0x3c] sm:$0xf]
      %v374 = vld [vmem:[%s219 + $0x40] sm:$0xf]
      %v375 = vld [vmem:[%s219 + $0x44] sm:$0xf]
      %v376 = vld [vmem:[%s219 + $0x48] sm:$0xf]
      %v377 = vld [vmem:[%s219 + $0x4c] sm:$0xf]
      %v378 = vld [vmem:[%s219 + $0x50] sm:$0xf]
      %v379 = vld [vmem:[%s219 + $0x54] sm:$0xf]
      %v380 = vld [vmem:[%s219 + $0x58] sm:$0xf]
      %v381 = vld [vmem:[%s219 + $0x5c] sm:$0xf]
      %v382 = vld [vmem:[%s219 + $0x60] sm:$0xf]
      %v383 = vld [vmem:[%s219 + $0x64] sm:$0xf]
      %v384 = vld [vmem:[%s219 + $0x68] sm:$0xf]
      %v385 = vld [vmem:[%s219 + $0x6c] sm:$0xf]
      %v386 = vld [vmem:[%s219 + $0x70] sm:$0xf]
      %v387 = vld [vmem:[%s219 + $0x74] sm:$0xf]
      %v388 = vld [vmem:[%s219 + $0x78] sm:$0xf]
      %v389 = vld [vmem:[%s219 + $0x7c] sm:$0xf]
      %v432 = vunpack.c.l.b16 %v316
      %v433 = vunpack.c.h.b16 %v316
      %v434 = vunpack.c.l.b16 %v317
      %v435 = vunpack.c.h.b16 %v317
      %v436 = vunpack.c.l.b16 %v318
      %v437 = vunpack.c.h.b16 %v318
      %v438 = vunpack.c.l.b16 %v319
      %v439 = vunpack.c.h.b16 %v319
      %v440 = vunpack.c.l.b16 %v320
      %v441 = vunpack.c.h.b16 %v320
      %v442 = vunpack.c.l.b16 %v321
      %v443 = vunpack.c.h.b16 %v321
      %v444 = vunpack.c.l.b16 %v322
      %v445 = vunpack.c.h.b16 %v322
      %v446 = vunpack.c.l.b16 %v323
      %v447 = vunpack.c.h.b16 %v323
      %v448 = vunpack.c.l.b16 %v324
      %v449 = vunpack.c.h.b16 %v324
      %v450 = vunpack.c.l.b16 %v325
      %v451 = vunpack.c.h.b16 %v325
      %v452 = vunpack.c.l.b16 %v326
      %v453 = vunpack.c.h.b16 %v326
      %v454 = vunpack.c.l.b16 %v327
      %v455 = vunpack.c.h.b16 %v327
      %v456 = vunpack.c.l.b16 %v328
      %v457 = vunpack.c.h.b16 %v328
      %v458 = vunpack.c.l.b16 %v329
      %v459 = vunpack.c.h.b16 %v329
      %v460 = vunpack.c.l.b16 %v330
      %v461 = vunpack.c.h.b16 %v330
      %v462 = vunpack.c.l.b16 %v331
      %v463 = vunpack.c.h.b16 %v331
      %v464 = vunpack.c.l.b16 %v332
      %v465 = vunpack.c.h.b16 %v332
      %v466 = vunpack.c.l.b16 %v333
      %v467 = vunpack.c.h.b16 %v333
      %v468 = vunpack.c.l.b16 %v334
      %v469 = vunpack.c.h.b16 %v334
      %v470 = vunpack.c.l.b16 %v335
      %v471 = vunpack.c.h.b16 %v335
      %v472 = vunpack.c.l.b16 %v336
      %v473 = vunpack.c.h.b16 %v336
      %v474 = vunpack.c.l.b16 %v337
      %v475 = vunpack.c.h.b16 %v337
      %v476 = vunpack.c.l.b16 %v338
      %v477 = vunpack.c.h.b16 %v338
      %v478 = vunpack.c.l.b16 %v339
      %v479 = vunpack.c.h.b16 %v339
      %v480 = vunpack.c.l.b16 %v340
      %v481 = vunpack.c.h.b16 %v340
      %v482 = vunpack.c.l.b16 %v341
      %v483 = vunpack.c.h.b16 %v341
      %v484 = vunpack.c.l.b16 %v342
      %v485 = vunpack.c.h.b16 %v342
      %v486 = vunpack.c.l.b16 %v343
      %v487 = vunpack.c.h.b16 %v343
      %v488 = vunpack.c.l.b16 %v344
      %v489 = vunpack.c.h.b16 %v344
      %v490 = vunpack.c.l.b16 %v345
      %v491 = vunpack.c.h.b16 %v345
      %v492 = vunpack.c.l.b16 %v346
      %v493 = vunpack.c.h.b16 %v346
      %v494 = vunpack.c.l.b16 %v347
      %v495 = vunpack.c.h.b16 %v347
      %v496 = vunpack.c.l.b16 %v348
      %v497 = vunpack.c.h.b16 %v348
      %v498 = vunpack.c.l.b16 %v349
      %v499 = vunpack.c.h.b16 %v349
      %v500 = vunpack.c.l.b16 %v350
      %v501 = vunpack.c.h.b16 %v350
      %v502 = vunpack.c.l.b16 %v351
      %v503 = vunpack.c.h.b16 %v351
      %v504 = vunpack.c.l.b16 %v352
      %v505 = vunpack.c.h.b16 %v352
      %v506 = vunpack.c.l.b16 %v353
      %v507 = vunpack.c.h.b16 %v353
      %v508 = vunpack.c.l.b16 %v354
      %v509 = vunpack.c.h.b16 %v354
      %v510 = vunpack.c.l.b16 %v355
      %v511 = vunpack.c.h.b16 %v355
      %v512 = vunpack.c.l.b16 %v356
      %v513 = vunpack.c.h.b16 %v356
      %v514 = vunpack.c.l.b16 %v357
      %v515 = vunpack.c.h.b16 %v357
      %v516 = vpack.c.b16 %v434, %v432
      %v517 = vpack.c.b16 %v435, %v433
      %v518 = vpack.c.b16 %v438, %v436
      %v519 = vpack.c.b16 %v439, %v437
      %v520 = vpack.c.b16 %v442, %v440
      %v521 = vpack.c.b16 %v443, %v441
      %v522 = vpack.c.b16 %v446, %v444
      %v523 = vpack.c.b16 %v447, %v445
      %v524 = vpack.c.b16 %v450, %v448
      %v525 = vpack.c.b16 %v451, %v449
      %v526 = vpack.c.b16 %v454, %v452
      %v527 = vpack.c.b16 %v455, %v453
      %v528 = vpack.c.b16 %v458, %v456
      %v529 = vpack.c.b16 %v459, %v457
      %v530 = vpack.c.b16 %v462, %v460
      %v531 = vpack.c.b16 %v463, %v461
      %v532 = vpack.c.b16 %v466, %v464
      %v533 = vpack.c.b16 %v467, %v465
      %v534 = vpack.c.b16 %v470, %v468
      %v535 = vpack.c.b16 %v471, %v469
      %v536 = vpack.c.b16 %v474, %v472
      %v537 = vpack.c.b16 %v475, %v473
      %v538 = vpack.c.b16 %v478, %v476
      %v539 = vpack.c.b16 %v479, %v477
      %v540 = vpack.c.b16 %v482, %v480
      %v541 = vpack.c.b16 %v483, %v481
      %v542 = vpack.c.b16 %v486, %v484
      %v543 = vpack.c.b16 %v487, %v485
      %v544 = vpack.c.b16 %v490, %v488
      %v545 = vpack.c.b16 %v491, %v489
      %v546 = vpack.c.b16 %v494, %v492
      %v547 = vpack.c.b16 %v495, %v493
      %v548 = vpack.c.b16 %v498, %v496
      %v549 = vpack.c.b16 %v499, %v497
      %v550 = vpack.c.b16 %v502, %v500
      %v551 = vpack.c.b16 %v503, %v501
      %v552 = vpack.c.b16 %v506, %v504
      %v553 = vpack.c.b16 %v507, %v505
      %v554 = vpack.c.b16 %v510, %v508
      %v555 = vpack.c.b16 %v511, %v509
      %v556 = vpack.c.b16 %v514, %v512
      %v557 = vpack.c.b16 %v515, %v513
      %v632 = vunpack.c.l.b16 %v358
      %v633 = vunpack.c.l.b16 %v359
      %v634 = vunpack.c.l.b16 %v360
      %v635 = vunpack.c.l.b16 %v361
      %v636 = vunpack.c.l.b16 %v362
      %v637 = vunpack.c.l.b16 %v363
      %v638 = vunpack.c.l.b16 %v364
      %v639 = vunpack.c.l.b16 %v365
      %v640 = vunpack.c.l.b16 %v366
      %v641 = vunpack.c.l.b16 %v367
      %v642 = vunpack.c.l.b16 %v368
      %v643 = vunpack.c.l.b16 %v369
      %v644 = vunpack.c.l.b16 %v370
      %v645 = vunpack.c.l.b16 %v371
      %v646 = vunpack.c.l.b16 %v372
      %v647 = vunpack.c.l.b16 %v373
      %v648 = vunpack.c.l.b16 %v374
      %v649 = vunpack.c.l.b16 %v375
      %v650 = vunpack.c.l.b16 %v376
      %v651 = vunpack.c.l.b16 %v377
      %v652 = vunpack.c.l.b16 %v378
      %v653 = vunpack.c.l.b16 %v379
      %v654 = vunpack.c.l.b16 %v380
      %v655 = vunpack.c.l.b16 %v381
      %v656 = vunpack.c.l.b16 %v382
      %v657 = vunpack.c.l.b16 %v383
      %v658 = vunpack.c.l.b16 %v384
      %v659 = vunpack.c.l.b16 %v385
      %v660 = vunpack.c.l.b16 %v386
      %v661 = vunpack.c.l.b16 %v387
      %v662 = vunpack.c.l.b16 %v388
      %v663 = vunpack.c.l.b16 %v389
      %v664 = vpack.c.b16 %v633, %v632
      %v665 = vpack.c.b16 %v635, %v634
      %v666 = vpack.c.b16 %v637, %v636
      %v667 = vpack.c.b16 %v639, %v638
      %v668 = vpack.c.b16 %v641, %v640
      %v669 = vpack.c.b16 %v643, %v642
      %v670 = vpack.c.b16 %v645, %v644
      %v671 = vpack.c.b16 %v647, %v646
      %v672 = vpack.c.b16 %v649, %v648
      %v673 = vpack.c.b16 %v651, %v650
      %v674 = vpack.c.b16 %v653, %v652
      %v675 = vpack.c.b16 %v655, %v654
      %v676 = vpack.c.b16 %v657, %v656
      %v677 = vpack.c.b16 %v659, %v658
      %v678 = vpack.c.b16 %v661, %v660
      %v679 = vpack.c.b16 %v663, %v662
      %696 = vmatprep.subr.bf16.mxu0 0
      %697 = vmatpush1.bf16.msra.mxu0 %v664
      %698 = vmatprep.subr.bf16.mxu0 0
      %699 = vmatpush1.bf16.msra.mxu0 %v665
      %700 = vmatprep.subr.bf16.mxu0 0
      %701 = vmatpush1.bf16.msra.mxu0 %v666
      %702 = vmatprep.subr.bf16.mxu0 0
      %703 = vmatpush1.bf16.msra.mxu0 %v667
      %704 = vmatprep.subr.bf16.mxu0 0
      %705 = vmatpush1.bf16.msra.mxu0 %v668
      %706 = vmatprep.subr.bf16.mxu0 0
      %707 = vmatpush1.bf16.msra.mxu0 %v669
      %708 = vmatprep.subr.bf16.mxu0 0
      %709 = vmatpush1.bf16.msra.mxu0 %v670
      %710 = vmatprep.subr.bf16.mxu0 0
      %711 = vmatpush1.bf16.msra.mxu0 %v671
      %712 = vmatprep.subr.bf16.mxu0 0
      %713 = vmatpush1.bf16.msra.mxu0 %v672
      %714 = vmatprep.subr.bf16.mxu0 0
      %715 = vmatpush1.bf16.msra.mxu0 %v673
      %716 = vmatprep.subr.bf16.mxu0 0
      %717 = vmatpush1.bf16.msra.mxu0 %v674
      %718 = vmatprep.subr.bf16.mxu0 0
      %719 = vmatpush1.bf16.msra.mxu0 %v675
      %720 = vmatprep.subr.bf16.mxu0 0
      %721 = vmatpush1.bf16.msra.mxu0 %v676
      %722 = vmatprep.subr.bf16.mxu0 0
      %723 = vmatpush1.bf16.msra.mxu0 %v677
      %724 = vmatprep.subr.bf16.mxu0 0
      %725 = vmatpush1.bf16.msra.mxu0 %v678
      %726 = vmatprep.subr.bf16.mxu0 0
      %727 = vmatpush1.bf16.msra.mxu0 %v679
      %728 = vmatprep.mubr.bf16.mxu0 %v517
      %729 = vmatmul.mubr.bf16.gmra.mrb[0].mxu0 %v516
      %v730 = vpop.f32.mrb[0].mxu0
      %v731 = vadd.f32 0.0, %v730
      %v732 = vpop.f32.mrb[0].mxu0
      %v733 = vpop.f32.mrb[0].mxu0
      %v734 = vadd.f32 0.0, %v733
      %v735 = vpop.f32.mrb[0].mxu0
      %736 = vmatprep.mubr.bf16.mxu0 %v519
      %737 = vmatmul.mubr.bf16.gmra.mrb[0].mxu0 %v518
      %v738 = vpop.f32.mrb[0].mxu0
      %v739 = vadd.f32 0.0, %v738
      %v740 = vpop.f32.mrb[0].mxu0
      %v741 = vpop.f32.mrb[0].mxu0
      %v742 = vadd.f32 0.0, %v741
      %v743 = vpop.f32.mrb[0].mxu0
      %744 = vmatprep.mubr.bf16.mxu0 %v521
      %745 = vmatmul.mubr.bf16.gmra.mrb[0].mxu0 %v520
      %v746 = vpop.f32.mrb[0].mxu0
      %v747 = vadd.f32 0.0, %v746
      %v748 = vpop.f32.mrb[0].mxu0
      %v749 = vpop.f32.mrb[0].mxu0
      %v750 = vadd.f32 0.0, %v749
      %v751 = vpop.f32.mrb[0].mxu0
      %752 = vmatprep.mubr.bf16.mxu0 %v523
      %753 = vmatmul.mubr.bf16.gmra.mrb[0].mxu0 %v522
      %v754 = vpop.f32.mrb[0].mxu0
      %v755 = vadd.f32 0.0, %v754
      %v756 = vpop.f32.mrb[0].mxu0
      %v757 = vpop.f32.mrb[0].mxu0
      %v758 = vadd.f32 0.0, %v757
      %v759 = vpop.f32.mrb[0].mxu0
      %760 = vmatprep.mubr.bf16.mxu0 %v525
      %761 = vmatmul.mubr.bf16.gmra.mrb[0].mxu0 %v524
      %v762 = vpop.f32.mrb[0].mxu0
      %v763 = vadd.f32 0.0, %v762
      %v764 = vpop.f32.mrb[0].mxu0
      %v765 = vpop.f32.mrb[0].mxu0
      %v766 = vadd.f32 0.0, %v765
      %v767 = vpop.f32.mrb[0].mxu0
      %768 = vmatprep.mubr.bf16.mxu0 %v527
      %769 = vmatmul.mubr.bf16.gmra.mrb[0].mxu0 %v526
      %v770 = vpop.f32.mrb[0].mxu0
      %v771 = vadd.f32 0.0, %v770
      %v772 = vpop.f32.mrb[0].mxu0
      %v773 = vpop.f32.mrb[0].mxu0
      %v774 = vadd.f32 0.0, %v773
      %v775 = vpop.f32.mrb[0].mxu0
      %776 = vmatprep.mubr.bf16.mxu0 %v529
      %777 = vmatmul.mubr.bf16.gmra.mrb[0].mxu0 %v528
      %v778 = vpop.f32.mrb[0].mxu0
      %v779 = vadd.f32 0.0, %v778
      %v780 = vpop.f32.mrb[0].mxu0
      %v781 = vpop.f32.mrb[0].mxu0
      %v782 = vadd.f32 0.0, %v781
      %v783 = vpop.f32.mrb[0].mxu0
      %784 = vmatprep.mubr.bf16.mxu0 %v531
      %785 = vmatmul.mubr.bf16.gmra.mrb[0].mxu0 %v530
      %v786 = vpop.f32.mrb[0].mxu0
      %v787 = vadd.f32 0.0, %v786
      %v788 = vpop.f32.mrb[0].mxu0
      %v789 = vpop.f32.mrb[0].mxu0
      %v790 = vadd.f32 0.0, %v789
      %v791 = vpop.f32.mrb[0].mxu0
      %792 = vmatprep.mubr.bf16.mxu0 %v533
      %793 = vmatmul.mubr.bf16.gmra.mrb[0].mxu0 %v532
      %v794 = vpop.f32.mrb[0].mxu0
      %v795 = vadd.f32 0.0, %v794
      %v796 = vpop.f32.mrb[0].mxu0
      %v797 = vpop.f32.mrb[0].mxu0
      %v798 = vadd.f32 0.0, %v797
      %v799 = vpop.f32.mrb[0].mxu0
      %800 = vmatprep.mubr.bf16.mxu0 %v535
      %801 = vmatmul.mubr.bf16.gmra.mrb[0].mxu0 %v534
      %v802 = vpop.f32.mrb[0].mxu0
      %v803 = vadd.f32 0.0, %v802
      %v804 = vpop.f32.mrb[0].mxu0
      %v805 = vpop.f32.mrb[0].mxu0
      %v806 = vadd.f32 0.0, %v805
      %v807 = vpop.f32.mrb[0].mxu0
      %808 = vmatprep.mubr.bf16.mxu0 %v537
      %809 = vmatmul.mubr.bf16.gmra.mrb[0].mxu0 %v536
      %v810 = vpop.f32.mrb[0].mxu0
      %v811 = vadd.f32 0.0, %v810
      %v812 = vpop.f32.mrb[0].mxu0
      %v813 = vpop.f32.mrb[0].mxu0
      %v814 = vadd.f32 0.0, %v813
      %v815 = vpop.f32.mrb[0].mxu0
      %816 = vmatprep.mubr.bf16.mxu0 %v539
      %817 = vmatmul.mubr.bf16.gmra.mrb[0].mxu0 %v538
      %v818 = vpop.f32.mrb[0].mxu0
      %v819 = vadd.f32 0.0, %v818
      %v820 = vpop.f32.mrb[0].mxu0
      %v821 = vpop.f32.mrb[0].mxu0
      %v822 = vadd.f32 0.0, %v821
      %v823 = vpop.f32.mrb[0].mxu0
      %824 = vmatprep.mubr.bf16.mxu0 %v541
      %825 = vmatmul.mubr.bf16.gmra.mrb[0].mxu0 %v540
      %v826 = vpop.f32.mrb[0].mxu0
      %v827 = vadd.f32 0.0, %v826
      %v828 = vpop.f32.mrb[0].mxu0
      %v829 = vpop.f32.mrb[0].mxu0
      %v830 = vadd.f32 0.0, %v829
      %v831 = vpop.f32.mrb[0].mxu0
      %832 = vmatprep.mubr.bf16.mxu0 %v543
      %833 = vmatmul.mubr.bf16.gmra.mrb[0].mxu0 %v542
      %v834 = vpop.f32.mrb[0].mxu0
      %v835 = vadd.f32 0.0, %v834
      %v836 = vpop.f32.mrb[0].mxu0
      %v837 = vpop.f32.mrb[0].mxu0
      %v838 = vadd.f32 0.0, %v837
      %v839 = vpop.f32.mrb[0].mxu0
      %840 = vmatprep.mubr.bf16.mxu0 %v545
      %841 = vmatmul.mubr.bf16.gmra.mrb[0].mxu0 %v544
      %v842 = vpop.f32.mrb[0].mxu0
      %v843 = vadd.f32 0.0, %v842
      %v844 = vpop.f32.mrb[0].mxu0
      %v845 = vpop.f32.mrb[0].mxu0
      %v846 = vadd.f32 0.0, %v845
      %v847 = vpop.f32.mrb[0].mxu0
      %848 = vmatprep.mubr.bf16.mxu0 %v547
      %849 = vmatmul.mubr.bf16.gmra.mrb[0].mxu0 %v546
      %v850 = vpop.f32.mrb[0].mxu0
      %v851 = vadd.f32 0.0, %v850
      %v852 = vpop.f32.mrb[0].mxu0
      %v853 = vpop.f32.mrb[0].mxu0
      %v854 = vadd.f32 0.0, %v853
      %v855 = vpop.f32.mrb[0].mxu0
      %856 = vmatprep.mubr.bf16.mxu0 %v549
      %857 = vmatmul.mubr.bf16.gmra.mrb[0].mxu0 %v548
      %v858 = vpop.f32.mrb[0].mxu0
      %v859 = vadd.f32 0.0, %v858
      %v860 = vpop.f32.mrb[0].mxu0
      %v861 = vpop.f32.mrb[0].mxu0
      %v862 = vadd.f32 0.0, %v861
      %v863 = vpop.f32.mrb[0].mxu0
      %864 = vmatprep.mubr.bf16.mxu0 %v551
      %865 = vmatmul.mubr.bf16.gmra.mrb[0].mxu0 %v550
      %v866 = vpop.f32.mrb[0].mxu0
      %v867 = vadd.f32 0.0, %v866
      %v868 = vpop.f32.mrb[0].mxu0
      %v869 = vpop.f32.mrb[0].mxu0
      %v870 = vadd.f32 0.0, %v869
      %v871 = vpop.f32.mrb[0].mxu0
      %872 = vmatprep.mubr.bf16.mxu0 %v553
      %873 = vmatmul.mubr.bf16.gmra.mrb[0].mxu0 %v552
      %v874 = vpop.f32.mrb[0].mxu0
      %v875 = vadd.f32 0.0, %v874
      %v876 = vpop.f32.mrb[0].mxu0
      %v877 = vpop.f32.mrb[0].mxu0
      %v878 = vadd.f32 0.0, %v877
      %v879 = vpop.f32.mrb[0].mxu0
      %880 = vmatprep.mubr.bf16.mxu0 %v555
      %881 = vmatmul.mubr.bf16.gmra.mrb[0].mxu0 %v554
      %v882 = vpop.f32.mrb[0].mxu0
      %v883 = vadd.f32 0.0, %v882
      %v884 = vpop.f32.mrb[0].mxu0
      %v885 = vpop.f32.mrb[0].mxu0
      %v886 = vadd.f32 0.0, %v885
      %v887 = vpop.f32.mrb[0].mxu0
      %888 = vmatprep.mubr.bf16.mxu0 %v557
      %889 = vmatmul.mubr.bf16.gmra.mrb[0].mxu0 %v556
      %v890 = vpop.f32.mrb[0].mxu0
      %v891 = vadd.f32 0.0, %v890
      %v892 = vpop.f32.mrb[0].mxu0
      %v893 = vpop.f32.mrb[0].mxu0
      %v894 = vadd.f32 0.0, %v893
      %v895 = vpop.f32.mrb[0].mxu0
      %896 = vdwg.mxu0
      %v897 = vadd.f32 %v274, %v731
      %v898 = vadd.f32 %v275, %v734
      %v899 = vadd.f32 %v276, %v739
      %v900 = vadd.f32 %v277, %v742
      %v901 = vadd.f32 %v278, %v747
      %v902 = vadd.f32 %v279, %v750
      %v903 = vadd.f32 %v280, %v755
      %v904 = vadd.f32 %v281, %v758
      %v905 = vadd.f32 %v282, %v763
      %v906 = vadd.f32 %v283, %v766
      %v907 = vadd.f32 %v284, %v771
      %v908 = vadd.f32 %v285, %v774
      %v909 = vadd.f32 %v286, %v779
      %v910 = vadd.f32 %v287, %v782
      %v911 = vadd.f32 %v288, %v787
      %v912 = vadd.f32 %v289, %v790
      %v913 = vadd.f32 %v290, %v795
      %v914 = vadd.f32 %v291, %v798
      %v915 = vadd.f32 %v292, %v803
      %v916 = vadd.f32 %v293, %v806
      %v917 = vadd.f32 %v294, %v811
      %v918 = vadd.f32 %v295, %v814
      %v919 = vadd.f32 %v296, %v819
      %v920 = vadd.f32 %v297, %v822
      %v921 = vadd.f32 %v298, %v827
      %v922 = vadd.f32 %v299, %v830
      %v923 = vadd.f32 %v300, %v835
      %v924 = vadd.f32 %v301, %v838
      %v925 = vadd.f32 %v302, %v843
      %v926 = vadd.f32 %v303, %v846
      %v927 = vadd.f32 %v304, %v851
      %v928 = vadd.f32 %v305, %v854
      %v929 = vadd.f32 %v306, %v859
      %v930 = vadd.f32 %v307, %v862
      %v931 = vadd.f32 %v308, %v867
      %v932 = vadd.f32 %v309, %v870
      %v933 = vadd.f32 %v310, %v875
      %v934 = vadd.f32 %v311, %v878
      %v935 = vadd.f32 %v312, %v883
      %v936 = vadd.f32 %v313, %v886
      %v937 = vadd.f32 %v314, %v891
      %v938 = vadd.f32 %v315, %v894
      %939 = vst [vmem:[#allocation2] sm:$0xff] %v897
      %940 = vst [vmem:[#allocation2 + $0x8] sm:$0xff] %v898
      %941 = vst [vmem:[#allocation2 + $0x10] sm:$0xff] %v899
      %942 = vst [vmem:[#allocation2 + $0x18] sm:$0xff] %v900
      %943 = vst [vmem:[#allocation2 + $0x20] sm:$0xff] %v901
      %944 = vst [vmem:[#allocation2 + $0x28] sm:$0xff] %v902
      %945 = vst [vmem:[#allocation2 + $0x30] sm:$0xff] %v903
      %946 = vst [vmem:[#allocation2 + $0x38] sm:$0xff] %v904
      %947 = vst [vmem:[#allocation2 + $0x40] sm:$0xff] %v905
      %948 = vst [vmem:[#allocation2 + $0x48] sm:$0xff] %v906
      %949 = vst [vmem:[#allocation2 + $0x50] sm:$0xff] %v907
      %950 = vst [vmem:[#allocation2 + $0x58] sm:$0xff] %v908
      %951 = vst [vmem:[#allocation2 + $0x60] sm:$0xff] %v909
      %952 = vst [vmem:[#allocation2 + $0x68] sm:$0xff] %v910
      %953 = vst [vmem:[#allocation2 + $0x70] sm:$0xff] %v911
      %954 = vst [vmem:[#allocation2 + $0x78] sm:$0xff] %v912
      %955 = vst [vmem:[#allocation2 + $0x80] sm:$0xff] %v913
      %956 = vst [vmem:[#allocation2 + $0x88] sm:$0xff] %v914
      %957 = vst [vmem:[#allocation2 + $0x90] sm:$0xff] %v915
      %958 = vst [vmem:[#allocation2 + $0x98] sm:$0xff] %v916
      %959 = vst [vmem:[#allocation2 + $0xa0] sm:$0xff] %v917
      %960 = vst [vmem:[#allocation2 + $0xa8] sm:$0xff] %v918
      %961 = vst [vmem:[#allocation2 + $0xb0] sm:$0xff] %v919
      %962 = vst [vmem:[#allocation2 + $0xb8] sm:$0xff] %v920
      %963 = vst [vmem:[#allocation2 + $0xc0] sm:$0xff] %v921
      %964 = vst [vmem:[#allocation2 + $0xc8] sm:$0xff] %v922
      %965 = vst [vmem:[#allocation2 + $0xd0] sm:$0xff] %v923
      %966 = vst [vmem:[#allocation2 + $0xd8] sm:$0xff] %v924
      %967 = vst [vmem:[#allocation2 + $0xe0] sm:$0xff] %v925
      %968 = vst [vmem:[#allocation2 + $0xe8] sm:$0xff] %v926
      %969 = vst [vmem:[#allocation2 + $0xf0] sm:$0xff] %v927
      %970 = vst [vmem:[#allocation2 + $0xf8] sm:$0xff] %v928
      %971 = vst [vmem:[#allocation2 + $0x100] sm:$0xff] %v929
      %972 = vst [vmem:[#allocation2 + $0x108] sm:$0xff] %v930
      %973 = vst [vmem:[#allocation2 + $0x110] sm:$0xff] %v931
      %974 = vst [vmem:[#allocation2 + $0x118] sm:$0xff] %v932
      %975 = vst [vmem:[#allocation2 + $0x120] sm:$0xff] %v933
      %976 = vst [vmem:[#allocation2 + $0x128] sm:$0xff] %v934
      %977 = vst [vmem:[#allocation2 + $0x130] sm:$0xff] %v935
      %978 = vst [vmem:[#allocation2 + $0x138] sm:$0xff] %v936
      %979 = vst [vmem:[#allocation2 + $0x140] sm:$0xff] %v937
      %980 = vst [vmem:[#allocation2 + $0x148] sm:$0xff] %v938
      // Predicated region
      $region37: #{forward.4} parent=31 // pred_check
        %p981 = pneg %p228
      $region38: #{forward.4} parent=31 // pred_check_branch
        %983 = sbr.rel (%p981) target = $region40
      $region39: #{forward.4} parent=31 // pred_region
        %v984 = vld [vmem:[#allocation2] sm:$0xff]
        %v985 = vld [vmem:[#allocation2 + $0x8] sm:$0xff]
        %v986 = vld [vmem:[#allocation2 + $0x10] sm:$0xff]
        %v987 = vld [vmem:[#allocation2 + $0x18] sm:$0xff]
        %v988 = vld [vmem:[#allocation2 + $0x20] sm:$0xff]
        %v989 = vld [vmem:[#allocation2 + $0x28] sm:$0xff]
        %v990 = vld [vmem:[#allocation2 + $0x30] sm:$0xff]
        %v991 = vld [vmem:[#allocation2 + $0x38] sm:$0xff]
        %v992 = vld [vmem:[#allocation2 + $0x40] sm:$0xff]
        %v993 = vld [vmem:[#allocation2 + $0x48] sm:$0xff]
        %v994 = vld [vmem:[#allocation2 + $0x50] sm:$0xff]
        %v995 = vld [vmem:[#allocation2 + $0x58] sm:$0xff]
        %v996 = vld [vmem:[#allocation2 + $0x60] sm:$0xff]
        %v997 = vld [vmem:[#allocation2 + $0x68] sm:$0xff]
        %v998 = vld [vmem:[#allocation2 + $0x70] sm:$0xff]
        %v999 = vld [vmem:[#allocation2 + $0x78] sm:$0xff]
        %v1000 = vld [vmem:[#allocation2 + $0x80] sm:$0xff]
        %v1001 = vld [vmem:[#allocation2 + $0x88] sm:$0xff]
        %v1002 = vld [vmem:[#allocation2 + $0x90] sm:$0xff]
        %v1003 = vld [vmem:[#allocation2 + $0x98] sm:$0xff]
        %v1004 = vld [vmem:[#allocation2 + $0xa0] sm:$0xff]
        %v1005 = vld [vmem:[#allocation2 + $0xa8] sm:$0xff]
        %v1006 = vld [vmem:[#allocation2 + $0xb0] sm:$0xff]
        %v1007 = vld [vmem:[#allocation2 + $0xb8] sm:$0xff]
        %v1008 = vld [vmem:[#allocation2 + $0xc0] sm:$0xff]
        %v1009 = vld [vmem:[#allocation2 + $0xc8] sm:$0xff]
        %v1010 = vld [vmem:[#allocation2 + $0xd0] sm:$0xff]
        %v1011 = vld [vmem:[#allocation2 + $0xd8] sm:$0xff]
        %v1012 = vld [vmem:[#allocation2 + $0xe0] sm:$0xff]
        %v1013 = vld [vmem:[#allocation2 + $0xe8] sm:$0xff]
        %v1014 = vld [vmem:[#allocation2 + $0xf0] sm:$0xff]
        %v1015 = vld [vmem:[#allocation2 + $0xf8] sm:$0xff]
        %v1016 = vld [vmem:[#allocation2 + $0x100] sm:$0xff]
        %v1017 = vld [vmem:[#allocation2 + $0x108] sm:$0xff]
        %v1018 = vld [vmem:[#allocation2 + $0x110] sm:$0xff]
        %v1019 = vld [vmem:[#allocation2 + $0x118] sm:$0xff]
        %v1020 = vld [vmem:[#allocation2 + $0x120] sm:$0xff]
        %v1021 = vld [vmem:[#allocation2 + $0x128] sm:$0xff]
        %v1022 = vld [vmem:[#allocation2 + $0x130] sm:$0xff]
        %v1023 = vld [vmem:[#allocation2 + $0x138] sm:$0xff]
        %v1024 = vld [vmem:[#allocation2 + $0x140] sm:$0xff]
        %v1025 = vld [vmem:[#allocation2 + $0x148] sm:$0xff]
        %v1026 = vld [vmem:[%s2] sm:$0x1]
        %v1028 = vlaneseq
        %v1029 = vshrl.u32 %v1028, 7
        %v1030 = vsub.s32 0, %v1029
        %v1031 = vrot.slane %v1026, %v1030
        %v1033 = vadd.f32 %v984, %v1031
        %v1034 = vadd.f32 %v985, %v1031
        %v1035 = vadd.f32 %v986, %v1031
        %v1036 = vadd.f32 %v987, %v1031
        %v1037 = vadd.f32 %v988, %v1031
        %v1038 = vadd.f32 %v989, %v1031
        %v1039 = vadd.f32 %v990, %v1031
        %v1040 = vadd.f32 %v991, %v1031
        %v1041 = vadd.f32 %v992, %v1031
        %v1042 = vadd.f32 %v993, %v1031
        %v1043 = vadd.f32 %v994, %v1031
        %v1044 = vadd.f32 %v995, %v1031
        %v1045 = vadd.f32 %v996, %v1031
        %v1046 = vadd.f32 %v997, %v1031
        %v1047 = vadd.f32 %v998, %v1031
        %v1048 = vadd.f32 %v999, %v1031
        %v1049 = vadd.f32 %v1000, %v1031
        %v1050 = vadd.f32 %v1001, %v1031
        %v1051 = vadd.f32 %v1002, %v1031
        %v1052 = vadd.f32 %v1003, %v1031
        %v1053 = vadd.f32 %v1004, %v1031
        %v1054 = vadd.f32 %v1005, %v1031
        %v1055 = vadd.f32 %v1006, %v1031
        %v1056 = vadd.f32 %v1007, %v1031
        %v1057 = vadd.f32 %v1008, %v1031
        %v1058 = vadd.f32 %v1009, %v1031
        %v1059 = vadd.f32 %v1010, %v1031
        %v1060 = vadd.f32 %v1011, %v1031
        %v1061 = vadd.f32 %v1012, %v1031
        %v1062 = vadd.f32 %v1013, %v1031
        %v1063 = vadd.f32 %v1014, %v1031
        %v1064 = vadd.f32 %v1015, %v1031
        %v1065 = vadd.f32 %v1016, %v1031
        %v1066 = vadd.f32 %v1017, %v1031
        %v1067 = vadd.f32 %v1018, %v1031
        %v1068 = vadd.f32 %v1019, %v1031
        %v1069 = vadd.f32 %v1020, %v1031
        %v1070 = vadd.f32 %v1021, %v1031
        %v1071 = vadd.f32 %v1022, %v1031
        %v1072 = vadd.f32 %v1023, %v1031
        %v1073 = vadd.f32 %v1024, %v1031
        %v1074 = vadd.f32 %v1025, %v1031
        %v1075 = vmax.f32 %v1033, 0.0
        %v1076 = vmax.f32 %v1034, 0.0
        %v1077 = vmax.f32 %v1035, 0.0
        %v1078 = vmax.f32 %v1036, 0.0
        %v1079 = vmax.f32 %v1037, 0.0
        %v1080 = vmax.f32 %v1038, 0.0
        %v1081 = vmax.f32 %v1039, 0.0
        %v1082 = vmax.f32 %v1040, 0.0
        %v1083 = vmax.f32 %v1041, 0.0
        %v1084 = vmax.f32 %v1042, 0.0
        %v1085 = vmax.f32 %v1043, 0.0
        %v1086 = vmax.f32 %v1044, 0.0
        %v1087 = vmax.f32 %v1045, 0.0
        %v1088 = vmax.f32 %v1046, 0.0
        %v1089 = vmax.f32 %v1047, 0.0
        %v1090 = vmax.f32 %v1048, 0.0
        %v1091 = vmax.f32 %v1049, 0.0
        %v1092 = vmax.f32 %v1050, 0.0
        %v1093 = vmax.f32 %v1051, 0.0
        %v1094 = vmax.f32 %v1052, 0.0
        %v1095 = vmax.f32 %v1053, 0.0
        %v1096 = vmax.f32 %v1054, 0.0
        %v1097 = vmax.f32 %v1055, 0.0
        %v1098 = vmax.f32 %v1056, 0.0
        %v1099 = vmax.f32 %v1057, 0.0
        %v1100 = vmax.f32 %v1058, 0.0
        %v1101 = vmax.f32 %v1059, 0.0
        %v1102 = vmax.f32 %v1060, 0.0
        %v1103 = vmax.f32 %v1061, 0.0
        %v1104 = vmax.f32 %v1062, 0.0
        %v1105 = vmax.f32 %v1063, 0.0
        %v1106 = vmax.f32 %v1064, 0.0
        %v1107 = vmax.f32 %v1065, 0.0
        %v1108 = vmax.f32 %v1066, 0.0
        %v1109 = vmax.f32 %v1067, 0.0
        %v1110 = vmax.f32 %v1068, 0.0
        %v1111 = vmax.f32 %v1069, 0.0
        %v1112 = vmax.f32 %v1070, 0.0
        %v1113 = vmax.f32 %v1071, 0.0
        %v1114 = vmax.f32 %v1072, 0.0
        %v1115 = vmax.f32 %v1073, 0.0
        %v1116 = vmax.f32 %v1074, 0.0
        %v1117 = vpack.c.bf16 %v1076, %v1075
        %v1118 = vpack.c.bf16 %v1078, %v1077
        %v1119 = vpack.c.bf16 %v1080, %v1079
        %v1120 = vpack.c.bf16 %v1082, %v1081
        %v1121 = vpack.c.bf16 %v1084, %v1083
        %v1122 = vpack.c.bf16 %v1086, %v1085
        %v1123 = vpack.c.bf16 %v1088, %v1087
        %v1124 = vpack.c.bf16 %v1090, %v1089
        %v1125 = vpack.c.bf16 %v1092, %v1091
        %v1126 = vpack.c.bf16 %v1094, %v1093
        %v1127 = vpack.c.bf16 %v1096, %v1095
        %v1128 = vpack.c.bf16 %v1098, %v1097
        %v1129 = vpack.c.bf16 %v1100, %v1099
        %v1130 = vpack.c.bf16 %v1102, %v1101
        %v1131 = vpack.c.bf16 %v1104, %v1103
        %v1132 = vpack.c.bf16 %v1106, %v1105
        %v1133 = vpack.c.bf16 %v1108, %v1107
        %v1134 = vpack.c.bf16 %v1110, %v1109
        %v1135 = vpack.c.bf16 %v1112, %v1111
        %v1136 = vpack.c.bf16 %v1114, %v1113
        %v1137 = vpack.c.bf16 %v1116, %v1115
        %v1159 = vunpack.c.l.b16 %v1117
        %v1160 = vunpack.c.h.b16 %v1117
        %v1161 = vunpack.c.l.b16 %v1118
        %v1162 = vunpack.c.h.b16 %v1118
        %v1163 = vunpack.c.l.b16 %v1119
        %v1164 = vunpack.c.h.b16 %v1119
        %v1165 = vunpack.c.l.b16 %v1120
        %v1166 = vunpack.c.h.b16 %v1120
        %v1167 = vunpack.c.l.b16 %v1121
        %v1168 = vunpack.c.h.b16 %v1121
        %v1169 = vunpack.c.l.b16 %v1122
        %v1170 = vunpack.c.h.b16 %v1122
        %v1171 = vunpack.c.l.b16 %v1123
        %v1172 = vunpack.c.h.b16 %v1123
        %v1173 = vunpack.c.l.b16 %v1124
        %v1174 = vunpack.c.h.b16 %v1124
        %v1175 = vunpack.c.l.b16 %v1125
        %v1176 = vunpack.c.h.b16 %v1125
        %v1177 = vunpack.c.l.b16 %v1126
        %v1178 = vunpack.c.h.b16 %v1126
        %v1179 = vunpack.c.l.b16 %v1127
        %v1180 = vunpack.c.h.b16 %v1127
        %v1181 = vunpack.c.l.b16 %v1128
        %v1182 = vunpack.c.h.b16 %v1128
        %v1183 = vunpack.c.l.b16 %v1129
        %v1184 = vunpack.c.h.b16 %v1129
        %v1185 = vunpack.c.l.b16 %v1130
        %v1186 = vunpack.c.h.b16 %v1130
        %v1187 = vunpack.c.l.b16 %v1131
        %v1188 = vunpack.c.h.b16 %v1131
        %v1189 = vunpack.c.l.b16 %v1132
        %v1190 = vunpack.c.h.b16 %v1132
        %v1191 = vunpack.c.l.b16 %v1133
        %v1192 = vunpack.c.h.b16 %v1133
        %v1193 = vunpack.c.l.b16 %v1134
        %v1194 = vunpack.c.h.b16 %v1134
        %v1195 = vunpack.c.l.b16 %v1135
        %v1196 = vunpack.c.h.b16 %v1135
        %v1197 = vunpack.c.l.b16 %v1136
        %v1198 = vunpack.c.h.b16 %v1136
        %v1199 = vunpack.c.l.b16 %v1137
        %v1200 = vunpack.c.h.b16 %v1137
        %v1201 = vpack.c.b16 %v1159, %v1159
        %v1202 = vpack.c.b16 %v1160, %v1160
        %v1203 = vpack.c.b16 %v1161, %v1161
        %v1204 = vpack.c.b16 %v1162, %v1162
        %v1205 = vpack.c.b16 %v1163, %v1163
        %v1206 = vpack.c.b16 %v1164, %v1164
        %v1207 = vpack.c.b16 %v1165, %v1165
        %v1208 = vpack.c.b16 %v1166, %v1166
        %v1209 = vpack.c.b16 %v1167, %v1167
        %v1210 = vpack.c.b16 %v1168, %v1168
        %v1211 = vpack.c.b16 %v1169, %v1169
        %v1212 = vpack.c.b16 %v1170, %v1170
        %v1213 = vpack.c.b16 %v1171, %v1171
        %v1214 = vpack.c.b16 %v1172, %v1172
        %v1215 = vpack.c.b16 %v1173, %v1173
        %v1216 = vpack.c.b16 %v1174, %v1174
        %v1217 = vpack.c.b16 %v1175, %v1175
        %v1218 = vpack.c.b16 %v1176, %v1176
        %v1219 = vpack.c.b16 %v1177, %v1177
        %v1220 = vpack.c.b16 %v1178, %v1178
        %v1221 = vpack.c.b16 %v1179, %v1179
        %v1222 = vpack.c.b16 %v1180, %v1180
        %v1223 = vpack.c.b16 %v1181, %v1181
        %v1224 = vpack.c.b16 %v1182, %v1182
        %v1225 = vpack.c.b16 %v1183, %v1183
        %v1226 = vpack.c.b16 %v1184, %v1184
        %v1227 = vpack.c.b16 %v1185, %v1185
        %v1228 = vpack.c.b16 %v1186, %v1186
        %v1229 = vpack.c.b16 %v1187, %v1187
        %v1230 = vpack.c.b16 %v1188, %v1188
        %v1231 = vpack.c.b16 %v1189, %v1189
        %v1232 = vpack.c.b16 %v1190, %v1190
        %v1233 = vpack.c.b16 %v1191, %v1191
        %v1234 = vpack.c.b16 %v1192, %v1192
        %v1235 = vpack.c.b16 %v1193, %v1193
        %v1236 = vpack.c.b16 %v1194, %v1194
        %v1237 = vpack.c.b16 %v1195, %v1195
        %v1238 = vpack.c.b16 %v1196, %v1196
        %v1239 = vpack.c.b16 %v1197, %v1197
        %v1240 = vpack.c.b16 %v1198, %v1198
        %v1241 = vpack.c.b16 %v1199, %v1199
        %v1242 = vpack.c.b16 %v1200, %v1200
        %1285 = vst [vmem:[%s225] sm:$0xf] %v1201
        %1286 = vst [vmem:[%s225 + $0x4] sm:$0xf] %v1202
        %1287 = vst [vmem:[%s225 + $0x8] sm:$0xf] %v1203
        %1288 = vst [vmem:[%s225 + $0xc] sm:$0xf] %v1204
        %1289 = vst [vmem:[%s225 + $0x10] sm:$0xf] %v1205
        %1290 = vst [vmem:[%s225 + $0x14] sm:$0xf] %v1206
        %1291 = vst [vmem:[%s225 + $0x18] sm:$0xf] %v1207
        %1292 = vst [vmem:[%s225 + $0x1c] sm:$0xf] %v1208
        %1293 = vst [vmem:[%s225 + $0x20] sm:$0xf] %v1209
        %1294 = vst [vmem:[%s225 + $0x24] sm:$0xf] %v1210
        %1295 = vst [vmem:[%s225 + $0x28] sm:$0xf] %v1211
        %1296 = vst [vmem:[%s225 + $0x2c] sm:$0xf] %v1212
        %1297 = vst [vmem:[%s225 + $0x30] sm:$0xf] %v1213
        %1298 = vst [vmem:[%s225 + $0x34] sm:$0xf] %v1214
        %1299 = vst [vmem:[%s225 + $0x38] sm:$0xf] %v1215
        %1300 = vst [vmem:[%s225 + $0x3c] sm:$0xf] %v1216
        %1301 = vst [vmem:[%s225 + $0x40] sm:$0xf] %v1217
        %1302 = vst [vmem:[%s225 + $0x44] sm:$0xf] %v1218
        %1303 = vst [vmem:[%s225 + $0x48] sm:$0xf] %v1219
        %1304 = vst [vmem:[%s225 + $0x4c] sm:$0xf] %v1220
        %1305 = vst [vmem:[%s225 + $0x50] sm:$0xf] %v1221
        %1306 = vst [vmem:[%s225 + $0x54] sm:$0xf] %v1222
        %1307 = vst [vmem:[%s225 + $0x58] sm:$0xf] %v1223
        %1308 = vst [vmem:[%s225 + $0x5c] sm:$0xf] %v1224
        %1309 = vst [vmem:[%s225 + $0x60] sm:$0xf] %v1225
        %1310 = vst [vmem:[%s225 + $0x64] sm:$0xf] %v1226
        %1311 = vst [vmem:[%s225 + $0x68] sm:$0xf] %v1227
        %1312 = vst [vmem:[%s225 + $0x6c] sm:$0xf] %v1228
        %1313 = vst [vmem:[%s225 + $0x70] sm:$0xf] %v1229
        %1314 = vst [vmem:[%s225 + $0x74] sm:$0xf] %v1230
        %1315 = vst [vmem:[%s225 + $0x78] sm:$0xf] %v1231
        %1316 = vst [vmem:[%s225 + $0x7c] sm:$0xf] %v1232
        %1317 = vst [vmem:[%s225 + $0x80] sm:$0xf] %v1233
        %1318 = vst [vmem:[%s225 + $0x84] sm:$0xf] %v1234
        %1319 = vst [vmem:[%s225 + $0x88] sm:$0xf] %v1235
        %1320 = vst [vmem:[%s225 + $0x8c] sm:$0xf] %v1236
        %1321 = vst [vmem:[%s225 + $0x90] sm:$0xf] %v1237
        %1322 = vst [vmem:[%s225 + $0x94] sm:$0xf] %v1238
        %1323 = vst [vmem:[%s225 + $0x98] sm:$0xf] %v1239
        %1324 = vst [vmem:[%s225 + $0x9c] sm:$0xf] %v1240
        %1325 = vst [vmem:[%s225 + $0xa0] sm:$0xf] %v1241
        %1326 = vst [vmem:[%s225 + $0xa4] sm:$0xf] %v1242
      $region40: #{forward.4} parent=31 // pred_fallthru
        _
      %s1327 = smul.u32 42, %s18
      %p1328 = scmp.lt.s32.totalorder %s1327, 83
      %s1329 = scalar_select %p1328, %s1327, 83
      %s1330 = smul.addr %s1329, 4
      %s1331 = scalar_lea.vmem %s3, %s1330
      // Predicated region
      $region41: #{forward.4} parent=31 // pred_check
        %p1332 = pneg %p119
      $region42: #{forward.4} parent=31 // pred_check_branch
        %1334 = sbr.rel (%p1332) target = $region44
      $region43: #{forward.4} parent=31 // pred_region
        %s1335 = smul.u32 42, %s18
      $region44: #{forward.4} parent=31 // pred_fallthru
        _
    $region32: #{forward.4} parent=5 // pred_fallthru
      _
    %p1336 = scmp.le.s32.totalorder 2, %s9
    // Predicated region
    $region45: #{forward.4} parent=5 // pred_check
      %p1337 = pneg %p1336
    $region46: #{forward.4} parent=5 // pred_check_branch
      %1339 = sbr.rel (%p1337) target = $region48
    $region47: #{forward.4} parent=5 // pred_region
      %s1340 = ssub.s32 %s9, 2
      // Predicated region
      $region49: #{forward.4} parent=47 // pred_check
        %p1341 = pneg %p125
      $region50: #{forward.4} parent=47 // pred_check_branch
        %1343 = sbr.rel (%p1341) target = $region52
      $region51: #{forward.4} parent=47 // pred_region
        %s1344 = smul.u32 42, %s20
        %p1345 = scmp.lt.s32.totalorder %s1344, 83
        %s1346 = scalar_select %p1345, %s1344, 83
        %s1347 = smul.addr %s1346, 4
        %s1348 = scalar_lea.vmem %s3, %s1347
      $region52: #{forward.4} parent=47 // pred_fallthru
        _
    $region48: #{forward.4} parent=5 // pred_fallthru
      _
  $region6: #{forward.4} parent=0 // loop_footer
    %s13 = sadd.s32 1, %s9
  $region7: #{forward.4} parent=0 // loop_footer_branch
    %8 = sbr.rel target = $region3
  $region8: #{forward.4} parent=0 // loop_exit
    _

// kernel: forward.5
$region0: #{forward.5}
  #allocation0 [shape = 'u32[]', space=smem, size = 0x4, offset = 0x4, fixed_abs, tag = 'smem constant byte address 0x4 - core index']
  #allocation1 [shape = 'u32[144,128]{1,0:T(1,128)}', space=vmem, size = 0x12000, scoped, tag = 'internal scratch']
  #allocation2 [shape = 'f32[64,128]{1,0:T(8,128)}', space=vmem, size = 0x8000, scoped, tag = 'scratch operand']
  %s0 = inlined_call_operand.vmem [shape: bf16[128,512], index: 0, kind: input, shape index: {}]
  %s1 = inlined_call_operand.vmem [shape: bf16[512,128], index: 1, kind: input, shape index: {}]
  %s2 = inlined_call_operand.vmem [shape: f32[1,128], index: 2, kind: input, shape index: {}]
  %s3 = inlined_call_operand.vmem [shape: bf16[128,128], index: 3, kind: output, shape index: {}]
  %s4 = sld [smem:[#allocation0]]
  $region53: #{forward.5} parent=0
    _
  %s6 = ssub.s32 1, %s4
  %s7 = scalar_select 0, %s6, %s4
  loop: start=0, step=1, limit=4
  $region2: #{forward.5} parent=0 // loop_pre_header
    _
  $region3: #{forward.5} parent=0 // loop_header
    %s9 = sphi 0, %s13
    %p10 = scmp.ge.s32.totalorder %s9, 4
    %s16 = sphi 0, %s28
    %s17 = sphi 0, %s24
    %s18 = sphi 0, %s16
    %s19 = sphi 0, %s17
    %s20 = sphi 0, %s18
    %s21 = sphi 0, %s19
    %s33 = sphi 0, %s35
    %s36 = sphi 0, %s33
    %s37 = sphi 0, %s36
    %s53 = sphi 0, %s37
    %s59 = sphi 0, %s61
    %s62 = sphi 0, %s59
    %s63 = sphi 0, %s62
    %s79 = sphi 0, %s63
    %s83 = sphi 0, %s83
    %s85 = sphi 0, %s83
    %s86 = sphi 0, %s85
    %s100 = sphi 0, %s86
    %s106 = sphi 0, %s108
    %s109 = sphi 0, %s106
    %s110 = sphi 0, %s109
    %s126 = sphi 0, %s110
  $region4: #{forward.5} parent=0 // loop_header_branch
    %12 = sbr.rel (%p10) target = $region8
  $region5: #{forward.5} parent=0 // loop_body
    %s14 = ssub.s32 %s9, 1
    %s15 = ssub.s32 %s9, 2
    %s22 = sadd.s32 1, %s17
    %p23 = scmp.ge.s32.totalorder %s22, 1
    %s24 = scalar_select %p23, 0, %s22
    %s25 = sadd.s32 1, %s16
    %s26 = scalar_select %p23, %s25, %s16
    %p27 = scmp.ge.s32.totalorder %s26, 2
    %s28 = scalar_select %p27, 0, %s26
    %s29 = ssub.s32 %s16, %s28
    %s30 = ssub.s32 %s17, %s24
    %s31 = sor.u32 %s29, %s30
    %p32 = scmp.eq.s32.totalorder %s31, 0
    %s34 = sadd.s32 %s33, 1
    %s35 = scalar_select %p32, %s33, %s34
    %p38 = pneg %p32
    %p39 = scmp.eq.s32.totalorder %s9, 1
    %p40 = por %p38, %p39
    %p41 = scmp.ne.s32.totalorder %s33, %s36
    %p42 = scmp.eq.s32.totalorder %s9, 0
    %p43 = por %p41, %p42
    %p44 = scmp.ne.s32.totalorder %s33, %s36
    %p45 = scmp.eq.s32.totalorder %s14, 1
    %p46 = por %p44, %p45
    %p47 = scmp.ne.s32.totalorder %s36, %s37
    %p48 = scmp.eq.s32.totalorder %s14, 0
    %p49 = por %p47, %p48
    %p50 = scmp.ne.s32.totalorder %s36, %s37
    %p51 = scmp.eq.s32.totalorder %s15, 1
    %p52 = por %p50, %p51
    %p54 = scmp.ne.s32.totalorder %s37, %s53
    %p55 = scmp.eq.s32.totalorder %s15, 0
    %p56 = por %p54, %p55
    %s57 = ssub.s32 %s17, %s24
    %p58 = scmp.eq.s32.totalorder %s57, 0
    %s60 = sadd.s32 %s59, 1
    %s61 = scalar_select %p58, %s59, %s60
    %p64 = pneg %p58
    %p65 = scmp.eq.s32.totalorder %s9, 1
    %p66 = por %p64, %p65
    %p67 = scmp.ne.s32.totalorder %s59, %s62
    %p68 = scmp.eq.s32.totalorder %s9, 0
    %p69 = por %p67, %p68
    %p70 = scmp.ne.s32.totalorder %s59, %s62
    %p71 = scmp.eq.s32.totalorder %s14, 1
    %p72 = por %p70, %p71
    %p73 = scmp.ne.s32.totalorder %s62, %s63
    %p74 = scmp.eq.s32.totalorder %s14, 0
    %p75 = por %p73, %p74
    %p76 = scmp.ne.s32.totalorder %s62, %s63
    %p77 = scmp.eq.s32.totalorder %s15, 1
    %p78 = por %p76, %p77
    %p80 = scmp.ne.s32.totalorder %s63, %s79
    %p81 = scmp.eq.s32.totalorder %s15, 0
    %p82 = por %p80, %p81
    %s84 = sadd.s32 %s83, 1
    %p87 = scmp.eq.s32.totalorder %s9, 1
    %p88 = scmp.ne.s32.totalorder %s83, %s85
    %p89 = scmp.eq.s32.totalorder %s9, 0
    %p90 = por %p88, %p89
    %p91 = scmp.ne.s32.totalorder %s83, %s85
    %p92 = scmp.eq.s32.totalorder %s14, 1
    %p93 = por %p91, %p92
    %p94 = scmp.ne.s32.totalorder %s85, %s86
    %p95 = scmp.eq.s32.totalorder %s14, 0
    %p96 = por %p94, %p95
    %p97 = scmp.ne.s32.totalorder %s85, %s86
    %p98 = scmp.eq.s32.totalorder %s15, 1
    %p99 = por %p97, %p98
    %p101 = scmp.ne.s32.totalorder %s86, %s100
    %p102 = scmp.eq.s32.totalorder %s15, 0
    %p103 = por %p101, %p102
    %s104 = ssub.s32 %s16, %s28
    %p105 = scmp.eq.s32.totalorder %s104, 0
    %s107 = sadd.s32 %s106, 1
    %s108 = scalar_select %p105, %s106, %s107
    %p111 = pneg %p105
    %p112 = scmp.eq.s32.totalorder %s9, 1
    %p113 = por %p111, %p112
    %p114 = scmp.ne.s32.totalorder %s106, %s109
    %p115 = scmp.eq.s32.totalorder %s9, 0
    %p116 = por %p114, %p115
    %p117 = scmp.ne.s32.totalorder %s106, %s109
    %p118 = scmp.eq.s32.totalorder %s14, 1
    %p119 = por %p117, %p118
    %p120 = scmp.ne.s32.totalorder %s109, %s110
    %p121 = scmp.eq.s32.totalorder %s14, 0
    %p122 = por %p120, %p121
    %p123 = scmp.ne.s32.totalorder %s109, %s110
    %p124 = scmp.eq.s32.totalorder %s15, 1
    %p125 = por %p123, %p124
    %p127 = scmp.ne.s32.totalorder %s110, %s126
    %p128 = scmp.eq.s32.totalorder %s15, 0
    %p129 = por %p127, %p128
    %p130 = scmp.le.s32.totalorder 1, %s9
    %p131 = scmp.lt.s32.totalorder %s9, 3
    %p132 = pnand %p130, %p131
    %p133 = pneg %p132
    // Predicated region
    $region9: #{forward.5} parent=5 // pred_check
      _
    $region10: #{forward.5} parent=5 // pred_check_branch
      %135 = sbr.rel (%p132) target = $region12
    $region11: #{forward.5} parent=5 // pred_region
      %s136 = ssub.s32 %s9, 1
      // Predicated region
      $region13: #{forward.5} parent=11 // pred_check
        %p137 = pneg %p75
      $region14: #{forward.5} parent=11 // pred_check_branch
        %139 = sbr.rel (%p137) target = $region16
      $region15: #{forward.5} parent=11 // pred_region
        %s140 = smul.u32 64, %s19
        %p141 = scmp.lt.s32.totalorder %s140, 63
        %s142 = scalar_select %p141, %s140, 63
        %s143 = smul.addr %s142, 4
        %s144 = scalar_lea.vmem %s1, %s143
        %s145 = smul.u32 64, %s19
      $region16: #{forward.5} parent=11 // pred_fallthru
        _
      // Predicated region
      $region17: #{forward.5} parent=11 // pred_check
        %p146 = pneg %p96
      $region18: #{forward.5} parent=11 // pred_check_branch
        %148 = sbr.rel (%p146) target = $region20
      $region19: #{forward.5} parent=11 // pred_region
        _
      $region20: #{forward.5} parent=11 // pred_fallthru
        _
    $region12: #{forward.5} parent=5 // pred_fallthru
      _
    %p149 = scmp.lt.s32.totalorder %s9, 2
    // Predicated region
    $region21: #{forward.5} parent=5 // pred_check
      %p150 = pneg %p149
    $region22: #{forward.5} parent=5 // pred_check_branch
      %152 = sbr.rel (%p150) target = $region24
    $region23: #{forward.5} parent=5 // pred_region
      // Predicated region
      $region25: #{forward.5} parent=23 // pred_check
        %p153 = pneg %p43
      $region26: #{forward.5} parent=23 // pred_check_branch
        %155 = sbr.rel (%p153) target = $region28
      $region27: #{forward.5} parent=23 // pred_region
        %s156 = smul.u32 8, %s16
        %s157 = smul.u32 4, %s17
        %p158 = scmp.lt.s32.totalorder %s156, 15
        %s159 = scalar_select %p158, %s156, 15
        %p160 = scmp.lt.s32.totalorder %s157, 3
        %s161 = scalar_select %p160, %s157, 3
        %s162 = smul.addr %s159, 4
        %s163 = sadd.s32 %s161, %s162
        %s164 = smul.addr %s163, 4
        %s165 = scalar_lea.vmem %s0, %s164
        %s166 = smul.u32 8, %s16
        %s167 = smul.u32 4, %s17
      $region28: #{forward.5} parent=23 // pred_fallthru
        _
    $region24: #{forward.5} parent=5 // pred_fallthru
      _
    %p168 = scmp.le.s32.totalorder 1, %s9
    %p169 = scmp.lt.s32.totalorder %s9, 3
    %p170 = pnand %p168, %p169
    %p171 = pneg %p170
    // Predicated region
    $region29: #{forward.5} parent=5 // pred_check
      _
    $region30: #{forward.5} parent=5 // pred_check_branch
      %173 = sbr.rel (%p170) target = $region32
    $region31: #{forward.5} parent=5 // pred_region
      %s174 = ssub.s32 %s9, 1
      %s175 = smul.u32 8, %s18
      %s176 = smul.u32 4, %s19
      %p177 = scmp.lt.s32.totalorder %s175, 15
      %s178 = scalar_select %p177, %s175, 15
      %p179 = scmp.lt.s32.totalorder %s176, 3
      %s180 = scalar_select %p179, %s176, 3
      %s181 = smul.addr %s178, 4
      %s182 = sadd.s32 %s180, %s181
      %s183 = smul.addr %s182, 4
      %s184 = scalar_lea.vmem %s0, %s183
      %p185 = pneg %p49
      %p186 = pneg %p46
      %s187 = smul.u32 64, %s19
      %p188 = scmp.lt.s32.totalorder %s187, 63
      %s189 = scalar_select %p188, %s187, 63
      %s190 = smul.addr %s189, 4
      %s191 = scalar_lea.vmem %s1, %s190
      %p192 = pneg %p75
      %p193 = pneg %p72
      %p194 = pneg %p96
      %p195 = pneg %p93
      %p196 = pneg %p122
      %p197 = pneg %p119
      %s198 = smul.u32 8, %s18
      %p199 = scmp.lt.s32.totalorder %s198, 15
      %s200 = scalar_select %p199, %s198, 15
      %s201 = smul.addr %s200, 4
      %s202 = scalar_lea.vmem %s3, %s201
      %s203 = smul.u32 8, %s18
      %s204 = smul.u32 4, %s19
      %p205 = scmp.lt.s32.totalorder %s203, 15
      %s206 = scalar_select %p205, %s203, 15
      %p207 = scmp.lt.s32.totalorder %s204, 3
      %s208 = scalar_select %p207, %s204, 3
      %s209 = smul.addr %s206, 4
      %s210 = sadd.s32 %s208, %s209
      %s211 = smul.addr %s210, 4
      %s212 = scalar_lea.vmem %s0, %s211
      %s213 = smul.u32 8, %s18
      %s214 = smul.u32 4, %s19
      %s215 = smul.u32 64, %s19
      %p216 = scmp.lt.s32.totalorder %s215, 63
      %s217 = scalar_select %p216, %s215, 63
      %s218 = smul.addr %s217, 4
      %s219 = scalar_lea.vmem %s1, %s218
      %s220 = smul.u32 64, %s19
      %s221 = smul.u32 8, %s18
      %p222 = scmp.lt.s32.totalorder %s221, 15
      %s223 = scalar_select %p222, %s221, 15
      %s224 = smul.addr %s223, 4
      %s225 = scalar_lea.vmem %s3, %s224
      %s226 = smul.u32 8, %s18
      %p228 = scmp.eq.s32.totalorder %s19, 0
      // Predicated region
      $region33: #{forward.5} parent=31 // pred_check
        %p229 = pneg %p228
      $region34: #{forward.5} parent=31 // pred_check_branch
        %231 = sbr.rel (%p229) target = $region36
      $region35: #{forward.5} parent=31 // pred_region
        %232 = vst [vmem:[#allocation2] sm:$0xff] 0.0
        %233 = vst [vmem:[#allocation2 + $0x8] sm:$0xff] 0.0
        %234 = vst [vmem:[#allocation2 + $0x10] sm:$0xff] 0.0
        %235 = vst [vmem:[#allocation2 + $0x18] sm:$0xff] 0.0
        %236 = vst [vmem:[#allocation2 + $0x20] sm:$0xff] 0.0
        %237 = vst [vmem:[#allocation2 + $0x28] sm:$0xff] 0.0
        %238 = vst [vmem:[#allocation2 + $0x30] sm:$0xff] 0.0
        %239 = vst [vmem:[#allocation2 + $0x38] sm:$0xff] 0.0
      $region36: #{forward.5} parent=31 // pred_fallthru
        _
      %v240 = vld [vmem:[#allocation2] sm:$0xff]
      %v241 = vld [vmem:[#allocation2 + $0x8] sm:$0xff]
      %v242 = vld [vmem:[#allocation2 + $0x10] sm:$0xff]
      %v243 = vld [vmem:[#allocation2 + $0x18] sm:$0xff]
      %v244 = vld [vmem:[#allocation2 + $0x20] sm:$0xff]
      %v245 = vld [vmem:[#allocation2 + $0x28] sm:$0xff]
      %v246 = vld [vmem:[#allocation2 + $0x30] sm:$0xff]
      %v247 = vld [vmem:[#allocation2 + $0x38] sm:$0xff]
      %v248 = vld [vmem:[%s212] sm:$0xff]
      %v249 = vld [vmem:[%s212 + $0x8] sm:$0xff]
      %v250 = vld [vmem:[%s212 + $0x10] sm:$0xff]
      %v251 = vld [vmem:[%s212 + $0x18] sm:$0xff]
      %v252 = vld [vmem:[%s212 + $0x20] sm:$0xff]
      %v253 = vld [vmem:[%s212 + $0x28] sm:$0xff]
      %v254 = vld [vmem:[%s212 + $0x30] sm:$0xff]
      %v255 = vld [vmem:[%s212 + $0x38] sm:$0xff]
      %v256 = vld [vmem:[%s212 + $0x40] sm:$0xff]
      %v257 = vld [vmem:[%s212 + $0x48] sm:$0xff]
      %v258 = vld [vmem:[%s212 + $0x50] sm:$0xff]
      %v259 = vld [vmem:[%s212 + $0x58] sm:$0xff]
      %v260 = vld [vmem:[%s212 + $0x60] sm:$0xff]
      %v261 = vld [vmem:[%s212 + $0x68] sm:$0xff]
      %v262 = vld [vmem:[%s212 + $0x70] sm:$0xff]
      %v263 = vld [vmem:[%s212 + $0x78] sm:$0xff]
      %v264 = vld [vmem:[%s219] sm:$0xf]
      %v265 = vld [vmem:[%s219 + $0x4] sm:$0xf]
      %v266 = vld [vmem:[%s219 + $0x8] sm:$0xf]
      %v267 = vld [vmem:[%s219 + $0xc] sm:$0xf]
      %v268 = vld [vmem:[%s219 + $0x10] sm:$0xf]
      %v269 = vld [vmem:[%s219 + $0x14] sm:$0xf]
      %v270 = vld [vmem:[%s219 + $0x18] sm:$0xf]
      %v271 = vld [vmem:[%s219 + $0x1c] sm:$0xf]
      %v272 = vld [vmem:[%s219 + $0x20] sm:$0xf]
      %v273 = vld [vmem:[%s219 + $0x24] sm:$0xf]
      %v274 = vld [vmem:[%s219 + $0x28] sm:$0xf]
      %v275 = vld [vmem:[%s219 + $0x2c] sm:$0xf]
      %v276 = vld [vmem:[%s219 + $0x30] sm:$0xf]
      %v277 = vld [vmem:[%s219 + $0x34] sm:$0xf]
      %v278 = vld [vmem:[%s219 + $0x38] sm:$0xf]
      %v279 = vld [vmem:[%s219 + $0x3c] sm:$0xf]
      %v280 = vld [vmem:[%s219 + $0x40] sm:$0xf]
      %v281 = vld [vmem:[%s219 + $0x44] sm:$0xf]
      %v282 = vld [vmem:[%s219 + $0x48] sm:$0xf]
      %v283 = vld [vmem:[%s219 + $0x4c] sm:$0xf]
      %v284 = vld [vmem:[%s219 + $0x50] sm:$0xf]
      %v285 = vld [vmem:[%s219 + $0x54] sm:$0xf]
      %v286 = vld [vmem:[%s219 + $0x58] sm:$0xf]
      %v287 = vld [vmem:[%s219 + $0x5c] sm:$0xf]
      %v288 = vld [vmem:[%s219 + $0x60] sm:$0xf]
      %v289 = vld [vmem:[%s219 + $0x64] sm:$0xf]
      %v290 = vld [vmem:[%s219 + $0x68] sm:$0xf]
      %v291 = vld [vmem:[%s219 + $0x6c] sm:$0xf]
      %v292 = vld [vmem:[%s219 + $0x70] sm:$0xf]
      %v293 = vld [vmem:[%s219 + $0x74] sm:$0xf]
      %v294 = vld [vmem:[%s219 + $0x78] sm:$0xf]
      %v295 = vld [vmem:[%s219 + $0x7c] sm:$0xf]
      %v296 = vld [vmem:[%s219 + $0x80] sm:$0xf]
      %v297 = vld [vmem:[%s219 + $0x84] sm:$0xf]
      %v298 = vld [vmem:[%s219 + $0x88] sm:$0xf]
      %v299 = vld [vmem:[%s219 + $0x8c] sm:$0xf]
      %v300 = vld [vmem:[%s219 + $0x90] sm:$0xf]
      %v301 = vld [vmem:[%s219 + $0x94] sm:$0xf]
      %v302 = vld [vmem:[%s219 + $0x98] sm:$0xf]
      %v303 = vld [vmem:[%s219 + $0x9c] sm:$0xf]
      %v304 = vld [vmem:[%s219 + $0xa0] sm:$0xf]
      %v305 = vld [vmem:[%s219 + $0xa4] sm:$0xf]
      %v306 = vld [vmem:[%s219 + $0xa8] sm:$0xf]
      %v307 = vld [vmem:[%s219 + $0xac] sm:$0xf]
      %v308 = vld [vmem:[%s219 + $0xb0] sm:$0xf]
      %v309 = vld [vmem:[%s219 + $0xb4] sm:$0xf]
      %v310 = vld [vmem:[%s219 + $0xb8] sm:$0xf]
      %v311 = vld [vmem:[%s219 + $0xbc] sm:$0xf]
      %v312 = vld [vmem:[%s219 + $0xc0] sm:$0xf]
      %v313 = vld [vmem:[%s219 + $0xc4] sm:$0xf]
      %v314 = vld [vmem:[%s219 + $0xc8] sm:$0xf]
      %v315 = vld [vmem:[%s219 + $0xcc] sm:$0xf]
      %v316 = vld [vmem:[%s219 + $0xd0] sm:$0xf]
      %v317 = vld [vmem:[%s219 + $0xd4] sm:$0xf]
      %v318 = vld [vmem:[%s219 + $0xd8] sm:$0xf]
      %v319 = vld [vmem:[%s219 + $0xdc] sm:$0xf]
      %v320 = vld [vmem:[%s219 + $0xe0] sm:$0xf]
      %v321 = vld [vmem:[%s219 + $0xe4] sm:$0xf]
      %v322 = vld [vmem:[%s219 + $0xe8] sm:$0xf]
      %v323 = vld [vmem:[%s219 + $0xec] sm:$0xf]
      %v324 = vld [vmem:[%s219 + $0xf0] sm:$0xf]
      %v325 = vld [vmem:[%s219 + $0xf4] sm:$0xf]
      %v326 = vld [vmem:[%s219 + $0xf8] sm:$0xf]
      %v327 = vld [vmem:[%s219 + $0xfc] sm:$0xf]
      %v344 = vunpack.c.l.b16 %v248
      %v345 = vunpack.c.h.b16 %v248
      %v346 = vunpack.c.l.b16 %v249
      %v347 = vunpack.c.h.b16 %v249
      %v348 = vunpack.c.l.b16 %v250
      %v349 = vunpack.c.h.b16 %v250
      %v350 = vunpack.c.l.b16 %v251
      %v351 = vunpack.c.h.b16 %v251
      %v352 = vunpack.c.l.b16 %v252
      %v353 = vunpack.c.h.b16 %v252
      %v354 = vunpack.c.l.b16 %v253
      %v355 = vunpack.c.h.b16 %v253
      %v356 = vunpack.c.l.b16 %v254
      %v357 = vunpack.c.h.b16 %v254
      %v358 = vunpack.c.l.b16 %v255
      %v359 = vunpack.c.h.b16 %v255
      %v360 = vunpack.c.l.b16 %v256
      %v361 = vunpack.c.h.b16 %v256
      %v362 = vunpack.c.l.b16 %v257
      %v363 = vunpack.c.h.b16 %v257
      %v364 = vunpack.c.l.b16 %v258
      %v365 = vunpack.c.h.b16 %v258
      %v366 = vunpack.c.l.b16 %v259
      %v367 = vunpack.c.h.b16 %v259
      %v368 = vunpack.c.l.b16 %v260
      %v369 = vunpack.c.h.b16 %v260
      %v370 = vunpack.c.l.b16 %v261
      %v371 = vunpack.c.h.b16 %v261
      %v372 = vunpack.c.l.b16 %v262
      %v373 = vunpack.c.h.b16 %v262
      %v374 = vunpack.c.l.b16 %v263
      %v375 = vunpack.c.h.b16 %v263
      %v376 = vpack.c.b16 %v348, %v344
      %v377 = vpack.c.b16 %v349, %v345
      %v378 = vpack.c.b16 %v350, %v346
      %v379 = vpack.c.b16 %v351, %v347
      %v380 = vpack.c.b16 %v356, %v352
      %v381 = vpack.c.b16 %v357, %v353
      %v382 = vpack.c.b16 %v358, %v354
      %v383 = vpack.c.b16 %v359, %v355
      %v384 = vpack.c.b16 %v364, %v360
      %v385 = vpack.c.b16 %v365, %v361
      %v386 = vpack.c.b16 %v366, %v362
      %v387 = vpack.c.b16 %v367, %v363
      %v388 = vpack.c.b16 %v372, %v368
      %v389 = vpack.c.b16 %v373, %v369
      %v390 = vpack.c.b16 %v374, %v370
      %v391 = vpack.c.b16 %v375, %v371
      %v472 = vunpack.c.l.b16 %v264
      %v473 = vunpack.c.l.b16 %v265
      %v474 = vunpack.c.l.b16 %v266
      %v475 = vunpack.c.l.b16 %v267
      %v476 = vunpack.c.l.b16 %v268
      %v477 = vunpack.c.l.b16 %v269
      %v478 = vunpack.c.l.b16 %v270
      %v479 = vunpack.c.l.b16 %v271
      %v480 = vunpack.c.l.b16 %v272
      %v481 = vunpack.c.l.b16 %v273
      %v482 = vunpack.c.l.b16 %v274
      %v483 = vunpack.c.l.b16 %v275
      %v484 = vunpack.c.l.b16 %v276
      %v485 = vunpack.c.l.b16 %v277
      %v486 = vunpack.c.l.b16 %v278
      %v487 = vunpack.c.l.b16 %v279
      %v488 = vunpack.c.l.b16 %v280
      %v489 = vunpack.c.l.b16 %v281
      %v490 = vunpack.c.l.b16 %v282
      %v491 = vunpack.c.l.b16 %v283
      %v492 = vunpack.c.l.b16 %v284
      %v493 = vunpack.c.l.b16 %v285
      %v494 = vunpack.c.l.b16 %v286
      %v495 = vunpack.c.l.b16 %v287
      %v496 = vunpack.c.l.b16 %v288
      %v497 = vunpack.c.l.b16 %v289
      %v498 = vunpack.c.l.b16 %v290
      %v499 = vunpack.c.l.b16 %v291
      %v500 = vunpack.c.l.b16 %v292
      %v501 = vunpack.c.l.b16 %v293
      %v502 = vunpack.c.l.b16 %v294
      %v503 = vunpack.c.l.b16 %v295
      %v504 = vunpack.c.l.b16 %v296
      %v505 = vunpack.c.l.b16 %v297
      %v506 = vunpack.c.l.b16 %v298
      %v507 = vunpack.c.l.b16 %v299
      %v508 = vunpack.c.l.b16 %v300
      %v509 = vunpack.c.l.b16 %v301
      %v510 = vunpack.c.l.b16 %v302
      %v511 = vunpack.c.l.b16 %v303
      %v512 = vunpack.c.l.b16 %v304
      %v513 = vunpack.c.l.b16 %v305
      %v514 = vunpack.c.l.b16 %v306
      %v515 = vunpack.c.l.b16 %v307
      %v516 = vunpack.c.l.b16 %v308
      %v517 = vunpack.c.l.b16 %v309
      %v518 = vunpack.c.l.b16 %v310
      %v519 = vunpack.c.l.b16 %v311
      %v520 = vunpack.c.l.b16 %v312
      %v521 = vunpack.c.l.b16 %v313
      %v522 = vunpack.c.l.b16 %v314
      %v523 = vunpack.c.l.b16 %v315
      %v524 = vunpack.c.l.b16 %v316
      %v525 = vunpack.c.l.b16 %v317
      %v526 = vunpack.c.l.b16 %v318
      %v527 = vunpack.c.l.b16 %v319
      %v528 = vunpack.c.l.b16 %v320
      %v529 = vunpack.c.l.b16 %v321
      %v530 = vunpack.c.l.b16 %v322
      %v531 = vunpack.c.l.b16 %v323
      %v532 = vunpack.c.l.b16 %v324
      %v533 = vunpack.c.l.b16 %v325
      %v534 = vunpack.c.l.b16 %v326
      %v535 = vunpack.c.l.b16 %v327
      %v536 = vpack.c.b16 %v473, %v472
      %v537 = vpack.c.b16 %v475, %v474
      %v538 = vpack.c.b16 %v477, %v476
      %v539 = vpack.c.b16 %v479, %v478
      %v540 = vpack.c.b16 %v481, %v480
      %v541 = vpack.c.b16 %v483, %v482
      %v542 = vpack.c.b16 %v485, %v484
      %v543 = vpack.c.b16 %v487, %v486
      %v544 = vpack.c.b16 %v489, %v488
      %v545 = vpack.c.b16 %v491, %v490
      %v546 = vpack.c.b16 %v493, %v492
      %v547 = vpack.c.b16 %v495, %v494
      %v548 = vpack.c.b16 %v497, %v496
      %v549 = vpack.c.b16 %v499, %v498
      %v550 = vpack.c.b16 %v501, %v500
      %v551 = vpack.c.b16 %v503, %v502
      %v552 = vpack.c.b16 %v505, %v504
      %v553 = vpack.c.b16 %v507, %v506
      %v554 = vpack.c.b16 %v509, %v508
      %v555 = vpack.c.b16 %v511, %v510
      %v556 = vpack.c.b16 %v513, %v512
      %v557 = vpack.c.b16 %v515, %v514
      %v558 = vpack.c.b16 %v517, %v516
      %v559 = vpack.c.b16 %v519, %v518
      %v560 = vpack.c.b16 %v521, %v520
      %v561 = vpack.c.b16 %v523, %v522
      %v562 = vpack.c.b16 %v525, %v524
      %v563 = vpack.c.b16 %v527, %v526
      %v564 = vpack.c.b16 %v529, %v528
      %v565 = vpack.c.b16 %v531, %v530
      %v566 = vpack.c.b16 %v533, %v532
      %v567 = vpack.c.b16 %v535, %v534
      %600 = vmatprep.subr.bf16.mxu0 0
      %601 = vmatpush1.bf16.msra.mxu0 %v536
      %602 = vmatprep.subr.bf16.mxu0 0
      %603 = vmatpush1.bf16.msra.mxu0 %v537
      %604 = vmatprep.subr.bf16.mxu0 0
      %605 = vmatpush1.bf16.msra.mxu0 %v538
      %606 = vmatprep.subr.bf16.mxu0 0
      %607 = vmatpush1.bf16.msra.mxu0 %v539
      %608 = vmatprep.subr.bf16.mxu0 0
      %609 = vmatpush1.bf16.msra.mxu0 %v540
      %610 = vmatprep.subr.bf16.mxu0 0
      %611 = vmatpush1.bf16.msra.mxu0 %v541
      %612 = vmatprep.subr.bf16.mxu0 0
      %613 = vmatpush1.bf16.msra.mxu0 %v542
      %614 = vmatprep.subr.bf16.mxu0 0
      %615 = vmatpush1.bf16.msra.mxu0 %v543
      %616 = vmatprep.subr.bf16.mxu0 0
      %617 = vmatpush1.bf16.msra.mxu0 %v544
      %618 = vmatprep.subr.bf16.mxu0 0
      %619 = vmatpush1.bf16.msra.mxu0 %v545
      %620 = vmatprep.subr.bf16.mxu0 0
      %621 = vmatpush1.bf16.msra.mxu0 %v546
      %622 = vmatprep.subr.bf16.mxu0 0
      %623 = vmatpush1.bf16.msra.mxu0 %v547
      %624 = vmatprep.subr.bf16.mxu0 0
      %625 = vmatpush1.bf16.msra.mxu0 %v548
      %626 = vmatprep.subr.bf16.mxu0 0
      %627 = vmatpush1.bf16.msra.mxu0 %v549
      %628 = vmatprep.subr.bf16.mxu0 0
      %629 = vmatpush1.bf16.msra.mxu0 %v550
      %630 = vmatprep.subr.bf16.mxu0 0
      %631 = vmatpush1.bf16.msra.mxu0 %v551
      %632 = vmatprep.mubr.bf16.mxu0 %v377
      %633 = vmatmul.mubr.bf16.gmra.mrb[0].mxu0 %v376
      %v634 = vpop.f32.mrb[0].mxu0
      %v635 = vadd.f32 0.0, %v634
      %v636 = vpop.f32.mrb[0].mxu0
      %v637 = vpop.f32.mrb[0].mxu0
      %v638 = vadd.f32 0.0, %v637
      %v639 = vpop.f32.mrb[0].mxu0
      %640 = vmatprep.mubr.bf16.mxu0 %v381
      %641 = vmatmul.mubr.bf16.gmra.mrb[0].mxu0 %v380
      %v642 = vpop.f32.mrb[0].mxu0
      %v643 = vadd.f32 0.0, %v642
      %v644 = vpop.f32.mrb[0].mxu0
      %v645 = vpop.f32.mrb[0].mxu0
      %v646 = vadd.f32 0.0, %v645
      %v647 = vpop.f32.mrb[0].mxu0
      %648 = vmatprep.mubr.bf16.mxu0 %v385
      %649 = vmatmul.mubr.bf16.gmra.mrb[0].mxu0 %v384
      %v650 = vpop.f32.mrb[0].mxu0
      %v651 = vadd.f32 0.0, %v650
      %v652 = vpop.f32.mrb[0].mxu0
      %v653 = vpop.f32.mrb[0].mxu0
      %v654 = vadd.f32 0.0, %v653
      %v655 = vpop.f32.mrb[0].mxu0
      %656 = vmatprep.mubr.bf16.mxu0 %v389
      %657 = vmatmul.mubr.bf16.gmra.mrb[0].mxu0 %v388
      %v658 = vpop.f32.mrb[0].mxu0
      %v659 = vadd.f32 0.0, %v658
      %v660 = vpop.f32.mrb[0].mxu0
      %v661 = vpop.f32.mrb[0].mxu0
      %v662 = vadd.f32 0.0, %v661
      %v663 = vpop.f32.mrb[0].mxu0
      %664 = vdwg.mxu0
      %665 = vmatprep.subr.bf16.mxu0 0
      %666 = vmatpush1.bf16.msra.mxu0 %v552
      %667 = vmatprep.subr.bf16.mxu0 0
      %668 = vmatpush1.bf16.msra.mxu0 %v553
      %669 = vmatprep.subr.bf16.mxu0 0
      %670 = vmatpush1.bf16.msra.mxu0 %v554
      %671 = vmatprep.subr.bf16.mxu0 0
      %672 = vmatpush1.bf16.msra.mxu0 %v555
      %673 = vmatprep.subr.bf16.mxu0 0
      %674 = vmatpush1.bf16.msra.mxu0 %v556
      %675 = vmatprep.subr.bf16.mxu0 0
      %676 = vmatpush1.bf16.msra.mxu0 %v557
      %677 = vmatprep.subr.bf16.mxu0 0
      %678 = vmatpush1.bf16.msra.mxu0 %v558
      %679 = vmatprep.subr.bf16.mxu0 0
      %680 = vmatpush1.bf16.msra.mxu0 %v559
      %681 = vmatprep.subr.bf16.mxu0 0
      %682 = vmatpush1.bf16.msra.mxu0 %v560
      %683 = vmatprep.subr.bf16.mxu0 0
      %684 = vmatpush1.bf16.msra.mxu0 %v561
      %685 = vmatprep.subr.bf16.mxu0 0
      %686 = vmatpush1.bf16.msra.mxu0 %v562
      %687 = vmatprep.subr.bf16.mxu0 0
      %688 = vmatpush1.bf16.msra.mxu0 %v563
      %689 = vmatprep.subr.bf16.mxu0 0
      %690 = vmatpush1.bf16.msra.mxu0 %v564
      %691 = vmatprep.subr.bf16.mxu0 0
      %692 = vmatpush1.bf16.msra.mxu0 %v565
      %693 = vmatprep.subr.bf16.mxu0 0
      %694 = vmatpush1.bf16.msra.mxu0 %v566
      %695 = vmatprep.subr.bf16.mxu0 0
      %696 = vmatpush1.bf16.msra.mxu0 %v567
      %697 = vmatprep.mubr.bf16.mxu0 %v379
      %698 = vmatmul.mubr.bf16.gmra.mrb[0].mxu0 %v378
      %v699 = vpop.f32.mrb[0].mxu0
      %v700 = vadd.f32 %v635, %v699
      %v701 = vpop.f32.mrb[0].mxu0
      %v702 = vpop.f32.mrb[0].mxu0
      %v703 = vadd.f32 %v638, %v702
      %v704 = vpop.f32.mrb[0].mxu0
      %705 = vmatprep.mubr.bf16.mxu0 %v383
      %706 = vmatmul.mubr.bf16.gmra.mrb[0].mxu0 %v382
      %v707 = vpop.f32.mrb[0].mxu0
      %v708 = vadd.f32 %v643, %v707
      %v709 = vpop.f32.mrb[0].mxu0
      %v710 = vpop.f32.mrb[0].mxu0
      %v711 = vadd.f32 %v646, %v710
      %v712 = vpop.f32.mrb[0].mxu0
      %713 = vmatprep.mubr.bf16.mxu0 %v387
      %714 = vmatmul.mubr.bf16.gmra.mrb[0].mxu0 %v386
      %v715 = vpop.f32.mrb[0].mxu0
      %v716 = vadd.f32 %v651, %v715
      %v717 = vpop.f32.mrb[0].mxu0
      %v718 = vpop.f32.mrb[0].mxu0
      %v719 = vadd.f32 %v654, %v718
      %v720 = vpop.f32.mrb[0].mxu0
      %721 = vmatprep.mubr.bf16.mxu0 %v391
      %722 = vmatmul.mubr.bf16.gmra.mrb[0].mxu0 %v390
      %v723 = vpop.f32.mrb[0].mxu0
      %v724 = vadd.f32 %v659, %v723
      %v725 = vpop.f32.mrb[0].mxu0
      %v726 = vpop.f32.mrb[0].mxu0
      %v727 = vadd.f32 %v662, %v726
      %v728 = vpop.f32.mrb[0].mxu0
      %729 = vdwg.mxu0
      %v730 = vadd.f32 %v240, %v700
      %v731 = vadd.f32 %v241, %v703
      %v732 = vadd.f32 %v242, %v708
      %v733 = vadd.f32 %v243, %v711
      %v734 = vadd.f32 %v244, %v716
      %v735 = vadd.f32 %v245, %v719
      %v736 = vadd.f32 %v246, %v724
      %v737 = vadd.f32 %v247, %v727
      %738 = vst [vmem:[#allocation2] sm:$0xff] %v730
      %739 = vst [vmem:[#allocation2 + $0x8] sm:$0xff] %v731
      %740 = vst [vmem:[#allocation2 + $0x10] sm:$0xff] %v732
      %741 = vst [vmem:[#allocation2 + $0x18] sm:$0xff] %v733
      %742 = vst [vmem:[#allocation2 + $0x20] sm:$0xff] %v734
      %743 = vst [vmem:[#allocation2 + $0x28] sm:$0xff] %v735
      %744 = vst [vmem:[#allocation2 + $0x30] sm:$0xff] %v736
      %745 = vst [vmem:[#allocation2 + $0x38] sm:$0xff] %v737
      // Predicated region
      $region37: #{forward.5} parent=31 // pred_check
        %p746 = pneg %p228
      $region38: #{forward.5} parent=31 // pred_check_branch
        %748 = sbr.rel (%p746) target = $region40
      $region39: #{forward.5} parent=31 // pred_region
        %v749 = vld [vmem:[#allocation2] sm:$0xff]
        %v750 = vld [vmem:[#allocation2 + $0x8] sm:$0xff]
        %v751 = vld [vmem:[#allocation2 + $0x10] sm:$0xff]
        %v752 = vld [vmem:[#allocation2 + $0x18] sm:$0xff]
        %v753 = vld [vmem:[#allocation2 + $0x20] sm:$0xff]
        %v754 = vld [vmem:[#allocation2 + $0x28] sm:$0xff]
        %v755 = vld [vmem:[#allocation2 + $0x30] sm:$0xff]
        %v756 = vld [vmem:[#allocation2 + $0x38] sm:$0xff]
        %v757 = vld [vmem:[%s2] sm:$0x1]
        %v759 = vlaneseq
        %v760 = vshrl.u32 %v759, 7
        %v761 = vsub.s32 0, %v760
        %v762 = vrot.slane %v757, %v761
        %v764 = vadd.f32 %v749, %v762
        %v765 = vadd.f32 %v750, %v762
        %v766 = vadd.f32 %v751, %v762
        %v767 = vadd.f32 %v752, %v762
        %v768 = vadd.f32 %v753, %v762
        %v769 = vadd.f32 %v754, %v762
        %v770 = vadd.f32 %v755, %v762
        %v771 = vadd.f32 %v756, %v762
        %v772 = vmax.f32 %v764, 0.0
        %v773 = vmax.f32 %v765, 0.0
        %v774 = vmax.f32 %v766, 0.0
        %v775 = vmax.f32 %v767, 0.0
        %v776 = vmax.f32 %v768, 0.0
        %v777 = vmax.f32 %v769, 0.0
        %v778 = vmax.f32 %v770, 0.0
        %v779 = vmax.f32 %v771, 0.0
        %v780 = vpack.c.bf16 %v773, %v772
        %v781 = vpack.c.bf16 %v775, %v774
        %v782 = vpack.c.bf16 %v777, %v776
        %v783 = vpack.c.bf16 %v779, %v778
        %v788 = vunpack.c.l.b16 %v780
        %v789 = vunpack.c.h.b16 %v780
        %v790 = vunpack.c.l.b16 %v781
        %v791 = vunpack.c.h.b16 %v781
        %v792 = vunpack.c.l.b16 %v782
        %v793 = vunpack.c.h.b16 %v782
        %v794 = vunpack.c.l.b16 %v783
        %v795 = vunpack.c.h.b16 %v783
        %v796 = vpack.c.b16 %v788, %v788
        %v797 = vpack.c.b16 %v789, %v789
        %v798 = vpack.c.b16 %v790, %v790
        %v799 = vpack.c.b16 %v791, %v791
        %v800 = vpack.c.b16 %v792, %v792
        %v801 = vpack.c.b16 %v793, %v793
        %v802 = vpack.c.b16 %v794, %v794
        %v803 = vpack.c.b16 %v795, %v795
        %812 = vst [vmem:[%s225] sm:$0xf] %v796
        %813 = vst [vmem:[%s225 + $0x4] sm:$0xf] %v797
        %814 = vst [vmem:[%s225 + $0x8] sm:$0xf] %v798
        %815 = vst [vmem:[%s225 + $0xc] sm:$0xf] %v799
        %816 = vst [vmem:[%s225 + $0x10] sm:$0xf] %v800
        %817 = vst [vmem:[%s225 + $0x14] sm:$0xf] %v801
        %818 = vst [vmem:[%s225 + $0x18] sm:$0xf] %v802
        %819 = vst [vmem:[%s225 + $0x1c] sm:$0xf] %v803
      $region40: #{forward.5} parent=31 // pred_fallthru
        _
      %s820 = smul.u32 8, %s18
      %p821 = scmp.lt.s32.totalorder %s820, 15
      %s822 = scalar_select %p821, %s820, 15
      %s823 = smul.addr %s822, 4
      %s824 = scalar_lea.vmem %s3, %s823
      // Predicated region
      $region41: #{forward.5} parent=31 // pred_check
        %p825 = pneg %p119
      $region42: #{forward.5} parent=31 // pred_check_branch
        %827 = sbr.rel (%p825) target = $region44
      $region43: #{forward.5} parent=31 // pred_region
        %s828 = smul.u32 8, %s18
      $region44: #{forward.5} parent=31 // pred_fallthru
        _
    $region32: #{forward.5} parent=5 // pred_fallthru
      _
    %p829 = scmp.le.s32.totalorder 2, %s9
    // Predicated region
    $region45: #{forward.5} parent=5 // pred_check
      %p830 = pneg %p829
    $region46: #{forward.5} parent=5 // pred_check_branch
      %832 = sbr.rel (%p830) target = $region48
    $region47: #{forward.5} parent=5 // pred_region
      %s833 = ssub.s32 %s9, 2
      // Predicated region
      $region49: #{forward.5} parent=47 // pred_check
        %p834 = pneg %p125
      $region50: #{forward.5} parent=47 // pred_check_branch
        %836 = sbr.rel (%p834) target = $region52
      $region51: #{forward.5} parent=47 // pred_region
        %s837 = smul.u32 8, %s20
        %p838 = scmp.lt.s32.totalorder %s837, 15
        %s839 = scalar_select %p838, %s837, 15
        %s840 = smul.addr %s839, 4
        %s841 = scalar_lea.vmem %s3, %s840
      $region52: #{forward.5} parent=47 // pred_fallthru
        _
    $region48: #{forward.5} parent=5 // pred_fallthru
      _
  $region6: #{forward.5} parent=0 // loop_footer
    %s13 = sadd.s32 1, %s9
  $region7: #{forward.5} parent=0 // loop_footer_branch
    %8 = sbr.rel target = $region3
  $region8: #{forward.5} parent=0 // loop_exit
    _

// kernel: forward.6
$region0: #{forward.6}
  #allocation0 [shape = 'u32[]', space=smem, size = 0x4, offset = 0x4, fixed_abs, tag = 'smem constant byte address 0x4 - core index']
  #allocation1 [shape = 'u32[144,128]{1,0:T(1,128)}', space=vmem, size = 0x12000, scoped, tag = 'internal scratch']
  #allocation2 [shape = 'f32[48,128]{1,0:T(8,128)}', space=vmem, size = 0x6000, scoped, tag = 'scratch operand']
  %s0 = inlined_call_operand.vmem [shape: bf16[96,640], index: 0, kind: input, shape index: {}]
  %s1 = inlined_call_operand.vmem [shape: bf16[640,128], index: 1, kind: input, shape index: {}]
  %s2 = inlined_call_operand.vmem [shape: f32[1,128], index: 2, kind: input, shape index: {}]
  %s3 = inlined_call_operand.vmem [shape: bf16[96,128], index: 3, kind: output, shape index: {}]
  %s4 = sld [smem:[#allocation0]]
  $region53: #{forward.6} parent=0
    _
  %s6 = ssub.s32 1, %s4
  %s7 = scalar_select 0, %s6, %s4
  loop: start=0, step=1, limit=4
  $region2: #{forward.6} parent=0 // loop_pre_header
    _
  $region3: #{forward.6} parent=0 // loop_header
    %s9 = sphi 0, %s13
    %p10 = scmp.ge.s32.totalorder %s9, 4
    %s16 = sphi 0, %s28
    %s17 = sphi 0, %s24
    %s18 = sphi 0, %s16
    %s19 = sphi 0, %s17
    %s20 = sphi 0, %s18
    %s21 = sphi 0, %s19
    %s33 = sphi 0, %s35
    %s36 = sphi 0, %s33
    %s37 = sphi 0, %s36
    %s53 = sphi 0, %s37
    %s59 = sphi 0, %s61
    %s62 = sphi 0, %s59
    %s63 = sphi 0, %s62
    %s79 = sphi 0, %s63
    %s83 = sphi 0, %s83
    %s85 = sphi 0, %s83
    %s86 = sphi 0, %s85
    %s100 = sphi 0, %s86
    %s106 = sphi 0, %s108
    %s109 = sphi 0, %s106
    %s110 = sphi 0, %s109
    %s126 = sphi 0, %s110
  $region4: #{forward.6} parent=0 // loop_header_branch
    %12 = sbr.rel (%p10) target = $region8
  $region5: #{forward.6} parent=0 // loop_body
    %s14 = ssub.s32 %s9, 1
    %s15 = ssub.s32 %s9, 2
    %s22 = sadd.s32 1, %s17
    %p23 = scmp.ge.s32.totalorder %s22, 1
    %s24 = scalar_select %p23, 0, %s22
    %s25 = sadd.s32 1, %s16
    %s26 = scalar_select %p23, %s25, %s16
    %p27 = scmp.ge.s32.totalorder %s26, 2
    %s28 = scalar_select %p27, 0, %s26
    %s29 = ssub.s32 %s16, %s28
    %s30 = ssub.s32 %s17, %s24
    %s31 = sor.u32 %s29, %s30
    %p32 = scmp.eq.s32.totalorder %s31, 0
    %s34 = sadd.s32 %s33, 1
    %s35 = scalar_select %p32, %s33, %s34
    %p38 = pneg %p32
    %p39 = scmp.eq.s32.totalorder %s9, 1
    %p40 = por %p38, %p39
    %p41 = scmp.ne.s32.totalorder %s33, %s36
    %p42 = scmp.eq.s32.totalorder %s9, 0
    %p43 = por %p41, %p42
    %p44 = scmp.ne.s32.totalorder %s33, %s36
    %p45 = scmp.eq.s32.totalorder %s14, 1
    %p46 = por %p44, %p45
    %p47 = scmp.ne.s32.totalorder %s36, %s37
    %p48 = scmp.eq.s32.totalorder %s14, 0
    %p49 = por %p47, %p48
    %p50 = scmp.ne.s32.totalorder %s36, %s37
    %p51 = scmp.eq.s32.totalorder %s15, 1
    %p52 = por %p50, %p51
    %p54 = scmp.ne.s32.totalorder %s37, %s53
    %p55 = scmp.eq.s32.totalorder %s15, 0
    %p56 = por %p54, %p55
    %s57 = ssub.s32 %s17, %s24
    %p58 = scmp.eq.s32.totalorder %s57, 0
    %s60 = sadd.s32 %s59, 1
    %s61 = scalar_select %p58, %s59, %s60
    %p64 = pneg %p58
    %p65 = scmp.eq.s32.totalorder %s9, 1
    %p66 = por %p64, %p65
    %p67 = scmp.ne.s32.totalorder %s59, %s62
    %p68 = scmp.eq.s32.totalorder %s9, 0
    %p69 = por %p67, %p68
    %p70 = scmp.ne.s32.totalorder %s59, %s62
    %p71 = scmp.eq.s32.totalorder %s14, 1
    %p72 = por %p70, %p71
    %p73 = scmp.ne.s32.totalorder %s62, %s63
    %p74 = scmp.eq.s32.totalorder %s14, 0
    %p75 = por %p73, %p74
    %p76 = scmp.ne.s32.totalorder %s62, %s63
    %p77 = scmp.eq.s32.totalorder %s15, 1
    %p78 = por %p76, %p77
    %p80 = scmp.ne.s32.totalorder %s63, %s79
    %p81 = scmp.eq.s32.totalorder %s15, 0
    %p82 = por %p80, %p81
    %s84 = sadd.s32 %s83, 1
    %p87 = scmp.eq.s32.totalorder %s9, 1
    %p88 = scmp.ne.s32.totalorder %s83, %s85
    %p89 = scmp.eq.s32.totalorder %s9, 0
    %p90 = por %p88, %p89
    %p91 = scmp.ne.s32.totalorder %s83, %s85
    %p92 = scmp.eq.s32.totalorder %s14, 1
    %p93 = por %p91, %p92
    %p94 = scmp.ne.s32.totalorder %s85, %s86
    %p95 = scmp.eq.s32.totalorder %s14, 0
    %p96 = por %p94, %p95
    %p97 = scmp.ne.s32.totalorder %s85, %s86
    %p98 = scmp.eq.s32.totalorder %s15, 1
    %p99 = por %p97, %p98
    %p101 = scmp.ne.s32.totalorder %s86, %s100
    %p102 = scmp.eq.s32.totalorder %s15, 0
    %p103 = por %p101, %p102
    %s104 = ssub.s32 %s16, %s28
    %p105 = scmp.eq.s32.totalorder %s104, 0
    %s107 = sadd.s32 %s106, 1
    %s108 = scalar_select %p105, %s106, %s107
    %p111 = pneg %p105
    %p112 = scmp.eq.s32.totalorder %s9, 1
    %p113 = por %p111, %p112
    %p114 = scmp.ne.s32.totalorder %s106, %s109
    %p115 = scmp.eq.s32.totalorder %s9, 0
    %p116 = por %p114, %p115
    %p117 = scmp.ne.s32.totalorder %s106, %s109
    %p118 = scmp.eq.s32.totalorder %s14, 1
    %p119 = por %p117, %p118
    %p120 = scmp.ne.s32.totalorder %s109, %s110
    %p121 = scmp.eq.s32.totalorder %s14, 0
    %p122 = por %p120, %p121
    %p123 = scmp.ne.s32.totalorder %s109, %s110
    %p124 = scmp.eq.s32.totalorder %s15, 1
    %p125 = por %p123, %p124
    %p127 = scmp.ne.s32.totalorder %s110, %s126
    %p128 = scmp.eq.s32.totalorder %s15, 0
    %p129 = por %p127, %p128
    %p130 = scmp.le.s32.totalorder 1, %s9
    %p131 = scmp.lt.s32.totalorder %s9, 3
    %p132 = pnand %p130, %p131
    %p133 = pneg %p132
    // Predicated region
    $region9: #{forward.6} parent=5 // pred_check
      _
    $region10: #{forward.6} parent=5 // pred_check_branch
      %135 = sbr.rel (%p132) target = $region12
    $region11: #{forward.6} parent=5 // pred_region
      %s136 = ssub.s32 %s9, 1
      // Predicated region
      $region13: #{forward.6} parent=11 // pred_check
        %p137 = pneg %p75
      $region14: #{forward.6} parent=11 // pred_check_branch
        %139 = sbr.rel (%p137) target = $region16
      $region15: #{forward.6} parent=11 // pred_region
        %s140 = smul.u32 80, %s19
        %p141 = scmp.lt.s32.totalorder %s140, 79
        %s142 = scalar_select %p141, %s140, 79
        %s143 = smul.addr %s142, 4
        %s144 = scalar_lea.vmem %s1, %s143
        %s145 = smul.u32 80, %s19
      $region16: #{forward.6} parent=11 // pred_fallthru
        _
      // Predicated region
      $region17: #{forward.6} parent=11 // pred_check
        %p146 = pneg %p96
      $region18: #{forward.6} parent=11 // pred_check_branch
        %148 = sbr.rel (%p146) target = $region20
      $region19: #{forward.6} parent=11 // pred_region
        _
      $region20: #{forward.6} parent=11 // pred_fallthru
        _
    $region12: #{forward.6} parent=5 // pred_fallthru
      _
    %p149 = scmp.lt.s32.totalorder %s9, 2
    // Predicated region
    $region21: #{forward.6} parent=5 // pred_check
      %p150 = pneg %p149
    $region22: #{forward.6} parent=5 // pred_check_branch
      %152 = sbr.rel (%p150) target = $region24
    $region23: #{forward.6} parent=5 // pred_region
      // Predicated region
      $region25: #{forward.6} parent=23 // pred_check
        %p153 = pneg %p43
      $region26: #{forward.6} parent=23 // pred_check_branch
        %155 = sbr.rel (%p153) target = $region28
      $region27: #{forward.6} parent=23 // pred_region
        %s156 = smul.u32 6, %s16
        %s157 = smul.u32 5, %s17
        %p158 = scmp.lt.s32.totalorder %s156, 11
        %s159 = scalar_select %p158, %s156, 11
        %p160 = scmp.lt.s32.totalorder %s157, 4
        %s161 = scalar_select %p160, %s157, 4
        %s162 = smul.addr %s159, 5
        %s163 = sadd.s32 %s161, %s162
        %s164 = smul.addr %s163, 4
        %s165 = scalar_lea.vmem %s0, %s164
        %s166 = smul.u32 6, %s16
        %s167 = smul.u32 5, %s17
      $region28: #{forward.6} parent=23 // pred_fallthru
        _
    $region24: #{forward.6} parent=5 // pred_fallthru
      _
    %p168 = scmp.le.s32.totalorder 1, %s9
    %p169 = scmp.lt.s32.totalorder %s9, 3
    %p170 = pnand %p168, %p169
    %p171 = pneg %p170
    // Predicated region
    $region29: #{forward.6} parent=5 // pred_check
      _
    $region30: #{forward.6} parent=5 // pred_check_branch
      %173 = sbr.rel (%p170) target = $region32
    $region31: #{forward.6} parent=5 // pred_region
      %s174 = ssub.s32 %s9, 1
      %s175 = smul.u32 6, %s18
      %s176 = smul.u32 5, %s19
      %p177 = scmp.lt.s32.totalorder %s175, 11
      %s178 = scalar_select %p177, %s175, 11
      %p179 = scmp.lt.s32.totalorder %s176, 4
      %s180 = scalar_select %p179, %s176, 4
      %s181 = smul.addr %s178, 5
      %s182 = sadd.s32 %s180, %s181
      %s183 = smul.addr %s182, 4
      %s184 = scalar_lea.vmem %s0, %s183
      %p185 = pneg %p49
      %p186 = pneg %p46
      %s187 = smul.u32 80, %s19
      %p188 = scmp.lt.s32.totalorder %s187, 79
      %s189 = scalar_select %p188, %s187, 79
      %s190 = smul.addr %s189, 4
      %s191 = scalar_lea.vmem %s1, %s190
      %p192 = pneg %p75
      %p193 = pneg %p72
      %p194 = pneg %p96
      %p195 = pneg %p93
      %p196 = pneg %p122
      %p197 = pneg %p119
      %s198 = smul.u32 6, %s18
      %p199 = scmp.lt.s32.totalorder %s198, 11
      %s200 = scalar_select %p199, %s198, 11
      %s201 = smul.addr %s200, 4
      %s202 = scalar_lea.vmem %s3, %s201
      %s203 = smul.u32 6, %s18
      %s204 = smul.u32 5, %s19
      %p205 = scmp.lt.s32.totalorder %s203, 11
      %s206 = scalar_select %p205, %s203, 11
      %p207 = scmp.lt.s32.totalorder %s204, 4
      %s208 = scalar_select %p207, %s204, 4
      %s209 = smul.addr %s206, 5
      %s210 = sadd.s32 %s208, %s209
      %s211 = smul.addr %s210, 4
      %s212 = scalar_lea.vmem %s0, %s211
      %s213 = smul.u32 6, %s18
      %s214 = smul.u32 5, %s19
      %s215 = smul.u32 80, %s19
      %p216 = scmp.lt.s32.totalorder %s215, 79
      %s217 = scalar_select %p216, %s215, 79
      %s218 = smul.addr %s217, 4
      %s219 = scalar_lea.vmem %s1, %s218
      %s220 = smul.u32 80, %s19
      %s221 = smul.u32 6, %s18
      %p222 = scmp.lt.s32.totalorder %s221, 11
      %s223 = scalar_select %p222, %s221, 11
      %s224 = smul.addr %s223, 4
      %s225 = scalar_lea.vmem %s3, %s224
      %s226 = smul.u32 6, %s18
      %p228 = scmp.eq.s32.totalorder %s19, 0
      // Predicated region
      $region33: #{forward.6} parent=31 // pred_check
        %p229 = pneg %p228
      $region34: #{forward.6} parent=31 // pred_check_branch
        %231 = sbr.rel (%p229) target = $region36
      $region35: #{forward.6} parent=31 // pred_region
        %232 = vst [vmem:[#allocation2] sm:$0xff] 0.0
        %233 = vst [vmem:[#allocation2 + $0x8] sm:$0xff] 0.0
        %234 = vst [vmem:[#allocation2 + $0x10] sm:$0xff] 0.0
        %235 = vst [vmem:[#allocation2 + $0x18] sm:$0xff] 0.0
        %236 = vst [vmem:[#allocation2 + $0x20] sm:$0xff] 0.0
        %237 = vst [vmem:[#allocation2 + $0x28] sm:$0xff] 0.0
      $region36: #{forward.6} parent=31 // pred_fallthru
        _
      %v238 = vld [vmem:[#allocation2] sm:$0xff]
      %v239 = vld [vmem:[#allocation2 + $0x8] sm:$0xff]
      %v240 = vld [vmem:[#allocation2 + $0x10] sm:$0xff]
      %v241 = vld [vmem:[#allocation2 + $0x18] sm:$0xff]
      %v242 = vld [vmem:[#allocation2 + $0x20] sm:$0xff]
      %v243 = vld [vmem:[#allocation2 + $0x28] sm:$0xff]
      %v244 = vld [vmem:[%s212] sm:$0xff]
      %v245 = vld [vmem:[%s212 + $0x8] sm:$0xff]
      %v246 = vld [vmem:[%s212 + $0x10] sm:$0xf]
      %v247 = vld [vmem:[%s212 + $0x14] sm:$0xff]
      %v248 = vld [vmem:[%s212 + $0x1c] sm:$0xff]
      %v249 = vld [vmem:[%s212 + $0x24] sm:$0xf]
      %v250 = vld [vmem:[%s212 + $0x28] sm:$0xff]
      %v251 = vld [vmem:[%s212 + $0x30] sm:$0xff]
      %v252 = vld [vmem:[%s212 + $0x38] sm:$0xf]
      %v253 = vld [vmem:[%s212 + $0x3c] sm:$0xff]
      %v254 = vld [vmem:[%s212 + $0x44] sm:$0xff]
      %v255 = vld [vmem:[%s212 + $0x4c] sm:$0xf]
      %v256 = vld [vmem:[%s212 + $0x50] sm:$0xff]
      %v257 = vld [vmem:[%s212 + $0x58] sm:$0xff]
      %v258 = vld [vmem:[%s212 + $0x60] sm:$0xf]
      %v259 = vld [vmem:[%s212 + $0x64] sm:$0xff]
      %v260 = vld [vmem:[%s212 + $0x6c] sm:$0xff]
      %v261 = vld [vmem:[%s212 + $0x74] sm:$0xf]
      %v262 = vld [vmem:[%s219] sm:$0xf]
      %v263 = vld [vmem:[%s219 + $0x4] sm:$0xf]
      %v264 = vld [vmem:[%s219 + $0x8] sm:$0xf]
      %v265 = vld [vmem:[%s219 + $0xc] sm:$0xf]
      %v266 = vld [vmem:[%s219 + $0x10] sm:$0xf]
      %v267 = vld [vmem:[%s219 + $0x14] sm:$0xf]
      %v268 = vld [vmem:[%s219 + $0x18] sm:$0xf]
      %v269 = vld [vmem:[%s219 + $0x1c] sm:$0xf]
      %v270 = vld [vmem:[%s219 + $0x20] sm:$0xf]
      %v271 = vld [vmem:[%s219 + $0x24] sm:$0xf]
      %v272 = vld [vmem:[%s219 + $0x28] sm:$0xf]
      %v273 = vld [vmem:[%s219 + $0x2c] sm:$0xf]
      %v274 = vld [vmem:[%s219 + $0x30] sm:$0xf]
      %v275 = vld [vmem:[%s219 + $0x34] sm:$0xf]
      %v276 = vld [vmem:[%s219 + $0x38] sm:$0xf]
      %v277 = vld [vmem:[%s219 + $0x3c] sm:$0xf]
      %v278 = vld [vmem:[%s219 + $0x40] sm:$0xf]
      %v279 = vld [vmem:[%s219 + $0x44] sm:$0xf]
      %v280 = vld [vmem:[%s219 + $0x48] sm:$0xf]
      %v281 = vld [vmem:[%s219 + $0x4c] sm:$0xf]
      %v282 = vld [vmem:[%s219 + $0x50] sm:$0xf]
      %v283 = vld [vmem:[%s219 + $0x54] sm:$0xf]
      %v284 = vld [vmem:[%s219 + $0x58] sm:$0xf]
      %v285 = vld [vmem:[%s219 + $0x5c] sm:$0xf]
      %v286 = vld [vmem:[%s219 + $0x60] sm:$0xf]
      %v287 = vld [vmem:[%s219 + $0x64] sm:$0xf]
      %v288 = vld [vmem:[%s219 + $0x68] sm:$0xf]
      %v289 = vld [vmem:[%s219 + $0x6c] sm:$0xf]
      %v290 = vld [vmem:[%s219 + $0x70] sm:$0xf]
      %v291 = vld [vmem:[%s219 + $0x74] sm:$0xf]
      %v292 = vld [vmem:[%s219 + $0x78] sm:$0xf]
      %v293 = vld [vmem:[%s219 + $0x7c] sm:$0xf]
      %v294 = vld [vmem:[%s219 + $0x80] sm:$0xf]
      %v295 = vld [vmem:[%s219 + $0x84] sm:$0xf]
      %v296 = vld [vmem:[%s219 + $0x88] sm:$0xf]
      %v297 = vld [vmem:[%s219 + $0x8c] sm:$0xf]
      %v298 = vld [vmem:[%s219 + $0x90] sm:$0xf]
      %v299 = vld [vmem:[%s219 + $0x94] sm:$0xf]
      %v300 = vld [vmem:[%s219 + $0x98] sm:$0xf]
      %v301 = vld [vmem:[%s219 + $0x9c] sm:$0xf]
      %v302 = vld [vmem:[%s219 + $0xa0] sm:$0xf]
      %v303 = vld [vmem:[%s219 + $0xa4] sm:$0xf]
      %v304 = vld [vmem:[%s219 + $0xa8] sm:$0xf]
      %v305 = vld [vmem:[%s219 + $0xac] sm:$0xf]
      %v306 = vld [vmem:[%s219 + $0xb0] sm:$0xf]
      %v307 = vld [vmem:[%s219 + $0xb4] sm:$0xf]
      %v308 = vld [vmem:[%s219 + $0xb8] sm:$0xf]
      %v309 = vld [vmem:[%s219 + $0xbc] sm:$0xf]
      %v310 = vld [vmem:[%s219 + $0xc0] sm:$0xf]
      %v311 = vld [vmem:[%s219 + $0xc4] sm:$0xf]
      %v312 = vld [vmem:[%s219 + $0xc8] sm:$0xf]
      %v313 = vld [vmem:[%s219 + $0xcc] sm:$0xf]
      %v314 = vld [vmem:[%s219 + $0xd0] sm:$0xf]
      %v315 = vld [vmem:[%s219 + $0xd4] sm:$0xf]
      %v316 = vld [vmem:[%s219 + $0xd8] sm:$0xf]
      %v317 = vld [vmem:[%s219 + $0xdc] sm:$0xf]
      %v318 = vld [vmem:[%s219 + $0xe0] sm:$0xf]
      %v319 = vld [vmem:[%s219 + $0xe4] sm:$0xf]
      %v320 = vld [vmem:[%s219 + $0xe8] sm:$0xf]
      %v321 = vld [vmem:[%s219 + $0xec] sm:$0xf]
      %v322 = vld [vmem:[%s219 + $0xf0] sm:$0xf]
      %v323 = vld [vmem:[%s219 + $0xf4] sm:$0xf]
      %v324 = vld [vmem:[%s219 + $0xf8] sm:$0xf]
      %v325 = vld [vmem:[%s219 + $0xfc] sm:$0xf]
      %v326 = vld [vmem:[%s219 + $0x100] sm:$0xf]
      %v327 = vld [vmem:[%s219 + $0x104] sm:$0xf]
      %v328 = vld [vmem:[%s219 + $0x108] sm:$0xf]
      %v329 = vld [vmem:[%s219 + $0x10c] sm:$0xf]
      %v330 = vld [vmem:[%s219 + $0x110] sm:$0xf]
      %v331 = vld [vmem:[%s219 + $0x114] sm:$0xf]
      %v332 = vld [vmem:[%s219 + $0x118] sm:$0xf]
      %v333 = vld [vmem:[%s219 + $0x11c] sm:$0xf]
      %v334 = vld [vmem:[%s219 + $0x120] sm:$0xf]
      %v335 = vld [vmem:[%s219 + $0x124] sm:$0xf]
      %v336 = vld [vmem:[%s219 + $0x128] sm:$0xf]
      %v337 = vld [vmem:[%s219 + $0x12c] sm:$0xf]
      %v338 = vld [vmem:[%s219 + $0x130] sm:$0xf]
      %v339 = vld [vmem:[%s219 + $0x134] sm:$0xf]
      %v340 = vld [vmem:[%s219 + $0x138] sm:$0xf]
      %v341 = vld [vmem:[%s219 + $0x13c] sm:$0xf]
      %v360 = vunpack.c.l.b16 %v244
      %v361 = vunpack.c.h.b16 %v244
      %v362 = vunpack.c.l.b16 %v245
      %v363 = vunpack.c.h.b16 %v245
      %v364 = vunpack.c.l.b16 %v246
      %v365 = vunpack.c.l.b16 %v247
      %v366 = vunpack.c.h.b16 %v247
      %v367 = vunpack.c.l.b16 %v248
      %v368 = vunpack.c.h.b16 %v248
      %v369 = vunpack.c.l.b16 %v249
      %v370 = vunpack.c.l.b16 %v250
      %v371 = vunpack.c.h.b16 %v250
      %v372 = vunpack.c.l.b16 %v251
      %v373 = vunpack.c.h.b16 %v251
      %v374 = vunpack.c.l.b16 %v252
      %v375 = vunpack.c.l.b16 %v253
      %v376 = vunpack.c.h.b16 %v253
      %v377 = vunpack.c.l.b16 %v254
      %v378 = vunpack.c.h.b16 %v254
      %v379 = vunpack.c.l.b16 %v255
      %v380 = vunpack.c.l.b16 %v256
      %v381 = vunpack.c.h.b16 %v256
      %v382 = vunpack.c.l.b16 %v257
      %v383 = vunpack.c.h.b16 %v257
      %v384 = vunpack.c.l.b16 %v258
      %v385 = vunpack.c.l.b16 %v259
      %v386 = vunpack.c.h.b16 %v259
      %v387 = vunpack.c.l.b16 %v260
      %v388 = vunpack.c.h.b16 %v260
      %v389 = vunpack.c.l.b16 %v261
      %v390 = vpack.c.b16 %v365, %v360
      %v391 = vpack.c.b16 %v366, %v361
      %v392 = vpack.c.b16 %v367, %v362
      %v393 = vpack.c.b16 %v368, %v363
      %v394 = vpack.c.b16 %v369, %v364
      %v395 = vpack.c.b16 %v375, %v370
      %v396 = vpack.c.b16 %v376, %v371
      %v397 = vpack.c.b16 %v377, %v372
      %v398 = vpack.c.b16 %v378, %v373
      %v399 = vpack.c.b16 %v379, %v374
      %v400 = vpack.c.b16 %v385, %v380
      %v401 = vpack.c.b16 %v386, %v381
      %v402 = vpack.c.b16 %v387, %v382
      %v403 = vpack.c.b16 %v388, %v383
      %v404 = vpack.c.b16 %v389, %v384
      %v500 = vunpack.c.l.b16 %v262
      %v501 = vunpack.c.l.b16 %v263
      %v502 = vunpack.c.l.b16 %v264
      %v503 = vunpack.c.l.b16 %v265
      %v504 = vunpack.c.l.b16 %v266
      %v505 = vunpack.c.l.b16 %v267
      %v506 = vunpack.c.l.b16 %v268
      %v507 = vunpack.c.l.b16 %v269
      %v508 = vunpack.c.l.b16 %v270
      %v509 = vunpack.c.l.b16 %v271
      %v510 = vunpack.c.l.b16 %v272
      %v511 = vunpack.c.l.b16 %v273
      %v512 = vunpack.c.l.b16 %v274
      %v513 = vunpack.c.l.b16 %v275
      %v514 = vunpack.c.l.b16 %v276
      %v515 = vunpack.c.l.b16 %v277
      %v516 = vunpack.c.l.b16 %v278
      %v517 = vunpack.c.l.b16 %v279
      %v518 = vunpack.c.l.b16 %v280
      %v519 = vunpack.c.l.b16 %v281
      %v520 = vunpack.c.l.b16 %v282
      %v521 = vunpack.c.l.b16 %v283
      %v522 = vunpack.c.l.b16 %v284
      %v523 = vunpack.c.l.b16 %v285
      %v524 = vunpack.c.l.b16 %v286
      %v525 = vunpack.c.l.b16 %v287
      %v526 = vunpack.c.l.b16 %v288
      %v527 = vunpack.c.l.b16 %v289
      %v528 = vunpack.c.l.b16 %v290
      %v529 = vunpack.c.l.b16 %v291
      %v530 = vunpack.c.l.b16 %v292
      %v531 = vunpack.c.l.b16 %v293
      %v532 = vunpack.c.l.b16 %v294
      %v533 = vunpack.c.l.b16 %v295
      %v534 = vunpack.c.l.b16 %v296
      %v535 = vunpack.c.l.b16 %v297
      %v536 = vunpack.c.l.b16 %v298
      %v537 = vunpack.c.l.b16 %v299
      %v538 = vunpack.c.l.b16 %v300
      %v539 = vunpack.c.l.b16 %v301
      %v540 = vunpack.c.l.b16 %v302
      %v541 = vunpack.c.l.b16 %v303
      %v542 = vunpack.c.l.b16 %v304
      %v543 = vunpack.c.l.b16 %v305
      %v544 = vunpack.c.l.b16 %v306
      %v545 = vunpack.c.l.b16 %v307
      %v546 = vunpack.c.l.b16 %v308
      %v547 = vunpack.c.l.b16 %v309
      %v548 = vunpack.c.l.b16 %v310
      %v549 = vunpack.c.l.b16 %v311
      %v550 = vunpack.c.l.b16 %v312
      %v551 = vunpack.c.l.b16 %v313
      %v552 = vunpack.c.l.b16 %v314
      %v553 = vunpack.c.l.b16 %v315
      %v554 = vunpack.c.l.b16 %v316
      %v555 = vunpack.c.l.b16 %v317
      %v556 = vunpack.c.l.b16 %v318
      %v557 = vunpack.c.l.b16 %v319
      %v558 = vunpack.c.l.b16 %v320
      %v559 = vunpack.c.l.b16 %v321
      %v560 = vunpack.c.l.b16 %v322
      %v561 = vunpack.c.l.b16 %v323
      %v562 = vunpack.c.l.b16 %v324
      %v563 = vunpack.c.l.b16 %v325
      %v564 = vunpack.c.l.b16 %v326
      %v565 = vunpack.c.l.b16 %v327
      %v566 = vunpack.c.l.b16 %v328
      %v567 = vunpack.c.l.b16 %v329
      %v568 = vunpack.c.l.b16 %v330
      %v569 = vunpack.c.l.b16 %v331
      %v570 = vunpack.c.l.b16 %v332
      %v571 = vunpack.c.l.b16 %v333
      %v572 = vunpack.c.l.b16 %v334
      %v573 = vunpack.c.l.b16 %v335
      %v574 = vunpack.c.l.b16 %v336
      %v575 = vunpack.c.l.b16 %v337
      %v576 = vunpack.c.l.b16 %v338
      %v577 = vunpack.c.l.b16 %v339
      %v578 = vunpack.c.l.b16 %v340
      %v579 = vunpack.c.l.b16 %v341
      %v580 = vpack.c.b16 %v501, %v500
      %v581 = vpack.c.b16 %v503, %v502
      %v582 = vpack.c.b16 %v505, %v504
      %v583 = vpack.c.b16 %v507, %v506
      %v584 = vpack.c.b16 %v509, %v508
      %v585 = vpack.c.b16 %v511, %v510
      %v586 = vpack.c.b16 %v513, %v512
      %v587 = vpack.c.b16 %v515, %v514
      %v588 = vpack.c.b16 %v517, %v516
      %v589 = vpack.c.b16 %v519, %v518
      %v590 = vpack.c.b16 %v521, %v520
      %v591 = vpack.c.b16 %v523, %v522
      %v592 = vpack.c.b16 %v525, %v524
      %v593 = vpack.c.b16 %v527, %v526
      %v594 = vpack.c.b16 %v529, %v528
      %v595 = vpack.c.b16 %v531, %v530
      %v596 = vpack.c.b16 %v533, %v532
      %v597 = vpack.c.b16 %v535, %v534
      %v598 = vpack.c.b16 %v537, %v536
      %v599 = vpack.c.b16 %v539, %v538
      %v600 = vpack.c.b16 %v541, %v540
      %v601 = vpack.c.b16 %v543, %v542
      %v602 = vpack.c.b16 %v545, %v544
      %v603 = vpack.c.b16 %v547, %v546
      %v604 = vpack.c.b16 %v549, %v548
      %v605 = vpack.c.b16 %v551, %v550
      %v606 = vpack.c.b16 %v553, %v552
      %v607 = vpack.c.b16 %v555, %v554
      %v608 = vpack.c.b16 %v557, %v556
      %v609 = vpack.c.b16 %v559, %v558
      %v610 = vpack.c.b16 %v561, %v560
      %v611 = vpack.c.b16 %v563, %v562
      %v612 = vpack.c.b16 %v565, %v564
      %v613 = vpack.c.b16 %v567, %v566
      %v614 = vpack.c.b16 %v569, %v568
      %v615 = vpack.c.b16 %v571, %v570
      %v616 = vpack.c.b16 %v573, %v572
      %v617 = vpack.c.b16 %v575, %v574
      %v618 = vpack.c.b16 %v577, %v576
      %v619 = vpack.c.b16 %v579, %v578
      %660 = vmatprep.subr.bf16.mxu0 0
      %661 = vmatpush1.bf16.msra.mxu0 %v580
      %662 = vmatprep.subr.bf16.mxu0 0
      %663 = vmatpush1.bf16.msra.mxu0 %v581
      %664 = vmatprep.subr.bf16.mxu0 0
      %665 = vmatpush1.bf16.msra.mxu0 %v582
      %666 = vmatprep.subr.bf16.mxu0 0
      %667 = vmatpush1.bf16.msra.mxu0 %v583
      %668 = vmatprep.subr.bf16.mxu0 0
      %669 = vmatpush1.bf16.msra.mxu0 %v584
      %670 = vmatprep.subr.bf16.mxu0 0
      %671 = vmatpush1.bf16.msra.mxu0 %v585
      %672 = vmatprep.subr.bf16.mxu0 0
      %673 = vmatpush1.bf16.msra.mxu0 %v586
      %674 = vmatprep.subr.bf16.mxu0 0
      %675 = vmatpush1.bf16.msra.mxu0 %v587
      %676 = vmatprep.subr.bf16.mxu0 0
      %677 = vmatpush1.bf16.msra.mxu0 %v588
      %678 = vmatprep.subr.bf16.mxu0 0
      %679 = vmatpush1.bf16.msra.mxu0 %v589
      %680 = vmatprep.subr.bf16.mxu0 0
      %681 = vmatpush1.bf16.msra.mxu0 %v590
      %682 = vmatprep.subr.bf16.mxu0 0
      %683 = vmatpush1.bf16.msra.mxu0 %v591
      %684 = vmatprep.subr.bf16.mxu0 0
      %685 = vmatpush1.bf16.msra.mxu0 %v592
      %686 = vmatprep.subr.bf16.mxu0 0
      %687 = vmatpush1.bf16.msra.mxu0 %v593
      %688 = vmatprep.subr.bf16.mxu0 0
      %689 = vmatpush1.bf16.msra.mxu0 %v594
      %690 = vmatprep.subr.bf16.mxu0 0
      %691 = vmatpush1.bf16.msra.mxu0 %v595
      %692 = vmatprep.mubr.bf16.mxu0 %v391
      %693 = vmatmul.mubr.bf16.gmra.mrb[0].mxu0 %v390
      %v694 = vpop.f32.mrb[0].mxu0
      %v695 = vadd.f32 0.0, %v694
      %v696 = vpop.f32.mrb[0].mxu0
      %v697 = vpop.f32.mrb[0].mxu0
      %v698 = vadd.f32 0.0, %v697
      %v699 = vpop.f32.mrb[0].mxu0
      %700 = vmatprep.mubr.bf16.mxu0 %v396
      %701 = vmatmul.mubr.bf16.gmra.mrb[0].mxu0 %v395
      %v702 = vpop.f32.mrb[0].mxu0
      %v703 = vadd.f32 0.0, %v702
      %v704 = vpop.f32.mrb[0].mxu0
      %v705 = vpop.f32.mrb[0].mxu0
      %v706 = vadd.f32 0.0, %v705
      %v707 = vpop.f32.mrb[0].mxu0
      %708 = vmatprep.mubr.bf16.mxu0 %v401
      %709 = vmatmul.mubr.bf16.gmra.mrb[0].mxu0 %v400
      %v710 = vpop.f32.mrb[0].mxu0
      %v711 = vadd.f32 0.0, %v710
      %v712 = vpop.f32.mrb[0].mxu0
      %v713 = vpop.f32.mrb[0].mxu0
      %v714 = vadd.f32 0.0, %v713
      %v715 = vpop.f32.mrb[0].mxu0
      %716 = vdwg.mxu0
      %717 = vmatprep.subr.bf16.mxu0 0
      %718 = vmatpush1.bf16.msra.mxu0 %v596
      %719 = vmatprep.subr.bf16.mxu0 0
      %720 = vmatpush1.bf16.msra.mxu0 %v597
      %721 = vmatprep.subr.bf16.mxu0 0
      %722 = vmatpush1.bf16.msra.mxu0 %v598
      %723 = vmatprep.subr.bf16.mxu0 0
      %724 = vmatpush1.bf16.msra.mxu0 %v599
      %725 = vmatprep.subr.bf16.mxu0 0
      %726 = vmatpush1.bf16.msra.mxu0 %v600
      %727 = vmatprep.subr.bf16.mxu0 0
      %728 = vmatpush1.bf16.msra.mxu0 %v601
      %729 = vmatprep.subr.bf16.mxu0 0
      %730 = vmatpush1.bf16.msra.mxu0 %v602
      %731 = vmatprep.subr.bf16.mxu0 0
      %732 = vmatpush1.bf16.msra.mxu0 %v603
      %733 = vmatprep.subr.bf16.mxu0 0
      %734 = vmatpush1.bf16.msra.mxu0 %v604
      %735 = vmatprep.subr.bf16.mxu0 0
      %736 = vmatpush1.bf16.msra.mxu0 %v605
      %737 = vmatprep.subr.bf16.mxu0 0
      %738 = vmatpush1.bf16.msra.mxu0 %v606
      %739 = vmatprep.subr.bf16.mxu0 0
      %740 = vmatpush1.bf16.msra.mxu0 %v607
      %741 = vmatprep.subr.bf16.mxu0 0
      %742 = vmatpush1.bf16.msra.mxu0 %v608
      %743 = vmatprep.subr.bf16.mxu0 0
      %744 = vmatpush1.bf16.msra.mxu0 %v609
      %745 = vmatprep.subr.bf16.mxu0 0
      %746 = vmatpush1.bf16.msra.mxu0 %v610
      %747 = vmatprep.subr.bf16.mxu0 0
      %748 = vmatpush1.bf16.msra.mxu0 %v611
      %749 = vmatprep.mubr.bf16.mxu0 %v393
      %750 = vmatmul.mubr.bf16.gmra.mrb[0].mxu0 %v392
      %v751 = vpop.f32.mrb[0].mxu0
      %v752 = vadd.f32 %v695, %v751
      %v753 = vpop.f32.mrb[0].mxu0
      %v754 = vpop.f32.mrb[0].mxu0
      %v755 = vadd.f32 %v698, %v754
      %v756 = vpop.f32.mrb[0].mxu0
      %757 = vmatprep.mubr.bf16.mxu0 %v398
      %758 = vmatmul.mubr.bf16.gmra.mrb[0].mxu0 %v397
      %v759 = vpop.f32.mrb[0].mxu0
      %v760 = vadd.f32 %v703, %v759
      %v761 = vpop.f32.mrb[0].mxu0
      %v762 = vpop.f32.mrb[0].mxu0
      %v763 = vadd.f32 %v706, %v762
      %v764 = vpop.f32.mrb[0].mxu0
      %765 = vmatprep.mubr.bf16.mxu0 %v403
      %766 = vmatmul.mubr.bf16.gmra.mrb[0].mxu0 %v402
      %v767 = vpop.f32.mrb[0].mxu0
      %v768 = vadd.f32 %v711, %v767
      %v769 = vpop.f32.mrb[0].mxu0
      %v770 = vpop.f32.mrb[0].mxu0
      %v771 = vadd.f32 %v714, %v770
      %v772 = vpop.f32.mrb[0].mxu0
      %773 = vdwg.mxu0
      %774 = vmatprep.subr.bf16.mxu0 0
      %775 = vmatpush1.bf16.msra.mxu0 %v612
      %776 = vmatprep.subr.bf16.mxu0 0
      %777 = vmatpush1.bf16.msra.mxu0 %v613
      %778 = vmatprep.subr.bf16.mxu0 0
      %779 = vmatpush1.bf16.msra.mxu0 %v614
      %780 = vmatprep.subr.bf16.mxu0 0
      %781 = vmatpush1.bf16.msra.mxu0 %v615
      %782 = vmatprep.subr.bf16.mxu0 0
      %783 = vmatpush1.bf16.msra.mxu0 %v616
      %784 = vmatprep.subr.bf16.mxu0 0
      %785 = vmatpush1.bf16.msra.mxu0 %v617
      %786 = vmatprep.subr.bf16.mxu0 0
      %787 = vmatpush1.bf16.msra.mxu0 %v618
      %788 = vmatprep.subr.bf16.mxu0 0
      %789 = vmatpush1.bf16.msra.mxu0 %v619
      %790 = vmatprep.subr.bf16.mxu0 0
      %791 = vmatpush1.bf16.msra.mxu0 0
      %792 = vmatprep.subr.bf16.mxu0 0
      %793 = vmatpush1.bf16.msra.mxu0 0
      %794 = vmatprep.subr.bf16.mxu0 0
      %795 = vmatpush1.bf16.msra.mxu0 0
      %796 = vmatprep.subr.bf16.mxu0 0
      %797 = vmatpush1.bf16.msra.mxu0 0
      %798 = vmatprep.subr.bf16.mxu0 0
      %799 = vmatpush1.bf16.msra.mxu0 0
      %800 = vmatprep.subr.bf16.mxu0 0
      %801 = vmatpush1.bf16.msra.mxu0 0
      %802 = vmatprep.subr.bf16.mxu0 0
      %803 = vmatpush1.bf16.msra.mxu0 0
      %804 = vmatprep.subr.bf16.mxu0 0
      %805 = vmatpush1.bf16.msra.mxu0 0
      %806 = vmatprep.mubr.bf16.mxu0 0
      %807 = vmatmul.mubr.bf16.gmra.mrb[0].mxu0 %v394
      %v808 = vpop.f32.mrb[0].mxu0
      %v809 = vadd.f32 %v752, %v808
      %v810 = vpop.f32.mrb[0].mxu0
      %v811 = vpop.f32.mrb[0].mxu0
      %v812 = vadd.f32 %v755, %v811
      %v813 = vpop.f32.mrb[0].mxu0
      %814 = vmatprep.mubr.bf16.mxu0 0
      %815 = vmatmul.mubr.bf16.gmra.mrb[0].mxu0 %v399
      %v816 = vpop.f32.mrb[0].mxu0
      %v817 = vadd.f32 %v760, %v816
      %v818 = vpop.f32.mrb[0].mxu0
      %v819 = vpop.f32.mrb[0].mxu0
      %v820 = vadd.f32 %v763, %v819
      %v821 = vpop.f32.mrb[0].mxu0
      %822 = vmatprep.mubr.bf16.mxu0 0
      %823 = vmatmul.mubr.bf16.gmra.mrb[0].mxu0 %v404
      %v824 = vpop.f32.mrb[0].mxu0
      %v825 = vadd.f32 %v768, %v824
      %v826 = vpop.f32.mrb[0].mxu0
      %v827 = vpop.f32.mrb[0].mxu0
      %v828 = vadd.f32 %v771, %v827
      %v829 = vpop.f32.mrb[0].mxu0
      %830 = vdwg.mxu0
      %v831 = vadd.f32 %v238, %v809
      %v832 = vadd.f32 %v239, %v812
      %v833 = vadd.f32 %v240, %v817
      %v834 = vadd.f32 %v241, %v820
      %v835 = vadd.f32 %v242, %v825
      %v836 = vadd.f32 %v243, %v828
      %837 = vst [vmem:[#allocation2] sm:$0xff] %v831
      %838 = vst [vmem:[#allocation2 + $0x8] sm:$0xff] %v832
      %839 = vst [vmem:[#allocation2 + $0x10] sm:$0xff] %v833
      %840 = vst [vmem:[#allocation2 + $0x18] sm:$0xff] %v834
      %841 = vst [vmem:[#allocation2 + $0x20] sm:$0xff] %v835
      %842 = vst [vmem:[#allocation2 + $0x28] sm:$0xff] %v836
      // Predicated region
      $region37: #{forward.6} parent=31 // pred_check
        %p843 = pneg %p228
      $region38: #{forward.6} parent=31 // pred_check_branch
        %845 = sbr.rel (%p843) target = $region40
      $region39: #{forward.6} parent=31 // pred_region
        %v846 = vld [vmem:[#allocation2] sm:$0xff]
        %v847 = vld [vmem:[#allocation2 + $0x8] sm:$0xff]
        %v848 = vld [vmem:[#allocation2 + $0x10] sm:$0xff]
        %v849 = vld [vmem:[#allocation2 + $0x18] sm:$0xff]
        %v850 = vld [vmem:[#allocation2 + $0x20] sm:$0xff]
        %v851 = vld [vmem:[#allocation2 + $0x28] sm:$0xff]
        %v852 = vld [vmem:[%s2] sm:$0x1]
        %v854 = vlaneseq
        %v855 = vshrl.u32 %v854, 7
        %v856 = vsub.s32 0, %v855
        %v857 = vrot.slane %v852, %v856
        %v859 = vadd.f32 %v846, %v857
        %v860 = vadd.f32 %v847, %v857
        %v861 = vadd.f32 %v848, %v857
        %v862 = vadd.f32 %v849, %v857
        %v863 = vadd.f32 %v850, %v857
        %v864 = vadd.f32 %v851, %v857
        %v865 = vmax.f32 %v859, 0.0
        %v866 = vmax.f32 %v860, 0.0
        %v867 = vmax.f32 %v861, 0.0
        %v868 = vmax.f32 %v862, 0.0
        %v869 = vmax.f32 %v863, 0.0
        %v870 = vmax.f32 %v864, 0.0
        %v871 = vpack.c.bf16 %v866, %v865
        %v872 = vpack.c.bf16 %v868, %v867
        %v873 = vpack.c.bf16 %v870, %v869
        %v877 = vunpack.c.l.b16 %v871
        %v878 = vunpack.c.h.b16 %v871
        %v879 = vunpack.c.l.b16 %v872
        %v880 = vunpack.c.h.b16 %v872
        %v881 = vunpack.c.l.b16 %v873
        %v882 = vunpack.c.h.b16 %v873
        %v883 = vpack.c.b16 %v877, %v877
        %v884 = vpack.c.b16 %v878, %v878
        %v885 = vpack.c.b16 %v879, %v879
        %v886 = vpack.c.b16 %v880, %v880
        %v887 = vpack.c.b16 %v881, %v881
        %v888 = vpack.c.b16 %v882, %v882
        %895 = vst [vmem:[%s225] sm:$0xf] %v883
        %896 = vst [vmem:[%s225 + $0x4] sm:$0xf] %v884
        %897 = vst [vmem:[%s225 + $0x8] sm:$0xf] %v885
        %898 = vst [vmem:[%s225 + $0xc] sm:$0xf] %v886
        %899 = vst [vmem:[%s225 + $0x10] sm:$0xf] %v887
        %900 = vst [vmem:[%s225 + $0x14] sm:$0xf] %v888
      $region40: #{forward.6} parent=31 // pred_fallthru
        _
      %s901 = smul.u32 6, %s18
      %p902 = scmp.lt.s32.totalorder %s901, 11
      %s903 = scalar_select %p902, %s901, 11
      %s904 = smul.addr %s903, 4
      %s905 = scalar_lea.vmem %s3, %s904
      // Predicated region
      $region41: #{forward.6} parent=31 // pred_check
        %p906 = pneg %p119
      $region42: #{forward.6} parent=31 // pred_check_branch
        %908 = sbr.rel (%p906) target = $region44
      $region43: #{forward.6} parent=31 // pred_region
        %s909 = smul.u32 6, %s18
      $region44: #{forward.6} parent=31 // pred_fallthru
        _
    $region32: #{forward.6} parent=5 // pred_fallthru
      _
    %p910 = scmp.le.s32.totalorder 2, %s9
    // Predicated region
    $region45: #{forward.6} parent=5 // pred_check
      %p911 = pneg %p910
    $region46: #{forward.6} parent=5 // pred_check_branch
      %913 = sbr.rel (%p911) target = $region48
    $region47: #{forward.6} parent=5 // pred_region
      %s914 = ssub.s32 %s9, 2
      // Predicated region
      $region49: #{forward.6} parent=47 // pred_check
        %p915 = pneg %p125
      $region50: #{forward.6} parent=47 // pred_check_branch
        %917 = sbr.rel (%p915) target = $region52
      $region51: #{forward.6} parent=47 // pred_region
        %s918 = smul.u32 6, %s20
        %p919 = scmp.lt.s32.totalorder %s918, 11
        %s920 = scalar_select %p919, %s918, 11
        %s921 = smul.addr %s920, 4
        %s922 = scalar_lea.vmem %s3, %s921
      $region52: #{forward.6} parent=47 // pred_fallthru
        _
    $region48: #{forward.6} parent=5 // pred_fallthru
      _
  $region6: #{forward.6} parent=0 // loop_footer
    %s13 = sadd.s32 1, %s9
  $region7: #{forward.6} parent=0 // loop_footer_branch
    %8 = sbr.rel target = $region3
  $region8: #{forward.6} parent=0 // loop_exit
    _

// kernel: forward.7
$region0: #{forward.7}
  #allocation0 [shape = 'u32[]', space=smem, size = 0x4, offset = 0x4, fixed_abs, tag = 'smem constant byte address 0x4 - core index']
  #allocation1 [shape = 'u32[144,128]{1,0:T(1,128)}', space=vmem, size = 0x12000, scoped, tag = 'internal scratch']
  %s0 = inlined_call_operand.vmem [shape: bf16[16,2304], index: 0, kind: input, shape index: {}]
  %s1 = inlined_call_operand.vmem [shape: bf16[2304,512], index: 1, kind: input, shape index: {}]
  %s2 = inlined_call_operand.vmem [shape: f32[1,512], index: 2, kind: input, shape index: {}]
  %s3 = inlined_call_operand.vmem [shape: bf16[512,128], index: 3, kind: input, shape index: {}]
  %s4 = inlined_call_operand.vmem [shape: f32[1,128], index: 4, kind: input, shape index: {}]
  %s5 = inlined_call_operand.vmem [shape: f32[16,128], index: 5, kind: output, shape index: {}]
  %s6 = sld [smem:[#allocation0]]
  $region30: #{forward.7} parent=0
    _
  %s8 = ssub.s32 1, %s6
  %s9 = scalar_select 0, %s8, %s6
  // Predicated region
  $region2: #{forward.7} parent=0 // pred_check
    _
  $region3: #{forward.7} parent=0 // pred_check_branch
    %11 = sbr.rel (0) target = $region5
  $region4: #{forward.7} parent=0 // pred_region
    _
  $region5: #{forward.7} parent=0 // pred_fallthru
    _
  // Predicated region
  $region6: #{forward.7} parent=0 // pred_check
    _
  $region7: #{forward.7} parent=0 // pred_check_branch
    %13 = sbr.rel (0) target = $region9
  $region8: #{forward.7} parent=0 // pred_region
    _
  $region9: #{forward.7} parent=0 // pred_fallthru
    _
  // Predicated region
  $region10: #{forward.7} parent=0 // pred_check
    _
  $region11: #{forward.7} parent=0 // pred_check_branch
    %15 = sbr.rel (0) target = $region13
  $region12: #{forward.7} parent=0 // pred_region
    _
  $region13: #{forward.7} parent=0 // pred_fallthru
    _
  // Predicated region
  $region14: #{forward.7} parent=0 // pred_check
    _
  $region15: #{forward.7} parent=0 // pred_check_branch
    %17 = sbr.rel (0) target = $region17
  $region16: #{forward.7} parent=0 // pred_region
    _
  $region17: #{forward.7} parent=0 // pred_fallthru
    _
  // Predicated region
  $region18: #{forward.7} parent=0 // pred_check
    _
  $region19: #{forward.7} parent=0 // pred_check_branch
    %19 = sbr.rel (0) target = $region21
  $region20: #{forward.7} parent=0 // pred_region
    _
  $region21: #{forward.7} parent=0 // pred_fallthru
    _
  %v21 = vld [vmem:[%s0] sm:$0xff]
  %v22 = vld [vmem:[%s0 + $0x8] sm:$0xff]
  %v23 = vld [vmem:[%s0 + $0x10] sm:$0xff]
  %v24 = vld [vmem:[%s0 + $0x18] sm:$0xff]
  %v25 = vld [vmem:[%s0 + $0x20] sm:$0xff]
  %v26 = vld [vmem:[%s0 + $0x28] sm:$0xff]
  %v27 = vld [vmem:[%s0 + $0x30] sm:$0xff]
  %v28 = vld [vmem:[%s0 + $0x38] sm:$0xff]
  %v29 = vld [vmem:[%s0 + $0x40] sm:$0xff]
  %v30 = vld [vmem:[%s0 + $0x48] sm:$0xff]
  %v31 = vld [vmem:[%s0 + $0x50] sm:$0xff]
  %v32 = vld [vmem:[%s0 + $0x58] sm:$0xff]
  %v33 = vld [vmem:[%s0 + $0x60] sm:$0xff]
  %v34 = vld [vmem:[%s0 + $0x68] sm:$0xff]
  %v35 = vld [vmem:[%s0 + $0x70] sm:$0xff]
  %v36 = vld [vmem:[%s0 + $0x78] sm:$0xff]
  %v37 = vld [vmem:[%s0 + $0x80] sm:$0xff]
  %v38 = vld [vmem:[%s0 + $0x88] sm:$0xff]
  %v39 = vld [vmem:[%s1] sm:$0xff]
  %v40 = vld [vmem:[%s1 + $0x8] sm:$0xff]
  %v41 = vld [vmem:[%s1 + $0x10] sm:$0xff]
  %v42 = vld [vmem:[%s1 + $0x18] sm:$0xff]
  %v43 = vld [vmem:[%s1 + $0x20] sm:$0xff]
  %v44 = vld [vmem:[%s1 + $0x28] sm:$0xff]
  %v45 = vld [vmem:[%s1 + $0x30] sm:$0xff]
  %v46 = vld [vmem:[%s1 + $0x38] sm:$0xff]
  %v47 = vld [vmem:[%s1 + $0x40] sm:$0xff]
  %v48 = vld [vmem:[%s1 + $0x48] sm:$0xff]
  %v49 = vld [vmem:[%s1 + $0x50] sm:$0xff]
  %v50 = vld [vmem:[%s1 + $0x58] sm:$0xff]
  %v51 = vld [vmem:[%s1 + $0x60] sm:$0xff]
  %v52 = vld [vmem:[%s1 + $0x68] sm:$0xff]
  %v53 = vld [vmem:[%s1 + $0x70] sm:$0xff]
  %v54 = vld [vmem:[%s1 + $0x78] sm:$0xff]
  %v55 = vld [vmem:[%s1 + $0x80] sm:$0xff]
  %v56 = vld [vmem:[%s1 + $0x88] sm:$0xff]
  %v57 = vld [vmem:[%s1 + $0x90] sm:$0xff]
  %v58 = vld [vmem:[%s1 + $0x98] sm:$0xff]
  %v59 = vld [vmem:[%s1 + $0xa0] sm:$0xff]
  %v60 = vld [vmem:[%s1 + $0xa8] sm:$0xff]
  %v61 = vld [vmem:[%s1 + $0xb0] sm:$0xff]
  %v62 = vld [vmem:[%s1 + $0xb8] sm:$0xff]
  %v63 = vld [vmem:[%s1 + $0xc0] sm:$0xff]
  %v64 = vld [vmem:[%s1 + $0xc8] sm:$0xff]
  %v65 = vld [vmem:[%s1 + $0xd0] sm:$0xff]
  %v66 = vld [vmem:[%s1 + $0xd8] sm:$0xff]
  %v67 = vld [vmem:[%s1 + $0xe0] sm:$0xff]
  %v68 = vld [vmem:[%s1 + $0xe8] sm:$0xff]
  %v69 = vld [vmem:[%s1 + $0xf0] sm:$0xff]
  %v70 = vld [vmem:[%s1 + $0xf8] sm:$0xff]
  %v71 = vld [vmem:[%s1 + $0x100] sm:$0xff]
  %v72 = vld [vmem:[%s1 + $0x108] sm:$0xff]
  %v73 = vld [vmem:[%s1 + $0x110] sm:$0xff]
  %v74 = vld [vmem:[%s1 + $0x118] sm:$0xff]
  %v75 = vld [vmem:[%s1 + $0x120] sm:$0xff]
  %v76 = vld [vmem:[%s1 + $0x128] sm:$0xff]
  %v77 = vld [vmem:[%s1 + $0x130] sm:$0xff]
  %v78 = vld [vmem:[%s1 + $0x138] sm:$0xff]
  %v79 = vld [vmem:[%s1 + $0x140] sm:$0xff]
  %v80 = vld [vmem:[%s1 + $0x148] sm:$0xff]
  %v81 = vld [vmem:[%s1 + $0x150] sm:$0xff]
  %v82 = vld [vmem:[%s1 + $0x158] sm:$0xff]
  %v83 = vld [vmem:[%s1 + $0x160] sm:$0xff]
  %v84 = vld [vmem:[%s1 + $0x168] sm:$0xff]
  %v85 = vld [vmem:[%s1 + $0x170] sm:$0xff]
  %v86 = vld [vmem:[%s1 + $0x178] sm:$0xff]
  %v87 = vld [vmem:[%s1 + $0x180] sm:$0xff]
  %v88 = vld [vmem:[%s1 + $0x188] sm:$0xff]
  %v89 = vld [vmem:[%s1 + $0x190] sm:$0xff]
  %v90 = vld [vmem:[%s1 + $0x198] sm:$0xff]
  %v91 = vld [vmem:[%s1 + $0x1a0] sm:$0xff]
  %v92 = vld [vmem:[%s1 + $0x1a8] sm:$0xff]
  %v93 = vld [vmem:[%s1 + $0x1b0] sm:$0xff]
  %v94 = vld [vmem:[%s1 + $0x1b8] sm:$0xff]
  %v95 = vld [vmem:[%s1 + $0x1c0] sm:$0xff]
  %v96 = vld [vmem:[%s1 + $0x1c8] sm:$0xff]
  %v97 = vld [vmem:[%s1 + $0x1d0] sm:$0xff]
  %v98 = vld [vmem:[%s1 + $0x1d8] sm:$0xff]
  %v99 = vld [vmem:[%s1 + $0x1e0] sm:$0xff]
  %v100 = vld [vmem:[%s1 + $0x1e8] sm:$0xff]
  %v101 = vld [vmem:[%s1 + $0x1f0] sm:$0xff]
  %v102 = vld [vmem:[%s1 + $0x1f8] sm:$0xff]
  %v103 = vld [vmem:[%s1 + $0x200] sm:$0xff]
  %v104 = vld [vmem:[%s1 + $0x208] sm:$0xff]
  %v105 = vld [vmem:[%s1 + $0x210] sm:$0xff]
  %v106 = vld [vmem:[%s1 + $0x218] sm:$0xff]
  %v107 = vld [vmem:[%s1 + $0x220] sm:$0xff]
  %v108 = vld [vmem:[%s1 + $0x228] sm:$0xff]
  %v109 = vld [vmem:[%s1 + $0x230] sm:$0xff]
  %v110 = vld [vmem:[%s1 + $0x238] sm:$0xff]
  %v111 = vld [vmem:[%s1 + $0x240] sm:$0xff]
  %v112 = vld [vmem:[%s1 + $0x248] sm:$0xff]
  %v113 = vld [vmem:[%s1 + $0x250] sm:$0xff]
  %v114 = vld [vmem:[%s1 + $0x258] sm:$0xff]
  %v115 = vld [vmem:[%s1 + $0x260] sm:$0xff]
  %v116 = vld [vmem:[%s1 + $0x268] sm:$0xff]
  %v117 = vld [vmem:[%s1 + $0x270] sm:$0xff]
  %v118 = vld [vmem:[%s1 + $0x278] sm:$0xff]
  %v119 = vld [vmem:[%s1 + $0x280] sm:$0xff]
  %v120 = vld [vmem:[%s1 + $0x288] sm:$0xff]
  %v121 = vld [vmem:[%s1 + $0x290] sm:$0xff]
  %v122 = vld [vmem:[%s1 + $0x298] sm:$0xff]
  %v123 = vld [vmem:[%s1 + $0x2a0] sm:$0xff]
  %v124 = vld [vmem:[%s1 + $0x2a8] sm:$0xff]
  %v125 = vld [vmem:[%s1 + $0x2b0] sm:$0xff]
  %v126 = vld [vmem:[%s1 + $0x2b8] sm:$0xff]
  %v127 = vld [vmem:[%s1 + $0x2c0] sm:$0xff]
  %v128 = vld [vmem:[%s1 + $0x2c8] sm:$0xff]
  %v129 = vld [vmem:[%s1 + $0x2d0] sm:$0xff]
  %v130 = vld [vmem:[%s1 + $0x2d8] sm:$0xff]
  %v131 = vld [vmem:[%s1 + $0x2e0] sm:$0xff]
  %v132 = vld [vmem:[%s1 + $0x2e8] sm:$0xff]
  %v133 = vld [vmem:[%s1 + $0x2f0] sm:$0xff]
  %v134 = vld [vmem:[%s1 + $0x2f8] sm:$0xff]
  %v135 = vld [vmem:[%s1 + $0x300] sm:$0xff]
  %v136 = vld [vmem:[%s1 + $0x308] sm:$0xff]
  %v137 = vld [vmem:[%s1 + $0x310] sm:$0xff]
  %v138 = vld [vmem:[%s1 + $0x318] sm:$0xff]
  %v139 = vld [vmem:[%s1 + $0x320] sm:$0xff]
  %v140 = vld [vmem:[%s1 + $0x328] sm:$0xff]
  %v141 = vld [vmem:[%s1 + $0x330] sm:$0xff]
  %v142 = vld [vmem:[%s1 + $0x338] sm:$0xff]
  %v143 = vld [vmem:[%s1 + $0x340] sm:$0xff]
  %v144 = vld [vmem:[%s1 + $0x348] sm:$0xff]
  %v145 = vld [vmem:[%s1 + $0x350] sm:$0xff]
  %v146 = vld [vmem:[%s1 + $0x358] sm:$0xff]
  %v147 = vld [vmem:[%s1 + $0x360] sm:$0xff]
  %v148 = vld [vmem:[%s1 + $0x368] sm:$0xff]
  %v149 = vld [vmem:[%s1 + $0x370] sm:$0xff]
  %v150 = vld [vmem:[%s1 + $0x378] sm:$0xff]
  %v151 = vld [vmem:[%s1 + $0x380] sm:$0xff]
  %v152 = vld [vmem:[%s1 + $0x388] sm:$0xff]
  %v153 = vld [vmem:[%s1 + $0x390] sm:$0xff]
  %v154 = vld [vmem:[%s1 + $0x398] sm:$0xff]
  %v155 = vld [vmem:[%s1 + $0x3a0] sm:$0xff]
  %v156 = vld [vmem:[%s1 + $0x3a8] sm:$0xff]
  %v157 = vld [vmem:[%s1 + $0x3b0] sm:$0xff]
  %v158 = vld [vmem:[%s1 + $0x3b8] sm:$0xff]
  %v159 = vld [vmem:[%s1 + $0x3c0] sm:$0xff]
  %v160 = vld [vmem:[%s1 + $0x3c8] sm:$0xff]
  %v161 = vld [vmem:[%s1 + $0x3d0] sm:$0xff]
  %v162 = vld [vmem:[%s1 + $0x3d8] sm:$0xff]
  %v163 = vld [vmem:[%s1 + $0x3e0] sm:$0xff]
  %v164 = vld [vmem:[%s1 + $0x3e8] sm:$0xff]
  %v165 = vld [vmem:[%s1 + $0x3f0] sm:$0xff]
  %v166 = vld [vmem:[%s1 + $0x3f8] sm:$0xff]
  %v167 = vld [vmem:[%s1 + $0x400] sm:$0xff]
  %v168 = vld [vmem:[%s1 + $0x408] sm:$0xff]
  %v169 = vld [vmem:[%s1 + $0x410] sm:$0xff]
  %v170 = vld [vmem:[%s1 + $0x418] sm:$0xff]
  %v171 = vld [vmem:[%s1 + $0x420] sm:$0xff]
  %v172 = vld [vmem:[%s1 + $0x428] sm:$0xff]
  %v173 = vld [vmem:[%s1 + $0x430] sm:$0xff]
  %v174 = vld [vmem:[%s1 + $0x438] sm:$0xff]
  %v175 = vld [vmem:[%s1 + $0x440] sm:$0xff]
  %v176 = vld [vmem:[%s1 + $0x448] sm:$0xff]
  %v177 = vld [vmem:[%s1 + $0x450] sm:$0xff]
  %v178 = vld [vmem:[%s1 + $0x458] sm:$0xff]
  %v179 = vld [vmem:[%s1 + $0x460] sm:$0xff]
  %v180 = vld [vmem:[%s1 + $0x468] sm:$0xff]
  %v181 = vld [vmem:[%s1 + $0x470] sm:$0xff]
  %v182 = vld [vmem:[%s1 + $0x478] sm:$0xff]
  %v183 = vld [vmem:[%s1 + $0x480] sm:$0xff]
  %v184 = vld [vmem:[%s1 + $0x488] sm:$0xff]
  %v185 = vld [vmem:[%s1 + $0x490] sm:$0xff]
  %v186 = vld [vmem:[%s1 + $0x498] sm:$0xff]
  %v187 = vld [vmem:[%s1 + $0x4a0] sm:$0xff]
  %v188 = vld [vmem:[%s1 + $0x4a8] sm:$0xff]
  %v189 = vld [vmem:[%s1 + $0x4b0] sm:$0xff]
  %v190 = vld [vmem:[%s1 + $0x4b8] sm:$0xff]
  %v191 = vld [vmem:[%s1 + $0x4c0] sm:$0xff]
  %v192 = vld [vmem:[%s1 + $0x4c8] sm:$0xff]
  %v193 = vld [vmem:[%s1 + $0x4d0] sm:$0xff]
  %v194 = vld [vmem:[%s1 + $0x4d8] sm:$0xff]
  %v195 = vld [vmem:[%s1 + $0x4e0] sm:$0xff]
  %v196 = vld [vmem:[%s1 + $0x4e8] sm:$0xff]
  %v197 = vld [vmem:[%s1 + $0x4f0] sm:$0xff]
  %v198 = vld [vmem:[%s1 + $0x4f8] sm:$0xff]
  %v199 = vld [vmem:[%s1 + $0x500] sm:$0xff]
  %v200 = vld [vmem:[%s1 + $0x508] sm:$0xff]
  %v201 = vld [vmem:[%s1 + $0x510] sm:$0xff]
  %v202 = vld [vmem:[%s1 + $0x518] sm:$0xff]
  %v203 = vld [vmem:[%s1 + $0x520] sm:$0xff]
  %v204 = vld [vmem:[%s1 + $0x528] sm:$0xff]
  %v205 = vld [vmem:[%s1 + $0x530] sm:$0xff]
  %v206 = vld [vmem:[%s1 + $0x538] sm:$0xff]
  %v207 = vld [vmem:[%s1 + $0x540] sm:$0xff]
  %v208 = vld [vmem:[%s1 + $0x548] sm:$0xff]
  %v209 = vld [vmem:[%s1 + $0x550] sm:$0xff]
  %v210 = vld [vmem:[%s1 + $0x558] sm:$0xff]
  %v211 = vld [vmem:[%s1 + $0x560] sm:$0xff]
  %v212 = vld [vmem:[%s1 + $0x568] sm:$0xff]
  %v213 = vld [vmem:[%s1 + $0x570] sm:$0xff]
  %v214 = vld [vmem:[%s1 + $0x578] sm:$0xff]
  %v215 = vld [vmem:[%s1 + $0x580] sm:$0xff]
  %v216 = vld [vmem:[%s1 + $0x588] sm:$0xff]
  %v217 = vld [vmem:[%s1 + $0x590] sm:$0xff]
  %v218 = vld [vmem:[%s1 + $0x598] sm:$0xff]
  %v219 = vld [vmem:[%s1 + $0x5a0] sm:$0xff]
  %v220 = vld [vmem:[%s1 + $0x5a8] sm:$0xff]
  %v221 = vld [vmem:[%s1 + $0x5b0] sm:$0xff]
  %v222 = vld [vmem:[%s1 + $0x5b8] sm:$0xff]
  %v223 = vld [vmem:[%s1 + $0x5c0] sm:$0xff]
  %v224 = vld [vmem:[%s1 + $0x5c8] sm:$0xff]
  %v225 = vld [vmem:[%s1 + $0x5d0] sm:$0xff]
  %v226 = vld [vmem:[%s1 + $0x5d8] sm:$0xff]
  %v227 = vld [vmem:[%s1 + $0x5e0] sm:$0xff]
  %v228 = vld [vmem:[%s1 + $0x5e8] sm:$0xff]
  %v229 = vld [vmem:[%s1 + $0x5f0] sm:$0xff]
  %v230 = vld [vmem:[%s1 + $0x5f8] sm:$0xff]
  %v231 = vld [vmem:[%s1 + $0x600] sm:$0xff]
  %v232 = vld [vmem:[%s1 + $0x608] sm:$0xff]
  %v233 = vld [vmem:[%s1 + $0x610] sm:$0xff]
  %v234 = vld [vmem:[%s1 + $0x618] sm:$0xff]
  %v235 = vld [vmem:[%s1 + $0x620] sm:$0xff]
  %v236 = vld [vmem:[%s1 + $0x628] sm:$0xff]
  %v237 = vld [vmem:[%s1 + $0x630] sm:$0xff]
  %v238 = vld [vmem:[%s1 + $0x638] sm:$0xff]
  %v239 = vld [vmem:[%s1 + $0x640] sm:$0xff]
  %v240 = vld [vmem:[%s1 + $0x648] sm:$0xff]
  %v241 = vld [vmem:[%s1 + $0x650] sm:$0xff]
  %v242 = vld [vmem:[%s1 + $0x658] sm:$0xff]
  %v243 = vld [vmem:[%s1 + $0x660] sm:$0xff]
  %v244 = vld [vmem:[%s1 + $0x668] sm:$0xff]
  %v245 = vld [vmem:[%s1 + $0x670] sm:$0xff]
  %v246 = vld [vmem:[%s1 + $0x678] sm:$0xff]
  %v247 = vld [vmem:[%s1 + $0x680] sm:$0xff]
  %v248 = vld [vmem:[%s1 + $0x688] sm:$0xff]
  %v249 = vld [vmem:[%s1 + $0x690] sm:$0xff]
  %v250 = vld [vmem:[%s1 + $0x698] sm:$0xff]
  %v251 = vld [vmem:[%s1 + $0x6a0] sm:$0xff]
  %v252 = vld [vmem:[%s1 + $0x6a8] sm:$0xff]
  %v253 = vld [vmem:[%s1 + $0x6b0] sm:$0xff]
  %v254 = vld [vmem:[%s1 + $0x6b8] sm:$0xff]
  %v255 = vld [vmem:[%s1 + $0x6c0] sm:$0xff]
  %v256 = vld [vmem:[%s1 + $0x6c8] sm:$0xff]
  %v257 = vld [vmem:[%s1 + $0x6d0] sm:$0xff]
  %v258 = vld [vmem:[%s1 + $0x6d8] sm:$0xff]
  %v259 = vld [vmem:[%s1 + $0x6e0] sm:$0xff]
  %v260 = vld [vmem:[%s1 + $0x6e8] sm:$0xff]
  %v261 = vld [vmem:[%s1 + $0x6f0] sm:$0xff]
  %v262 = vld [vmem:[%s1 + $0x6f8] sm:$0xff]
  %v263 = vld [vmem:[%s1 + $0x700] sm:$0xff]
  %v264 = vld [vmem:[%s1 + $0x708] sm:$0xff]
  %v265 = vld [vmem:[%s1 + $0x710] sm:$0xff]
  %v266 = vld [vmem:[%s1 + $0x718] sm:$0xff]
  %v267 = vld [vmem:[%s1 + $0x720] sm:$0xff]
  %v268 = vld [vmem:[%s1 + $0x728] sm:$0xff]
  %v269 = vld [vmem:[%s1 + $0x730] sm:$0xff]
  %v270 = vld [vmem:[%s1 + $0x738] sm:$0xff]
  %v271 = vld [vmem:[%s1 + $0x740] sm:$0xff]
  %v272 = vld [vmem:[%s1 + $0x748] sm:$0xff]
  %v273 = vld [vmem:[%s1 + $0x750] sm:$0xff]
  %v274 = vld [vmem:[%s1 + $0x758] sm:$0xff]
  %v275 = vld [vmem:[%s1 + $0x760] sm:$0xff]
  %v276 = vld [vmem:[%s1 + $0x768] sm:$0xff]
  %v277 = vld [vmem:[%s1 + $0x770] sm:$0xff]
  %v278 = vld [vmem:[%s1 + $0x778] sm:$0xff]
  %v279 = vld [vmem:[%s1 + $0x780] sm:$0xff]
  %v280 = vld [vmem:[%s1 + $0x788] sm:$0xff]
  %v281 = vld [vmem:[%s1 + $0x790] sm:$0xff]
  %v282 = vld [vmem:[%s1 + $0x798] sm:$0xff]
  %v283 = vld [vmem:[%s1 + $0x7a0] sm:$0xff]
  %v284 = vld [vmem:[%s1 + $0x7a8] sm:$0xff]
  %v285 = vld [vmem:[%s1 + $0x7b0] sm:$0xff]
  %v286 = vld [vmem:[%s1 + $0x7b8] sm:$0xff]
  %v287 = vld [vmem:[%s1 + $0x7c0] sm:$0xff]
  %v288 = vld [vmem:[%s1 + $0x7c8] sm:$0xff]
  %v289 = vld [vmem:[%s1 + $0x7d0] sm:$0xff]
  %v290 = vld [vmem:[%s1 + $0x7d8] sm:$0xff]
  %v291 = vld [vmem:[%s1 + $0x7e0] sm:$0xff]
  %v292 = vld [vmem:[%s1 + $0x7e8] sm:$0xff]
  %v293 = vld [vmem:[%s1 + $0x7f0] sm:$0xff]
  %v294 = vld [vmem:[%s1 + $0x7f8] sm:$0xff]
  %v295 = vld [vmem:[%s1 + $0x800] sm:$0xff]
  %v296 = vld [vmem:[%s1 + $0x808] sm:$0xff]
  %v297 = vld [vmem:[%s1 + $0x810] sm:$0xff]
  %v298 = vld [vmem:[%s1 + $0x818] sm:$0xff]
  %v299 = vld [vmem:[%s1 + $0x820] sm:$0xff]
  %v300 = vld [vmem:[%s1 + $0x828] sm:$0xff]
  %v301 = vld [vmem:[%s1 + $0x830] sm:$0xff]
  %v302 = vld [vmem:[%s1 + $0x838] sm:$0xff]
  %v303 = vld [vmem:[%s1 + $0x840] sm:$0xff]
  %v304 = vld [vmem:[%s1 + $0x848] sm:$0xff]
  %v305 = vld [vmem:[%s1 + $0x850] sm:$0xff]
  %v306 = vld [vmem:[%s1 + $0x858] sm:$0xff]
  %v307 = vld [vmem:[%s1 + $0x860] sm:$0xff]
  %v308 = vld [vmem:[%s1 + $0x868] sm:$0xff]
  %v309 = vld [vmem:[%s1 + $0x870] sm:$0xff]
  %v310 = vld [vmem:[%s1 + $0x878] sm:$0xff]
  %v311 = vld [vmem:[%s1 + $0x880] sm:$0xff]
  %v312 = vld [vmem:[%s1 + $0x888] sm:$0xff]
  %v313 = vld [vmem:[%s1 + $0x890] sm:$0xff]
  %v314 = vld [vmem:[%s1 + $0x898] sm:$0xff]
  %v315 = vld [vmem:[%s1 + $0x8a0] sm:$0xff]
  %v316 = vld [vmem:[%s1 + $0x8a8] sm:$0xff]
  %v317 = vld [vmem:[%s1 + $0x8b0] sm:$0xff]
  %v318 = vld [vmem:[%s1 + $0x8b8] sm:$0xff]
  %v319 = vld [vmem:[%s1 + $0x8c0] sm:$0xff]
  %v320 = vld [vmem:[%s1 + $0x8c8] sm:$0xff]
  %v321 = vld [vmem:[%s1 + $0x8d0] sm:$0xff]
  %v322 = vld [vmem:[%s1 + $0x8d8] sm:$0xff]
  %v323 = vld [vmem:[%s1 + $0x8e0] sm:$0xff]
  %v324 = vld [vmem:[%s1 + $0x8e8] sm:$0xff]
  %v325 = vld [vmem:[%s1 + $0x8f0] sm:$0xff]
  %v326 = vld [vmem:[%s1 + $0x8f8] sm:$0xff]
  %v327 = vld [vmem:[%s1 + $0x900] sm:$0xff]
  %v328 = vld [vmem:[%s1 + $0x908] sm:$0xff]
  %v329 = vld [vmem:[%s1 + $0x910] sm:$0xff]
  %v330 = vld [vmem:[%s1 + $0x918] sm:$0xff]
  %v331 = vld [vmem:[%s1 + $0x920] sm:$0xff]
  %v332 = vld [vmem:[%s1 + $0x928] sm:$0xff]
  %v333 = vld [vmem:[%s1 + $0x930] sm:$0xff]
  %v334 = vld [vmem:[%s1 + $0x938] sm:$0xff]
  %v335 = vld [vmem:[%s1 + $0x940] sm:$0xff]
  %v336 = vld [vmem:[%s1 + $0x948] sm:$0xff]
  %v337 = vld [vmem:[%s1 + $0x950] sm:$0xff]
  %v338 = vld [vmem:[%s1 + $0x958] sm:$0xff]
  %v339 = vld [vmem:[%s1 + $0x960] sm:$0xff]
  %v340 = vld [vmem:[%s1 + $0x968] sm:$0xff]
  %v341 = vld [vmem:[%s1 + $0x970] sm:$0xff]
  %v342 = vld [vmem:[%s1 + $0x978] sm:$0xff]
  %v343 = vld [vmem:[%s1 + $0x980] sm:$0xff]
  %v344 = vld [vmem:[%s1 + $0x988] sm:$0xff]
  %v345 = vld [vmem:[%s1 + $0x990] sm:$0xff]
  %v346 = vld [vmem:[%s1 + $0x998] sm:$0xff]
  %v347 = vld [vmem:[%s1 + $0x9a0] sm:$0xff]
  %v348 = vld [vmem:[%s1 + $0x9a8] sm:$0xff]
  %v349 = vld [vmem:[%s1 + $0x9b0] sm:$0xff]
  %v350 = vld [vmem:[%s1 + $0x9b8] sm:$0xff]
  %v351 = vld [vmem:[%s1 + $0x9c0] sm:$0xff]
  %v352 = vld [vmem:[%s1 + $0x9c8] sm:$0xff]
  %v353 = vld [vmem:[%s1 + $0x9d0] sm:$0xff]
  %v354 = vld [vmem:[%s1 + $0x9d8] sm:$0xff]
  %v355 = vld [vmem:[%s1 + $0x9e0] sm:$0xff]
  %v356 = vld [vmem:[%s1 + $0x9e8] sm:$0xff]
  %v357 = vld [vmem:[%s1 + $0x9f0] sm:$0xff]
  %v358 = vld [vmem:[%s1 + $0x9f8] sm:$0xff]
  %v359 = vld [vmem:[%s1 + $0xa00] sm:$0xff]
  %v360 = vld [vmem:[%s1 + $0xa08] sm:$0xff]
  %v361 = vld [vmem:[%s1 + $0xa10] sm:$0xff]
  %v362 = vld [vmem:[%s1 + $0xa18] sm:$0xff]
  %v363 = vld [vmem:[%s1 + $0xa20] sm:$0xff]
  %v364 = vld [vmem:[%s1 + $0xa28] sm:$0xff]
  %v365 = vld [vmem:[%s1 + $0xa30] sm:$0xff]
  %v366 = vld [vmem:[%s1 + $0xa38] sm:$0xff]
  %v367 = vld [vmem:[%s1 + $0xa40] sm:$0xff]
  %v368 = vld [vmem:[%s1 + $0xa48] sm:$0xff]
  %v369 = vld [vmem:[%s1 + $0xa50] sm:$0xff]
  %v370 = vld [vmem:[%s1 + $0xa58] sm:$0xff]
  %v371 = vld [vmem:[%s1 + $0xa60] sm:$0xff]
  %v372 = vld [vmem:[%s1 + $0xa68] sm:$0xff]
  %v373 = vld [vmem:[%s1 + $0xa70] sm:$0xff]
  %v374 = vld [vmem:[%s1 + $0xa78] sm:$0xff]
  %v375 = vld [vmem:[%s1 + $0xa80] sm:$0xff]
  %v376 = vld [vmem:[%s1 + $0xa88] sm:$0xff]
  %v377 = vld [vmem:[%s1 + $0xa90] sm:$0xff]
  %v378 = vld [vmem:[%s1 + $0xa98] sm:$0xff]
  %v379 = vld [vmem:[%s1 + $0xaa0] sm:$0xff]
  %v380 = vld [vmem:[%s1 + $0xaa8] sm:$0xff]
  %v381 = vld [vmem:[%s1 + $0xab0] sm:$0xff]
  %v382 = vld [vmem:[%s1 + $0xab8] sm:$0xff]
  %v383 = vld [vmem:[%s1 + $0xac0] sm:$0xff]
  %v384 = vld [vmem:[%s1 + $0xac8] sm:$0xff]
  %v385 = vld [vmem:[%s1 + $0xad0] sm:$0xff]
  %v386 = vld [vmem:[%s1 + $0xad8] sm:$0xff]
  %v387 = vld [vmem:[%s1 + $0xae0] sm:$0xff]
  %v388 = vld [vmem:[%s1 + $0xae8] sm:$0xff]
  %v389 = vld [vmem:[%s1 + $0xaf0] sm:$0xff]
  %v390 = vld [vmem:[%s1 + $0xaf8] sm:$0xff]
  %v391 = vld [vmem:[%s1 + $0xb00] sm:$0xff]
  %v392 = vld [vmem:[%s1 + $0xb08] sm:$0xff]
  %v393 = vld [vmem:[%s1 + $0xb10] sm:$0xff]
  %v394 = vld [vmem:[%s1 + $0xb18] sm:$0xff]
  %v395 = vld [vmem:[%s1 + $0xb20] sm:$0xff]
  %v396 = vld [vmem:[%s1 + $0xb28] sm:$0xff]
  %v397 = vld [vmem:[%s1 + $0xb30] sm:$0xff]
  %v398 = vld [vmem:[%s1 + $0xb38] sm:$0xff]
  %v399 = vld [vmem:[%s1 + $0xb40] sm:$0xff]
  %v400 = vld [vmem:[%s1 + $0xb48] sm:$0xff]
  %v401 = vld [vmem:[%s1 + $0xb50] sm:$0xff]
  %v402 = vld [vmem:[%s1 + $0xb58] sm:$0xff]
  %v403 = vld [vmem:[%s1 + $0xb60] sm:$0xff]
  %v404 = vld [vmem:[%s1 + $0xb68] sm:$0xff]
  %v405 = vld [vmem:[%s1 + $0xb70] sm:$0xff]
  %v406 = vld [vmem:[%s1 + $0xb78] sm:$0xff]
  %v407 = vld [vmem:[%s1 + $0xb80] sm:$0xff]
  %v408 = vld [vmem:[%s1 + $0xb88] sm:$0xff]
  %v409 = vld [vmem:[%s1 + $0xb90] sm:$0xff]
  %v410 = vld [vmem:[%s1 + $0xb98] sm:$0xff]
  %v411 = vld [vmem:[%s1 + $0xba0] sm:$0xff]
  %v412 = vld [vmem:[%s1 + $0xba8] sm:$0xff]
  %v413 = vld [vmem:[%s1 + $0xbb0] sm:$0xff]
  %v414 = vld [vmem:[%s1 + $0xbb8] sm:$0xff]
  %v415 = vld [vmem:[%s1 + $0xbc0] sm:$0xff]
  %v416 = vld [vmem:[%s1 + $0xbc8] sm:$0xff]
  %v417 = vld [vmem:[%s1 + $0xbd0] sm:$0xff]
  %v418 = vld [vmem:[%s1 + $0xbd8] sm:$0xff]
  %v419 = vld [vmem:[%s1 + $0xbe0] sm:$0xff]
  %v420 = vld [vmem:[%s1 + $0xbe8] sm:$0xff]
  %v421 = vld [vmem:[%s1 + $0xbf0] sm:$0xff]
  %v422 = vld [vmem:[%s1 + $0xbf8] sm:$0xff]
  %v423 = vld [vmem:[%s1 + $0xc00] sm:$0xff]
  %v424 = vld [vmem:[%s1 + $0xc08] sm:$0xff]
  %v425 = vld [vmem:[%s1 + $0xc10] sm:$0xff]
  %v426 = vld [vmem:[%s1 + $0xc18] sm:$0xff]
  %v427 = vld [vmem:[%s1 + $0xc20] sm:$0xff]
  %v428 = vld [vmem:[%s1 + $0xc28] sm:$0xff]
  %v429 = vld [vmem:[%s1 + $0xc30] sm:$0xff]
  %v430 = vld [vmem:[%s1 + $0xc38] sm:$0xff]
  %v431 = vld [vmem:[%s1 + $0xc40] sm:$0xff]
  %v432 = vld [vmem:[%s1 + $0xc48] sm:$0xff]
  %v433 = vld [vmem:[%s1 + $0xc50] sm:$0xff]
  %v434 = vld [vmem:[%s1 + $0xc58] sm:$0xff]
  %v435 = vld [vmem:[%s1 + $0xc60] sm:$0xff]
  %v436 = vld [vmem:[%s1 + $0xc68] sm:$0xff]
  %v437 = vld [vmem:[%s1 + $0xc70] sm:$0xff]
  %v438 = vld [vmem:[%s1 + $0xc78] sm:$0xff]
  %v439 = vld [vmem:[%s1 + $0xc80] sm:$0xff]
  %v440 = vld [vmem:[%s1 + $0xc88] sm:$0xff]
  %v441 = vld [vmem:[%s1 + $0xc90] sm:$0xff]
  %v442 = vld [vmem:[%s1 + $0xc98] sm:$0xff]
  %v443 = vld [vmem:[%s1 + $0xca0] sm:$0xff]
  %v444 = vld [vmem:[%s1 + $0xca8] sm:$0xff]
  %v445 = vld [vmem:[%s1 + $0xcb0] sm:$0xff]
  %v446 = vld [vmem:[%s1 + $0xcb8] sm:$0xff]
  %v447 = vld [vmem:[%s1 + $0xcc0] sm:$0xff]
  %v448 = vld [vmem:[%s1 + $0xcc8] sm:$0xff]
  %v449 = vld [vmem:[%s1 + $0xcd0] sm:$0xff]
  %v450 = vld [vmem:[%s1 + $0xcd8] sm:$0xff]
  %v451 = vld [vmem:[%s1 + $0xce0] sm:$0xff]
  %v452 = vld [vmem:[%s1 + $0xce8] sm:$0xff]
  %v453 = vld [vmem:[%s1 + $0xcf0] sm:$0xff]
  %v454 = vld [vmem:[%s1 + $0xcf8] sm:$0xff]
  %v455 = vld [vmem:[%s1 + $0xd00] sm:$0xff]
  %v456 = vld [vmem:[%s1 + $0xd08] sm:$0xff]
  %v457 = vld [vmem:[%s1 + $0xd10] sm:$0xff]
  %v458 = vld [vmem:[%s1 + $0xd18] sm:$0xff]
  %v459 = vld [vmem:[%s1 + $0xd20] sm:$0xff]
  %v460 = vld [vmem:[%s1 + $0xd28] sm:$0xff]
  %v461 = vld [vmem:[%s1 + $0xd30] sm:$0xff]
  %v462 = vld [vmem:[%s1 + $0xd38] sm:$0xff]
  %v463 = vld [vmem:[%s1 + $0xd40] sm:$0xff]
  %v464 = vld [vmem:[%s1 + $0xd48] sm:$0xff]
  %v465 = vld [vmem:[%s1 + $0xd50] sm:$0xff]
  %v466 = vld [vmem:[%s1 + $0xd58] sm:$0xff]
  %v467 = vld [vmem:[%s1 + $0xd60] sm:$0xff]
  %v468 = vld [vmem:[%s1 + $0xd68] sm:$0xff]
  %v469 = vld [vmem:[%s1 + $0xd70] sm:$0xff]
  %v470 = vld [vmem:[%s1 + $0xd78] sm:$0xff]
  %v471 = vld [vmem:[%s1 + $0xd80] sm:$0xff]
  %v472 = vld [vmem:[%s1 + $0xd88] sm:$0xff]
  %v473 = vld [vmem:[%s1 + $0xd90] sm:$0xff]
  %v474 = vld [vmem:[%s1 + $0xd98] sm:$0xff]
  %v475 = vld [vmem:[%s1 + $0xda0] sm:$0xff]
  %v476 = vld [vmem:[%s1 + $0xda8] sm:$0xff]
  %v477 = vld [vmem:[%s1 + $0xdb0] sm:$0xff]
  %v478 = vld [vmem:[%s1 + $0xdb8] sm:$0xff]
  %v479 = vld [vmem:[%s1 + $0xdc0] sm:$0xff]
  %v480 = vld [vmem:[%s1 + $0xdc8] sm:$0xff]
  %v481 = vld [vmem:[%s1 + $0xdd0] sm:$0xff]
  %v482 = vld [vmem:[%s1 + $0xdd8] sm:$0xff]
  %v483 = vld [vmem:[%s1 + $0xde0] sm:$0xff]
  %v484 = vld [vmem:[%s1 + $0xde8] sm:$0xff]
  %v485 = vld [vmem:[%s1 + $0xdf0] sm:$0xff]
  %v486 = vld [vmem:[%s1 + $0xdf8] sm:$0xff]
  %v487 = vld [vmem:[%s1 + $0xe00] sm:$0xff]
  %v488 = vld [vmem:[%s1 + $0xe08] sm:$0xff]
  %v489 = vld [vmem:[%s1 + $0xe10] sm:$0xff]
  %v490 = vld [vmem:[%s1 + $0xe18] sm:$0xff]
  %v491 = vld [vmem:[%s1 + $0xe20] sm:$0xff]
  %v492 = vld [vmem:[%s1 + $0xe28] sm:$0xff]
  %v493 = vld [vmem:[%s1 + $0xe30] sm:$0xff]
  %v494 = vld [vmem:[%s1 + $0xe38] sm:$0xff]
  %v495 = vld [vmem:[%s1 + $0xe40] sm:$0xff]
  %v496 = vld [vmem:[%s1 + $0xe48] sm:$0xff]
  %v497 = vld [vmem:[%s1 + $0xe50] sm:$0xff]
  %v498 = vld [vmem:[%s1 + $0xe58] sm:$0xff]
  %v499 = vld [vmem:[%s1 + $0xe60] sm:$0xff]
  %v500 = vld [vmem:[%s1 + $0xe68] sm:$0xff]
  %v501 = vld [vmem:[%s1 + $0xe70] sm:$0xff]
  %v502 = vld [vmem:[%s1 + $0xe78] sm:$0xff]
  %v503 = vld [vmem:[%s1 + $0xe80] sm:$0xff]
  %v504 = vld [vmem:[%s1 + $0xe88] sm:$0xff]
  %v505 = vld [vmem:[%s1 + $0xe90] sm:$0xff]
  %v506 = vld [vmem:[%s1 + $0xe98] sm:$0xff]
  %v507 = vld [vmem:[%s1 + $0xea0] sm:$0xff]
  %v508 = vld [vmem:[%s1 + $0xea8] sm:$0xff]
  %v509 = vld [vmem:[%s1 + $0xeb0] sm:$0xff]
  %v510 = vld [vmem:[%s1 + $0xeb8] sm:$0xff]
  %v511 = vld [vmem:[%s1 + $0xec0] sm:$0xff]
  %v512 = vld [vmem:[%s1 + $0xec8] sm:$0xff]
  %v513 = vld [vmem:[%s1 + $0xed0] sm:$0xff]
  %v514 = vld [vmem:[%s1 + $0xed8] sm:$0xff]
  %v515 = vld [vmem:[%s1 + $0xee0] sm:$0xff]
  %v516 = vld [vmem:[%s1 + $0xee8] sm:$0xff]
  %v517 = vld [vmem:[%s1 + $0xef0] sm:$0xff]
  %v518 = vld [vmem:[%s1 + $0xef8] sm:$0xff]
  %v519 = vld [vmem:[%s1 + $0xf00] sm:$0xff]
  %v520 = vld [vmem:[%s1 + $0xf08] sm:$0xff]
  %v521 = vld [vmem:[%s1 + $0xf10] sm:$0xff]
  %v522 = vld [vmem:[%s1 + $0xf18] sm:$0xff]
  %v523 = vld [vmem:[%s1 + $0xf20] sm:$0xff]
  %v524 = vld [vmem:[%s1 + $0xf28] sm:$0xff]
  %v525 = vld [vmem:[%s1 + $0xf30] sm:$0xff]
  %v526 = vld [vmem:[%s1 + $0xf38] sm:$0xff]
  %v527 = vld [vmem:[%s1 + $0xf40] sm:$0xff]
  %v528 = vld [vmem:[%s1 + $0xf48] sm:$0xff]
  %v529 = vld [vmem:[%s1 + $0xf50] sm:$0xff]
  %v530 = vld [vmem:[%s1 + $0xf58] sm:$0xff]
  %v531 = vld [vmem:[%s1 + $0xf60] sm:$0xff]
  %v532 = vld [vmem:[%s1 + $0xf68] sm:$0xff]
  %v533 = vld [vmem:[%s1 + $0xf70] sm:$0xff]
  %v534 = vld [vmem:[%s1 + $0xf78] sm:$0xff]
  %v535 = vld [vmem:[%s1 + $0xf80] sm:$0xff]
  %v536 = vld [vmem:[%s1 + $0xf88] sm:$0xff]
  %v537 = vld [vmem:[%s1 + $0xf90] sm:$0xff]
  %v538 = vld [vmem:[%s1 + $0xf98] sm:$0xff]
  %v539 = vld [vmem:[%s1 + $0xfa0] sm:$0xff]
  %v540 = vld [vmem:[%s1 + $0xfa8] sm:$0xff]
  %v541 = vld [vmem:[%s1 + $0xfb0] sm:$0xff]
  %v542 = vld [vmem:[%s1 + $0xfb8] sm:$0xff]
  %v543 = vld [vmem:[%s1 + $0xfc0] sm:$0xff]
  %v544 = vld [vmem:[%s1 + $0xfc8] sm:$0xff]
  %v545 = vld [vmem:[%s1 + $0xfd0] sm:$0xff]
  %v546 = vld [vmem:[%s1 + $0xfd8] sm:$0xff]
  %v547 = vld [vmem:[%s1 + $0xfe0] sm:$0xff]
  %v548 = vld [vmem:[%s1 + $0xfe8] sm:$0xff]
  %v549 = vld [vmem:[%s1 + $0xff0] sm:$0xff]
  %v550 = vld [vmem:[%s1 + $0xff8] sm:$0xff]
  %v551 = vld [vmem:[%s1 + $0x1000] sm:$0xff]
  %v552 = vld [vmem:[%s1 + $0x1008] sm:$0xff]
  %v553 = vld [vmem:[%s1 + $0x1010] sm:$0xff]
  %v554 = vld [vmem:[%s1 + $0x1018] sm:$0xff]
  %v555 = vld [vmem:[%s1 + $0x1020] sm:$0xff]
  %v556 = vld [vmem:[%s1 + $0x1028] sm:$0xff]
  %v557 = vld [vmem:[%s1 + $0x1030] sm:$0xff]
  %v558 = vld [vmem:[%s1 + $0x1038] sm:$0xff]
  %v559 = vld [vmem:[%s1 + $0x1040] sm:$0xff]
  %v560 = vld [vmem:[%s1 + $0x1048] sm:$0xff]
  %v561 = vld [vmem:[%s1 + $0x1050] sm:$0xff]
  %v562 = vld [vmem:[%s1 + $0x1058] sm:$0xff]
  %v563 = vld [vmem:[%s1 + $0x1060] sm:$0xff]
  %v564 = vld [vmem:[%s1 + $0x1068] sm:$0xff]
  %v565 = vld [vmem:[%s1 + $0x1070] sm:$0xff]
  %v566 = vld [vmem:[%s1 + $0x1078] sm:$0xff]
  %v567 = vld [vmem:[%s1 + $0x1080] sm:$0xff]
  %v568 = vld [vmem:[%s1 + $0x1088] sm:$0xff]
  %v569 = vld [vmem:[%s1 + $0x1090] sm:$0xff]
  %v570 = vld [vmem:[%s1 + $0x1098] sm:$0xff]
  %v571 = vld [vmem:[%s1 + $0x10a0] sm:$0xff]
  %v572 = vld [vmem:[%s1 + $0x10a8] sm:$0xff]
  %v573 = vld [vmem:[%s1 + $0x10b0] sm:$0xff]
  %v574 = vld [vmem:[%s1 + $0x10b8] sm:$0xff]
  %v575 = vld [vmem:[%s1 + $0x10c0] sm:$0xff]
  %v576 = vld [vmem:[%s1 + $0x10c8] sm:$0xff]
  %v577 = vld [vmem:[%s1 + $0x10d0] sm:$0xff]
  %v578 = vld [vmem:[%s1 + $0x10d8] sm:$0xff]
  %v579 = vld [vmem:[%s1 + $0x10e0] sm:$0xff]
  %v580 = vld [vmem:[%s1 + $0x10e8] sm:$0xff]
  %v581 = vld [vmem:[%s1 + $0x10f0] sm:$0xff]
  %v582 = vld [vmem:[%s1 + $0x10f8] sm:$0xff]
  %v583 = vld [vmem:[%s1 + $0x1100] sm:$0xff]
  %v584 = vld [vmem:[%s1 + $0x1108] sm:$0xff]
  %v585 = vld [vmem:[%s1 + $0x1110] sm:$0xff]
  %v586 = vld [vmem:[%s1 + $0x1118] sm:$0xff]
  %v587 = vld [vmem:[%s1 + $0x1120] sm:$0xff]
  %v588 = vld [vmem:[%s1 + $0x1128] sm:$0xff]
  %v589 = vld [vmem:[%s1 + $0x1130] sm:$0xff]
  %v590 = vld [vmem:[%s1 + $0x1138] sm:$0xff]
  %v591 = vld [vmem:[%s1 + $0x1140] sm:$0xff]
  %v592 = vld [vmem:[%s1 + $0x1148] sm:$0xff]
  %v593 = vld [vmem:[%s1 + $0x1150] sm:$0xff]
  %v594 = vld [vmem:[%s1 + $0x1158] sm:$0xff]
  %v595 = vld [vmem:[%s1 + $0x1160] sm:$0xff]
  %v596 = vld [vmem:[%s1 + $0x1168] sm:$0xff]
  %v597 = vld [vmem:[%s1 + $0x1170] sm:$0xff]
  %v598 = vld [vmem:[%s1 + $0x1178] sm:$0xff]
  %v599 = vld [vmem:[%s1 + $0x1180] sm:$0xff]
  %v600 = vld [vmem:[%s1 + $0x1188] sm:$0xff]
  %v601 = vld [vmem:[%s1 + $0x1190] sm:$0xff]
  %v602 = vld [vmem:[%s1 + $0x1198] sm:$0xff]
  %v603 = vld [vmem:[%s1 + $0x11a0] sm:$0xff]
  %v604 = vld [vmem:[%s1 + $0x11a8] sm:$0xff]
  %v605 = vld [vmem:[%s1 + $0x11b0] sm:$0xff]
  %v606 = vld [vmem:[%s1 + $0x11b8] sm:$0xff]
  %v607 = vld [vmem:[%s1 + $0x11c0] sm:$0xff]
  %v608 = vld [vmem:[%s1 + $0x11c8] sm:$0xff]
  %v609 = vld [vmem:[%s1 + $0x11d0] sm:$0xff]
  %v610 = vld [vmem:[%s1 + $0x11d8] sm:$0xff]
  %v611 = vld [vmem:[%s1 + $0x11e0] sm:$0xff]
  %v612 = vld [vmem:[%s1 + $0x11e8] sm:$0xff]
  %v613 = vld [vmem:[%s1 + $0x11f0] sm:$0xff]
  %v614 = vld [vmem:[%s1 + $0x11f8] sm:$0xff]
  %v615 = vld [vmem:[%s2] sm:$0xf]
  %v617 = vlaneseq
  %v618 = vshrl.u32 %v617, 7
  %v619 = vsub.s32 0, %v618
  %v620 = vrot.slane %v615, %v619
  %v621 = vlaneseq
  %v622 = vshrl.u32 %v621, 7
  %v623 = vsub.s32 1, %v622
  %v624 = vrot.slane %v615, %v623
  %v625 = vlaneseq
  %v626 = vshrl.u32 %v625, 7
  %v627 = vsub.s32 2, %v626
  %v628 = vrot.slane %v615, %v627
  %v629 = vlaneseq
  %v630 = vshrl.u32 %v629, 7
  %v631 = vsub.s32 3, %v630
  %v632 = vrot.slane %v615, %v631
  %v655 = vunpack.c.l.b16 %v21
  %v656 = vunpack.c.h.b16 %v21
  %v657 = vunpack.c.l.b16 %v22
  %v658 = vunpack.c.h.b16 %v22
  %v659 = vunpack.c.l.b16 %v23
  %v660 = vunpack.c.h.b16 %v23
  %v661 = vunpack.c.l.b16 %v24
  %v662 = vunpack.c.h.b16 %v24
  %v663 = vunpack.c.l.b16 %v25
  %v664 = vunpack.c.h.b16 %v25
  %v665 = vunpack.c.l.b16 %v26
  %v666 = vunpack.c.h.b16 %v26
  %v667 = vunpack.c.l.b16 %v27
  %v668 = vunpack.c.h.b16 %v27
  %v669 = vunpack.c.l.b16 %v28
  %v670 = vunpack.c.h.b16 %v28
  %v671 = vunpack.c.l.b16 %v29
  %v672 = vunpack.c.h.b16 %v29
  %v673 = vunpack.c.l.b16 %v30
  %v674 = vunpack.c.h.b16 %v30
  %v675 = vunpack.c.l.b16 %v31
  %v676 = vunpack.c.h.b16 %v31
  %v677 = vunpack.c.l.b16 %v32
  %v678 = vunpack.c.h.b16 %v32
  %v679 = vunpack.c.l.b16 %v33
  %v680 = vunpack.c.h.b16 %v33
  %v681 = vunpack.c.l.b16 %v34
  %v682 = vunpack.c.h.b16 %v34
  %v683 = vunpack.c.l.b16 %v35
  %v684 = vunpack.c.h.b16 %v35
  %v685 = vunpack.c.l.b16 %v36
  %v686 = vunpack.c.h.b16 %v36
  %v687 = vunpack.c.l.b16 %v37
  %v688 = vunpack.c.h.b16 %v37
  %v689 = vunpack.c.l.b16 %v38
  %v690 = vunpack.c.h.b16 %v38
  %v691 = vpack.c.b16 %v673, %v655
  %v692 = vpack.c.b16 %v674, %v656
  %v693 = vpack.c.b16 %v675, %v657
  %v694 = vpack.c.b16 %v676, %v658
  %v695 = vpack.c.b16 %v677, %v659
  %v696 = vpack.c.b16 %v678, %v660
  %v697 = vpack.c.b16 %v679, %v661
  %v698 = vpack.c.b16 %v680, %v662
  %v699 = vpack.c.b16 %v681, %v663
  %v700 = vpack.c.b16 %v682, %v664
  %v701 = vpack.c.b16 %v683, %v665
  %v702 = vpack.c.b16 %v684, %v666
  %v703 = vpack.c.b16 %v685, %v667
  %v704 = vpack.c.b16 %v686, %v668
  %v705 = vpack.c.b16 %v687, %v669
  %v706 = vpack.c.b16 %v688, %v670
  %v707 = vpack.c.b16 %v689, %v671
  %v708 = vpack.c.b16 %v690, %v672
  %v1303 = vunpack.c.l.b16 %v39
  %v1304 = vunpack.c.h.b16 %v39
  %v1305 = vunpack.c.l.b16 %v40
  %v1306 = vunpack.c.h.b16 %v40
  %v1307 = vunpack.c.l.b16 %v41
  %v1308 = vunpack.c.h.b16 %v41
  %v1309 = vunpack.c.l.b16 %v42
  %v1310 = vunpack.c.h.b16 %v42
  %v1311 = vunpack.c.l.b16 %v43
  %v1312 = vunpack.c.h.b16 %v43
  %v1313 = vunpack.c.l.b16 %v44
  %v1314 = vunpack.c.h.b16 %v44
  %v1315 = vunpack.c.l.b16 %v45
  %v1316 = vunpack.c.h.b16 %v45
  %v1317 = vunpack.c.l.b16 %v46
  %v1318 = vunpack.c.h.b16 %v46
  %v1319 = vunpack.c.l.b16 %v47
  %v1320 = vunpack.c.h.b16 %v47
  %v1321 = vunpack.c.l.b16 %v48
  %v1322 = vunpack.c.h.b16 %v48
  %v1323 = vunpack.c.l.b16 %v49
  %v1324 = vunpack.c.h.b16 %v49
  %v1325 = vunpack.c.l.b16 %v50
  %v1326 = vunpack.c.h.b16 %v50
  %v1327 = vunpack.c.l.b16 %v51
  %v1328 = vunpack.c.h.b16 %v51
  %v1329 = vunpack.c.l.b16 %v52
  %v1330 = vunpack.c.h.b16 %v52
  %v1331 = vunpack.c.l.b16 %v53
  %v1332 = vunpack.c.h.b16 %v53
  %v1333 = vunpack.c.l.b16 %v54
  %v1334 = vunpack.c.h.b16 %v54
  %v1335 = vunpack.c.l.b16 %v55
  %v1336 = vunpack.c.h.b16 %v55
  %v1337 = vunpack.c.l.b16 %v56
  %v1338 = vunpack.c.h.b16 %v56
  %v1339 = vunpack.c.l.b16 %v57
  %v1340 = vunpack.c.h.b16 %v57
  %v1341 = vunpack.c.l.b16 %v58
  %v1342 = vunpack.c.h.b16 %v58
  %v1343 = vunpack.c.l.b16 %v59
  %v1344 = vunpack.c.h.b16 %v59
  %v1345 = vunpack.c.l.b16 %v60
  %v1346 = vunpack.c.h.b16 %v60
  %v1347 = vunpack.c.l.b16 %v61
  %v1348 = vunpack.c.h.b16 %v61
  %v1349 = vunpack.c.l.b16 %v62
  %v1350 = vunpack.c.h.b16 %v62
  %v1351 = vunpack.c.l.b16 %v63
  %v1352 = vunpack.c.h.b16 %v63
  %v1353 = vunpack.c.l.b16 %v64
  %v1354 = vunpack.c.h.b16 %v64
  %v1355 = vunpack.c.l.b16 %v65
  %v1356 = vunpack.c.h.b16 %v65
  %v1357 = vunpack.c.l.b16 %v66
  %v1358 = vunpack.c.h.b16 %v66
  %v1359 = vunpack.c.l.b16 %v67
  %v1360 = vunpack.c.h.b16 %v67
  %v1361 = vunpack.c.l.b16 %v68
  %v1362 = vunpack.c.h.b16 %v68
  %v1363 = vunpack.c.l.b16 %v69
  %v1364 = vunpack.c.h.b16 %v69
  %v1365 = vunpack.c.l.b16 %v70
  %v1366 = vunpack.c.h.b16 %v70
  %v1367 = vunpack.c.l.b16 %v71
  %v1368 = vunpack.c.h.b16 %v71
  %v1369 = vunpack.c.l.b16 %v72
  %v1370 = vunpack.c.h.b16 %v72
  %v1371 = vunpack.c.l.b16 %v73
  %v1372 = vunpack.c.h.b16 %v73
  %v1373 = vunpack.c.l.b16 %v74
  %v1374 = vunpack.c.h.b16 %v74
  %v1375 = vunpack.c.l.b16 %v75
  %v1376 = vunpack.c.h.b16 %v75
  %v1377 = vunpack.c.l.b16 %v76
  %v1378 = vunpack.c.h.b16 %v76
  %v1379 = vunpack.c.l.b16 %v77
  %v1380 = vunpack.c.h.b16 %v77
  %v1381 = vunpack.c.l.b16 %v78
  %v1382 = vunpack.c.h.b16 %v78
  %v1383 = vunpack.c.l.b16 %v79
  %v1384 = vunpack.c.h.b16 %v79
  %v1385 = vunpack.c.l.b16 %v80
  %v1386 = vunpack.c.h.b16 %v80
  %v1387 = vunpack.c.l.b16 %v81
  %v1388 = vunpack.c.h.b16 %v81
  %v1389 = vunpack.c.l.b16 %v82
  %v1390 = vunpack.c.h.b16 %v82
  %v1391 = vunpack.c.l.b16 %v83
  %v1392 = vunpack.c.h.b16 %v83
  %v1393 = vunpack.c.l.b16 %v84
  %v1394 = vunpack.c.h.b16 %v84
  %v1395 = vunpack.c.l.b16 %v85
  %v1396 = vunpack.c.h.b16 %v85
  %v1397 = vunpack.c.l.b16 %v86
  %v1398 = vunpack.c.h.b16 %v86
  %v1399 = vunpack.c.l.b16 %v87
  %v1400 = vunpack.c.h.b16 %v87
  %v1401 = vunpack.c.l.b16 %v88
  %v1402 = vunpack.c.h.b16 %v88
  %v1403 = vunpack.c.l.b16 %v89
  %v1404 = vunpack.c.h.b16 %v89
  %v1405 = vunpack.c.l.b16 %v90
  %v1406 = vunpack.c.h.b16 %v90
  %v1407 = vunpack.c.l.b16 %v91
  %v1408 = vunpack.c.h.b16 %v91
  %v1409 = vunpack.c.l.b16 %v92
  %v1410 = vunpack.c.h.b16 %v92
  %v1411 = vunpack.c.l.b16 %v93
  %v1412 = vunpack.c.h.b16 %v93
  %v1413 = vunpack.c.l.b16 %v94
  %v1414 = vunpack.c.h.b16 %v94
  %v1415 = vunpack.c.l.b16 %v95
  %v1416 = vunpack.c.h.b16 %v95
  %v1417 = vunpack.c.l.b16 %v96
  %v1418 = vunpack.c.h.b16 %v96
  %v1419 = vunpack.c.l.b16 %v97
  %v1420 = vunpack.c.h.b16 %v97
  %v1421 = vunpack.c.l.b16 %v98
  %v1422 = vunpack.c.h.b16 %v98
  %v1423 = vunpack.c.l.b16 %v99
  %v1424 = vunpack.c.h.b16 %v99
  %v1425 = vunpack.c.l.b16 %v100
  %v1426 = vunpack.c.h.b16 %v100
  %v1427 = vunpack.c.l.b16 %v101
  %v1428 = vunpack.c.h.b16 %v101
  %v1429 = vunpack.c.l.b16 %v102
  %v1430 = vunpack.c.h.b16 %v102
  %v1431 = vunpack.c.l.b16 %v103
  %v1432 = vunpack.c.h.b16 %v103
  %v1433 = vunpack.c.l.b16 %v104
  %v1434 = vunpack.c.h.b16 %v104
  %v1435 = vunpack.c.l.b16 %v105
  %v1436 = vunpack.c.h.b16 %v105
  %v1437 = vunpack.c.l.b16 %v106
  %v1438 = vunpack.c.h.b16 %v106
  %v1439 = vunpack.c.l.b16 %v107
  %v1440 = vunpack.c.h.b16 %v107
  %v1441 = vunpack.c.l.b16 %v108
  %v1442 = vunpack.c.h.b16 %v108
  %v1443 = vunpack.c.l.b16 %v109
  %v1444 = vunpack.c.h.b16 %v109
  %v1445 = vunpack.c.l.b16 %v110
  %v1446 = vunpack.c.h.b16 %v110
  %v1447 = vunpack.c.l.b16 %v111
  %v1448 = vunpack.c.h.b16 %v111
  %v1449 = vunpack.c.l.b16 %v112
  %v1450 = vunpack.c.h.b16 %v112
  %v1451 = vunpack.c.l.b16 %v113
  %v1452 = vunpack.c.h.b16 %v113
  %v1453 = vunpack.c.l.b16 %v114
  %v1454 = vunpack.c.h.b16 %v114
  %v1455 = vunpack.c.l.b16 %v115
  %v1456 = vunpack.c.h.b16 %v115
  %v1457 = vunpack.c.l.b16 %v116
  %v1458 = vunpack.c.h.b16 %v116
  %v1459 = vunpack.c.l.b16 %v117
  %v1460 = vunpack.c.h.b16 %v117
  %v1461 = vunpack.c.l.b16 %v118
  %v1462 = vunpack.c.h.b16 %v118
  %v1463 = vunpack.c.l.b16 %v119
  %v1464 = vunpack.c.h.b16 %v119
  %v1465 = vunpack.c.l.b16 %v120
  %v1466 = vunpack.c.h.b16 %v120
  %v1467 = vunpack.c.l.b16 %v121
  %v1468 = vunpack.c.h.b16 %v121
  %v1469 = vunpack.c.l.b16 %v122
  %v1470 = vunpack.c.h.b16 %v122
  %v1471 = vunpack.c.l.b16 %v123
  %v1472 = vunpack.c.h.b16 %v123
  %v1473 = vunpack.c.l.b16 %v124
  %v1474 = vunpack.c.h.b16 %v124
  %v1475 = vunpack.c.l.b16 %v125
  %v1476 = vunpack.c.h.b16 %v125
  %v1477 = vunpack.c.l.b16 %v126
  %v1478 = vunpack.c.h.b16 %v126
  %v1479 = vunpack.c.l.b16 %v127
  %v1480 = vunpack.c.h.b16 %v127
  %v1481 = vunpack.c.l.b16 %v128
  %v1482 = vunpack.c.h.b16 %v128
  %v1483 = vunpack.c.l.b16 %v129
  %v1484 = vunpack.c.h.b16 %v129
  %v1485 = vunpack.c.l.b16 %v130
  %v1486 = vunpack.c.h.b16 %v130
  %v1487 = vunpack.c.l.b16 %v131
  %v1488 = vunpack.c.h.b16 %v131
  %v1489 = vunpack.c.l.b16 %v132
  %v1490 = vunpack.c.h.b16 %v132
  %v1491 = vunpack.c.l.b16 %v133
  %v1492 = vunpack.c.h.b16 %v133
  %v1493 = vunpack.c.l.b16 %v134
  %v1494 = vunpack.c.h.b16 %v134
  %v1495 = vunpack.c.l.b16 %v135
  %v1496 = vunpack.c.h.b16 %v135
  %v1497 = vunpack.c.l.b16 %v136
  %v1498 = vunpack.c.h.b16 %v136
  %v1499 = vunpack.c.l.b16 %v137
  %v1500 = vunpack.c.h.b16 %v137
  %v1501 = vunpack.c.l.b16 %v138
  %v1502 = vunpack.c.h.b16 %v138
  %v1503 = vunpack.c.l.b16 %v139
  %v1504 = vunpack.c.h.b16 %v139
  %v1505 = vunpack.c.l.b16 %v140
  %v1506 = vunpack.c.h.b16 %v140
  %v1507 = vunpack.c.l.b16 %v141
  %v1508 = vunpack.c.h.b16 %v141
  %v1509 = vunpack.c.l.b16 %v142
  %v1510 = vunpack.c.h.b16 %v142
  %v1511 = vunpack.c.l.b16 %v143
  %v1512 = vunpack.c.h.b16 %v143
  %v1513 = vunpack.c.l.b16 %v144
  %v1514 = vunpack.c.h.b16 %v144
  %v1515 = vunpack.c.l.b16 %v145
  %v1516 = vunpack.c.h.b16 %v145
  %v1517 = vunpack.c.l.b16 %v146
  %v1518 = vunpack.c.h.b16 %v146
  %v1519 = vunpack.c.l.b16 %v147
  %v1520 = vunpack.c.h.b16 %v147
  %v1521 = vunpack.c.l.b16 %v148
  %v1522 = vunpack.c.h.b16 %v148
  %v1523 = vunpack.c.l.b16 %v149
  %v1524 = vunpack.c.h.b16 %v149
  %v1525 = vunpack.c.l.b16 %v150
  %v1526 = vunpack.c.h.b16 %v150
  %v1527 = vunpack.c.l.b16 %v151
  %v1528 = vunpack.c.h.b16 %v151
  %v1529 = vunpack.c.l.b16 %v152
  %v1530 = vunpack.c.h.b16 %v152
  %v1531 = vunpack.c.l.b16 %v153
  %v1532 = vunpack.c.h.b16 %v153
  %v1533 = vunpack.c.l.b16 %v154
  %v1534 = vunpack.c.h.b16 %v154
  %v1535 = vunpack.c.l.b16 %v155
  %v1536 = vunpack.c.h.b16 %v155
  %v1537 = vunpack.c.l.b16 %v156
  %v1538 = vunpack.c.h.b16 %v156
  %v1539 = vunpack.c.l.b16 %v157
  %v1540 = vunpack.c.h.b16 %v157
  %v1541 = vunpack.c.l.b16 %v158
  %v1542 = vunpack.c.h.b16 %v158
  %v1543 = vunpack.c.l.b16 %v159
  %v1544 = vunpack.c.h.b16 %v159
  %v1545 = vunpack.c.l.b16 %v160
  %v1546 = vunpack.c.h.b16 %v160
  %v1547 = vunpack.c.l.b16 %v161
  %v1548 = vunpack.c.h.b16 %v161
  %v1549 = vunpack.c.l.b16 %v162
  %v1550 = vunpack.c.h.b16 %v162
  %v1551 = vunpack.c.l.b16 %v163
  %v1552 = vunpack.c.h.b16 %v163
  %v1553 = vunpack.c.l.b16 %v164
  %v1554 = vunpack.c.h.b16 %v164
  %v1555 = vunpack.c.l.b16 %v165
  %v1556 = vunpack.c.h.b16 %v165
  %v1557 = vunpack.c.l.b16 %v166
  %v1558 = vunpack.c.h.b16 %v166
  %v1559 = vunpack.c.l.b16 %v167
  %v1560 = vunpack.c.h.b16 %v167
  %v1561 = vunpack.c.l.b16 %v168
  %v1562 = vunpack.c.h.b16 %v168
  %v1563 = vunpack.c.l.b16 %v169
  %v1564 = vunpack.c.h.b16 %v169
  %v1565 = vunpack.c.l.b16 %v170
  %v1566 = vunpack.c.h.b16 %v170
  %v1567 = vunpack.c.l.b16 %v171
  %v1568 = vunpack.c.h.b16 %v171
  %v1569 = vunpack.c.l.b16 %v172
  %v1570 = vunpack.c.h.b16 %v172
  %v1571 = vunpack.c.l.b16 %v173
  %v1572 = vunpack.c.h.b16 %v173
  %v1573 = vunpack.c.l.b16 %v174
  %v1574 = vunpack.c.h.b16 %v174
  %v1575 = vunpack.c.l.b16 %v175
  %v1576 = vunpack.c.h.b16 %v175
  %v1577 = vunpack.c.l.b16 %v176
  %v1578 = vunpack.c.h.b16 %v176
  %v1579 = vunpack.c.l.b16 %v177
  %v1580 = vunpack.c.h.b16 %v177
  %v1581 = vunpack.c.l.b16 %v178
  %v1582 = vunpack.c.h.b16 %v178
  %v1583 = vunpack.c.l.b16 %v179
  %v1584 = vunpack.c.h.b16 %v179
  %v1585 = vunpack.c.l.b16 %v180
  %v1586 = vunpack.c.h.b16 %v180
  %v1587 = vunpack.c.l.b16 %v181
  %v1588 = vunpack.c.h.b16 %v181
  %v1589 = vunpack.c.l.b16 %v182
  %v1590 = vunpack.c.h.b16 %v182
  %v1591 = vunpack.c.l.b16 %v183
  %v1592 = vunpack.c.h.b16 %v183
  %v1593 = vunpack.c.l.b16 %v184
  %v1594 = vunpack.c.h.b16 %v184
  %v1595 = vunpack.c.l.b16 %v185
  %v1596 = vunpack.c.h.b16 %v185
  %v1597 = vunpack.c.l.b16 %v186
  %v1598 = vunpack.c.h.b16 %v186
  %v1599 = vunpack.c.l.b16 %v187
  %v1600 = vunpack.c.h.b16 %v187
  %v1601 = vunpack.c.l.b16 %v188
  %v1602 = vunpack.c.h.b16 %v188
  %v1603 = vunpack.c.l.b16 %v189
  %v1604 = vunpack.c.h.b16 %v189
  %v1605 = vunpack.c.l.b16 %v190
  %v1606 = vunpack.c.h.b16 %v190
  %v1607 = vunpack.c.l.b16 %v191
  %v1608 = vunpack.c.h.b16 %v191
  %v1609 = vunpack.c.l.b16 %v192
  %v1610 = vunpack.c.h.b16 %v192
  %v1611 = vunpack.c.l.b16 %v193
  %v1612 = vunpack.c.h.b16 %v193
  %v1613 = vunpack.c.l.b16 %v194
  %v1614 = vunpack.c.h.b16 %v194
  %v1615 = vunpack.c.l.b16 %v195
  %v1616 = vunpack.c.h.b16 %v195
  %v1617 = vunpack.c.l.b16 %v196
  %v1618 = vunpack.c.h.b16 %v196
  %v1619 = vunpack.c.l.b16 %v197
  %v1620 = vunpack.c.h.b16 %v197
  %v1621 = vunpack.c.l.b16 %v198
  %v1622 = vunpack.c.h.b16 %v198
  %v1623 = vunpack.c.l.b16 %v199
  %v1624 = vunpack.c.h.b16 %v199
  %v1625 = vunpack.c.l.b16 %v200
  %v1626 = vunpack.c.h.b16 %v200
  %v1627 = vunpack.c.l.b16 %v201
  %v1628 = vunpack.c.h.b16 %v201
  %v1629 = vunpack.c.l.b16 %v202
  %v1630 = vunpack.c.h.b16 %v202
  %v1631 = vunpack.c.l.b16 %v203
  %v1632 = vunpack.c.h.b16 %v203
  %v1633 = vunpack.c.l.b16 %v204
  %v1634 = vunpack.c.h.b16 %v204
  %v1635 = vunpack.c.l.b16 %v205
  %v1636 = vunpack.c.h.b16 %v205
  %v1637 = vunpack.c.l.b16 %v206
  %v1638 = vunpack.c.h.b16 %v206
  %v1639 = vunpack.c.l.b16 %v207
  %v1640 = vunpack.c.h.b16 %v207
  %v1641 = vunpack.c.l.b16 %v208
  %v1642 = vunpack.c.h.b16 %v208
  %v1643 = vunpack.c.l.b16 %v209
  %v1644 = vunpack.c.h.b16 %v209
  %v1645 = vunpack.c.l.b16 %v210
  %v1646 = vunpack.c.h.b16 %v210
  %v1647 = vunpack.c.l.b16 %v211
  %v1648 = vunpack.c.h.b16 %v211
  %v1649 = vunpack.c.l.b16 %v212
  %v1650 = vunpack.c.h.b16 %v212
  %v1651 = vunpack.c.l.b16 %v213
  %v1652 = vunpack.c.h.b16 %v213
  %v1653 = vunpack.c.l.b16 %v214
  %v1654 = vunpack.c.h.b16 %v214
  %v1655 = vunpack.c.l.b16 %v215
  %v1656 = vunpack.c.h.b16 %v215
  %v1657 = vunpack.c.l.b16 %v216
  %v1658 = vunpack.c.h.b16 %v216
  %v1659 = vunpack.c.l.b16 %v217
  %v1660 = vunpack.c.h.b16 %v217
  %v1661 = vunpack.c.l.b16 %v218
  %v1662 = vunpack.c.h.b16 %v218
  %v1663 = vunpack.c.l.b16 %v219
  %v1664 = vunpack.c.h.b16 %v219
  %v1665 = vunpack.c.l.b16 %v220
  %v1666 = vunpack.c.h.b16 %v220
  %v1667 = vunpack.c.l.b16 %v221
  %v1668 = vunpack.c.h.b16 %v221
  %v1669 = vunpack.c.l.b16 %v222
  %v1670 = vunpack.c.h.b16 %v222
  %v1671 = vunpack.c.l.b16 %v223
  %v1672 = vunpack.c.h.b16 %v223
  %v1673 = vunpack.c.l.b16 %v224
  %v1674 = vunpack.c.h.b16 %v224
  %v1675 = vunpack.c.l.b16 %v225
  %v1676 = vunpack.c.h.b16 %v225
  %v1677 = vunpack.c.l.b16 %v226
  %v1678 = vunpack.c.h.b16 %v226
  %v1679 = vunpack.c.l.b16 %v227
  %v1680 = vunpack.c.h.b16 %v227
  %v1681 = vunpack.c.l.b16 %v228
  %v1682 = vunpack.c.h.b16 %v228
  %v1683 = vunpack.c.l.b16 %v229
  %v1684 = vunpack.c.h.b16 %v229
  %v1685 = vunpack.c.l.b16 %v230
  %v1686 = vunpack.c.h.b16 %v230
  %v1687 = vunpack.c.l.b16 %v231
  %v1688 = vunpack.c.h.b16 %v231
  %v1689 = vunpack.c.l.b16 %v232
  %v1690 = vunpack.c.h.b16 %v232
  %v1691 = vunpack.c.l.b16 %v233
  %v1692 = vunpack.c.h.b16 %v233
  %v1693 = vunpack.c.l.b16 %v234
  %v1694 = vunpack.c.h.b16 %v234
  %v1695 = vunpack.c.l.b16 %v235
  %v1696 = vunpack.c.h.b16 %v235
  %v1697 = vunpack.c.l.b16 %v236
  %v1698 = vunpack.c.h.b16 %v236
  %v1699 = vunpack.c.l.b16 %v237
  %v1700 = vunpack.c.h.b16 %v237
  %v1701 = vunpack.c.l.b16 %v238
  %v1702 = vunpack.c.h.b16 %v238
  %v1703 = vunpack.c.l.b16 %v239
  %v1704 = vunpack.c.h.b16 %v239
  %v1705 = vunpack.c.l.b16 %v240
  %v1706 = vunpack.c.h.b16 %v240
  %v1707 = vunpack.c.l.b16 %v241
  %v1708 = vunpack.c.h.b16 %v241
  %v1709 = vunpack.c.l.b16 %v242
  %v1710 = vunpack.c.h.b16 %v242
  %v1711 = vunpack.c.l.b16 %v243
  %v1712 = vunpack.c.h.b16 %v243
  %v1713 = vunpack.c.l.b16 %v244
  %v1714 = vunpack.c.h.b16 %v244
  %v1715 = vunpack.c.l.b16 %v245
  %v1716 = vunpack.c.h.b16 %v245
  %v1717 = vunpack.c.l.b16 %v246
  %v1718 = vunpack.c.h.b16 %v246
  %v1719 = vunpack.c.l.b16 %v247
  %v1720 = vunpack.c.h.b16 %v247
  %v1721 = vunpack.c.l.b16 %v248
  %v1722 = vunpack.c.h.b16 %v248
  %v1723 = vunpack.c.l.b16 %v249
  %v1724 = vunpack.c.h.b16 %v249
  %v1725 = vunpack.c.l.b16 %v250
  %v1726 = vunpack.c.h.b16 %v250
  %v1727 = vunpack.c.l.b16 %v251
  %v1728 = vunpack.c.h.b16 %v251
  %v1729 = vunpack.c.l.b16 %v252
  %v1730 = vunpack.c.h.b16 %v252
  %v1731 = vunpack.c.l.b16 %v253
  %v1732 = vunpack.c.h.b16 %v253
  %v1733 = vunpack.c.l.b16 %v254
  %v1734 = vunpack.c.h.b16 %v254
  %v1735 = vunpack.c.l.b16 %v255
  %v1736 = vunpack.c.h.b16 %v255
  %v1737 = vunpack.c.l.b16 %v256
  %v1738 = vunpack.c.h.b16 %v256
  %v1739 = vunpack.c.l.b16 %v257
  %v1740 = vunpack.c.h.b16 %v257
  %v1741 = vunpack.c.l.b16 %v258
  %v1742 = vunpack.c.h.b16 %v258
  %v1743 = vunpack.c.l.b16 %v259
  %v1744 = vunpack.c.h.b16 %v259
  %v1745 = vunpack.c.l.b16 %v260
  %v1746 = vunpack.c.h.b16 %v260
  %v1747 = vunpack.c.l.b16 %v261
  %v1748 = vunpack.c.h.b16 %v261
  %v1749 = vunpack.c.l.b16 %v262
  %v1750 = vunpack.c.h.b16 %v262
  %v1751 = vunpack.c.l.b16 %v263
  %v1752 = vunpack.c.h.b16 %v263
  %v1753 = vunpack.c.l.b16 %v264
  %v1754 = vunpack.c.h.b16 %v264
  %v1755 = vunpack.c.l.b16 %v265
  %v1756 = vunpack.c.h.b16 %v265
  %v1757 = vunpack.c.l.b16 %v266
  %v1758 = vunpack.c.h.b16 %v266
  %v1759 = vunpack.c.l.b16 %v267
  %v1760 = vunpack.c.h.b16 %v267
  %v1761 = vunpack.c.l.b16 %v268
  %v1762 = vunpack.c.h.b16 %v268
  %v1763 = vunpack.c.l.b16 %v269
  %v1764 = vunpack.c.h.b16 %v269
  %v1765 = vunpack.c.l.b16 %v270
  %v1766 = vunpack.c.h.b16 %v270
  %v1767 = vunpack.c.l.b16 %v271
  %v1768 = vunpack.c.h.b16 %v271
  %v1769 = vunpack.c.l.b16 %v272
  %v1770 = vunpack.c.h.b16 %v272
  %v1771 = vunpack.c.l.b16 %v273
  %v1772 = vunpack.c.h.b16 %v273
  %v1773 = vunpack.c.l.b16 %v274
  %v1774 = vunpack.c.h.b16 %v274
  %v1775 = vunpack.c.l.b16 %v275
  %v1776 = vunpack.c.h.b16 %v275
  %v1777 = vunpack.c.l.b16 %v276
  %v1778 = vunpack.c.h.b16 %v276
  %v1779 = vunpack.c.l.b16 %v277
  %v1780 = vunpack.c.h.b16 %v277
  %v1781 = vunpack.c.l.b16 %v278
  %v1782 = vunpack.c.h.b16 %v278
  %v1783 = vunpack.c.l.b16 %v279
  %v1784 = vunpack.c.h.b16 %v279
  %v1785 = vunpack.c.l.b16 %v280
  %v1786 = vunpack.c.h.b16 %v280
  %v1787 = vunpack.c.l.b16 %v281
  %v1788 = vunpack.c.h.b16 %v281
  %v1789 = vunpack.c.l.b16 %v282
  %v1790 = vunpack.c.h.b16 %v282
  %v1791 = vunpack.c.l.b16 %v283
  %v1792 = vunpack.c.h.b16 %v283
  %v1793 = vunpack.c.l.b16 %v284
  %v1794 = vunpack.c.h.b16 %v284
  %v1795 = vunpack.c.l.b16 %v285
  %v1796 = vunpack.c.h.b16 %v285
  %v1797 = vunpack.c.l.b16 %v286
  %v1798 = vunpack.c.h.b16 %v286
  %v1799 = vunpack.c.l.b16 %v287
  %v1800 = vunpack.c.h.b16 %v287
  %v1801 = vunpack.c.l.b16 %v288
  %v1802 = vunpack.c.h.b16 %v288
  %v1803 = vunpack.c.l.b16 %v289
  %v1804 = vunpack.c.h.b16 %v289
  %v1805 = vunpack.c.l.b16 %v290
  %v1806 = vunpack.c.h.b16 %v290
  %v1807 = vunpack.c.l.b16 %v291
  %v1808 = vunpack.c.h.b16 %v291
  %v1809 = vunpack.c.l.b16 %v292
  %v1810 = vunpack.c.h.b16 %v292
  %v1811 = vunpack.c.l.b16 %v293
  %v1812 = vunpack.c.h.b16 %v293
  %v1813 = vunpack.c.l.b16 %v294
  %v1814 = vunpack.c.h.b16 %v294
  %v1815 = vunpack.c.l.b16 %v295
  %v1816 = vunpack.c.h.b16 %v295
  %v1817 = vunpack.c.l.b16 %v296
  %v1818 = vunpack.c.h.b16 %v296
  %v1819 = vunpack.c.l.b16 %v297
  %v1820 = vunpack.c.h.b16 %v297
  %v1821 = vunpack.c.l.b16 %v298
  %v1822 = vunpack.c.h.b16 %v298
  %v1823 = vunpack.c.l.b16 %v299
  %v1824 = vunpack.c.h.b16 %v299
  %v1825 = vunpack.c.l.b16 %v300
  %v1826 = vunpack.c.h.b16 %v300
  %v1827 = vunpack.c.l.b16 %v301
  %v1828 = vunpack.c.h.b16 %v301
  %v1829 = vunpack.c.l.b16 %v302
  %v1830 = vunpack.c.h.b16 %v302
  %v1831 = vunpack.c.l.b16 %v303
  %v1832 = vunpack.c.h.b16 %v303
  %v1833 = vunpack.c.l.b16 %v304
  %v1834 = vunpack.c.h.b16 %v304
  %v1835 = vunpack.c.l.b16 %v305
  %v1836 = vunpack.c.h.b16 %v305
  %v1837 = vunpack.c.l.b16 %v306
  %v1838 = vunpack.c.h.b16 %v306
  %v1839 = vunpack.c.l.b16 %v307
  %v1840 = vunpack.c.h.b16 %v307
  %v1841 = vunpack.c.l.b16 %v308
  %v1842 = vunpack.c.h.b16 %v308
  %v1843 = vunpack.c.l.b16 %v309
  %v1844 = vunpack.c.h.b16 %v309
  %v1845 = vunpack.c.l.b16 %v310
  %v1846 = vunpack.c.h.b16 %v310
  %v1847 = vunpack.c.l.b16 %v311
  %v1848 = vunpack.c.h.b16 %v311
  %v1849 = vunpack.c.l.b16 %v312
  %v1850 = vunpack.c.h.b16 %v312
  %v1851 = vunpack.c.l.b16 %v313
  %v1852 = vunpack.c.h.b16 %v313
  %v1853 = vunpack.c.l.b16 %v314
  %v1854 = vunpack.c.h.b16 %v314
  %v1855 = vunpack.c.l.b16 %v315
  %v1856 = vunpack.c.h.b16 %v315
  %v1857 = vunpack.c.l.b16 %v316
  %v1858 = vunpack.c.h.b16 %v316
  %v1859 = vunpack.c.l.b16 %v317
  %v1860 = vunpack.c.h.b16 %v317
  %v1861 = vunpack.c.l.b16 %v318
  %v1862 = vunpack.c.h.b16 %v318
  %v1863 = vunpack.c.l.b16 %v319
  %v1864 = vunpack.c.h.b16 %v319
  %v1865 = vunpack.c.l.b16 %v320
  %v1866 = vunpack.c.h.b16 %v320
  %v1867 = vunpack.c.l.b16 %v321
  %v1868 = vunpack.c.h.b16 %v321
  %v1869 = vunpack.c.l.b16 %v322
  %v1870 = vunpack.c.h.b16 %v322
  %v1871 = vunpack.c.l.b16 %v323
  %v1872 = vunpack.c.h.b16 %v323
  %v1873 = vunpack.c.l.b16 %v324
  %v1874 = vunpack.c.h.b16 %v324
  %v1875 = vunpack.c.l.b16 %v325
  %v1876 = vunpack.c.h.b16 %v325
  %v1877 = vunpack.c.l.b16 %v326
  %v1878 = vunpack.c.h.b16 %v326
  %v1879 = vunpack.c.l.b16 %v327
  %v1880 = vunpack.c.h.b16 %v327
  %v1881 = vunpack.c.l.b16 %v328
  %v1882 = vunpack.c.h.b16 %v328
  %v1883 = vunpack.c.l.b16 %v329
  %v1884 = vunpack.c.h.b16 %v329
  %v1885 = vunpack.c.l.b16 %v330
  %v1886 = vunpack.c.h.b16 %v330
  %v1887 = vunpack.c.l.b16 %v331
  %v1888 = vunpack.c.h.b16 %v331
  %v1889 = vunpack.c.l.b16 %v332
  %v1890 = vunpack.c.h.b16 %v332
  %v1891 = vunpack.c.l.b16 %v333
  %v1892 = vunpack.c.h.b16 %v333
  %v1893 = vunpack.c.l.b16 %v334
  %v1894 = vunpack.c.h.b16 %v334
  %v1895 = vunpack.c.l.b16 %v335
  %v1896 = vunpack.c.h.b16 %v335
  %v1897 = vunpack.c.l.b16 %v336
  %v1898 = vunpack.c.h.b16 %v336
  %v1899 = vunpack.c.l.b16 %v337
  %v1900 = vunpack.c.h.b16 %v337
  %v1901 = vunpack.c.l.b16 %v338
  %v1902 = vunpack.c.h.b16 %v338
  %v1903 = vunpack.c.l.b16 %v339
  %v1904 = vunpack.c.h.b16 %v339
  %v1905 = vunpack.c.l.b16 %v340
  %v1906 = vunpack.c.h.b16 %v340
  %v1907 = vunpack.c.l.b16 %v341
  %v1908 = vunpack.c.h.b16 %v341
  %v1909 = vunpack.c.l.b16 %v342
  %v1910 = vunpack.c.h.b16 %v342
  %v1911 = vunpack.c.l.b16 %v343
  %v1912 = vunpack.c.h.b16 %v343
  %v1913 = vunpack.c.l.b16 %v344
  %v1914 = vunpack.c.h.b16 %v344
  %v1915 = vunpack.c.l.b16 %v345
  %v1916 = vunpack.c.h.b16 %v345
  %v1917 = vunpack.c.l.b16 %v346
  %v1918 = vunpack.c.h.b16 %v346
  %v1919 = vunpack.c.l.b16 %v347
  %v1920 = vunpack.c.h.b16 %v347
  %v1921 = vunpack.c.l.b16 %v348
  %v1922 = vunpack.c.h.b16 %v348
  %v1923 = vunpack.c.l.b16 %v349
  %v1924 = vunpack.c.h.b16 %v349
  %v1925 = vunpack.c.l.b16 %v350
  %v1926 = vunpack.c.h.b16 %v350
  %v1927 = vunpack.c.l.b16 %v351
  %v1928 = vunpack.c.h.b16 %v351
  %v1929 = vunpack.c.l.b16 %v352
  %v1930 = vunpack.c.h.b16 %v352
  %v1931 = vunpack.c.l.b16 %v353
  %v1932 = vunpack.c.h.b16 %v353
  %v1933 = vunpack.c.l.b16 %v354
  %v1934 = vunpack.c.h.b16 %v354
  %v1935 = vunpack.c.l.b16 %v355
  %v1936 = vunpack.c.h.b16 %v355
  %v1937 = vunpack.c.l.b16 %v356
  %v1938 = vunpack.c.h.b16 %v356
  %v1939 = vunpack.c.l.b16 %v357
  %v1940 = vunpack.c.h.b16 %v357
  %v1941 = vunpack.c.l.b16 %v358
  %v1942 = vunpack.c.h.b16 %v358
  %v1943 = vunpack.c.l.b16 %v359
  %v1944 = vunpack.c.h.b16 %v359
  %v1945 = vunpack.c.l.b16 %v360
  %v1946 = vunpack.c.h.b16 %v360
  %v1947 = vunpack.c.l.b16 %v361
  %v1948 = vunpack.c.h.b16 %v361
  %v1949 = vunpack.c.l.b16 %v362
  %v1950 = vunpack.c.h.b16 %v362
  %v1951 = vunpack.c.l.b16 %v363
  %v1952 = vunpack.c.h.b16 %v363
  %v1953 = vunpack.c.l.b16 %v364
  %v1954 = vunpack.c.h.b16 %v364
  %v1955 = vunpack.c.l.b16 %v365
  %v1956 = vunpack.c.h.b16 %v365
  %v1957 = vunpack.c.l.b16 %v366
  %v1958 = vunpack.c.h.b16 %v366
  %v1959 = vunpack.c.l.b16 %v367
  %v1960 = vunpack.c.h.b16 %v367
  %v1961 = vunpack.c.l.b16 %v368
  %v1962 = vunpack.c.h.b16 %v368
  %v1963 = vunpack.c.l.b16 %v369
  %v1964 = vunpack.c.h.b16 %v369
  %v1965 = vunpack.c.l.b16 %v370
  %v1966 = vunpack.c.h.b16 %v370
  %v1967 = vunpack.c.l.b16 %v371
  %v1968 = vunpack.c.h.b16 %v371
  %v1969 = vunpack.c.l.b16 %v372
  %v1970 = vunpack.c.h.b16 %v372
  %v1971 = vunpack.c.l.b16 %v373
  %v1972 = vunpack.c.h.b16 %v373
  %v1973 = vunpack.c.l.b16 %v374
  %v1974 = vunpack.c.h.b16 %v374
  %v1975 = vunpack.c.l.b16 %v375
  %v1976 = vunpack.c.h.b16 %v375
  %v1977 = vunpack.c.l.b16 %v376
  %v1978 = vunpack.c.h.b16 %v376
  %v1979 = vunpack.c.l.b16 %v377
  %v1980 = vunpack.c.h.b16 %v377
  %v1981 = vunpack.c.l.b16 %v378
  %v1982 = vunpack.c.h.b16 %v378
  %v1983 = vunpack.c.l.b16 %v379
  %v1984 = vunpack.c.h.b16 %v379
  %v1985 = vunpack.c.l.b16 %v380
  %v1986 = vunpack.c.h.b16 %v380
  %v1987 = vunpack.c.l.b16 %v381
  %v1988 = vunpack.c.h.b16 %v381
  %v1989 = vunpack.c.l.b16 %v382
  %v1990 = vunpack.c.h.b16 %v382
  %v1991 = vunpack.c.l.b16 %v383
  %v1992 = vunpack.c.h.b16 %v383
  %v1993 = vunpack.c.l.b16 %v384
  %v1994 = vunpack.c.h.b16 %v384
  %v1995 = vunpack.c.l.b16 %v385
  %v1996 = vunpack.c.h.b16 %v385
  %v1997 = vunpack.c.l.b16 %v386
  %v1998 = vunpack.c.h.b16 %v386
  %v1999 = vunpack.c.l.b16 %v387
  %v2000 = vunpack.c.h.b16 %v387
  %v2001 = vunpack.c.l.b16 %v388
  %v2002 = vunpack.c.h.b16 %v388
  %v2003 = vunpack.c.l.b16 %v389
  %v2004 = vunpack.c.h.b16 %v389
  %v2005 = vunpack.c.l.b16 %v390
  %v2006 = vunpack.c.h.b16 %v390
  %v2007 = vunpack.c.l.b16 %v391
  %v2008 = vunpack.c.h.b16 %v391
  %v2009 = vunpack.c.l.b16 %v392
  %v2010 = vunpack.c.h.b16 %v392
  %v2011 = vunpack.c.l.b16 %v393
  %v2012 = vunpack.c.h.b16 %v393
  %v2013 = vunpack.c.l.b16 %v394
  %v2014 = vunpack.c.h.b16 %v394
  %v2015 = vunpack.c.l.b16 %v395
  %v2016 = vunpack.c.h.b16 %v395
  %v2017 = vunpack.c.l.b16 %v396
  %v2018 = vunpack.c.h.b16 %v396
  %v2019 = vunpack.c.l.b16 %v397
  %v2020 = vunpack.c.h.b16 %v397
  %v2021 = vunpack.c.l.b16 %v398
  %v2022 = vunpack.c.h.b16 %v398
  %v2023 = vunpack.c.l.b16 %v399
  %v2024 = vunpack.c.h.b16 %v399
  %v2025 = vunpack.c.l.b16 %v400
  %v2026 = vunpack.c.h.b16 %v400
  %v2027 = vunpack.c.l.b16 %v401
  %v2028 = vunpack.c.h.b16 %v401
  %v2029 = vunpack.c.l.b16 %v402
  %v2030 = vunpack.c.h.b16 %v402
  %v2031 = vunpack.c.l.b16 %v403
  %v2032 = vunpack.c.h.b16 %v403
  %v2033 = vunpack.c.l.b16 %v404
  %v2034 = vunpack.c.h.b16 %v404
  %v2035 = vunpack.c.l.b16 %v405
  %v2036 = vunpack.c.h.b16 %v405
  %v2037 = vunpack.c.l.b16 %v406
  %v2038 = vunpack.c.h.b16 %v406
  %v2039 = vunpack.c.l.b16 %v407
  %v2040 = vunpack.c.h.b16 %v407
  %v2041 = vunpack.c.l.b16 %v408
  %v2042 = vunpack.c.h.b16 %v408
  %v2043 = vunpack.c.l.b16 %v409
  %v2044 = vunpack.c.h.b16 %v409
  %v2045 = vunpack.c.l.b16 %v410
  %v2046 = vunpack.c.h.b16 %v410
  %v2047 = vunpack.c.l.b16 %v411
  %v2048 = vunpack.c.h.b16 %v411
  %v2049 = vunpack.c.l.b16 %v412
  %v2050 = vunpack.c.h.b16 %v412
  %v2051 = vunpack.c.l.b16 %v413
  %v2052 = vunpack.c.h.b16 %v413
  %v2053 = vunpack.c.l.b16 %v414
  %v2054 = vunpack.c.h.b16 %v414
  %v2055 = vunpack.c.l.b16 %v415
  %v2056 = vunpack.c.h.b16 %v415
  %v2057 = vunpack.c.l.b16 %v416
  %v2058 = vunpack.c.h.b16 %v416
  %v2059 = vunpack.c.l.b16 %v417
  %v2060 = vunpack.c.h.b16 %v417
  %v2061 = vunpack.c.l.b16 %v418
  %v2062 = vunpack.c.h.b16 %v418
  %v2063 = vunpack.c.l.b16 %v419
  %v2064 = vunpack.c.h.b16 %v419
  %v2065 = vunpack.c.l.b16 %v420
  %v2066 = vunpack.c.h.b16 %v420
  %v2067 = vunpack.c.l.b16 %v421
  %v2068 = vunpack.c.h.b16 %v421
  %v2069 = vunpack.c.l.b16 %v422
  %v2070 = vunpack.c.h.b16 %v422
  %v2071 = vunpack.c.l.b16 %v423
  %v2072 = vunpack.c.h.b16 %v423
  %v2073 = vunpack.c.l.b16 %v424
  %v2074 = vunpack.c.h.b16 %v424
  %v2075 = vunpack.c.l.b16 %v425
  %v2076 = vunpack.c.h.b16 %v425
  %v2077 = vunpack.c.l.b16 %v426
  %v2078 = vunpack.c.h.b16 %v426
  %v2079 = vunpack.c.l.b16 %v427
  %v2080 = vunpack.c.h.b16 %v427
  %v2081 = vunpack.c.l.b16 %v428
  %v2082 = vunpack.c.h.b16 %v428
  %v2083 = vunpack.c.l.b16 %v429
  %v2084 = vunpack.c.h.b16 %v429
  %v2085 = vunpack.c.l.b16 %v430
  %v2086 = vunpack.c.h.b16 %v430
  %v2087 = vunpack.c.l.b16 %v431
  %v2088 = vunpack.c.h.b16 %v431
  %v2089 = vunpack.c.l.b16 %v432
  %v2090 = vunpack.c.h.b16 %v432
  %v2091 = vunpack.c.l.b16 %v433
  %v2092 = vunpack.c.h.b16 %v433
  %v2093 = vunpack.c.l.b16 %v434
  %v2094 = vunpack.c.h.b16 %v434
  %v2095 = vunpack.c.l.b16 %v435
  %v2096 = vunpack.c.h.b16 %v435
  %v2097 = vunpack.c.l.b16 %v436
  %v2098 = vunpack.c.h.b16 %v436
  %v2099 = vunpack.c.l.b16 %v437
  %v2100 = vunpack.c.h.b16 %v437
  %v2101 = vunpack.c.l.b16 %v438
  %v2102 = vunpack.c.h.b16 %v438
  %v2103 = vunpack.c.l.b16 %v439
  %v2104 = vunpack.c.h.b16 %v439
  %v2105 = vunpack.c.l.b16 %v440
  %v2106 = vunpack.c.h.b16 %v440
  %v2107 = vunpack.c.l.b16 %v441
  %v2108 = vunpack.c.h.b16 %v441
  %v2109 = vunpack.c.l.b16 %v442
  %v2110 = vunpack.c.h.b16 %v442
  %v2111 = vunpack.c.l.b16 %v443
  %v2112 = vunpack.c.h.b16 %v443
  %v2113 = vunpack.c.l.b16 %v444
  %v2114 = vunpack.c.h.b16 %v444
  %v2115 = vunpack.c.l.b16 %v445
  %v2116 = vunpack.c.h.b16 %v445
  %v2117 = vunpack.c.l.b16 %v446
  %v2118 = vunpack.c.h.b16 %v446
  %v2119 = vunpack.c.l.b16 %v447
  %v2120 = vunpack.c.h.b16 %v447
  %v2121 = vunpack.c.l.b16 %v448
  %v2122 = vunpack.c.h.b16 %v448
  %v2123 = vunpack.c.l.b16 %v449
  %v2124 = vunpack.c.h.b16 %v449
  %v2125 = vunpack.c.l.b16 %v450
  %v2126 = vunpack.c.h.b16 %v450
  %v2127 = vunpack.c.l.b16 %v451
  %v2128 = vunpack.c.h.b16 %v451
  %v2129 = vunpack.c.l.b16 %v452
  %v2130 = vunpack.c.h.b16 %v452
  %v2131 = vunpack.c.l.b16 %v453
  %v2132 = vunpack.c.h.b16 %v453
  %v2133 = vunpack.c.l.b16 %v454
  %v2134 = vunpack.c.h.b16 %v454
  %v2135 = vunpack.c.l.b16 %v455
  %v2136 = vunpack.c.h.b16 %v455
  %v2137 = vunpack.c.l.b16 %v456
  %v2138 = vunpack.c.h.b16 %v456
  %v2139 = vunpack.c.l.b16 %v457
  %v2140 = vunpack.c.h.b16 %v457
  %v2141 = vunpack.c.l.b16 %v458
  %v2142 = vunpack.c.h.b16 %v458
  %v2143 = vunpack.c.l.b16 %v459
  %v2144 = vunpack.c.h.b16 %v459
  %v2145 = vunpack.c.l.b16 %v460
  %v2146 = vunpack.c.h.b16 %v460
  %v2147 = vunpack.c.l.b16 %v461
  %v2148 = vunpack.c.h.b16 %v461
  %v2149 = vunpack.c.l.b16 %v462
  %v2150 = vunpack.c.h.b16 %v462
  %v2151 = vunpack.c.l.b16 %v463
  %v2152 = vunpack.c.h.b16 %v463
  %v2153 = vunpack.c.l.b16 %v464
  %v2154 = vunpack.c.h.b16 %v464
  %v2155 = vunpack.c.l.b16 %v465
  %v2156 = vunpack.c.h.b16 %v465
  %v2157 = vunpack.c.l.b16 %v466
  %v2158 = vunpack.c.h.b16 %v466
  %v2159 = vunpack.c.l.b16 %v467
  %v2160 = vunpack.c.h.b16 %v467
  %v2161 = vunpack.c.l.b16 %v468
  %v2162 = vunpack.c.h.b16 %v468
  %v2163 = vunpack.c.l.b16 %v469
  %v2164 = vunpack.c.h.b16 %v469
  %v2165 = vunpack.c.l.b16 %v470
  %v2166 = vunpack.c.h.b16 %v470
  %v2167 = vunpack.c.l.b16 %v471
  %v2168 = vunpack.c.h.b16 %v471
  %v2169 = vunpack.c.l.b16 %v472
  %v2170 = vunpack.c.h.b16 %v472
  %v2171 = vunpack.c.l.b16 %v473
  %v2172 = vunpack.c.h.b16 %v473
  %v2173 = vunpack.c.l.b16 %v474
  %v2174 = vunpack.c.h.b16 %v474
  %v2175 = vunpack.c.l.b16 %v475
  %v2176 = vunpack.c.h.b16 %v475
  %v2177 = vunpack.c.l.b16 %v476
  %v2178 = vunpack.c.h.b16 %v476
  %v2179 = vunpack.c.l.b16 %v477
  %v2180 = vunpack.c.h.b16 %v477
  %v2181 = vunpack.c.l.b16 %v478
  %v2182 = vunpack.c.h.b16 %v478
  %v2183 = vunpack.c.l.b16 %v479
  %v2184 = vunpack.c.h.b16 %v479
  %v2185 = vunpack.c.l.b16 %v480
  %v2186 = vunpack.c.h.b16 %v480
  %v2187 = vunpack.c.l.b16 %v481
  %v2188 = vunpack.c.h.b16 %v481
  %v2189 = vunpack.c.l.b16 %v482
  %v2190 = vunpack.c.h.b16 %v482
  %v2191 = vunpack.c.l.b16 %v483
  %v2192 = vunpack.c.h.b16 %v483
  %v2193 = vunpack.c.l.b16 %v484
  %v2194 = vunpack.c.h.b16 %v484
  %v2195 = vunpack.c.l.b16 %v485
  %v2196 = vunpack.c.h.b16 %v485
  %v2197 = vunpack.c.l.b16 %v486
  %v2198 = vunpack.c.h.b16 %v486
  %v2199 = vunpack.c.l.b16 %v487
  %v2200 = vunpack.c.h.b16 %v487
  %v2201 = vunpack.c.l.b16 %v488
  %v2202 = vunpack.c.h.b16 %v488
  %v2203 = vunpack.c.l.b16 %v489
  %v2204 = vunpack.c.h.b16 %v489
  %v2205 = vunpack.c.l.b16 %v490
  %v2206 = vunpack.c.h.b16 %v490
  %v2207 = vunpack.c.l.b16 %v491
  %v2208 = vunpack.c.h.b16 %v491
  %v2209 = vunpack.c.l.b16 %v492
  %v2210 = vunpack.c.h.b16 %v492
  %v2211 = vunpack.c.l.b16 %v493
  %v2212 = vunpack.c.h.b16 %v493
  %v2213 = vunpack.c.l.b16 %v494
  %v2214 = vunpack.c.h.b16 %v494
  %v2215 = vunpack.c.l.b16 %v495
  %v2216 = vunpack.c.h.b16 %v495
  %v2217 = vunpack.c.l.b16 %v496
  %v2218 = vunpack.c.h.b16 %v496
  %v2219 = vunpack.c.l.b16 %v497
  %v2220 = vunpack.c.h.b16 %v497
  %v2221 = vunpack.c.l.b16 %v498
  %v2222 = vunpack.c.h.b16 %v498
  %v2223 = vunpack.c.l.b16 %v499
  %v2224 = vunpack.c.h.b16 %v499
  %v2225 = vunpack.c.l.b16 %v500
  %v2226 = vunpack.c.h.b16 %v500
  %v2227 = vunpack.c.l.b16 %v501
  %v2228 = vunpack.c.h.b16 %v501
  %v2229 = vunpack.c.l.b16 %v502
  %v2230 = vunpack.c.h.b16 %v502
  %v2231 = vunpack.c.l.b16 %v503
  %v2232 = vunpack.c.h.b16 %v503
  %v2233 = vunpack.c.l.b16 %v504
  %v2234 = vunpack.c.h.b16 %v504
  %v2235 = vunpack.c.l.b16 %v505
  %v2236 = vunpack.c.h.b16 %v505
  %v2237 = vunpack.c.l.b16 %v506
  %v2238 = vunpack.c.h.b16 %v506
  %v2239 = vunpack.c.l.b16 %v507
  %v2240 = vunpack.c.h.b16 %v507
  %v2241 = vunpack.c.l.b16 %v508
  %v2242 = vunpack.c.h.b16 %v508
  %v2243 = vunpack.c.l.b16 %v509
  %v2244 = vunpack.c.h.b16 %v509
  %v2245 = vunpack.c.l.b16 %v510
  %v2246 = vunpack.c.h.b16 %v510
  %v2247 = vunpack.c.l.b16 %v511
  %v2248 = vunpack.c.h.b16 %v511
  %v2249 = vunpack.c.l.b16 %v512
  %v2250 = vunpack.c.h.b16 %v512
  %v2251 = vunpack.c.l.b16 %v513
  %v2252 = vunpack.c.h.b16 %v513
  %v2253 = vunpack.c.l.b16 %v514
  %v2254 = vunpack.c.h.b16 %v514
  %v2255 = vunpack.c.l.b16 %v515
  %v2256 = vunpack.c.h.b16 %v515
  %v2257 = vunpack.c.l.b16 %v516
  %v2258 = vunpack.c.h.b16 %v516
  %v2259 = vunpack.c.l.b16 %v517
  %v2260 = vunpack.c.h.b16 %v517
  %v2261 = vunpack.c.l.b16 %v518
  %v2262 = vunpack.c.h.b16 %v518
  %v2263 = vunpack.c.l.b16 %v519
  %v2264 = vunpack.c.h.b16 %v519
  %v2265 = vunpack.c.l.b16 %v520
  %v2266 = vunpack.c.h.b16 %v520
  %v2267 = vunpack.c.l.b16 %v521
  %v2268 = vunpack.c.h.b16 %v521
  %v2269 = vunpack.c.l.b16 %v522
  %v2270 = vunpack.c.h.b16 %v522
  %v2271 = vunpack.c.l.b16 %v523
  %v2272 = vunpack.c.h.b16 %v523
  %v2273 = vunpack.c.l.b16 %v524
  %v2274 = vunpack.c.h.b16 %v524
  %v2275 = vunpack.c.l.b16 %v525
  %v2276 = vunpack.c.h.b16 %v525
  %v2277 = vunpack.c.l.b16 %v526
  %v2278 = vunpack.c.h.b16 %v526
  %v2279 = vunpack.c.l.b16 %v527
  %v2280 = vunpack.c.h.b16 %v527
  %v2281 = vunpack.c.l.b16 %v528
  %v2282 = vunpack.c.h.b16 %v528
  %v2283 = vunpack.c.l.b16 %v529
  %v2284 = vunpack.c.h.b16 %v529
  %v2285 = vunpack.c.l.b16 %v530
  %v2286 = vunpack.c.h.b16 %v530
  %v2287 = vunpack.c.l.b16 %v531
  %v2288 = vunpack.c.h.b16 %v531
  %v2289 = vunpack.c.l.b16 %v532
  %v2290 = vunpack.c.h.b16 %v532
  %v2291 = vunpack.c.l.b16 %v533
  %v2292 = vunpack.c.h.b16 %v533
  %v2293 = vunpack.c.l.b16 %v534
  %v2294 = vunpack.c.h.b16 %v534
  %v2295 = vunpack.c.l.b16 %v535
  %v2296 = vunpack.c.h.b16 %v535
  %v2297 = vunpack.c.l.b16 %v536
  %v2298 = vunpack.c.h.b16 %v536
  %v2299 = vunpack.c.l.b16 %v537
  %v2300 = vunpack.c.h.b16 %v537
  %v2301 = vunpack.c.l.b16 %v538
  %v2302 = vunpack.c.h.b16 %v538
  %v2303 = vunpack.c.l.b16 %v539
  %v2304 = vunpack.c.h.b16 %v539
  %v2305 = vunpack.c.l.b16 %v540
  %v2306 = vunpack.c.h.b16 %v540
  %v2307 = vunpack.c.l.b16 %v541
  %v2308 = vunpack.c.h.b16 %v541
  %v2309 = vunpack.c.l.b16 %v542
  %v2310 = vunpack.c.h.b16 %v542
  %v2311 = vunpack.c.l.b16 %v543
  %v2312 = vunpack.c.h.b16 %v543
  %v2313 = vunpack.c.l.b16 %v544
  %v2314 = vunpack.c.h.b16 %v544
  %v2315 = vunpack.c.l.b16 %v545
  %v2316 = vunpack.c.h.b16 %v545
  %v2317 = vunpack.c.l.b16 %v546
  %v2318 = vunpack.c.h.b16 %v546
  %v2319 = vunpack.c.l.b16 %v547
  %v2320 = vunpack.c.h.b16 %v547
  %v2321 = vunpack.c.l.b16 %v548
  %v2322 = vunpack.c.h.b16 %v548
  %v2323 = vunpack.c.l.b16 %v549
  %v2324 = vunpack.c.h.b16 %v549
  %v2325 = vunpack.c.l.b16 %v550
  %v2326 = vunpack.c.h.b16 %v550
  %v2327 = vunpack.c.l.b16 %v551
  %v2328 = vunpack.c.h.b16 %v551
  %v2329 = vunpack.c.l.b16 %v552
  %v2330 = vunpack.c.h.b16 %v552
  %v2331 = vunpack.c.l.b16 %v553
  %v2332 = vunpack.c.h.b16 %v553
  %v2333 = vunpack.c.l.b16 %v554
  %v2334 = vunpack.c.h.b16 %v554
  %v2335 = vunpack.c.l.b16 %v555
  %v2336 = vunpack.c.h.b16 %v555
  %v2337 = vunpack.c.l.b16 %v556
  %v2338 = vunpack.c.h.b16 %v556
  %v2339 = vunpack.c.l.b16 %v557
  %v2340 = vunpack.c.h.b16 %v557
  %v2341 = vunpack.c.l.b16 %v558
  %v2342 = vunpack.c.h.b16 %v558
  %v2343 = vunpack.c.l.b16 %v559
  %v2344 = vunpack.c.h.b16 %v559
  %v2345 = vunpack.c.l.b16 %v560
  %v2346 = vunpack.c.h.b16 %v560
  %v2347 = vunpack.c.l.b16 %v561
  %v2348 = vunpack.c.h.b16 %v561
  %v2349 = vunpack.c.l.b16 %v562
  %v2350 = vunpack.c.h.b16 %v562
  %v2351 = vunpack.c.l.b16 %v563
  %v2352 = vunpack.c.h.b16 %v563
  %v2353 = vunpack.c.l.b16 %v564
  %v2354 = vunpack.c.h.b16 %v564
  %v2355 = vunpack.c.l.b16 %v565
  %v2356 = vunpack.c.h.b16 %v565
  %v2357 = vunpack.c.l.b16 %v566
  %v2358 = vunpack.c.h.b16 %v566
  %v2359 = vunpack.c.l.b16 %v567
  %v2360 = vunpack.c.h.b16 %v567
  %v2361 = vunpack.c.l.b16 %v568
  %v2362 = vunpack.c.h.b16 %v568
  %v2363 = vunpack.c.l.b16 %v569
  %v2364 = vunpack.c.h.b16 %v569
  %v2365 = vunpack.c.l.b16 %v570
  %v2366 = vunpack.c.h.b16 %v570
  %v2367 = vunpack.c.l.b16 %v571
  %v2368 = vunpack.c.h.b16 %v571
  %v2369 = vunpack.c.l.b16 %v572
  %v2370 = vunpack.c.h.b16 %v572
  %v2371 = vunpack.c.l.b16 %v573
  %v2372 = vunpack.c.h.b16 %v573
  %v2373 = vunpack.c.l.b16 %v574
  %v2374 = vunpack.c.h.b16 %v574
  %v2375 = vunpack.c.l.b16 %v575
  %v2376 = vunpack.c.h.b16 %v575
  %v2377 = vunpack.c.l.b16 %v576
  %v2378 = vunpack.c.h.b16 %v576
  %v2379 = vunpack.c.l.b16 %v577
  %v2380 = vunpack.c.h.b16 %v577
  %v2381 = vunpack.c.l.b16 %v578
  %v2382 = vunpack.c.h.b16 %v578
  %v2383 = vunpack.c.l.b16 %v579
  %v2384 = vunpack.c.h.b16 %v579
  %v2385 = vunpack.c.l.b16 %v580
  %v2386 = vunpack.c.h.b16 %v580
  %v2387 = vunpack.c.l.b16 %v581
  %v2388 = vunpack.c.h.b16 %v581
  %v2389 = vunpack.c.l.b16 %v582
  %v2390 = vunpack.c.h.b16 %v582
  %v2391 = vunpack.c.l.b16 %v583
  %v2392 = vunpack.c.h.b16 %v583
  %v2393 = vunpack.c.l.b16 %v584
  %v2394 = vunpack.c.h.b16 %v584
  %v2395 = vunpack.c.l.b16 %v585
  %v2396 = vunpack.c.h.b16 %v585
  %v2397 = vunpack.c.l.b16 %v586
  %v2398 = vunpack.c.h.b16 %v586
  %v2399 = vunpack.c.l.b16 %v587
  %v2400 = vunpack.c.h.b16 %v587
  %v2401 = vunpack.c.l.b16 %v588
  %v2402 = vunpack.c.h.b16 %v588
  %v2403 = vunpack.c.l.b16 %v589
  %v2404 = vunpack.c.h.b16 %v589
  %v2405 = vunpack.c.l.b16 %v590
  %v2406 = vunpack.c.h.b16 %v590
  %v2407 = vunpack.c.l.b16 %v591
  %v2408 = vunpack.c.h.b16 %v591
  %v2409 = vunpack.c.l.b16 %v592
  %v2410 = vunpack.c.h.b16 %v592
  %v2411 = vunpack.c.l.b16 %v593
  %v2412 = vunpack.c.h.b16 %v593
  %v2413 = vunpack.c.l.b16 %v594
  %v2414 = vunpack.c.h.b16 %v594
  %v2415 = vunpack.c.l.b16 %v595
  %v2416 = vunpack.c.h.b16 %v595
  %v2417 = vunpack.c.l.b16 %v596
  %v2418 = vunpack.c.h.b16 %v596
  %v2419 = vunpack.c.l.b16 %v597
  %v2420 = vunpack.c.h.b16 %v597
  %v2421 = vunpack.c.l.b16 %v598
  %v2422 = vunpack.c.h.b16 %v598
  %v2423 = vunpack.c.l.b16 %v599
  %v2424 = vunpack.c.h.b16 %v599
  %v2425 = vunpack.c.l.b16 %v600
  %v2426 = vunpack.c.h.b16 %v600
  %v2427 = vunpack.c.l.b16 %v601
  %v2428 = vunpack.c.h.b16 %v601
  %v2429 = vunpack.c.l.b16 %v602
  %v2430 = vunpack.c.h.b16 %v602
  %v2431 = vunpack.c.l.b16 %v603
  %v2432 = vunpack.c.h.b16 %v603
  %v2433 = vunpack.c.l.b16 %v604
  %v2434 = vunpack.c.h.b16 %v604
  %v2435 = vunpack.c.l.b16 %v605
  %v2436 = vunpack.c.h.b16 %v605
  %v2437 = vunpack.c.l.b16 %v606
  %v2438 = vunpack.c.h.b16 %v606
  %v2439 = vunpack.c.l.b16 %v607
  %v2440 = vunpack.c.h.b16 %v607
  %v2441 = vunpack.c.l.b16 %v608
  %v2442 = vunpack.c.h.b16 %v608
  %v2443 = vunpack.c.l.b16 %v609
  %v2444 = vunpack.c.h.b16 %v609
  %v2445 = vunpack.c.l.b16 %v610
  %v2446 = vunpack.c.h.b16 %v610
  %v2447 = vunpack.c.l.b16 %v611
  %v2448 = vunpack.c.h.b16 %v611
  %v2449 = vunpack.c.l.b16 %v612
  %v2450 = vunpack.c.h.b16 %v612
  %v2451 = vunpack.c.l.b16 %v613
  %v2452 = vunpack.c.h.b16 %v613
  %v2453 = vunpack.c.l.b16 %v614
  %v2454 = vunpack.c.h.b16 %v614
  %v2455 = vpack.c.b16 %v1307, %v1303
  %v2456 = vpack.c.b16 %v1308, %v1304
  %v2457 = vpack.c.b16 %v1309, %v1305
  %v2458 = vpack.c.b16 %v1310, %v1306
  %v2459 = vpack.c.b16 %v1315, %v1311
  %v2460 = vpack.c.b16 %v1316, %v1312
  %v2461 = vpack.c.b16 %v1317, %v1313
  %v2462 = vpack.c.b16 %v1318, %v1314
  %v2463 = vpack.c.b16 %v1323, %v1319
  %v2464 = vpack.c.b16 %v1324, %v1320
  %v2465 = vpack.c.b16 %v1325, %v1321
  %v2466 = vpack.c.b16 %v1326, %v1322
  %v2467 = vpack.c.b16 %v1331, %v1327
  %v2468 = vpack.c.b16 %v1332, %v1328
  %v2469 = vpack.c.b16 %v1333, %v1329
  %v2470 = vpack.c.b16 %v1334, %v1330
  %v2471 = vpack.c.b16 %v1339, %v1335
  %v2472 = vpack.c.b16 %v1340, %v1336
  %v2473 = vpack.c.b16 %v1341, %v1337
  %v2474 = vpack.c.b16 %v1342, %v1338
  %v2475 = vpack.c.b16 %v1347, %v1343
  %v2476 = vpack.c.b16 %v1348, %v1344
  %v2477 = vpack.c.b16 %v1349, %v1345
  %v2478 = vpack.c.b16 %v1350, %v1346
  %v2479 = vpack.c.b16 %v1355, %v1351
  %v2480 = vpack.c.b16 %v1356, %v1352
  %v2481 = vpack.c.b16 %v1357, %v1353
  %v2482 = vpack.c.b16 %v1358, %v1354
  %v2483 = vpack.c.b16 %v1363, %v1359
  %v2484 = vpack.c.b16 %v1364, %v1360
  %v2485 = vpack.c.b16 %v1365, %v1361
  %v2486 = vpack.c.b16 %v1366, %v1362
  %v2487 = vpack.c.b16 %v1371, %v1367
  %v2488 = vpack.c.b16 %v1372, %v1368
  %v2489 = vpack.c.b16 %v1373, %v1369
  %v2490 = vpack.c.b16 %v1374, %v1370
  %v2491 = vpack.c.b16 %v1379, %v1375
  %v2492 = vpack.c.b16 %v1380, %v1376
  %v2493 = vpack.c.b16 %v1381, %v1377
  %v2494 = vpack.c.b16 %v1382, %v1378
  %v2495 = vpack.c.b16 %v1387, %v1383
  %v2496 = vpack.c.b16 %v1388, %v1384
  %v2497 = vpack.c.b16 %v1389, %v1385
  %v2498 = vpack.c.b16 %v1390, %v1386
  %v2499 = vpack.c.b16 %v1395, %v1391
  %v2500 = vpack.c.b16 %v1396, %v1392
  %v2501 = vpack.c.b16 %v1397, %v1393
  %v2502 = vpack.c.b16 %v1398, %v1394
  %v2503 = vpack.c.b16 %v1403, %v1399
  %v2504 = vpack.c.b16 %v1404, %v1400
  %v2505 = vpack.c.b16 %v1405, %v1401
  %v2506 = vpack.c.b16 %v1406, %v1402
  %v2507 = vpack.c.b16 %v1411, %v1407
  %v2508 = vpack.c.b16 %v1412, %v1408
  %v2509 = vpack.c.b16 %v1413, %v1409
  %v2510 = vpack.c.b16 %v1414, %v1410
  %v2511 = vpack.c.b16 %v1419, %v1415
  %v2512 = vpack.c.b16 %v1420, %v1416
  %v2513 = vpack.c.b16 %v1421, %v1417
  %v2514 = vpack.c.b16 %v1422, %v1418
  %v2515 = vpack.c.b16 %v1427, %v1423
  %v2516 = vpack.c.b16 %v1428, %v1424
  %v2517 = vpack.c.b16 %v1429, %v1425
  %v2518 = vpack.c.b16 %v1430, %v1426
  %v2519 = vpack.c.b16 %v1435, %v1431
  %v2520 = vpack.c.b16 %v1436, %v1432
  %v2521 = vpack.c.b16 %v1437, %v1433
  %v2522 = vpack.c.b16 %v1438, %v1434
  %v2523 = vpack.c.b16 %v1443, %v1439
  %v2524 = vpack.c.b16 %v1444, %v1440
  %v2525 = vpack.c.b16 %v1445, %v1441
  %v2526 = vpack.c.b16 %v1446, %v1442
  %v2527 = vpack.c.b16 %v1451, %v1447
  %v2528 = vpack.c.b16 %v1452, %v1448
  %v2529 = vpack.c.b16 %v1453, %v1449
  %v2530 = vpack.c.b16 %v1454, %v1450
  %v2531 = vpack.c.b16 %v1459, %v1455
  %v2532 = vpack.c.b16 %v1460, %v1456
  %v2533 = vpack.c.b16 %v1461, %v1457
  %v2534 = vpack.c.b16 %v1462, %v1458
  %v2535 = vpack.c.b16 %v1467, %v1463
  %v2536 = vpack.c.b16 %v1468, %v1464
  %v2537 = vpack.c.b16 %v1469, %v1465
  %v2538 = vpack.c.b16 %v1470, %v1466
  %v2539 = vpack.c.b16 %v1475, %v1471
  %v2540 = vpack.c.b16 %v1476, %v1472
  %v2541 = vpack.c.b16 %v1477, %v1473
  %v2542 = vpack.c.b16 %v1478, %v1474
  %v2543 = vpack.c.b16 %v1483, %v1479
  %v2544 = vpack.c.b16 %v1484, %v1480
  %v2545 = vpack.c.b16 %v1485, %v1481
  %v2546 = vpack.c.b16 %v1486, %v1482
  %v2547 = vpack.c.b16 %v1491, %v1487
  %v2548 = vpack.c.b16 %v1492, %v1488
  %v2549 = vpack.c.b16 %v1493, %v1489
  %v2550 = vpack.c.b16 %v1494, %v1490
  %v2551 = vpack.c.b16 %v1499, %v1495
  %v2552 = vpack.c.b16 %v1500, %v1496
  %v2553 = vpack.c.b16 %v1501, %v1497
  %v2554 = vpack.c.b16 %v1502, %v1498
  %v2555 = vpack.c.b16 %v1507, %v1503
  %v2556 = vpack.c.b16 %v1508, %v1504
  %v2557 = vpack.c.b16 %v1509, %v1505
  %v2558 = vpack.c.b16 %v1510, %v1506
  %v2559 = vpack.c.b16 %v1515, %v1511
  %v2560 = vpack.c.b16 %v1516, %v1512
  %v2561 = vpack.c.b16 %v1517, %v1513
  %v2562 = vpack.c.b16 %v1518, %v1514
  %v2563 = vpack.c.b16 %v1523, %v1519
  %v2564 = vpack.c.b16 %v1524, %v1520
  %v2565 = vpack.c.b16 %v1525, %v1521
  %v2566 = vpack.c.b16 %v1526, %v1522
  %v2567 = vpack.c.b16 %v1531, %v1527
  %v2568 = vpack.c.b16 %v1532, %v1528
  %v2569 = vpack.c.b16 %v1533, %v1529
  %v2570 = vpack.c.b16 %v1534, %v1530
  %v2571 = vpack.c.b16 %v1539, %v1535
  %v2572 = vpack.c.b16 %v1540, %v1536
  %v2573 = vpack.c.b16 %v1541, %v1537
  %v2574 = vpack.c.b16 %v1542, %v1538
  %v2575 = vpack.c.b16 %v1547, %v1543
  %v2576 = vpack.c.b16 %v1548, %v1544
  %v2577 = vpack.c.b16 %v1549, %v1545
  %v2578 = vpack.c.b16 %v1550, %v1546
  %v2579 = vpack.c.b16 %v1555, %v1551
  %v2580 = vpack.c.b16 %v1556, %v1552
  %v2581 = vpack.c.b16 %v1557, %v1553
  %v2582 = vpack.c.b16 %v1558, %v1554
  %v2583 = vpack.c.b16 %v1563, %v1559
  %v2584 = vpack.c.b16 %v1564, %v1560
  %v2585 = vpack.c.b16 %v1565, %v1561
  %v2586 = vpack.c.b16 %v1566, %v1562
  %v2587 = vpack.c.b16 %v1571, %v1567
  %v2588 = vpack.c.b16 %v1572, %v1568
  %v2589 = vpack.c.b16 %v1573, %v1569
  %v2590 = vpack.c.b16 %v1574, %v1570
  %v2591 = vpack.c.b16 %v1579, %v1575
  %v2592 = vpack.c.b16 %v1580, %v1576
  %v2593 = vpack.c.b16 %v1581, %v1577
  %v2594 = vpack.c.b16 %v1582, %v1578
  %v2595 = vpack.c.b16 %v1587, %v1583
  %v2596 = vpack.c.b16 %v1588, %v1584
  %v2597 = vpack.c.b16 %v1589, %v1585
  %v2598 = vpack.c.b16 %v1590, %v1586
  %v2599 = vpack.c.b16 %v1595, %v1591
  %v2600 = vpack.c.b16 %v1596, %v1592
  %v2601 = vpack.c.b16 %v1597, %v1593
  %v2602 = vpack.c.b16 %v1598, %v1594
  %v2603 = vpack.c.b16 %v1603, %v1599
  %v2604 = vpack.c.b16 %v1604, %v1600
  %v2605 = vpack.c.b16 %v1605, %v1601
  %v2606 = vpack.c.b16 %v1606, %v1602
  %v2607 = vpack.c.b16 %v1611, %v1607
  %v2608 = vpack.c.b16 %v1612, %v1608
  %v2609 = vpack.c.b16 %v1613, %v1609
  %v2610 = vpack.c.b16 %v1614, %v1610
  %v2611 = vpack.c.b16 %v1619, %v1615
  %v2612 = vpack.c.b16 %v1620, %v1616
  %v2613 = vpack.c.b16 %v1621, %v1617
  %v2614 = vpack.c.b16 %v1622, %v1618
  %v2615 = vpack.c.b16 %v1627, %v1623
  %v2616 = vpack.c.b16 %v1628, %v1624
  %v2617 = vpack.c.b16 %v1629, %v1625
  %v2618 = vpack.c.b16 %v1630, %v1626
  %v2619 = vpack.c.b16 %v1635, %v1631
  %v2620 = vpack.c.b16 %v1636, %v1632
  %v2621 = vpack.c.b16 %v1637, %v1633
  %v2622 = vpack.c.b16 %v1638, %v1634
  %v2623 = vpack.c.b16 %v1643, %v1639
  %v2624 = vpack.c.b16 %v1644, %v1640
  %v2625 = vpack.c.b16 %v1645, %v1641
  %v2626 = vpack.c.b16 %v1646, %v1642
  %v2627 = vpack.c.b16 %v1651, %v1647
  %v2628 = vpack.c.b16 %v1652, %v1648
  %v2629 = vpack.c.b16 %v1653, %v1649
  %v2630 = vpack.c.b16 %v1654, %v1650
  %v2631 = vpack.c.b16 %v1659, %v1655
  %v2632 = vpack.c.b16 %v1660, %v1656
  %v2633 = vpack.c.b16 %v1661, %v1657
  %v2634 = vpack.c.b16 %v1662, %v1658
  %v2635 = vpack.c.b16 %v1667, %v1663
  %v2636 = vpack.c.b16 %v1668, %v1664
  %v2637 = vpack.c.b16 %v1669, %v1665
  %v2638 = vpack.c.b16 %v1670, %v1666
  %v2639 = vpack.c.b16 %v1675, %v1671
  %v2640 = vpack.c.b16 %v1676, %v1672
  %v2641 = vpack.c.b16 %v1677, %v1673
  %v2642 = vpack.c.b16 %v1678, %v1674
  %v2643 = vpack.c.b16 %v1683, %v1679
  %v2644 = vpack.c.b16 %v1684, %v1680
  %v2645 = vpack.c.b16 %v1685, %v1681
  %v2646 = vpack.c.b16 %v1686, %v1682
  %v2647 = vpack.c.b16 %v1691, %v1687
  %v2648 = vpack.c.b16 %v1692, %v1688
  %v2649 = vpack.c.b16 %v1693, %v1689
  %v2650 = vpack.c.b16 %v1694, %v1690
  %v2651 = vpack.c.b16 %v1699, %v1695
  %v2652 = vpack.c.b16 %v1700, %v1696
  %v2653 = vpack.c.b16 %v1701, %v1697
  %v2654 = vpack.c.b16 %v1702, %v1698
  %v2655 = vpack.c.b16 %v1707, %v1703
  %v2656 = vpack.c.b16 %v1708, %v1704
  %v2657 = vpack.c.b16 %v1709, %v1705
  %v2658 = vpack.c.b16 %v1710, %v1706
  %v2659 = vpack.c.b16 %v1715, %v1711
  %v2660 = vpack.c.b16 %v1716, %v1712
  %v2661 = vpack.c.b16 %v1717, %v1713
  %v2662 = vpack.c.b16 %v1718, %v1714
  %v2663 = vpack.c.b16 %v1723, %v1719
  %v2664 = vpack.c.b16 %v1724, %v1720
  %v2665 = vpack.c.b16 %v1725, %v1721
  %v2666 = vpack.c.b16 %v1726, %v1722
  %v2667 = vpack.c.b16 %v1731, %v1727
  %v2668 = vpack.c.b16 %v1732, %v1728
  %v2669 = vpack.c.b16 %v1733, %v1729
  %v2670 = vpack.c.b16 %v1734, %v1730
  %v2671 = vpack.c.b16 %v1739, %v1735
  %v2672 = vpack.c.b16 %v1740, %v1736
  %v2673 = vpack.c.b16 %v1741, %v1737
  %v2674 = vpack.c.b16 %v1742, %v1738
  %v2675 = vpack.c.b16 %v1747, %v1743
  %v2676 = vpack.c.b16 %v1748, %v1744
  %v2677 = vpack.c.b16 %v1749, %v1745
  %v2678 = vpack.c.b16 %v1750, %v1746
  %v2679 = vpack.c.b16 %v1755, %v1751
  %v2680 = vpack.c.b16 %v1756, %v1752
  %v2681 = vpack.c.b16 %v1757, %v1753
  %v2682 = vpack.c.b16 %v1758, %v1754
  %v2683 = vpack.c.b16 %v1763, %v1759
  %v2684 = vpack.c.b16 %v1764, %v1760
  %v2685 = vpack.c.b16 %v1765, %v1761
  %v2686 = vpack.c.b16 %v1766, %v1762
  %v2687 = vpack.c.b16 %v1771, %v1767
  %v2688 = vpack.c.b16 %v1772, %v1768
  %v2689 = vpack.c.b16 %v1773, %v1769
  %v2690 = vpack.c.b16 %v1774, %v1770
  %v2691 = vpack.c.b16 %v1779, %v1775
  %v2692 = vpack.c.b16 %v1780, %v1776
  %v2693 = vpack.c.b16 %v1781, %v1777
  %v2694 = vpack.c.b16 %v1782, %v1778
  %v2695 = vpack.c.b16 %v1787, %v1783
  %v2696 = vpack.c.b16 %v1788, %v1784
  %v2697 = vpack.c.b16 %v1789, %v1785
  %v2698 = vpack.c.b16 %v1790, %v1786
  %v2699 = vpack.c.b16 %v1795, %v1791
  %v2700 = vpack.c.b16 %v1796, %v1792
  %v2701 = vpack.c.b16 %v1797, %v1793
  %v2702 = vpack.c.b16 %v1798, %v1794
  %v2703 = vpack.c.b16 %v1803, %v1799
  %v2704 = vpack.c.b16 %v1804, %v1800
  %v2705 = vpack.c.b16 %v1805, %v1801
  %v2706 = vpack.c.b16 %v1806, %v1802
  %v2707 = vpack.c.b16 %v1811, %v1807
  %v2708 = vpack.c.b16 %v1812, %v1808
  %v2709 = vpack.c.b16 %v1813, %v1809
  %v2710 = vpack.c.b16 %v1814, %v1810
  %v2711 = vpack.c.b16 %v1819, %v1815
  %v2712 = vpack.c.b16 %v1820, %v1816
  %v2713 = vpack.c.b16 %v1821, %v1817
  %v2714 = vpack.c.b16 %v1822, %v1818
  %v2715 = vpack.c.b16 %v1827, %v1823
  %v2716 = vpack.c.b16 %v1828, %v1824
  %v2717 = vpack.c.b16 %v1829, %v1825
  %v2718 = vpack.c.b16 %v1830, %v1826
  %v2719 = vpack.c.b16 %v1835, %v1831
  %v2720 = vpack.c.b16 %v1836, %v1832
  %v2721 = vpack.c.b16 %v1837, %v1833
  %v2722 = vpack.c.b16 %v1838, %v1834
  %v2723 = vpack.c.b16 %v1843, %v1839
  %v2724 = vpack.c.b16 %v1844, %v1840
  %v2725 = vpack.c.b16 %v1845, %v1841
  %v2726 = vpack.c.b16 %v1846, %v1842
  %v2727 = vpack.c.b16 %v1851, %v1847
  %v2728 = vpack.c.b16 %v1852, %v1848
  %v2729 = vpack.c.b16 %v1853, %v1849
  %v2730 = vpack.c.b16 %v1854, %v1850
  %v2731 = vpack.c.b16 %v1859, %v1855
  %v2732 = vpack.c.b16 %v1860, %v1856
  %v2733 = vpack.c.b16 %v1861, %v1857
  %v2734 = vpack.c.b16 %v1862, %v1858
  %v2735 = vpack.c.b16 %v1867, %v1863
  %v2736 = vpack.c.b16 %v1868, %v1864
  %v2737 = vpack.c.b16 %v1869, %v1865
  %v2738 = vpack.c.b16 %v1870, %v1866
  %v2739 = vpack.c.b16 %v1875, %v1871
  %v2740 = vpack.c.b16 %v1876, %v1872
  %v2741 = vpack.c.b16 %v1877, %v1873
  %v2742 = vpack.c.b16 %v1878, %v1874
  %v2743 = vpack.c.b16 %v1883, %v1879
  %v2744 = vpack.c.b16 %v1884, %v1880
  %v2745 = vpack.c.b16 %v1885, %v1881
  %v2746 = vpack.c.b16 %v1886, %v1882
  %v2747 = vpack.c.b16 %v1891, %v1887
  %v2748 = vpack.c.b16 %v1892, %v1888
  %v2749 = vpack.c.b16 %v1893, %v1889
  %v2750 = vpack.c.b16 %v1894, %v1890
  %v2751 = vpack.c.b16 %v1899, %v1895
  %v2752 = vpack.c.b16 %v1900, %v1896
  %v2753 = vpack.c.b16 %v1901, %v1897
  %v2754 = vpack.c.b16 %v1902, %v1898
  %v2755 = vpack.c.b16 %v1907, %v1903
  %v2756 = vpack.c.b16 %v1908, %v1904
  %v2757 = vpack.c.b16 %v1909, %v1905
  %v2758 = vpack.c.b16 %v1910, %v1906
  %v2759 = vpack.c.b16 %v1915, %v1911
  %v2760 = vpack.c.b16 %v1916, %v1912
  %v2761 = vpack.c.b16 %v1917, %v1913
  %v2762 = vpack.c.b16 %v1918, %v1914
  %v2763 = vpack.c.b16 %v1923, %v1919
  %v2764 = vpack.c.b16 %v1924, %v1920
  %v2765 = vpack.c.b16 %v1925, %v1921
  %v2766 = vpack.c.b16 %v1926, %v1922
  %v2767 = vpack.c.b16 %v1931, %v1927
  %v2768 = vpack.c.b16 %v1932, %v1928
  %v2769 = vpack.c.b16 %v1933, %v1929
  %v2770 = vpack.c.b16 %v1934, %v1930
  %v2771 = vpack.c.b16 %v1939, %v1935
  %v2772 = vpack.c.b16 %v1940, %v1936
  %v2773 = vpack.c.b16 %v1941, %v1937
  %v2774 = vpack.c.b16 %v1942, %v1938
  %v2775 = vpack.c.b16 %v1947, %v1943
  %v2776 = vpack.c.b16 %v1948, %v1944
  %v2777 = vpack.c.b16 %v1949, %v1945
  %v2778 = vpack.c.b16 %v1950, %v1946
  %v2779 = vpack.c.b16 %v1955, %v1951
  %v2780 = vpack.c.b16 %v1956, %v1952
  %v2781 = vpack.c.b16 %v1957, %v1953
  %v2782 = vpack.c.b16 %v1958, %v1954
  %v2783 = vpack.c.b16 %v1963, %v1959
  %v2784 = vpack.c.b16 %v1964, %v1960
  %v2785 = vpack.c.b16 %v1965, %v1961
  %v2786 = vpack.c.b16 %v1966, %v1962
  %v2787 = vpack.c.b16 %v1971, %v1967
  %v2788 = vpack.c.b16 %v1972, %v1968
  %v2789 = vpack.c.b16 %v1973, %v1969
  %v2790 = vpack.c.b16 %v1974, %v1970
  %v2791 = vpack.c.b16 %v1979, %v1975
  %v2792 = vpack.c.b16 %v1980, %v1976
  %v2793 = vpack.c.b16 %v1981, %v1977
  %v2794 = vpack.c.b16 %v1982, %v1978
  %v2795 = vpack.c.b16 %v1987, %v1983
  %v2796 = vpack.c.b16 %v1988, %v1984
  %v2797 = vpack.c.b16 %v1989, %v1985
  %v2798 = vpack.c.b16 %v1990, %v1986
  %v2799 = vpack.c.b16 %v1995, %v1991
  %v2800 = vpack.c.b16 %v1996, %v1992
  %v2801 = vpack.c.b16 %v1997, %v1993
  %v2802 = vpack.c.b16 %v1998, %v1994
  %v2803 = vpack.c.b16 %v2003, %v1999
  %v2804 = vpack.c.b16 %v2004, %v2000
  %v2805 = vpack.c.b16 %v2005, %v2001
  %v2806 = vpack.c.b16 %v2006, %v2002
  %v2807 = vpack.c.b16 %v2011, %v2007
  %v2808 = vpack.c.b16 %v2012, %v2008
  %v2809 = vpack.c.b16 %v2013, %v2009
  %v2810 = vpack.c.b16 %v2014, %v2010
  %v2811 = vpack.c.b16 %v2019, %v2015
  %v2812 = vpack.c.b16 %v2020, %v2016
  %v2813 = vpack.c.b16 %v2021, %v2017
  %v2814 = vpack.c.b16 %v2022, %v2018
  %v2815 = vpack.c.b16 %v2027, %v2023
  %v2816 = vpack.c.b16 %v2028, %v2024
  %v2817 = vpack.c.b16 %v2029, %v2025
  %v2818 = vpack.c.b16 %v2030, %v2026
  %v2819 = vpack.c.b16 %v2035, %v2031
  %v2820 = vpack.c.b16 %v2036, %v2032
  %v2821 = vpack.c.b16 %v2037, %v2033
  %v2822 = vpack.c.b16 %v2038, %v2034
  %v2823 = vpack.c.b16 %v2043, %v2039
  %v2824 = vpack.c.b16 %v2044, %v2040
  %v2825 = vpack.c.b16 %v2045, %v2041
  %v2826 = vpack.c.b16 %v2046, %v2042
  %v2827 = vpack.c.b16 %v2051, %v2047
  %v2828 = vpack.c.b16 %v2052, %v2048
  %v2829 = vpack.c.b16 %v2053, %v2049
  %v2830 = vpack.c.b16 %v2054, %v2050
  %v2831 = vpack.c.b16 %v2059, %v2055
  %v2832 = vpack.c.b16 %v2060, %v2056
  %v2833 = vpack.c.b16 %v2061, %v2057
  %v2834 = vpack.c.b16 %v2062, %v2058
  %v2835 = vpack.c.b16 %v2067, %v2063
  %v2836 = vpack.c.b16 %v2068, %v2064
  %v2837 = vpack.c.b16 %v2069, %v2065
  %v2838 = vpack.c.b16 %v2070, %v2066
  %v2839 = vpack.c.b16 %v2075, %v2071
  %v2840 = vpack.c.b16 %v2076, %v2072
  %v2841 = vpack.c.b16 %v2077, %v2073
  %v2842 = vpack.c.b16 %v2078, %v2074
  %v2843 = vpack.c.b16 %v2083, %v2079
  %v2844 = vpack.c.b16 %v2084, %v2080
  %v2845 = vpack.c.b16 %v2085, %v2081
  %v2846 = vpack.c.b16 %v2086, %v2082
  %v2847 = vpack.c.b16 %v2091, %v2087
  %v2848 = vpack.c.b16 %v2092, %v2088
  %v2849 = vpack.c.b16 %v2093, %v2089
  %v2850 = vpack.c.b16 %v2094, %v2090
  %v2851 = vpack.c.b16 %v2099, %v2095
  %v2852 = vpack.c.b16 %v2100, %v2096
  %v2853 = vpack.c.b16 %v2101, %v2097
  %v2854 = vpack.c.b16 %v2102, %v2098
  %v2855 = vpack.c.b16 %v2107, %v2103
  %v2856 = vpack.c.b16 %v2108, %v2104
  %v2857 = vpack.c.b16 %v2109, %v2105
  %v2858 = vpack.c.b16 %v2110, %v2106
  %v2859 = vpack.c.b16 %v2115, %v2111
  %v2860 = vpack.c.b16 %v2116, %v2112
  %v2861 = vpack.c.b16 %v2117, %v2113
  %v2862 = vpack.c.b16 %v2118, %v2114
  %v2863 = vpack.c.b16 %v2123, %v2119
  %v2864 = vpack.c.b16 %v2124, %v2120
  %v2865 = vpack.c.b16 %v2125, %v2121
  %v2866 = vpack.c.b16 %v2126, %v2122
  %v2867 = vpack.c.b16 %v2131, %v2127
  %v2868 = vpack.c.b16 %v2132, %v2128
  %v2869 = vpack.c.b16 %v2133, %v2129
  %v2870 = vpack.c.b16 %v2134, %v2130
  %v2871 = vpack.c.b16 %v2139, %v2135
  %v2872 = vpack.c.b16 %v2140, %v2136
  %v2873 = vpack.c.b16 %v2141, %v2137
  %v2874 = vpack.c.b16 %v2142, %v2138
  %v2875 = vpack.c.b16 %v2147, %v2143
  %v2876 = vpack.c.b16 %v2148, %v2144
  %v2877 = vpack.c.b16 %v2149, %v2145
  %v2878 = vpack.c.b16 %v2150, %v2146
  %v2879 = vpack.c.b16 %v2155, %v2151
  %v2880 = vpack.c.b16 %v2156, %v2152
  %v2881 = vpack.c.b16 %v2157, %v2153
  %v2882 = vpack.c.b16 %v2158, %v2154
  %v2883 = vpack.c.b16 %v2163, %v2159
  %v2884 = vpack.c.b16 %v2164, %v2160
  %v2885 = vpack.c.b16 %v2165, %v2161
  %v2886 = vpack.c.b16 %v2166, %v2162
  %v2887 = vpack.c.b16 %v2171, %v2167
  %v2888 = vpack.c.b16 %v2172, %v2168
  %v2889 = vpack.c.b16 %v2173, %v2169
  %v2890 = vpack.c.b16 %v2174, %v2170
  %v2891 = vpack.c.b16 %v2179, %v2175
  %v2892 = vpack.c.b16 %v2180, %v2176
  %v2893 = vpack.c.b16 %v2181, %v2177
  %v2894 = vpack.c.b16 %v2182, %v2178
  %v2895 = vpack.c.b16 %v2187, %v2183
  %v2896 = vpack.c.b16 %v2188, %v2184
  %v2897 = vpack.c.b16 %v2189, %v2185
  %v2898 = vpack.c.b16 %v2190, %v2186
  %v2899 = vpack.c.b16 %v2195, %v2191
  %v2900 = vpack.c.b16 %v2196, %v2192
  %v2901 = vpack.c.b16 %v2197, %v2193
  %v2902 = vpack.c.b16 %v2198, %v2194
  %v2903 = vpack.c.b16 %v2203, %v2199
  %v2904 = vpack.c.b16 %v2204, %v2200
  %v2905 = vpack.c.b16 %v2205, %v2201
  %v2906 = vpack.c.b16 %v2206, %v2202
  %v2907 = vpack.c.b16 %v2211, %v2207
  %v2908 = vpack.c.b16 %v2212, %v2208
  %v2909 = vpack.c.b16 %v2213, %v2209
  %v2910 = vpack.c.b16 %v2214, %v2210
  %v2911 = vpack.c.b16 %v2219, %v2215
  %v2912 = vpack.c.b16 %v2220, %v2216
  %v2913 = vpack.c.b16 %v2221, %v2217
  %v2914 = vpack.c.b16 %v2222, %v2218
  %v2915 = vpack.c.b16 %v2227, %v2223
  %v2916 = vpack.c.b16 %v2228, %v2224
  %v2917 = vpack.c.b16 %v2229, %v2225
  %v2918 = vpack.c.b16 %v2230, %v2226
  %v2919 = vpack.c.b16 %v2235, %v2231
  %v2920 = vpack.c.b16 %v2236, %v2232
  %v2921 = vpack.c.b16 %v2237, %v2233
  %v2922 = vpack.c.b16 %v2238, %v2234
  %v2923 = vpack.c.b16 %v2243, %v2239
  %v2924 = vpack.c.b16 %v2244, %v2240
  %v2925 = vpack.c.b16 %v2245, %v2241
  %v2926 = vpack.c.b16 %v2246, %v2242
  %v2927 = vpack.c.b16 %v2251, %v2247
  %v2928 = vpack.c.b16 %v2252, %v2248
  %v2929 = vpack.c.b16 %v2253, %v2249
  %v2930 = vpack.c.b16 %v2254, %v2250
  %v2931 = vpack.c.b16 %v2259, %v2255
  %v2932 = vpack.c.b16 %v2260, %v2256
  %v2933 = vpack.c.b16 %v2261, %v2257
  %v2934 = vpack.c.b16 %v2262, %v2258
  %v2935 = vpack.c.b16 %v2267, %v2263
  %v2936 = vpack.c.b16 %v2268, %v2264
  %v2937 = vpack.c.b16 %v2269, %v2265
  %v2938 = vpack.c.b16 %v2270, %v2266
  %v2939 = vpack.c.b16 %v2275, %v2271
  %v2940 = vpack.c.b16 %v2276, %v2272
  %v2941 = vpack.c.b16 %v2277, %v2273
  %v2942 = vpack.c.b16 %v2278, %v2274
  %v2943 = vpack.c.b16 %v2283, %v2279
  %v2944 = vpack.c.b16 %v2284, %v2280
  %v2945 = vpack.c.b16 %v2285, %v2281
  %v2946 = vpack.c.b16 %v2286, %v2282
  %v2947 = vpack.c.b16 %v2291, %v2287
  %v2948 = vpack.c.b16 %v2292, %v2288
  %v2949 = vpack.c.b16 %v2293, %v2289
  %v2950 = vpack.c.b16 %v2294, %v2290
  %v2951 = vpack.c.b16 %v2299, %v2295
  %v2952 = vpack.c.b16 %v2300, %v2296
  %v2953 = vpack.c.b16 %v2301, %v2297
  %v2954 = vpack.c.b16 %v2302, %v2298
  %v2955 = vpack.c.b16 %v2307, %v2303
  %v2956 = vpack.c.b16 %v2308, %v2304
  %v2957 = vpack.c.b16 %v2309, %v2305
  %v2958 = vpack.c.b16 %v2310, %v2306
  %v2959 = vpack.c.b16 %v2315, %v2311
  %v2960 = vpack.c.b16 %v2316, %v2312
  %v2961 = vpack.c.b16 %v2317, %v2313
  %v2962 = vpack.c.b16 %v2318, %v2314
  %v2963 = vpack.c.b16 %v2323, %v2319
  %v2964 = vpack.c.b16 %v2324, %v2320
  %v2965 = vpack.c.b16 %v2325, %v2321
  %v2966 = vpack.c.b16 %v2326, %v2322
  %v2967 = vpack.c.b16 %v2331, %v2327
  %v2968 = vpack.c.b16 %v2332, %v2328
  %v2969 = vpack.c.b16 %v2333, %v2329
  %v2970 = vpack.c.b16 %v2334, %v2330
  %v2971 = vpack.c.b16 %v2339, %v2335
  %v2972 = vpack.c.b16 %v2340, %v2336
  %v2973 = vpack.c.b16 %v2341, %v2337
  %v2974 = vpack.c.b16 %v2342, %v2338
  %v2975 = vpack.c.b16 %v2347, %v2343
  %v2976 = vpack.c.b16 %v2348, %v2344
  %v2977 = vpack.c.b16 %v2349, %v2345
  %v2978 = vpack.c.b16 %v2350, %v2346
  %v2979 = vpack.c.b16 %v2355, %v2351
  %v2980 = vpack.c.b16 %v2356, %v2352
  %v2981 = vpack.c.b16 %v2357, %v2353
  %v2982 = vpack.c.b16 %v2358, %v2354
  %v2983 = vpack.c.b16 %v2363, %v2359
  %v2984 = vpack.c.b16 %v2364, %v2360
  %v2985 = vpack.c.b16 %v2365, %v2361
  %v2986 = vpack.c.b16 %v2366, %v2362
  %v2987 = vpack.c.b16 %v2371, %v2367
  %v2988 = vpack.c.b16 %v2372, %v2368
  %v2989 = vpack.c.b16 %v2373, %v2369
  %v2990 = vpack.c.b16 %v2374, %v2370
  %v2991 = vpack.c.b16 %v2379, %v2375
  %v2992 = vpack.c.b16 %v2380, %v2376
  %v2993 = vpack.c.b16 %v2381, %v2377
  %v2994 = vpack.c.b16 %v2382, %v2378
  %v2995 = vpack.c.b16 %v2387, %v2383
  %v2996 = vpack.c.b16 %v2388, %v2384
  %v2997 = vpack.c.b16 %v2389, %v2385
  %v2998 = vpack.c.b16 %v2390, %v2386
  %v2999 = vpack.c.b16 %v2395, %v2391
  %v3000 = vpack.c.b16 %v2396, %v2392
  %v3001 = vpack.c.b16 %v2397, %v2393
  %v3002 = vpack.c.b16 %v2398, %v2394
  %v3003 = vpack.c.b16 %v2403, %v2399
  %v3004 = vpack.c.b16 %v2404, %v2400
  %v3005 = vpack.c.b16 %v2405, %v2401
  %v3006 = vpack.c.b16 %v2406, %v2402
  %v3007 = vpack.c.b16 %v2411, %v2407
  %v3008 = vpack.c.b16 %v2412, %v2408
  %v3009 = vpack.c.b16 %v2413, %v2409
  %v3010 = vpack.c.b16 %v2414, %v2410
  %v3011 = vpack.c.b16 %v2419, %v2415
  %v3012 = vpack.c.b16 %v2420, %v2416
  %v3013 = vpack.c.b16 %v2421, %v2417
  %v3014 = vpack.c.b16 %v2422, %v2418
  %v3015 = vpack.c.b16 %v2427, %v2423
  %v3016 = vpack.c.b16 %v2428, %v2424
  %v3017 = vpack.c.b16 %v2429, %v2425
  %v3018 = vpack.c.b16 %v2430, %v2426
  %v3019 = vpack.c.b16 %v2435, %v2431
  %v3020 = vpack.c.b16 %v2436, %v2432
  %v3021 = vpack.c.b16 %v2437, %v2433
  %v3022 = vpack.c.b16 %v2438, %v2434
  %v3023 = vpack.c.b16 %v2443, %v2439
  %v3024 = vpack.c.b16 %v2444, %v2440
  %v3025 = vpack.c.b16 %v2445, %v2441
  %v3026 = vpack.c.b16 %v2446, %v2442
  %v3027 = vpack.c.b16 %v2451, %v2447
  %v3028 = vpack.c.b16 %v2452, %v2448
  %v3029 = vpack.c.b16 %v2453, %v2449
  %v3030 = vpack.c.b16 %v2454, %v2450
  %3607 = vmatprep.subr.bf16.mxu0 %v2456
  %3608 = vmatpush1.bf16.msra.mxu0 %v2455
  %3609 = vmatprep.subr.bf16.mxu0 %v2460
  %3610 = vmatpush1.bf16.msra.mxu0 %v2459
  %3611 = vmatprep.subr.bf16.mxu0 %v2464
  %3612 = vmatpush1.bf16.msra.mxu0 %v2463
  %3613 = vmatprep.subr.bf16.mxu0 %v2468
  %3614 = vmatpush1.bf16.msra.mxu0 %v2467
  %3615 = vmatprep.subr.bf16.mxu0 %v2472
  %3616 = vmatpush1.bf16.msra.mxu0 %v2471
  %3617 = vmatprep.subr.bf16.mxu0 %v2476
  %3618 = vmatpush1.bf16.msra.mxu0 %v2475
  %3619 = vmatprep.subr.bf16.mxu0 %v2480
  %3620 = vmatpush1.bf16.msra.mxu0 %v2479
  %3621 = vmatprep.subr.bf16.mxu0 %v2484
  %3622 = vmatpush1.bf16.msra.mxu0 %v2483
  %3623 = vmatprep.subr.bf16.mxu0 %v2488
  %3624 = vmatpush1.bf16.msra.mxu0 %v2487
  %3625 = vmatprep.subr.bf16.mxu0 %v2492
  %3626 = vmatpush1.bf16.msra.mxu0 %v2491
  %3627 = vmatprep.subr.bf16.mxu0 %v2496
  %3628 = vmatpush1.bf16.msra.mxu0 %v2495
  %3629 = vmatprep.subr.bf16.mxu0 %v2500
  %3630 = vmatpush1.bf16.msra.mxu0 %v2499
  %3631 = vmatprep.subr.bf16.mxu0 %v2504
  %3632 = vmatpush1.bf16.msra.mxu0 %v2503
  %3633 = vmatprep.subr.bf16.mxu0 %v2508
  %3634 = vmatpush1.bf16.msra.mxu0 %v2507
  %3635 = vmatprep.subr.bf16.mxu0 %v2512
  %3636 = vmatpush1.bf16.msra.mxu0 %v2511
  %3637 = vmatprep.subr.bf16.mxu0 %v2516
  %3638 = vmatpush1.bf16.msra.mxu0 %v2515
  %3639 = vmatprep.mubr.bf16.mxu0 %v692
  %3640 = vmatmul.mubr.bf16.gmra.mrb[0].mxu0 %v691
  %v3641 = vpop.f32.mrb[0].mxu0
  %v3642 = vadd.f32 %v620, %v3641
  %v3643 = vpop.f32.mrb[0].mxu0
  %v3644 = vadd.f32 %v624, %v3643
  %v3645 = vpop.f32.mrb[0].mxu0
  %v3646 = vadd.f32 %v620, %v3645
  %v3647 = vpop.f32.mrb[0].mxu0
  %v3648 = vadd.f32 %v624, %v3647
  %3649 = vdwg.mxu0
  %3650 = vmatprep.subr.bf16.mxu0 %v2520
  %3651 = vmatpush1.bf16.msra.mxu0 %v2519
  %3652 = vmatprep.subr.bf16.mxu0 %v2524
  %3653 = vmatpush1.bf16.msra.mxu0 %v2523
  %3654 = vmatprep.subr.bf16.mxu0 %v2528
  %3655 = vmatpush1.bf16.msra.mxu0 %v2527
  %3656 = vmatprep.subr.bf16.mxu0 %v2532
  %3657 = vmatpush1.bf16.msra.mxu0 %v2531
  %3658 = vmatprep.subr.bf16.mxu0 %v2536
  %3659 = vmatpush1.bf16.msra.mxu0 %v2535
  %3660 = vmatprep.subr.bf16.mxu0 %v2540
  %3661 = vmatpush1.bf16.msra.mxu0 %v2539
  %3662 = vmatprep.subr.bf16.mxu0 %v2544
  %3663 = vmatpush1.bf16.msra.mxu0 %v2543
  %3664 = vmatprep.subr.bf16.mxu0 %v2548
  %3665 = vmatpush1.bf16.msra.mxu0 %v2547
  %3666 = vmatprep.subr.bf16.mxu0 %v2552
  %3667 = vmatpush1.bf16.msra.mxu0 %v2551
  %3668 = vmatprep.subr.bf16.mxu0 %v2556
  %3669 = vmatpush1.bf16.msra.mxu0 %v2555
  %3670 = vmatprep.subr.bf16.mxu0 %v2560
  %3671 = vmatpush1.bf16.msra.mxu0 %v2559
  %3672 = vmatprep.subr.bf16.mxu0 %v2564
  %3673 = vmatpush1.bf16.msra.mxu0 %v2563
  %3674 = vmatprep.subr.bf16.mxu0 %v2568
  %3675 = vmatpush1.bf16.msra.mxu0 %v2567
  %3676 = vmatprep.subr.bf16.mxu0 %v2572
  %3677 = vmatpush1.bf16.msra.mxu0 %v2571
  %3678 = vmatprep.subr.bf16.mxu0 %v2576
  %3679 = vmatpush1.bf16.msra.mxu0 %v2575
  %3680 = vmatprep.subr.bf16.mxu0 %v2580
  %3681 = vmatpush1.bf16.msra.mxu0 %v2579
  %3682 = vmatprep.mubr.bf16.mxu0 %v694
  %3683 = vmatmul.mubr.bf16.gmra.mrb[0].mxu0 %v693
  %v3684 = vpop.f32.mrb[0].mxu0
  %v3685 = vadd.f32 %v3642, %v3684
  %v3686 = vpop.f32.mrb[0].mxu0
  %v3687 = vadd.f32 %v3644, %v3686
  %v3688 = vpop.f32.mrb[0].mxu0
  %v3689 = vadd.f32 %v3646, %v3688
  %v3690 = vpop.f32.mrb[0].mxu0
  %v3691 = vadd.f32 %v3648, %v3690
  %3692 = vdwg.mxu0
  %3693 = vmatprep.subr.bf16.mxu0 %v2584
  %3694 = vmatpush1.bf16.msra.mxu0 %v2583
  %3695 = vmatprep.subr.bf16.mxu0 %v2588
  %3696 = vmatpush1.bf16.msra.mxu0 %v2587
  %3697 = vmatprep.subr.bf16.mxu0 %v2592
  %3698 = vmatpush1.bf16.msra.mxu0 %v2591
  %3699 = vmatprep.subr.bf16.mxu0 %v2596
  %3700 = vmatpush1.bf16.msra.mxu0 %v2595
  %3701 = vmatprep.subr.bf16.mxu0 %v2600
  %3702 = vmatpush1.bf16.msra.mxu0 %v2599
  %3703 = vmatprep.subr.bf16.mxu0 %v2604
  %3704 = vmatpush1.bf16.msra.mxu0 %v2603
  %3705 = vmatprep.subr.bf16.mxu0 %v2608
  %3706 = vmatpush1.bf16.msra.mxu0 %v2607
  %3707 = vmatprep.subr.bf16.mxu0 %v2612
  %3708 = vmatpush1.bf16.msra.mxu0 %v2611
  %3709 = vmatprep.subr.bf16.mxu0 %v2616
  %3710 = vmatpush1.bf16.msra.mxu0 %v2615
  %3711 = vmatprep.subr.bf16.mxu0 %v2620
  %3712 = vmatpush1.bf16.msra.mxu0 %v2619
  %3713 = vmatprep.subr.bf16.mxu0 %v2624
  %3714 = vmatpush1.bf16.msra.mxu0 %v2623
  %3715 = vmatprep.subr.bf16.mxu0 %v2628
  %3716 = vmatpush1.bf16.msra.mxu0 %v2627
  %3717 = vmatprep.subr.bf16.mxu0 %v2632
  %3718 = vmatpush1.bf16.msra.mxu0 %v2631
  %3719 = vmatprep.subr.bf16.mxu0 %v2636
  %3720 = vmatpush1.bf16.msra.mxu0 %v2635
  %3721 = vmatprep.subr.bf16.mxu0 %v2640
  %3722 = vmatpush1.bf16.msra.mxu0 %v2639
  %3723 = vmatprep.subr.bf16.mxu0 %v2644
  %3724 = vmatpush1.bf16.msra.mxu0 %v2643
  %3725 = vmatprep.mubr.bf16.mxu0 %v696
  %3726 = vmatmul.mubr.bf16.gmra.mrb[0].mxu0 %v695
  %v3727 = vpop.f32.mrb[0].mxu0
  %v3728 = vadd.f32 %v3685, %v3727
  %v3729 = vpop.f32.mrb[0].mxu0
  %v3730 = vadd.f32 %v3687, %v3729
  %v3731 = vpop.f32.mrb[0].mxu0
  %v3732 = vadd.f32 %v3689, %v3731
  %v3733 = vpop.f32.mrb[0].mxu0
  %v3734 = vadd.f32 %v3691, %v3733
  %3735 = vdwg.mxu0
  %3736 = vmatprep.subr.bf16.mxu0 %v2648
  %3737 = vmatpush1.bf16.msra.mxu0 %v2647
  %3738 = vmatprep.subr.bf16.mxu0 %v2652
  %3739 = vmatpush1.bf16.msra.mxu0 %v2651
  %3740 = vmatprep.subr.bf16.mxu0 %v2656
  %3741 = vmatpush1.bf16.msra.mxu0 %v2655
  %3742 = vmatprep.subr.bf16.mxu0 %v2660
  %3743 = vmatpush1.bf16.msra.mxu0 %v2659
  %3744 = vmatprep.subr.bf16.mxu0 %v2664
  %3745 = vmatpush1.bf16.msra.mxu0 %v2663
  %3746 = vmatprep.subr.bf16.mxu0 %v2668
  %3747 = vmatpush1.bf16.msra.mxu0 %v2667
  %3748 = vmatprep.subr.bf16.mxu0 %v2672
  %3749 = vmatpush1.bf16.msra.mxu0 %v2671
  %3750 = vmatprep.subr.bf16.mxu0 %v2676
  %3751 = vmatpush1.bf16.msra.mxu0 %v2675
  %3752 = vmatprep.subr.bf16.mxu0 %v2680
  %3753 = vmatpush1.bf16.msra.mxu0 %v2679
  %3754 = vmatprep.subr.bf16.mxu0 %v2684
  %3755 = vmatpush1.bf16.msra.mxu0 %v2683
  %3756 = vmatprep.subr.bf16.mxu0 %v2688
  %3757 = vmatpush1.bf16.msra.mxu0 %v2687
  %3758 = vmatprep.subr.bf16.mxu0 %v2692
  %3759 = vmatpush1.bf16.msra.mxu0 %v2691
  %3760 = vmatprep.subr.bf16.mxu0 %v2696
  %3761 = vmatpush1.bf16.msra.mxu0 %v2695
  %3762 = vmatprep.subr.bf16.mxu0 %v2700
  %3763 = vmatpush1.bf16.msra.mxu0 %v2699
  %3764 = vmatprep.subr.bf16.mxu0 %v2704
  %3765 = vmatpush1.bf16.msra.mxu0 %v2703
  %3766 = vmatprep.subr.bf16.mxu0 %v2708
  %3767 = vmatpush1.bf16.msra.mxu0 %v2707
  %3768 = vmatprep.mubr.bf16.mxu0 %v698
  %3769 = vmatmul.mubr.bf16.gmra.mrb[0].mxu0 %v697
  %v3770 = vpop.f32.mrb[0].mxu0
  %v3771 = vadd.f32 %v3728, %v3770
  %v3772 = vpop.f32.mrb[0].mxu0
  %v3773 = vadd.f32 %v3730, %v3772
  %v3774 = vpop.f32.mrb[0].mxu0
  %v3775 = vadd.f32 %v3732, %v3774
  %v3776 = vpop.f32.mrb[0].mxu0
  %v3777 = vadd.f32 %v3734, %v3776
  %3778 = vdwg.mxu0
  %3779 = vmatprep.subr.bf16.mxu0 %v2712
  %3780 = vmatpush1.bf16.msra.mxu0 %v2711
  %3781 = vmatprep.subr.bf16.mxu0 %v2716
  %3782 = vmatpush1.bf16.msra.mxu0 %v2715
  %3783 = vmatprep.subr.bf16.mxu0 %v2720
  %3784 = vmatpush1.bf16.msra.mxu0 %v2719
  %3785 = vmatprep.subr.bf16.mxu0 %v2724
  %3786 = vmatpush1.bf16.msra.mxu0 %v2723
  %3787 = vmatprep.subr.bf16.mxu0 %v2728
  %3788 = vmatpush1.bf16.msra.mxu0 %v2727
  %3789 = vmatprep.subr.bf16.mxu0 %v2732
  %3790 = vmatpush1.bf16.msra.mxu0 %v2731
  %3791 = vmatprep.subr.bf16.mxu0 %v2736
  %3792 = vmatpush1.bf16.msra.mxu0 %v2735
  %3793 = vmatprep.subr.bf16.mxu0 %v2740
  %3794 = vmatpush1.bf16.msra.mxu0 %v2739
  %3795 = vmatprep.subr.bf16.mxu0 %v2744
  %3796 = vmatpush1.bf16.msra.mxu0 %v2743
  %3797 = vmatprep.subr.bf16.mxu0 %v2748
  %3798 = vmatpush1.bf16.msra.mxu0 %v2747
  %3799 = vmatprep.subr.bf16.mxu0 %v2752
  %3800 = vmatpush1.bf16.msra.mxu0 %v2751
  %3801 = vmatprep.subr.bf16.mxu0 %v2756
  %3802 = vmatpush1.bf16.msra.mxu0 %v2755
  %3803 = vmatprep.subr.bf16.mxu0 %v2760
  %3804 = vmatpush1.bf16.msra.mxu0 %v2759
  %3805 = vmatprep.subr.bf16.mxu0 %v2764
  %3806 = vmatpush1.bf16.msra.mxu0 %v2763
  %3807 = vmatprep.subr.bf16.mxu0 %v2768
  %3808 = vmatpush1.bf16.msra.mxu0 %v2767
  %3809 = vmatprep.subr.bf16.mxu0 %v2772
  %3810 = vmatpush1.bf16.msra.mxu0 %v2771
  %3811 = vmatprep.mubr.bf16.mxu0 %v700
  %3812 = vmatmul.mubr.bf16.gmra.mrb[0].mxu0 %v699
  %v3813 = vpop.f32.mrb[0].mxu0
  %v3814 = vadd.f32 %v3771, %v3813
  %v3815 = vpop.f32.mrb[0].mxu0
  %v3816 = vadd.f32 %v3773, %v3815
  %v3817 = vpop.f32.mrb[0].mxu0
  %v3818 = vadd.f32 %v3775, %v3817
  %v3819 = vpop.f32.mrb[0].mxu0
  %v3820 = vadd.f32 %v3777, %v3819
  %3821 = vdwg.mxu0
  %3822 = vmatprep.subr.bf16.mxu0 %v2776
  %3823 = vmatpush1.bf16.msra.mxu0 %v2775
  %3824 = vmatprep.subr.bf16.mxu0 %v2780
  %3825 = vmatpush1.bf16.msra.mxu0 %v2779
  %3826 = vmatprep.subr.bf16.mxu0 %v2784
  %3827 = vmatpush1.bf16.msra.mxu0 %v2783
  %3828 = vmatprep.subr.bf16.mxu0 %v2788
  %3829 = vmatpush1.bf16.msra.mxu0 %v2787
  %3830 = vmatprep.subr.bf16.mxu0 %v2792
  %3831 = vmatpush1.bf16.msra.mxu0 %v2791
  %3832 = vmatprep.subr.bf16.mxu0 %v2796
  %3833 = vmatpush1.bf16.msra.mxu0 %v2795
  %3834 = vmatprep.subr.bf16.mxu0 %v2800
  %3835 = vmatpush1.bf16.msra.mxu0 %v2799
  %3836 = vmatprep.subr.bf16.mxu0 %v2804
  %3837 = vmatpush1.bf16.msra.mxu0 %v2803
  %3838 = vmatprep.subr.bf16.mxu0 %v2808
  %3839 = vmatpush1.bf16.msra.mxu0 %v2807
  %3840 = vmatprep.subr.bf16.mxu0 %v2812
  %3841 = vmatpush1.bf16.msra.mxu0 %v2811
  %3842 = vmatprep.subr.bf16.mxu0 %v2816
  %3843 = vmatpush1.bf16.msra.mxu0 %v2815
  %3844 = vmatprep.subr.bf16.mxu0 %v2820
  %3845 = vmatpush1.bf16.msra.mxu0 %v2819
  %3846 = vmatprep.subr.bf16.mxu0 %v2824
  %3847 = vmatpush1.bf16.msra.mxu0 %v2823
  %3848 = vmatprep.subr.bf16.mxu0 %v2828
  %3849 = vmatpush1.bf16.msra.mxu0 %v2827
  %3850 = vmatprep.subr.bf16.mxu0 %v2832
  %3851 = vmatpush1.bf16.msra.mxu0 %v2831
  %3852 = vmatprep.subr.bf16.mxu0 %v2836
  %3853 = vmatpush1.bf16.msra.mxu0 %v2835
  %3854 = vmatprep.mubr.bf16.mxu0 %v702
  %3855 = vmatmul.mubr.bf16.gmra.mrb[0].mxu0 %v701
  %v3856 = vpop.f32.mrb[0].mxu0
  %v3857 = vadd.f32 %v3814, %v3856
  %v3858 = vpop.f32.mrb[0].mxu0
  %v3859 = vadd.f32 %v3816, %v3858
  %v3860 = vpop.f32.mrb[0].mxu0
  %v3861 = vadd.f32 %v3818, %v3860
  %v3862 = vpop.f32.mrb[0].mxu0
  %v3863 = vadd.f32 %v3820, %v3862
  %3864 = vdwg.mxu0
  %3865 = vmatprep.subr.bf16.mxu0 %v2840
  %3866 = vmatpush1.bf16.msra.mxu0 %v2839
  %3867 = vmatprep.subr.bf16.mxu0 %v2844
  %3868 = vmatpush1.bf16.msra.mxu0 %v2843
  %3869 = vmatprep.subr.bf16.mxu0 %v2848
  %3870 = vmatpush1.bf16.msra.mxu0 %v2847
  %3871 = vmatprep.subr.bf16.mxu0 %v2852
  %3872 = vmatpush1.bf16.msra.mxu0 %v2851
  %3873 = vmatprep.subr.bf16.mxu0 %v2856
  %3874 = vmatpush1.bf16.msra.mxu0 %v2855
  %3875 = vmatprep.subr.bf16.mxu0 %v2860
  %3876 = vmatpush1.bf16.msra.mxu0 %v2859
  %3877 = vmatprep.subr.bf16.mxu0 %v2864
  %3878 = vmatpush1.bf16.msra.mxu0 %v2863
  %3879 = vmatprep.subr.bf16.mxu0 %v2868
  %3880 = vmatpush1.bf16.msra.mxu0 %v2867
  %3881 = vmatprep.subr.bf16.mxu0 %v2872
  %3882 = vmatpush1.bf16.msra.mxu0 %v2871
  %3883 = vmatprep.subr.bf16.mxu0 %v2876
  %3884 = vmatpush1.bf16.msra.mxu0 %v2875
  %3885 = vmatprep.subr.bf16.mxu0 %v2880
  %3886 = vmatpush1.bf16.msra.mxu0 %v2879
  %3887 = vmatprep.subr.bf16.mxu0 %v2884
  %3888 = vmatpush1.bf16.msra.mxu0 %v2883
  %3889 = vmatprep.subr.bf16.mxu0 %v2888
  %3890 = vmatpush1.bf16.msra.mxu0 %v2887
  %3891 = vmatprep.subr.bf16.mxu0 %v2892
  %3892 = vmatpush1.bf16.msra.mxu0 %v2891
  %3893 = vmatprep.subr.bf16.mxu0 %v2896
  %3894 = vmatpush1.bf16.msra.mxu0 %v2895
  %3895 = vmatprep.subr.bf16.mxu0 %v2900
  %3896 = vmatpush1.bf16.msra.mxu0 %v2899
  %3897 = vmatprep.mubr.bf16.mxu0 %v704
  %3898 = vmatmul.mubr.bf16.gmra.mrb[0].mxu0 %v703
  %v3899 = vpop.f32.mrb[0].mxu0
  %v3900 = vadd.f32 %v3857, %v3899
  %v3901 = vpop.f32.mrb[0].mxu0
  %v3902 = vadd.f32 %v3859, %v3901
  %v3903 = vpop.f32.mrb[0].mxu0
  %v3904 = vadd.f32 %v3861, %v3903
  %v3905 = vpop.f32.mrb[0].mxu0
  %v3906 = vadd.f32 %v3863, %v3905
  %3907 = vdwg.mxu0
  %3908 = vmatprep.subr.bf16.mxu0 %v2904
  %3909 = vmatpush1.bf16.msra.mxu0 %v2903
  %3910 = vmatprep.subr.bf16.mxu0 %v2908
  %3911 = vmatpush1.bf16.msra.mxu0 %v2907
  %3912 = vmatprep.subr.bf16.mxu0 %v2912
  %3913 = vmatpush1.bf16.msra.mxu0 %v2911
  %3914 = vmatprep.subr.bf16.mxu0 %v2916
  %3915 = vmatpush1.bf16.msra.mxu0 %v2915
  %3916 = vmatprep.subr.bf16.mxu0 %v2920
  %3917 = vmatpush1.bf16.msra.mxu0 %v2919
  %3918 = vmatprep.subr.bf16.mxu0 %v2924
  %3919 = vmatpush1.bf16.msra.mxu0 %v2923
  %3920 = vmatprep.subr.bf16.mxu0 %v2928
  %3921 = vmatpush1.bf16.msra.mxu0 %v2927
  %3922 = vmatprep.subr.bf16.mxu0 %v2932
  %3923 = vmatpush1.bf16.msra.mxu0 %v2931
  %3924 = vmatprep.subr.bf16.mxu0 %v2936
  %3925 = vmatpush1.bf16.msra.mxu0 %v2935
  %3926 = vmatprep.subr.bf16.mxu0 %v2940
  %3927 = vmatpush1.bf16.msra.mxu0 %v2939
  %3928 = vmatprep.subr.bf16.mxu0 %v2944
  %3929 = vmatpush1.bf16.msra.mxu0 %v2943
  %3930 = vmatprep.subr.bf16.mxu0 %v2948
  %3931 = vmatpush1.bf16.msra.mxu0 %v2947
  %3932 = vmatprep.subr.bf16.mxu0 %v2952
  %3933 = vmatpush1.bf16.msra.mxu0 %v2951
  %3934 = vmatprep.subr.bf16.mxu0 %v2956
  %3935 = vmatpush1.bf16.msra.mxu0 %v2955
  %3936 = vmatprep.subr.bf16.mxu0 %v2960
  %3937 = vmatpush1.bf16.msra.mxu0 %v2959
  %3938 = vmatprep.subr.bf16.mxu0 %v2964
  %3939 = vmatpush1.bf16.msra.mxu0 %v2963
  %3940 = vmatprep.mubr.bf16.mxu0 %v706
  %3941 = vmatmul.mubr.bf16.gmra.mrb[0].mxu0 %v705
  %v3942 = vpop.f32.mrb[0].mxu0
  %v3943 = vadd.f32 %v3900, %v3942
  %v3944 = vpop.f32.mrb[0].mxu0
  %v3945 = vadd.f32 %v3902, %v3944
  %v3946 = vpop.f32.mrb[0].mxu0
  %v3947 = vadd.f32 %v3904, %v3946
  %v3948 = vpop.f32.mrb[0].mxu0
  %v3949 = vadd.f32 %v3906, %v3948
  %3950 = vdwg.mxu0
  %3951 = vmatprep.subr.bf16.mxu0 %v2968
  %3952 = vmatpush1.bf16.msra.mxu0 %v2967
  %3953 = vmatprep.subr.bf16.mxu0 %v2972
  %3954 = vmatpush1.bf16.msra.mxu0 %v2971
  %3955 = vmatprep.subr.bf16.mxu0 %v2976
  %3956 = vmatpush1.bf16.msra.mxu0 %v2975
  %3957 = vmatprep.subr.bf16.mxu0 %v2980
  %3958 = vmatpush1.bf16.msra.mxu0 %v2979
  %3959 = vmatprep.subr.bf16.mxu0 %v2984
  %3960 = vmatpush1.bf16.msra.mxu0 %v2983
  %3961 = vmatprep.subr.bf16.mxu0 %v2988
  %3962 = vmatpush1.bf16.msra.mxu0 %v2987
  %3963 = vmatprep.subr.bf16.mxu0 %v2992
  %3964 = vmatpush1.bf16.msra.mxu0 %v2991
  %3965 = vmatprep.subr.bf16.mxu0 %v2996
  %3966 = vmatpush1.bf16.msra.mxu0 %v2995
  %3967 = vmatprep.subr.bf16.mxu0 %v3000
  %3968 = vmatpush1.bf16.msra.mxu0 %v2999
  %3969 = vmatprep.subr.bf16.mxu0 %v3004
  %3970 = vmatpush1.bf16.msra.mxu0 %v3003
  %3971 = vmatprep.subr.bf16.mxu0 %v3008
  %3972 = vmatpush1.bf16.msra.mxu0 %v3007
  %3973 = vmatprep.subr.bf16.mxu0 %v3012
  %3974 = vmatpush1.bf16.msra.mxu0 %v3011
  %3975 = vmatprep.subr.bf16.mxu0 %v3016
  %3976 = vmatpush1.bf16.msra.mxu0 %v3015
  %3977 = vmatprep.subr.bf16.mxu0 %v3020
  %3978 = vmatpush1.bf16.msra.mxu0 %v3019
  %3979 = vmatprep.subr.bf16.mxu0 %v3024
  %3980 = vmatpush1.bf16.msra.mxu0 %v3023
  %3981 = vmatprep.subr.bf16.mxu0 %v3028
  %3982 = vmatpush1.bf16.msra.mxu0 %v3027
  %3983 = vmatprep.mubr.bf16.mxu0 %v708
  %3984 = vmatmul.mubr.bf16.gmra.mrb[0].mxu0 %v707
  %v3985 = vpop.f32.mrb[0].mxu0
  %v3986 = vadd.f32 %v3943, %v3985
  %v3987 = vpop.f32.mrb[0].mxu0
  %v3988 = vadd.f32 %v3945, %v3987
  %v3989 = vpop.f32.mrb[0].mxu0
  %v3990 = vadd.f32 %v3947, %v3989
  %v3991 = vpop.f32.mrb[0].mxu0
  %v3992 = vadd.f32 %v3949, %v3991
  %3993 = vdwg.mxu0
  %3994 = vmatprep.subr.bf16.mxu0 %v2458
  %3995 = vmatpush1.bf16.msra.mxu0 %v2457
  %3996 = vmatprep.subr.bf16.mxu0 %v2462
  %3997 = vmatpush1.bf16.msra.mxu0 %v2461
  %3998 = vmatprep.subr.bf16.mxu0 %v2466
  %3999 = vmatpush1.bf16.msra.mxu0 %v2465
  %4000 = vmatprep.subr.bf16.mxu0 %v2470
  %4001 = vmatpush1.bf16.msra.mxu0 %v2469
  %4002 = vmatprep.subr.bf16.mxu0 %v2474
  %4003 = vmatpush1.bf16.msra.mxu0 %v2473
  %4004 = vmatprep.subr.bf16.mxu0 %v2478
  %4005 = vmatpush1.bf16.msra.mxu0 %v2477
  %4006 = vmatprep.subr.bf16.mxu0 %v2482
  %4007 = vmatpush1.bf16.msra.mxu0 %v2481
  %4008 = vmatprep.subr.bf16.mxu0 %v2486
  %4009 = vmatpush1.bf16.msra.mxu0 %v2485
  %4010 = vmatprep.subr.bf16.mxu0 %v2490
  %4011 = vmatpush1.bf16.msra.mxu0 %v2489
  %4012 = vmatprep.subr.bf16.mxu0 %v2494
  %4013 = vmatpush1.bf16.msra.mxu0 %v2493
  %4014 = vmatprep.subr.bf16.mxu0 %v2498
  %4015 = vmatpush1.bf16.msra.mxu0 %v2497
  %4016 = vmatprep.subr.bf16.mxu0 %v2502
  %4017 = vmatpush1.bf16.msra.mxu0 %v2501
  %4018 = vmatprep.subr.bf16.mxu0 %v2506
  %4019 = vmatpush1.bf16.msra.mxu0 %v2505
  %4020 = vmatprep.subr.bf16.mxu0 %v2510
  %4021 = vmatpush1.bf16.msra.mxu0 %v2509
  %4022 = vmatprep.subr.bf16.mxu0 %v2514
  %4023 = vmatpush1.bf16.msra.mxu0 %v2513
  %4024 = vmatprep.subr.bf16.mxu0 %v2518
  %4025 = vmatpush1.bf16.msra.mxu0 %v2517
  %4026 = vmatprep.mubr.bf16.mxu0 %v692
  %4027 = vmatmul.mubr.bf16.gmra.mrb[0].mxu0 %v691
  %v4028 = vpop.f32.mrb[0].mxu0
  %v4029 = vadd.f32 %v628, %v4028
  %v4030 = vpop.f32.mrb[0].mxu0
  %v4031 = vadd.f32 %v632, %v4030
  %v4032 = vpop.f32.mrb[0].mxu0
  %v4033 = vadd.f32 %v628, %v4032
  %v4034 = vpop.f32.mrb[0].mxu0
  %v4035 = vadd.f32 %v632, %v4034
  %4036 = vdwg.mxu0
  %4037 = vmatprep.subr.bf16.mxu0 %v2522
  %4038 = vmatpush1.bf16.msra.mxu0 %v2521
  %4039 = vmatprep.subr.bf16.mxu0 %v2526
  %4040 = vmatpush1.bf16.msra.mxu0 %v2525
  %4041 = vmatprep.subr.bf16.mxu0 %v2530
  %4042 = vmatpush1.bf16.msra.mxu0 %v2529
  %4043 = vmatprep.subr.bf16.mxu0 %v2534
  %4044 = vmatpush1.bf16.msra.mxu0 %v2533
  %4045 = vmatprep.subr.bf16.mxu0 %v2538
  %4046 = vmatpush1.bf16.msra.mxu0 %v2537
  %4047 = vmatprep.subr.bf16.mxu0 %v2542
  %4048 = vmatpush1.bf16.msra.mxu0 %v2541
  %4049 = vmatprep.subr.bf16.mxu0 %v2546
  %4050 = vmatpush1.bf16.msra.mxu0 %v2545
  %4051 = vmatprep.subr.bf16.mxu0 %v2550
  %4052 = vmatpush1.bf16.msra.mxu0 %v2549
  %4053 = vmatprep.subr.bf16.mxu0 %v2554
  %4054 = vmatpush1.bf16.msra.mxu0 %v2553
  %4055 = vmatprep.subr.bf16.mxu0 %v2558
  %4056 = vmatpush1.bf16.msra.mxu0 %v2557
  %4057 = vmatprep.subr.bf16.mxu0 %v2562
  %4058 = vmatpush1.bf16.msra.mxu0 %v2561
  %4059 = vmatprep.subr.bf16.mxu0 %v2566
  %4060 = vmatpush1.bf16.msra.mxu0 %v2565
  %4061 = vmatprep.subr.bf16.mxu0 %v2570
  %4062 = vmatpush1.bf16.msra.mxu0 %v2569
  %4063 = vmatprep.subr.bf16.mxu0 %v2574
  %4064 = vmatpush1.bf16.msra.mxu0 %v2573
  %4065 = vmatprep.subr.bf16.mxu0 %v2578
  %4066 = vmatpush1.bf16.msra.mxu0 %v2577
  %4067 = vmatprep.subr.bf16.mxu0 %v2582
  %4068 = vmatpush1.bf16.msra.mxu0 %v2581
  %4069 = vmatprep.mubr.bf16.mxu0 %v694
  %4070 = vmatmul.mubr.bf16.gmra.mrb[0].mxu0 %v693
  %v4071 = vpop.f32.mrb[0].mxu0
  %v4072 = vadd.f32 %v4029, %v4071
  %v4073 = vpop.f32.mrb[0].mxu0
  %v4074 = vadd.f32 %v4031, %v4073
  %v4075 = vpop.f32.mrb[0].mxu0
  %v4076 = vadd.f32 %v4033, %v4075
  %v4077 = vpop.f32.mrb[0].mxu0
  %v4078 = vadd.f32 %v4035, %v4077
  %4079 = vdwg.mxu0
  %4080 = vmatprep.subr.bf16.mxu0 %v2586
  %4081 = vmatpush1.bf16.msra.mxu0 %v2585
  %4082 = vmatprep.subr.bf16.mxu0 %v2590
  %4083 = vmatpush1.bf16.msra.mxu0 %v2589
  %4084 = vmatprep.subr.bf16.mxu0 %v2594
  %4085 = vmatpush1.bf16.msra.mxu0 %v2593
  %4086 = vmatprep.subr.bf16.mxu0 %v2598
  %4087 = vmatpush1.bf16.msra.mxu0 %v2597
  %4088 = vmatprep.subr.bf16.mxu0 %v2602
  %4089 = vmatpush1.bf16.msra.mxu0 %v2601
  %4090 = vmatprep.subr.bf16.mxu0 %v2606
  %4091 = vmatpush1.bf16.msra.mxu0 %v2605
  %4092 = vmatprep.subr.bf16.mxu0 %v2610
  %4093 = vmatpush1.bf16.msra.mxu0 %v2609
  %4094 = vmatprep.subr.bf16.mxu0 %v2614
  %4095 = vmatpush1.bf16.msra.mxu0 %v2613
  %4096 = vmatprep.subr.bf16.mxu0 %v2618
  %4097 = vmatpush1.bf16.msra.mxu0 %v2617
  %4098 = vmatprep.subr.bf16.mxu0 %v2622
  %4099 = vmatpush1.bf16.msra.mxu0 %v2621
  %4100 = vmatprep.subr.bf16.mxu0 %v2626
  %4101 = vmatpush1.bf16.msra.mxu0 %v2625
  %4102 = vmatprep.subr.bf16.mxu0 %v2630
  %4103 = vmatpush1.bf16.msra.mxu0 %v2629
  %4104 = vmatprep.subr.bf16.mxu0 %v2634
  %4105 = vmatpush1.bf16.msra.mxu0 %v2633
  %4106 = vmatprep.subr.bf16.mxu0 %v2638
  %4107 = vmatpush1.bf16.msra.mxu0 %v2637
  %4108 = vmatprep.subr.bf16.mxu0 %v2642
  %4109 = vmatpush1.bf16.msra.mxu0 %v2641
  %4110 = vmatprep.subr.bf16.mxu0 %v2646
  %4111 = vmatpush1.bf16.msra.mxu0 %v2645
  %4112 = vmatprep.mubr.bf16.mxu0 %v696
  %4113 = vmatmul.mubr.bf16.gmra.mrb[0].mxu0 %v695
  %v4114 = vpop.f32.mrb[0].mxu0
  %v4115 = vadd.f32 %v4072, %v4114
  %v4116 = vpop.f32.mrb[0].mxu0
  %v4117 = vadd.f32 %v4074, %v4116
  %v4118 = vpop.f32.mrb[0].mxu0
  %v4119 = vadd.f32 %v4076, %v4118
  %v4120 = vpop.f32.mrb[0].mxu0
  %v4121 = vadd.f32 %v4078, %v4120
  %4122 = vdwg.mxu0
  %4123 = vmatprep.subr.bf16.mxu0 %v2650
  %4124 = vmatpush1.bf16.msra.mxu0 %v2649
  %4125 = vmatprep.subr.bf16.mxu0 %v2654
  %4126 = vmatpush1.bf16.msra.mxu0 %v2653
  %4127 = vmatprep.subr.bf16.mxu0 %v2658
  %4128 = vmatpush1.bf16.msra.mxu0 %v2657
  %4129 = vmatprep.subr.bf16.mxu0 %v2662
  %4130 = vmatpush1.bf16.msra.mxu0 %v2661
  %4131 = vmatprep.subr.bf16.mxu0 %v2666
  %4132 = vmatpush1.bf16.msra.mxu0 %v2665
  %4133 = vmatprep.subr.bf16.mxu0 %v2670
  %4134 = vmatpush1.bf16.msra.mxu0 %v2669
  %4135 = vmatprep.subr.bf16.mxu0 %v2674
  %4136 = vmatpush1.bf16.msra.mxu0 %v2673
  %4137 = vmatprep.subr.bf16.mxu0 %v2678
  %4138 = vmatpush1.bf16.msra.mxu0 %v2677
  %4139 = vmatprep.subr.bf16.mxu0 %v2682
  %4140 = vmatpush1.bf16.msra.mxu0 %v2681
  %4141 = vmatprep.subr.bf16.mxu0 %v2686
  %4142 = vmatpush1.bf16.msra.mxu0 %v2685
  %4143 = vmatprep.subr.bf16.mxu0 %v2690
  %4144 = vmatpush1.bf16.msra.mxu0 %v2689
  %4145 = vmatprep.subr.bf16.mxu0 %v2694
  %4146 = vmatpush1.bf16.msra.mxu0 %v2693
  %4147 = vmatprep.subr.bf16.mxu0 %v2698
  %4148 = vmatpush1.bf16.msra.mxu0 %v2697
  %4149 = vmatprep.subr.bf16.mxu0 %v2702
  %4150 = vmatpush1.bf16.msra.mxu0 %v2701
  %4151 = vmatprep.subr.bf16.mxu0 %v2706
  %4152 = vmatpush1.bf16.msra.mxu0 %v2705
  %4153 = vmatprep.subr.bf16.mxu0 %v2710
  %4154 = vmatpush1.bf16.msra.mxu0 %v2709
  %4155 = vmatprep.mubr.bf16.mxu0 %v698
  %4156 = vmatmul.mubr.bf16.gmra.mrb[0].mxu0 %v697
  %v4157 = vpop.f32.mrb[0].mxu0
  %v4158 = vadd.f32 %v4115, %v4157
  %v4159 = vpop.f32.mrb[0].mxu0
  %v4160 = vadd.f32 %v4117, %v4159
  %v4161 = vpop.f32.mrb[0].mxu0
  %v4162 = vadd.f32 %v4119, %v4161
  %v4163 = vpop.f32.mrb[0].mxu0
  %v4164 = vadd.f32 %v4121, %v4163
  %4165 = vdwg.mxu0
  %4166 = vmatprep.subr.bf16.mxu0 %v2714
  %4167 = vmatpush1.bf16.msra.mxu0 %v2713
  %4168 = vmatprep.subr.bf16.mxu0 %v2718
  %4169 = vmatpush1.bf16.msra.mxu0 %v2717
  %4170 = vmatprep.subr.bf16.mxu0 %v2722
  %4171 = vmatpush1.bf16.msra.mxu0 %v2721
  %4172 = vmatprep.subr.bf16.mxu0 %v2726
  %4173 = vmatpush1.bf16.msra.mxu0 %v2725
  %4174 = vmatprep.subr.bf16.mxu0 %v2730
  %4175 = vmatpush1.bf16.msra.mxu0 %v2729
  %4176 = vmatprep.subr.bf16.mxu0 %v2734
  %4177 = vmatpush1.bf16.msra.mxu0 %v2733
  %4178 = vmatprep.subr.bf16.mxu0 %v2738
  %4179 = vmatpush1.bf16.msra.mxu0 %v2737
  %4180 = vmatprep.subr.bf16.mxu0 %v2742
  %4181 = vmatpush1.bf16.msra.mxu0 %v2741
  %4182 = vmatprep.subr.bf16.mxu0 %v2746
  %4183 = vmatpush1.bf16.msra.mxu0 %v2745
  %4184 = vmatprep.subr.bf16.mxu0 %v2750
  %4185 = vmatpush1.bf16.msra.mxu0 %v2749
  %4186 = vmatprep.subr.bf16.mxu0 %v2754
  %4187 = vmatpush1.bf16.msra.mxu0 %v2753
  %4188 = vmatprep.subr.bf16.mxu0 %v2758
  %4189 = vmatpush1.bf16.msra.mxu0 %v2757
  %4190 = vmatprep.subr.bf16.mxu0 %v2762
  %4191 = vmatpush1.bf16.msra.mxu0 %v2761
  %4192 = vmatprep.subr.bf16.mxu0 %v2766
  %4193 = vmatpush1.bf16.msra.mxu0 %v2765
  %4194 = vmatprep.subr.bf16.mxu0 %v2770
  %4195 = vmatpush1.bf16.msra.mxu0 %v2769
  %4196 = vmatprep.subr.bf16.mxu0 %v2774
  %4197 = vmatpush1.bf16.msra.mxu0 %v2773
  %4198 = vmatprep.mubr.bf16.mxu0 %v700
  %4199 = vmatmul.mubr.bf16.gmra.mrb[0].mxu0 %v699
  %v4200 = vpop.f32.mrb[0].mxu0
  %v4201 = vadd.f32 %v4158, %v4200
  %v4202 = vpop.f32.mrb[0].mxu0
  %v4203 = vadd.f32 %v4160, %v4202
  %v4204 = vpop.f32.mrb[0].mxu0
  %v4205 = vadd.f32 %v4162, %v4204
  %v4206 = vpop.f32.mrb[0].mxu0
  %v4207 = vadd.f32 %v4164, %v4206
  %4208 = vdwg.mxu0
  %4209 = vmatprep.subr.bf16.mxu0 %v2778
  %4210 = vmatpush1.bf16.msra.mxu0 %v2777
  %4211 = vmatprep.subr.bf16.mxu0 %v2782
  %4212 = vmatpush1.bf16.msra.mxu0 %v2781
  %4213 = vmatprep.subr.bf16.mxu0 %v2786
  %4214 = vmatpush1.bf16.msra.mxu0 %v2785
  %4215 = vmatprep.subr.bf16.mxu0 %v2790
  %4216 = vmatpush1.bf16.msra.mxu0 %v2789
  %4217 = vmatprep.subr.bf16.mxu0 %v2794
  %4218 = vmatpush1.bf16.msra.mxu0 %v2793
  %4219 = vmatprep.subr.bf16.mxu0 %v2798
  %4220 = vmatpush1.bf16.msra.mxu0 %v2797
  %4221 = vmatprep.subr.bf16.mxu0 %v2802
  %4222 = vmatpush1.bf16.msra.mxu0 %v2801
  %4223 = vmatprep.subr.bf16.mxu0 %v2806
  %4224 = vmatpush1.bf16.msra.mxu0 %v2805
  %4225 = vmatprep.subr.bf16.mxu0 %v2810
  %4226 = vmatpush1.bf16.msra.mxu0 %v2809
  %4227 = vmatprep.subr.bf16.mxu0 %v2814
  %4228 = vmatpush1.bf16.msra.mxu0 %v2813
  %4229 = vmatprep.subr.bf16.mxu0 %v2818
  %4230 = vmatpush1.bf16.msra.mxu0 %v2817
  %4231 = vmatprep.subr.bf16.mxu0 %v2822
  %4232 = vmatpush1.bf16.msra.mxu0 %v2821
  %4233 = vmatprep.subr.bf16.mxu0 %v2826
  %4234 = vmatpush1.bf16.msra.mxu0 %v2825
  %4235 = vmatprep.subr.bf16.mxu0 %v2830
  %4236 = vmatpush1.bf16.msra.mxu0 %v2829
  %4237 = vmatprep.subr.bf16.mxu0 %v2834
  %4238 = vmatpush1.bf16.msra.mxu0 %v2833
  %4239 = vmatprep.subr.bf16.mxu0 %v2838
  %4240 = vmatpush1.bf16.msra.mxu0 %v2837
  %4241 = vmatprep.mubr.bf16.mxu0 %v702
  %4242 = vmatmul.mubr.bf16.gmra.mrb[0].mxu0 %v701
  %v4243 = vpop.f32.mrb[0].mxu0
  %v4244 = vadd.f32 %v4201, %v4243
  %v4245 = vpop.f32.mrb[0].mxu0
  %v4246 = vadd.f32 %v4203, %v4245
  %v4247 = vpop.f32.mrb[0].mxu0
  %v4248 = vadd.f32 %v4205, %v4247
  %v4249 = vpop.f32.mrb[0].mxu0
  %v4250 = vadd.f32 %v4207, %v4249
  %4251 = vdwg.mxu0
  %4252 = vmatprep.subr.bf16.mxu0 %v2842
  %4253 = vmatpush1.bf16.msra.mxu0 %v2841
  %4254 = vmatprep.subr.bf16.mxu0 %v2846
  %4255 = vmatpush1.bf16.msra.mxu0 %v2845
  %4256 = vmatprep.subr.bf16.mxu0 %v2850
  %4257 = vmatpush1.bf16.msra.mxu0 %v2849
  %4258 = vmatprep.subr.bf16.mxu0 %v2854
  %4259 = vmatpush1.bf16.msra.mxu0 %v2853
  %4260 = vmatprep.subr.bf16.mxu0 %v2858
  %4261 = vmatpush1.bf16.msra.mxu0 %v2857
  %4262 = vmatprep.subr.bf16.mxu0 %v2862
  %4263 = vmatpush1.bf16.msra.mxu0 %v2861
  %4264 = vmatprep.subr.bf16.mxu0 %v2866
  %4265 = vmatpush1.bf16.msra.mxu0 %v2865
  %4266 = vmatprep.subr.bf16.mxu0 %v2870
  %4267 = vmatpush1.bf16.msra.mxu0 %v2869
  %4268 = vmatprep.subr.bf16.mxu0 %v2874
  %4269 = vmatpush1.bf16.msra.mxu0 %v2873
  %4270 = vmatprep.subr.bf16.mxu0 %v2878
  %4271 = vmatpush1.bf16.msra.mxu0 %v2877
  %4272 = vmatprep.subr.bf16.mxu0 %v2882
  %4273 = vmatpush1.bf16.msra.mxu0 %v2881
  %4274 = vmatprep.subr.bf16.mxu0 %v2886
  %4275 = vmatpush1.bf16.msra.mxu0 %v2885
  %4276 = vmatprep.subr.bf16.mxu0 %v2890
  %4277 = vmatpush1.bf16.msra.mxu0 %v2889
  %4278 = vmatprep.subr.bf16.mxu0 %v2894
  %4279 = vmatpush1.bf16.msra.mxu0 %v2893
  %4280 = vmatprep.subr.bf16.mxu0 %v2898
  %4281 = vmatpush1.bf16.msra.mxu0 %v2897
  %4282 = vmatprep.subr.bf16.mxu0 %v2902
  %4283 = vmatpush1.bf16.msra.mxu0 %v2901
  %4284 = vmatprep.mubr.bf16.mxu0 %v704
  %4285 = vmatmul.mubr.bf16.gmra.mrb[0].mxu0 %v703
  %v4286 = vpop.f32.mrb[0].mxu0
  %v4287 = vadd.f32 %v4244, %v4286
  %v4288 = vpop.f32.mrb[0].mxu0
  %v4289 = vadd.f32 %v4246, %v4288
  %v4290 = vpop.f32.mrb[0].mxu0
  %v4291 = vadd.f32 %v4248, %v4290
  %v4292 = vpop.f32.mrb[0].mxu0
  %v4293 = vadd.f32 %v4250, %v4292
  %4294 = vdwg.mxu0
  %4295 = vmatprep.subr.bf16.mxu0 %v2906
  %4296 = vmatpush1.bf16.msra.mxu0 %v2905
  %4297 = vmatprep.subr.bf16.mxu0 %v2910
  %4298 = vmatpush1.bf16.msra.mxu0 %v2909
  %4299 = vmatprep.subr.bf16.mxu0 %v2914
  %4300 = vmatpush1.bf16.msra.mxu0 %v2913
  %4301 = vmatprep.subr.bf16.mxu0 %v2918
  %4302 = vmatpush1.bf16.msra.mxu0 %v2917
  %4303 = vmatprep.subr.bf16.mxu0 %v2922
  %4304 = vmatpush1.bf16.msra.mxu0 %v2921
  %4305 = vmatprep.subr.bf16.mxu0 %v2926
  %4306 = vmatpush1.bf16.msra.mxu0 %v2925
  %4307 = vmatprep.subr.bf16.mxu0 %v2930
  %4308 = vmatpush1.bf16.msra.mxu0 %v2929
  %4309 = vmatprep.subr.bf16.mxu0 %v2934
  %4310 = vmatpush1.bf16.msra.mxu0 %v2933
  %4311 = vmatprep.subr.bf16.mxu0 %v2938
  %4312 = vmatpush1.bf16.msra.mxu0 %v2937
  %4313 = vmatprep.subr.bf16.mxu0 %v2942
  %4314 = vmatpush1.bf16.msra.mxu0 %v2941
  %4315 = vmatprep.subr.bf16.mxu0 %v2946
  %4316 = vmatpush1.bf16.msra.mxu0 %v2945
  %4317 = vmatprep.subr.bf16.mxu0 %v2950
  %4318 = vmatpush1.bf16.msra.mxu0 %v2949
  %4319 = vmatprep.subr.bf16.mxu0 %v2954
  %4320 = vmatpush1.bf16.msra.mxu0 %v2953
  %4321 = vmatprep.subr.bf16.mxu0 %v2958
  %4322 = vmatpush1.bf16.msra.mxu0 %v2957
  %4323 = vmatprep.subr.bf16.mxu0 %v2962
  %4324 = vmatpush1.bf16.msra.mxu0 %v2961
  %4325 = vmatprep.subr.bf16.mxu0 %v2966
  %4326 = vmatpush1.bf16.msra.mxu0 %v2965
  %4327 = vmatprep.mubr.bf16.mxu0 %v706
  %4328 = vmatmul.mubr.bf16.gmra.mrb[0].mxu0 %v705
  %v4329 = vpop.f32.mrb[0].mxu0
  %v4330 = vadd.f32 %v4287, %v4329
  %v4331 = vpop.f32.mrb[0].mxu0
  %v4332 = vadd.f32 %v4289, %v4331
  %v4333 = vpop.f32.mrb[0].mxu0
  %v4334 = vadd.f32 %v4291, %v4333
  %v4335 = vpop.f32.mrb[0].mxu0
  %v4336 = vadd.f32 %v4293, %v4335
  %4337 = vdwg.mxu0
  %4338 = vmatprep.subr.bf16.mxu0 %v2970
  %4339 = vmatpush1.bf16.msra.mxu0 %v2969
  %4340 = vmatprep.subr.bf16.mxu0 %v2974
  %4341 = vmatpush1.bf16.msra.mxu0 %v2973
  %4342 = vmatprep.subr.bf16.mxu0 %v2978
  %4343 = vmatpush1.bf16.msra.mxu0 %v2977
  %4344 = vmatprep.subr.bf16.mxu0 %v2982
  %4345 = vmatpush1.bf16.msra.mxu0 %v2981
  %4346 = vmatprep.subr.bf16.mxu0 %v2986
  %4347 = vmatpush1.bf16.msra.mxu0 %v2985
  %4348 = vmatprep.subr.bf16.mxu0 %v2990
  %4349 = vmatpush1.bf16.msra.mxu0 %v2989
  %4350 = vmatprep.subr.bf16.mxu0 %v2994
  %4351 = vmatpush1.bf16.msra.mxu0 %v2993
  %4352 = vmatprep.subr.bf16.mxu0 %v2998
  %4353 = vmatpush1.bf16.msra.mxu0 %v2997
  %4354 = vmatprep.subr.bf16.mxu0 %v3002
  %4355 = vmatpush1.bf16.msra.mxu0 %v3001
  %4356 = vmatprep.subr.bf16.mxu0 %v3006
  %4357 = vmatpush1.bf16.msra.mxu0 %v3005
  %4358 = vmatprep.subr.bf16.mxu0 %v3010
  %4359 = vmatpush1.bf16.msra.mxu0 %v3009
  %4360 = vmatprep.subr.bf16.mxu0 %v3014
  %4361 = vmatpush1.bf16.msra.mxu0 %v3013
  %4362 = vmatprep.subr.bf16.mxu0 %v3018
  %4363 = vmatpush1.bf16.msra.mxu0 %v3017
  %4364 = vmatprep.subr.bf16.mxu0 %v3022
  %4365 = vmatpush1.bf16.msra.mxu0 %v3021
  %4366 = vmatprep.subr.bf16.mxu0 %v3026
  %4367 = vmatpush1.bf16.msra.mxu0 %v3025
  %4368 = vmatprep.subr.bf16.mxu0 %v3030
  %4369 = vmatpush1.bf16.msra.mxu0 %v3029
  %4370 = vmatprep.mubr.bf16.mxu0 %v708
  %4371 = vmatmul.mubr.bf16.gmra.mrb[0].mxu0 %v707
  %v4372 = vpop.f32.mrb[0].mxu0
  %v4373 = vadd.f32 %v4330, %v4372
  %v4374 = vpop.f32.mrb[0].mxu0
  %v4375 = vadd.f32 %v4332, %v4374
  %v4376 = vpop.f32.mrb[0].mxu0
  %v4377 = vadd.f32 %v4334, %v4376
  %v4378 = vpop.f32.mrb[0].mxu0
  %v4379 = vadd.f32 %v4336, %v4378
  %4380 = vdwg.mxu0
  %v4381 = vmax.f32 %v3986, 0.0
  %v4382 = vmax.f32 %v3988, 0.0
  %v4383 = vmax.f32 %v4373, 0.0
  %v4384 = vmax.f32 %v4375, 0.0
  %v4385 = vmax.f32 %v3990, 0.0
  %v4386 = vmax.f32 %v3992, 0.0
  %v4387 = vmax.f32 %v4377, 0.0
  %v4388 = vmax.f32 %v4379, 0.0
  %v4389 = vpack.c.bf16 %v4385, %v4381
  %v4390 = vpack.c.bf16 %v4386, %v4382
  %v4391 = vpack.c.bf16 %v4387, %v4383
  %v4392 = vpack.c.bf16 %v4388, %v4384
  %v4393 = vld [vmem:[%s3] sm:$0xf]
  %v4394 = vld [vmem:[%s3 + $0x4] sm:$0xf]
  %v4395 = vld [vmem:[%s3 + $0x8] sm:$0xf]
  %v4396 = vld [vmem:[%s3 + $0xc] sm:$0xf]
  %v4397 = vld [vmem:[%s3 + $0x10] sm:$0xf]
  %v4398 = vld [vmem:[%s3 + $0x14] sm:$0xf]
  %v4399 = vld [vmem:[%s3 + $0x18] sm:$0xf]
  %v4400 = vld [vmem:[%s3 + $0x1c] sm:$0xf]
  %v4401 = vld [vmem:[%s3 + $0x20] sm:$0xf]
  %v4402 = vld [vmem:[%s3 + $0x24] sm:$0xf]
  %v4403 = vld [vmem:[%s3 + $0x28] sm:$0xf]
  %v4404 = vld [vmem:[%s3 + $0x2c] sm:$0xf]
  %v4405 = vld [vmem:[%s3 + $0x30] sm:$0xf]
  %v4406 = vld [vmem:[%s3 + $0x34] sm:$0xf]
  %v4407 = vld [vmem:[%s3 + $0x38] sm:$0xf]
  %v4408 = vld [vmem:[%s3 + $0x3c] sm:$0xf]
  %v4409 = vld [vmem:[%s3 + $0x40] sm:$0xf]
  %v4410 = vld [vmem:[%s3 + $0x44] sm:$0xf]
  %v4411 = vld [vmem:[%s3 + $0x48] sm:$0xf]
  %v4412 = vld [vmem:[%s3 + $0x4c] sm:$0xf]
  %v4413 = vld [vmem:[%s3 + $0x50] sm:$0xf]
  %v4414 = vld [vmem:[%s3 + $0x54] sm:$0xf]
  %v4415 = vld [vmem:[%s3 + $0x58] sm:$0xf]
  %v4416 = vld [vmem:[%s3 + $0x5c] sm:$0xf]
  %v4417 = vld [vmem:[%s3 + $0x60] sm:$0xf]
  %v4418 = vld [vmem:[%s3 + $0x64] sm:$0xf]
  %v4419 = vld [vmem:[%s3 + $0x68] sm:$0xf]
  %v4420 = vld [vmem:[%s3 + $0x6c] sm:$0xf]
  %v4421 = vld [vmem:[%s3 + $0x70] sm:$0xf]
  %v4422 = vld [vmem:[%s3 + $0x74] sm:$0xf]
  %v4423 = vld [vmem:[%s3 + $0x78] sm:$0xf]
  %v4424 = vld [vmem:[%s3 + $0x7c] sm:$0xf]
  %v4425 = vld [vmem:[%s3 + $0x80] sm:$0xf]
  %v4426 = vld [vmem:[%s3 + $0x84] sm:$0xf]
  %v4427 = vld [vmem:[%s3 + $0x88] sm:$0xf]
  %v4428 = vld [vmem:[%s3 + $0x8c] sm:$0xf]
  %v4429 = vld [vmem:[%s3 + $0x90] sm:$0xf]
  %v4430 = vld [vmem:[%s3 + $0x94] sm:$0xf]
  %v4431 = vld [vmem:[%s3 + $0x98] sm:$0xf]
  %v4432 = vld [vmem:[%s3 + $0x9c] sm:$0xf]
  %v4433 = vld [vmem:[%s3 + $0xa0] sm:$0xf]
  %v4434 = vld [vmem:[%s3 + $0xa4] sm:$0xf]
  %v4435 = vld [vmem:[%s3 + $0xa8] sm:$0xf]
  %v4436 = vld [vmem:[%s3 + $0xac] sm:$0xf]
  %v4437 = vld [vmem:[%s3 + $0xb0] sm:$0xf]
  %v4438 = vld [vmem:[%s3 + $0xb4] sm:$0xf]
  %v4439 = vld [vmem:[%s3 + $0xb8] sm:$0xf]
  %v4440 = vld [vmem:[%s3 + $0xbc] sm:$0xf]
  %v4441 = vld [vmem:[%s3 + $0xc0] sm:$0xf]
  %v4442 = vld [vmem:[%s3 + $0xc4] sm:$0xf]
  %v4443 = vld [vmem:[%s3 + $0xc8] sm:$0xf]
  %v4444 = vld [vmem:[%s3 + $0xcc] sm:$0xf]
  %v4445 = vld [vmem:[%s3 + $0xd0] sm:$0xf]
  %v4446 = vld [vmem:[%s3 + $0xd4] sm:$0xf]
  %v4447 = vld [vmem:[%s3 + $0xd8] sm:$0xf]
  %v4448 = vld [vmem:[%s3 + $0xdc] sm:$0xf]
  %v4449 = vld [vmem:[%s3 + $0xe0] sm:$0xf]
  %v4450 = vld [vmem:[%s3 + $0xe4] sm:$0xf]
  %v4451 = vld [vmem:[%s3 + $0xe8] sm:$0xf]
  %v4452 = vld [vmem:[%s3 + $0xec] sm:$0xf]
  %v4453 = vld [vmem:[%s3 + $0xf0] sm:$0xf]
  %v4454 = vld [vmem:[%s3 + $0xf4] sm:$0xf]
  %v4455 = vld [vmem:[%s3 + $0xf8] sm:$0xf]
  %v4456 = vld [vmem:[%s3 + $0xfc] sm:$0xf]
  %v4457 = vld [vmem:[%s4] sm:$0x1]
  %v4459 = vlaneseq
  %v4460 = vshrl.u32 %v4459, 7
  %v4461 = vsub.s32 0, %v4460
  %v4462 = vrot.slane %v4457, %v4461
  %v4528 = vunpack.c.l.b16 %v4393
  %v4529 = vunpack.c.l.b16 %v4394
  %v4530 = vunpack.c.l.b16 %v4395
  %v4531 = vunpack.c.l.b16 %v4396
  %v4532 = vunpack.c.l.b16 %v4397
  %v4533 = vunpack.c.l.b16 %v4398
  %v4534 = vunpack.c.l.b16 %v4399
  %v4535 = vunpack.c.l.b16 %v4400
  %v4536 = vunpack.c.l.b16 %v4401
  %v4537 = vunpack.c.l.b16 %v4402
  %v4538 = vunpack.c.l.b16 %v4403
  %v4539 = vunpack.c.l.b16 %v4404
  %v4540 = vunpack.c.l.b16 %v4405
  %v4541 = vunpack.c.l.b16 %v4406
  %v4542 = vunpack.c.l.b16 %v4407
  %v4543 = vunpack.c.l.b16 %v4408
  %v4544 = vunpack.c.l.b16 %v4409
  %v4545 = vunpack.c.l.b16 %v4410
  %v4546 = vunpack.c.l.b16 %v4411
  %v4547 = vunpack.c.l.b16 %v4412
  %v4548 = vunpack.c.l.b16 %v4413
  %v4549 = vunpack.c.l.b16 %v4414
  %v4550 = vunpack.c.l.b16 %v4415
  %v4551 = vunpack.c.l.b16 %v4416
  %v4552 = vunpack.c.l.b16 %v4417
  %v4553 = vunpack.c.l.b16 %v4418
  %v4554 = vunpack.c.l.b16 %v4419
  %v4555 = vunpack.c.l.b16 %v4420
  %v4556 = vunpack.c.l.b16 %v4421
  %v4557 = vunpack.c.l.b16 %v4422
  %v4558 = vunpack.c.l.b16 %v4423
  %v4559 = vunpack.c.l.b16 %v4424
  %v4560 = vunpack.c.l.b16 %v4425
  %v4561 = vunpack.c.l.b16 %v4426
  %v4562 = vunpack.c.l.b16 %v4427
  %v4563 = vunpack.c.l.b16 %v4428
  %v4564 = vunpack.c.l.b16 %v4429
  %v4565 = vunpack.c.l.b16 %v4430
  %v4566 = vunpack.c.l.b16 %v4431
  %v4567 = vunpack.c.l.b16 %v4432
  %v4568 = vunpack.c.l.b16 %v4433
  %v4569 = vunpack.c.l.b16 %v4434
  %v4570 = vunpack.c.l.b16 %v4435
  %v4571 = vunpack.c.l.b16 %v4436
  %v4572 = vunpack.c.l.b16 %v4437
  %v4573 = vunpack.c.l.b16 %v4438
  %v4574 = vunpack.c.l.b16 %v4439
  %v4575 = vunpack.c.l.b16 %v4440
  %v4576 = vunpack.c.l.b16 %v4441
  %v4577 = vunpack.c.l.b16 %v4442
  %v4578 = vunpack.c.l.b16 %v4443
  %v4579 = vunpack.c.l.b16 %v4444
  %v4580 = vunpack.c.l.b16 %v4445
  %v4581 = vunpack.c.l.b16 %v4446
  %v4582 = vunpack.c.l.b16 %v4447
  %v4583 = vunpack.c.l.b16 %v4448
  %v4584 = vunpack.c.l.b16 %v4449
  %v4585 = vunpack.c.l.b16 %v4450
  %v4586 = vunpack.c.l.b16 %v4451
  %v4587 = vunpack.c.l.b16 %v4452
  %v4588 = vunpack.c.l.b16 %v4453
  %v4589 = vunpack.c.l.b16 %v4454
  %v4590 = vunpack.c.l.b16 %v4455
  %v4591 = vunpack.c.l.b16 %v4456
  %v4592 = vpack.c.b16 %v4529, %v4528
  %v4593 = vpack.c.b16 %v4531, %v4530
  %v4594 = vpack.c.b16 %v4533, %v4532
  %v4595 = vpack.c.b16 %v4535, %v4534
  %v4596 = vpack.c.b16 %v4537, %v4536
  %v4597 = vpack.c.b16 %v4539, %v4538
  %v4598 = vpack.c.b16 %v4541, %v4540
  %v4599 = vpack.c.b16 %v4543, %v4542
  %v4600 = vpack.c.b16 %v4545, %v4544
  %v4601 = vpack.c.b16 %v4547, %v4546
  %v4602 = vpack.c.b16 %v4549, %v4548
  %v4603 = vpack.c.b16 %v4551, %v4550
  %v4604 = vpack.c.b16 %v4553, %v4552
  %v4605 = vpack.c.b16 %v4555, %v4554
  %v4606 = vpack.c.b16 %v4557, %v4556
  %v4607 = vpack.c.b16 %v4559, %v4558
  %v4608 = vpack.c.b16 %v4561, %v4560
  %v4609 = vpack.c.b16 %v4563, %v4562
  %v4610 = vpack.c.b16 %v4565, %v4564
  %v4611 = vpack.c.b16 %v4567, %v4566
  %v4612 = vpack.c.b16 %v4569, %v4568
  %v4613 = vpack.c.b16 %v4571, %v4570
  %v4614 = vpack.c.b16 %v4573, %v4572
  %v4615 = vpack.c.b16 %v4575, %v4574
  %v4616 = vpack.c.b16 %v4577, %v4576
  %v4617 = vpack.c.b16 %v4579, %v4578
  %v4618 = vpack.c.b16 %v4581, %v4580
  %v4619 = vpack.c.b16 %v4583, %v4582
  %v4620 = vpack.c.b16 %v4585, %v4584
  %v4621 = vpack.c.b16 %v4587, %v4586
  %v4622 = vpack.c.b16 %v4589, %v4588
  %v4623 = vpack.c.b16 %v4591, %v4590
  %4656 = vmatprep.subr.bf16.mxu0 0
  %4657 = vmatpush1.bf16.msra.mxu0 %v4592
  %4658 = vmatprep.subr.bf16.mxu0 0
  %4659 = vmatpush1.bf16.msra.mxu0 %v4593
  %4660 = vmatprep.subr.bf16.mxu0 0
  %4661 = vmatpush1.bf16.msra.mxu0 %v4594
  %4662 = vmatprep.subr.bf16.mxu0 0
  %4663 = vmatpush1.bf16.msra.mxu0 %v4595
  %4664 = vmatprep.subr.bf16.mxu0 0
  %4665 = vmatpush1.bf16.msra.mxu0 %v4596
  %4666 = vmatprep.subr.bf16.mxu0 0
  %4667 = vmatpush1.bf16.msra.mxu0 %v4597
  %4668 = vmatprep.subr.bf16.mxu0 0
  %4669 = vmatpush1.bf16.msra.mxu0 %v4598
  %4670 = vmatprep.subr.bf16.mxu0 0
  %4671 = vmatpush1.bf16.msra.mxu0 %v4599
  %4672 = vmatprep.subr.bf16.mxu0 0
  %4673 = vmatpush1.bf16.msra.mxu0 %v4600
  %4674 = vmatprep.subr.bf16.mxu0 0
  %4675 = vmatpush1.bf16.msra.mxu0 %v4601
  %4676 = vmatprep.subr.bf16.mxu0 0
  %4677 = vmatpush1.bf16.msra.mxu0 %v4602
  %4678 = vmatprep.subr.bf16.mxu0 0
  %4679 = vmatpush1.bf16.msra.mxu0 %v4603
  %4680 = vmatprep.subr.bf16.mxu0 0
  %4681 = vmatpush1.bf16.msra.mxu0 %v4604
  %4682 = vmatprep.subr.bf16.mxu0 0
  %4683 = vmatpush1.bf16.msra.mxu0 %v4605
  %4684 = vmatprep.subr.bf16.mxu0 0
  %4685 = vmatpush1.bf16.msra.mxu0 %v4606
  %4686 = vmatprep.subr.bf16.mxu0 0
  %4687 = vmatpush1.bf16.msra.mxu0 %v4607
  %4688 = vmatprep.mubr.bf16.mxu0 %v4390
  %4689 = vmatmul.mubr.bf16.gmra.mrb[0].mxu0 %v4389
  %v4690 = vpop.f32.mrb[0].mxu0
  %v4691 = vadd.f32 %v4462, %v4690
  %v4692 = vpop.f32.mrb[0].mxu0
  %v4693 = vpop.f32.mrb[0].mxu0
  %v4694 = vadd.f32 %v4462, %v4693
  %v4695 = vpop.f32.mrb[0].mxu0
  %4696 = vdwg.mxu0
  %4697 = vmatprep.subr.bf16.mxu0 0
  %4698 = vmatpush1.bf16.msra.mxu0 %v4608
  %4699 = vmatprep.subr.bf16.mxu0 0
  %4700 = vmatpush1.bf16.msra.mxu0 %v4609
  %4701 = vmatprep.subr.bf16.mxu0 0
  %4702 = vmatpush1.bf16.msra.mxu0 %v4610
  %4703 = vmatprep.subr.bf16.mxu0 0
  %4704 = vmatpush1.bf16.msra.mxu0 %v4611
  %4705 = vmatprep.subr.bf16.mxu0 0
  %4706 = vmatpush1.bf16.msra.mxu0 %v4612
  %4707 = vmatprep.subr.bf16.mxu0 0
  %4708 = vmatpush1.bf16.msra.mxu0 %v4613
  %4709 = vmatprep.subr.bf16.mxu0 0
  %4710 = vmatpush1.bf16.msra.mxu0 %v4614
  %4711 = vmatprep.subr.bf16.mxu0 0
  %4712 = vmatpush1.bf16.msra.mxu0 %v4615
  %4713 = vmatprep.subr.bf16.mxu0 0
  %4714 = vmatpush1.bf16.msra.mxu0 %v4616
  %4715 = vmatprep.subr.bf16.mxu0 0
  %4716 = vmatpush1.bf16.msra.mxu0 %v4617
  %4717 = vmatprep.subr.bf16.mxu0 0
  %4718 = vmatpush1.bf16.msra.mxu0 %v4618
  %4719 = vmatprep.subr.bf16.mxu0 0
  %4720 = vmatpush1.bf16.msra.mxu0 %v4619
  %4721 = vmatprep.subr.bf16.mxu0 0
  %4722 = vmatpush1.bf16.msra.mxu0 %v4620
  %4723 = vmatprep.subr.bf16.mxu0 0
  %4724 = vmatpush1.bf16.msra.mxu0 %v4621
  %4725 = vmatprep.subr.bf16.mxu0 0
  %4726 = vmatpush1.bf16.msra.mxu0 %v4622
  %4727 = vmatprep.subr.bf16.mxu0 0
  %4728 = vmatpush1.bf16.msra.mxu0 %v4623
  %4729 = vmatprep.mubr.bf16.mxu0 %v4392
  %4730 = vmatmul.mubr.bf16.gmra.mrb[0].mxu0 %v4391
  %v4731 = vpop.f32.mrb[0].mxu0
  %v4732 = vadd.f32 %v4691, %v4731
  %v4733 = vpop.f32.mrb[0].mxu0
  %v4734 = vpop.f32.mrb[0].mxu0
  %v4735 = vadd.f32 %v4694, %v4734
  %v4736 = vpop.f32.mrb[0].mxu0
  %4737 = vdwg.mxu0
  %4738 = vst [vmem:[%s5] sm:$0xff] %v4732
  %4739 = vst [vmem:[%s5 + $0x8] sm:$0xff] %v4735
  // Predicated region
  $region22: #{forward.7} parent=0 // pred_check
    _
  $region23: #{forward.7} parent=0 // pred_check_branch
    %4741 = sbr.rel (0) target = $region25
  $region24: #{forward.7} parent=0 // pred_region
    _
  $region25: #{forward.7} parent=0 // pred_fallthru
    _
  // Predicated region
  $region26: #{forward.7} parent=0 // pred_check
    _
  $region27: #{forward.7} parent=0 // pred_check_branch
    %4743 = sbr.rel (0) target = $region29
  $region28: #{forward.7} parent=0 // pred_region
    _
  $region29: #{forward.7} parent=0 // pred_fallthru
    _

</llo_original>
